<compile_context>
chip_gen: v7x
topology: tpu7x:2x2x1
jax: 0.10.0
libtpu: 0.0.40
codegen_flags: <defaults>
</compile_context>

<pallas_src>
import functools

import jax
import jax.numpy as jnp
from jax.experimental import pallas as pl
from jax.experimental.pallas import tpu as pltpu

BN_EPS = 1e-5
LANES = 128            # channel padding target -> lane-dense MXU output / stores


def _round_up(v, m):
    return (v + m - 1) // m * m


def vanilla_block_pallas(x_nchw, params, *, stride):
    """Fused VanillaBlock forward.  x_nchw: (N, Cin, H, W) f32 -> (N, Cout, Ho, Wo) f32."""
    w_a, (ga, ba, ma, va) = params["a_w"], params["a_bn"]
    w_b, (gb, bb, mb, vb) = params["b_w"], params["b_bn"]

    N, Cin, H, W = x_nchw.shape
    Cout = w_a.shape[0]
    KH = KW = 3
    pad = 1
    Ho = (H + 2 * pad - KH) // stride + 1
    Wo = (W + 2 * pad - KW) // stride + 1
    Hp, Wp = H + 2 * pad, W + 2 * pad
    cin_p = _round_up(Cin, 8)
    CP = LANES
    assert Cout <= CP, "wider blocks would need channel tiling; not needed here"

    # ---------------- wrapper-side glue (XLA): layout, pad, BN fold, bf16 ----------------
    x = jnp.transpose(x_nchw, (0, 2, 3, 1)).astype(jnp.float32)            # NHWC
    xpad = jnp.pad(x, ((0, 0), (pad, pad), (pad, pad), (0, cin_p - Cin)))
    xpad = xpad.astype(jnp.bfloat16)                                       # (N, Hp, Wp, cin_p)

    # BN inference: y = conv(x)*scale + shift ; fold `scale` into the conv weights.
    sc_a = ga / jnp.sqrt(va + BN_EPS)
    sh_a = ba - ma * sc_a
    sc_b = gb / jnp.sqrt(vb + BN_EPS)
    sh_b = bb - mb * sc_b

    def prep_w(w_oihw, scale, cin_pad):
        # (Cout, Cin, KH, KW) -> per-tap (KH*KW, cin_pad, CP), BN scale folded in.
        ci = w_oihw.shape[1]
        wt = jnp.transpose(w_oihw, (2, 3, 1, 0)) * scale                   # (KH,KW,Ci,Co)
        wt = jnp.pad(wt, ((0, 0), (0, 0), (0, cin_pad - ci), (0, CP - Cout)))
        return wt.reshape(KH * KW, cin_pad, CP).astype(jnp.bfloat16)

    wa = prep_w(w_a, sc_a, cin_p)                                          # (9, cin_p, CP)
    wb = prep_w(w_b, sc_b, CP)                                             # (9, CP, CP)
    sha = jnp.pad(sh_a, (0, CP - Cout)).reshape(1, CP).astype(jnp.float32)
    shb = jnp.pad(sh_b, (0, CP - Cout)).reshape(1, CP).astype(jnp.float32)

    taps = [(i, j) for i in range(KH) for j in range(KW)]

    # ---------------- fused kernel (one image per grid step) ----------------
    def kernel(xp_ref, wa_ref, sha_ref, wb_ref, shb_ref, o_ref, xb_ref):
        # ---- conv a (3x3, stride=s) as 9 shifted matmuls, f32 accumulation ----
        xa = xp_ref[0]                                       # (Hp, Wp, cin_p) bf16
        acc = jnp.zeros((Ho * Wo, CP), jnp.float32)
        for t, (di, dj) in enumerate(taps):
            win = xa[di:di + stride * (Ho - 1) + 1:stride,
                     dj:dj + stride * (Wo - 1) + 1:stride, :]              # (Ho, Wo, cin_p)
            acc += jnp.dot(win.reshape(Ho * Wo, cin_p), wa_ref[t],
                           preferred_element_type=jnp.float32)
        # BN scale already folded into wa -> only shift + ReLU here.
        a_act = jnp.maximum(acc + sha_ref[...], 0.0)         # (Ho*Wo, CP) f32

        # ---- zero-pad the activation into VMEM scratch for conv b (pad=1) ----
        xb_ref[...] = jnp.zeros(xb_ref.shape, xb_ref.dtype)
        xb_ref[:, 1:Ho + 1, 1:Wo + 1, :] = (
            a_act.reshape(1, Ho, Wo, CP).astype(xb_ref.dtype))

        # ---- conv b (3x3, stride=1) as 9 shifted matmuls ----
        acc = jnp.zeros((Ho * Wo, CP), jnp.float32)
        for t, (di, dj) in enumerate(taps):
            win = xb_ref[0, di:di + Ho, dj:dj + Wo, :]       # (Ho, Wo, CP) bf16
            acc += jnp.dot(win.reshape(Ho * Wo, CP), wb_ref[t],
                           preferred_element_type=jnp.float32)
        o_ref[...] = jnp.maximum(acc + shb_ref[...], 0.0)    # lane-dense (Ho*Wo, 128) store

    out = pl.pallas_call(
        kernel,
        out_shape=jax.ShapeDtypeStruct((N * Ho * Wo, CP), jnp.float32),
        grid=(N,),
        in_specs=[
            pl.BlockSpec((1, Hp, Wp, cin_p), lambda n: (n, 0, 0, 0)),
            pl.BlockSpec((KH * KW, cin_p, CP), lambda n: (0, 0, 0)),
            pl.BlockSpec((1, CP), lambda n: (0, 0)),
            pl.BlockSpec((KH * KW, CP, CP), lambda n: (0, 0, 0)),
            pl.BlockSpec((1, CP), lambda n: (0, 0)),
        ],
        out_specs=pl.BlockSpec((Ho * Wo, CP), lambda n: (n, 0)),
        scratch_shapes=[pltpu.VMEM((1, Ho + 2, Wo + 2, CP), jnp.bfloat16)],
        compiler_params=pltpu.CompilerParams(
            dimension_semantics=("parallel",)),   # one image per step -> both v7x TCs busy
    )(xpad, wa, sha, wb, shb)

    y = out[:, :Cout].reshape(N, Ho, Wo, Cout)
    return jnp.transpose(y, (0, 3, 1, 2))                    # back to NCHW


# TODO(synk): training-mode BatchNorm (batch statistics + running-stat update) is not
# implemented; BN runs in inference mode with running stats folded into the weights.


# ---------------- pure-JAX reference (for correctness check) ----------------
def vanilla_block_reference(x_nchw, params, *, stride):
    def conv(x, w, s):
        return jax.lax.conv_general_dilated(
            x, w, window_strides=(s, s), padding=((1, 1), (1, 1)),
            dimension_numbers=("NCHW", "OIHW", "NCHW"))

    def bn_relu(y, bn):
        gamma, beta, mean, var = bn
        inv = gamma / jnp.sqrt(var + BN_EPS)
        y = y * inv[None, :, None, None] + (beta - mean * inv)[None, :, None, None]
        return jnp.maximum(y, 0.0)

    y = bn_relu(conv(x_nchw, params["a_w"], stride), params["a_bn"])
    y = bn_relu(conv(y, params["b_w"], 1), params["b_bn"])
    return y


# ---------------- deterministic parameter construction ----------------
def build_params(key, w_in, w_out):
    ks = jax.random.split(key, 4)

    def bn(k, c):
        k1, k2, k3, k4 = jax.random.split(k, 4)
        gamma = 1.0 + 0.1 * jax.random.normal(k1, (c,), jnp.float32)
        beta = 0.1 * jax.random.normal(k2, (c,), jnp.float32)
        mean = 0.1 * jax.random.normal(k3, (c,), jnp.float32)
        var = 1.0 + 0.1 * jax.random.uniform(k4, (c,), jnp.float32)
        return (gamma, beta, mean, var)

    return {
        "a_w": 0.1 * jax.random.normal(ks[0], (w_out, w_in, 3, 3), jnp.float32),
        "a_bn": bn(ks[1], w_out),
        "b_w": 0.1 * jax.random.normal(ks[2], (w_out, w_out, 3, 3), jnp.float32),
        "b_bn": bn(ks[3], w_out),
    }


# ----------------------------------------------------------------------------
if __name__ == "__main__":
    key = jax.random.PRNGKey(0)
    k_params, k_x = jax.random.split(key)

    # Small shapes consistent with the module: batch=2, w_in=4, 16x16 spatial, w_out=16.
    N, Cin, H, W = 2, 4, 16, 16
    Cout, stride = 16, 1
    x = jax.random.normal(k_x, (N, Cin, H, W), jnp.float32)       # NCHW, like PyTorch
    params = build_params(k_params, Cin, Cout)

    fwd = jax.jit(functools.partial(vanilla_block_pallas, stride=stride))
    out = fwd(x, params)
    jax.block_until_ready(out)

    assert out.shape == (N, Cout, H // stride, W // stride), out.shape
    assert bool(jnp.all(jnp.isfinite(out)))

    ref = vanilla_block_reference(x, params, stride=stride)
    max_err = float(jnp.max(jnp.abs(out - ref)))
    assert max_err < 5e-2, f"max abs err vs reference: {max_err}"

    print("KERNEL_OK")
</pallas_src>

<mosaic_0001>
module attributes {stable_mosaic.version = 11 : i64} {
  func.func @kernel(%arg0: i32, %arg1: memref<1x18x18x8xbf16, #tpu.memory_space<vmem>>, %arg2: memref<9x8x128xbf16, #tpu.memory_space<vmem>>, %arg3: memref<1x128xf32, #tpu.memory_space<vmem>>, %arg4: memref<9x128x128xbf16, #tpu.memory_space<vmem>>, %arg5: memref<1x128xf32, #tpu.memory_space<vmem>>, %arg6: memref<256x128xf32, #tpu.memory_space<vmem>>, %arg7: memref<1x18x18x128xbf16, #tpu.memory_space<vmem>>) attributes {dimension_semantics = [#tpu.dimension_semantics<parallel>], iteration_bounds = array<i64: 2>, scalar_prefetch = 0 : i64, scratch_operands = 1 : i64, tpu.core_type = #tpu.core_type<tc>, window_params = [{transform_indices = @transform_0, window_bounds = array<i64: 1, 18, 18, 8>}, {pipeline_mode = #tpu.pipeline_mode<synchronous>, transform_indices = @transform_1, window_bounds = array<i64: 9, 8, 128>}, {pipeline_mode = #tpu.pipeline_mode<synchronous>, transform_indices = @transform_2, window_bounds = array<i64: 1, 128>}, {pipeline_mode = #tpu.pipeline_mode<synchronous>, transform_indices = @transform_3, window_bounds = array<i64: 9, 128, 128>}, {pipeline_mode = #tpu.pipeline_mode<synchronous>, transform_indices = @transform_4, window_bounds = array<i64: 1, 128>}, {transform_indices = @transform_5, window_bounds = array<i64: 256, 128>}]} {
    %c0 = arith.constant 0 : index
    %c0_0 = arith.constant 0 : index
    %c0_1 = arith.constant 0 : index
    %c0_2 = arith.constant 0 : index
    %0 = vector.load %arg1[%c0, %c0_0, %c0_1, %c0_2] : memref<1x18x18x8xbf16, #tpu.memory_space<vmem>>, vector<1x18x18x8xbf16>
    %1 = vector.shape_cast %0 : vector<1x18x18x8xbf16> to vector<18x18x8xbf16>
    %cst = arith.constant 0.000000e+00 : f32
    %2 = vector.broadcast %cst : f32 to vector<256x128xf32>
    %3 = vector.extract_strided_slice %1 {offsets = [0, 0, 0], sizes = [16, 16, 8], strides = [1, 1, 1]} : vector<18x18x8xbf16> to vector<16x16x8xbf16>
    %4 = vector.shape_cast %3 : vector<16x16x8xbf16> to vector<256x8xbf16>
    %c0_3 = arith.constant 0 : index
    %c0_4 = arith.constant 0 : index
    %c0_5 = arith.constant 0 : index
    %5 = vector.load %arg2[%c0_3, %c0_4, %c0_5] : memref<9x8x128xbf16, #tpu.memory_space<vmem>>, vector<1x8x128xbf16>
    %6 = vector.shape_cast %5 : vector<1x8x128xbf16> to vector<8x128xbf16>
    %cst_6 = arith.constant dense<0.000000e+00> : vector<256x128xf32>
    %7 = tpu.matmul %4, %6, %cst_6 {dimension_numbers = #tpu.dot_dimension_numbers<[1], [0], [0], [1], [0, 0, 1, 1], [], []>} : vector<256x8xbf16>, vector<8x128xbf16>, vector<256x128xf32> -> vector<256x128xf32>
    %8 = arith.addf %2, %7 : vector<256x128xf32>
    %9 = vector.extract_strided_slice %1 {offsets = [0, 1, 0], sizes = [16, 16, 8], strides = [1, 1, 1]} : vector<18x18x8xbf16> to vector<16x16x8xbf16>
    %10 = vector.shape_cast %9 : vector<16x16x8xbf16> to vector<256x8xbf16>
    %c1 = arith.constant 1 : index
    %c0_7 = arith.constant 0 : index
    %c0_8 = arith.constant 0 : index
    %11 = vector.load %arg2[%c1, %c0_7, %c0_8] : memref<9x8x128xbf16, #tpu.memory_space<vmem>>, vector<1x8x128xbf16>
    %12 = vector.shape_cast %11 : vector<1x8x128xbf16> to vector<8x128xbf16>
    %cst_9 = arith.constant dense<0.000000e+00> : vector<256x128xf32>
    %13 = tpu.matmul %10, %12, %cst_9 {dimension_numbers = #tpu.dot_dimension_numbers<[1], [0], [0], [1], [0, 0, 1, 1], [], []>} : vector<256x8xbf16>, vector<8x128xbf16>, vector<256x128xf32> -> vector<256x128xf32>
    %14 = arith.addf %8, %13 : vector<256x128xf32>
    %15 = vector.extract_strided_slice %1 {offsets = [0, 2, 0], sizes = [16, 16, 8], strides = [1, 1, 1]} : vector<18x18x8xbf16> to vector<16x16x8xbf16>
    %16 = vector.shape_cast %15 : vector<16x16x8xbf16> to vector<256x8xbf16>
    %c2 = arith.constant 2 : index
    %c0_10 = arith.constant 0 : index
    %c0_11 = arith.constant 0 : index
    %17 = vector.load %arg2[%c2, %c0_10, %c0_11] : memref<9x8x128xbf16, #tpu.memory_space<vmem>>, vector<1x8x128xbf16>
    %18 = vector.shape_cast %17 : vector<1x8x128xbf16> to vector<8x128xbf16>
    %cst_12 = arith.constant dense<0.000000e+00> : vector<256x128xf32>
    %19 = tpu.matmul %16, %18, %cst_12 {dimension_numbers = #tpu.dot_dimension_numbers<[1], [0], [0], [1], [0, 0, 1, 1], [], []>} : vector<256x8xbf16>, vector<8x128xbf16>, vector<256x128xf32> -> vector<256x128xf32>
    %20 = arith.addf %14, %19 : vector<256x128xf32>
    %21 = vector.extract_strided_slice %1 {offsets = [1, 0, 0], sizes = [16, 16, 8], strides = [1, 1, 1]} : vector<18x18x8xbf16> to vector<16x16x8xbf16>
    %22 = vector.shape_cast %21 : vector<16x16x8xbf16> to vector<256x8xbf16>
    %c3 = arith.constant 3 : index
    %c0_13 = arith.constant 0 : index
    %c0_14 = arith.constant 0 : index
    %23 = vector.load %arg2[%c3, %c0_13, %c0_14] : memref<9x8x128xbf16, #tpu.memory_space<vmem>>, vector<1x8x128xbf16>
    %24 = vector.shape_cast %23 : vector<1x8x128xbf16> to vector<8x128xbf16>
    %cst_15 = arith.constant dense<0.000000e+00> : vector<256x128xf32>
    %25 = tpu.matmul %22, %24, %cst_15 {dimension_numbers = #tpu.dot_dimension_numbers<[1], [0], [0], [1], [0, 0, 1, 1], [], []>} : vector<256x8xbf16>, vector<8x128xbf16>, vector<256x128xf32> -> vector<256x128xf32>
    %26 = arith.addf %20, %25 : vector<256x128xf32>
    %27 = vector.extract_strided_slice %1 {offsets = [1, 1, 0], sizes = [16, 16, 8], strides = [1, 1, 1]} : vector<18x18x8xbf16> to vector<16x16x8xbf16>
    %28 = vector.shape_cast %27 : vector<16x16x8xbf16> to vector<256x8xbf16>
    %c4 = arith.constant 4 : index
    %c0_16 = arith.constant 0 : index
    %c0_17 = arith.constant 0 : index
    %29 = vector.load %arg2[%c4, %c0_16, %c0_17] : memref<9x8x128xbf16, #tpu.memory_space<vmem>>, vector<1x8x128xbf16>
    %30 = vector.shape_cast %29 : vector<1x8x128xbf16> to vector<8x128xbf16>
    %cst_18 = arith.constant dense<0.000000e+00> : vector<256x128xf32>
    %31 = tpu.matmul %28, %30, %cst_18 {dimension_numbers = #tpu.dot_dimension_numbers<[1], [0], [0], [1], [0, 0, 1, 1], [], []>} : vector<256x8xbf16>, vector<8x128xbf16>, vector<256x128xf32> -> vector<256x128xf32>
    %32 = arith.addf %26, %31 : vector<256x128xf32>
    %33 = vector.extract_strided_slice %1 {offsets = [1, 2, 0], sizes = [16, 16, 8], strides = [1, 1, 1]} : vector<18x18x8xbf16> to vector<16x16x8xbf16>
    %34 = vector.shape_cast %33 : vector<16x16x8xbf16> to vector<256x8xbf16>
    %c5 = arith.constant 5 : index
    %c0_19 = arith.constant 0 : index
    %c0_20 = arith.constant 0 : index
    %35 = vector.load %arg2[%c5, %c0_19, %c0_20] : memref<9x8x128xbf16, #tpu.memory_space<vmem>>, vector<1x8x128xbf16>
    %36 = vector.shape_cast %35 : vector<1x8x128xbf16> to vector<8x128xbf16>
    %cst_21 = arith.constant dense<0.000000e+00> : vector<256x128xf32>
    %37 = tpu.matmul %34, %36, %cst_21 {dimension_numbers = #tpu.dot_dimension_numbers<[1], [0], [0], [1], [0, 0, 1, 1], [], []>} : vector<256x8xbf16>, vector<8x128xbf16>, vector<256x128xf32> -> vector<256x128xf32>
    %38 = arith.addf %32, %37 : vector<256x128xf32>
    %39 = vector.extract_strided_slice %1 {offsets = [2, 0, 0], sizes = [16, 16, 8], strides = [1, 1, 1]} : vector<18x18x8xbf16> to vector<16x16x8xbf16>
    %40 = vector.shape_cast %39 : vector<16x16x8xbf16> to vector<256x8xbf16>
    %c6 = arith.constant 6 : index
    %c0_22 = arith.constant 0 : index
    %c0_23 = arith.constant 0 : index
    %41 = vector.load %arg2[%c6, %c0_22, %c0_23] : memref<9x8x128xbf16, #tpu.memory_space<vmem>>, vector<1x8x128xbf16>
    %42 = vector.shape_cast %41 : vector<1x8x128xbf16> to vector<8x128xbf16>
    %cst_24 = arith.constant dense<0.000000e+00> : vector<256x128xf32>
    %43 = tpu.matmul %40, %42, %cst_24 {dimension_numbers = #tpu.dot_dimension_numbers<[1], [0], [0], [1], [0, 0, 1, 1], [], []>} : vector<256x8xbf16>, vector<8x128xbf16>, vector<256x128xf32> -> vector<256x128xf32>
    %44 = arith.addf %38, %43 : vector<256x128xf32>
    %45 = vector.extract_strided_slice %1 {offsets = [2, 1, 0], sizes = [16, 16, 8], strides = [1, 1, 1]} : vector<18x18x8xbf16> to vector<16x16x8xbf16>
    %46 = vector.shape_cast %45 : vector<16x16x8xbf16> to vector<256x8xbf16>
    %c7 = arith.constant 7 : index
    %c0_25 = arith.constant 0 : index
    %c0_26 = arith.constant 0 : index
    %47 = vector.load %arg2[%c7, %c0_25, %c0_26] : memref<9x8x128xbf16, #tpu.memory_space<vmem>>, vector<1x8x128xbf16>
    %48 = vector.shape_cast %47 : vector<1x8x128xbf16> to vector<8x128xbf16>
    %cst_27 = arith.constant dense<0.000000e+00> : vector<256x128xf32>
    %49 = tpu.matmul %46, %48, %cst_27 {dimension_numbers = #tpu.dot_dimension_numbers<[1], [0], [0], [1], [0, 0, 1, 1], [], []>} : vector<256x8xbf16>, vector<8x128xbf16>, vector<256x128xf32> -> vector<256x128xf32>
    %50 = arith.addf %44, %49 : vector<256x128xf32>
    %51 = vector.extract_strided_slice %1 {offsets = [2, 2, 0], sizes = [16, 16, 8], strides = [1, 1, 1]} : vector<18x18x8xbf16> to vector<16x16x8xbf16>
    %52 = vector.shape_cast %51 : vector<16x16x8xbf16> to vector<256x8xbf16>
    %c8 = arith.constant 8 : index
    %c0_28 = arith.constant 0 : index
    %c0_29 = arith.constant 0 : index
    %53 = vector.load %arg2[%c8, %c0_28, %c0_29] : memref<9x8x128xbf16, #tpu.memory_space<vmem>>, vector<1x8x128xbf16>
    %54 = vector.shape_cast %53 : vector<1x8x128xbf16> to vector<8x128xbf16>
    %cst_30 = arith.constant dense<0.000000e+00> : vector<256x128xf32>
    %55 = tpu.matmul %52, %54, %cst_30 {dimension_numbers = #tpu.dot_dimension_numbers<[1], [0], [0], [1], [0, 0, 1, 1], [], []>} : vector<256x8xbf16>, vector<8x128xbf16>, vector<256x128xf32> -> vector<256x128xf32>
    %56 = arith.addf %50, %55 : vector<256x128xf32>
    %c0_31 = arith.constant 0 : index
    %c0_32 = arith.constant 0 : index
    %57 = vector.load %arg3[%c0_31, %c0_32] : memref<1x128xf32, #tpu.memory_space<vmem>>, vector<1x128xf32>
    %58 = vector.broadcast %57 : vector<1x128xf32> to vector<256x128xf32>
    %59 = arith.addf %56, %58 : vector<256x128xf32>
    %cst_33 = arith.constant 0.000000e+00 : f32
    %60 = vector.broadcast %cst_33 : f32 to vector<256x128xf32>
    %61 = arith.maximumf %59, %60 : vector<256x128xf32>
    %cst_34 = arith.constant 0.000000e+00 : bf16
    %62 = vector.broadcast %cst_34 : bf16 to vector<1x18x18x128xbf16>
    %c0_35 = arith.constant 0 : index
    %c0_36 = arith.constant 0 : index
    %c0_37 = arith.constant 0 : index
    %c0_38 = arith.constant 0 : index
    %63 = vector.load %arg7[%c0_35, %c0_36, %c0_37, %c0_38] : memref<1x18x18x128xbf16, #tpu.memory_space<vmem>>, vector<1x18x18x128xbf16>
    tpu.vector_store %arg7[%c0_35, %c0_36, %c0_37, %c0_38], %62 {strides = array<i32>} : memref<1x18x18x128xbf16, #tpu.memory_space<vmem>>, vector<1x18x18x128xbf16>,
    %64 = vector.shape_cast %61 : vector<256x128xf32> to vector<1x16x16x128xf32>
    %65 = arith.truncf %64 : vector<1x16x16x128xf32> to vector<1x16x16x128xbf16>
    %c0_39 = arith.constant 0 : index
    %c1_40 = arith.constant 1 : index
    %c1_41 = arith.constant 1 : index
    %c0_42 = arith.constant 0 : index
    %66 = vector.load %arg7[%c0_39, %c1_40, %c1_41, %c0_42] : memref<1x18x18x128xbf16, #tpu.memory_space<vmem>>, vector<1x16x16x128xbf16>
    tpu.vector_store %arg7[%c0_39, %c1_40, %c1_41, %c0_42], %65 {strides = array<i32>} : memref<1x18x18x128xbf16, #tpu.memory_space<vmem>>, vector<1x16x16x128xbf16>,
    %cst_43 = arith.constant 0.000000e+00 : f32
    %67 = vector.broadcast %cst_43 : f32 to vector<256x128xf32>
    %c0_44 = arith.constant 0 : index
    %c0_45 = arith.constant 0 : index
    %c0_46 = arith.constant 0 : index
    %c0_47 = arith.constant 0 : index
    %68 = vector.load %arg7[%c0_44, %c0_45, %c0_46, %c0_47] : memref<1x18x18x128xbf16, #tpu.memory_space<vmem>>, vector<1x16x16x128xbf16>
    %69 = vector.shape_cast %68 : vector<1x16x16x128xbf16> to vector<16x16x128xbf16>
    %70 = vector.shape_cast %69 : vector<16x16x128xbf16> to vector<256x128xbf16>
    %c0_48 = arith.constant 0 : index
    %c0_49 = arith.constant 0 : index
    %c0_50 = arith.constant 0 : index
    %71 = vector.load %arg4[%c0_48, %c0_49, %c0_50] : memref<9x128x128xbf16, #tpu.memory_space<vmem>>, vector<1x128x128xbf16>
    %72 = vector.shape_cast %71 : vector<1x128x128xbf16> to vector<128x128xbf16>
    %cst_51 = arith.constant dense<0.000000e+00> : vector<256x128xf32>
    %73 = tpu.matmul %70, %72, %cst_51 {dimension_numbers = #tpu.dot_dimension_numbers<[1], [0], [0], [1], [0, 0, 1, 1], [], []>} : vector<256x128xbf16>, vector<128x128xbf16>, vector<256x128xf32> -> vector<256x128xf32>
    %74 = arith.addf %67, %73 : vector<256x128xf32>
    %c0_52 = arith.constant 0 : index
    %c0_53 = arith.constant 0 : index
    %c1_54 = arith.constant 1 : index
    %c0_55 = arith.constant 0 : index
    %75 = vector.load %arg7[%c0_52, %c0_53, %c1_54, %c0_55] : memref<1x18x18x128xbf16, #tpu.memory_space<vmem>>, vector<1x16x16x128xbf16>
    %76 = vector.shape_cast %75 : vector<1x16x16x128xbf16> to vector<16x16x128xbf16>
    %77 = vector.shape_cast %76 : vector<16x16x128xbf16> to vector<256x128xbf16>
    %c1_56 = arith.constant 1 : index
    %c0_57 = arith.constant 0 : index
    %c0_58 = arith.constant 0 : index
    %78 = vector.load %arg4[%c1_56, %c0_57, %c0_58] : memref<9x128x128xbf16, #tpu.memory_space<vmem>>, vector<1x128x128xbf16>
    %79 = vector.shape_cast %78 : vector<1x128x128xbf16> to vector<128x128xbf16>
    %cst_59 = arith.constant dense<0.000000e+00> : vector<256x128xf32>
    %80 = tpu.matmul %77, %79, %cst_59 {dimension_numbers = #tpu.dot_dimension_numbers<[1], [0], [0], [1], [0, 0, 1, 1], [], []>} : vector<256x128xbf16>, vector<128x128xbf16>, vector<256x128xf32> -> vector<256x128xf32>
    %81 = arith.addf %74, %80 : vector<256x128xf32>
    %c0_60 = arith.constant 0 : index
    %c0_61 = arith.constant 0 : index
    %c2_62 = arith.constant 2 : index
    %c0_63 = arith.constant 0 : index
    %82 = vector.load %arg7[%c0_60, %c0_61, %c2_62, %c0_63] : memref<1x18x18x128xbf16, #tpu.memory_space<vmem>>, vector<1x16x16x128xbf16>
    %83 = vector.shape_cast %82 : vector<1x16x16x128xbf16> to vector<16x16x128xbf16>
    %84 = vector.shape_cast %83 : vector<16x16x128xbf16> to vector<256x128xbf16>
    %c2_64 = arith.constant 2 : index
    %c0_65 = arith.constant 0 : index
    %c0_66 = arith.constant 0 : index
    %85 = vector.load %arg4[%c2_64, %c0_65, %c0_66] : memref<9x128x128xbf16, #tpu.memory_space<vmem>>, vector<1x128x128xbf16>
    %86 = vector.shape_cast %85 : vector<1x128x128xbf16> to vector<128x128xbf16>
    %cst_67 = arith.constant dense<0.000000e+00> : vector<256x128xf32>
    %87 = tpu.matmul %84, %86, %cst_67 {dimension_numbers = #tpu.dot_dimension_numbers<[1], [0], [0], [1], [0, 0, 1, 1], [], []>} : vector<256x128xbf16>, vector<128x128xbf16>, vector<256x128xf32> -> vector<256x128xf32>
    %88 = arith.addf %81, %87 : vector<256x128xf32>
    %c0_68 = arith.constant 0 : index
    %c1_69 = arith.constant 1 : index
    %c0_70 = arith.constant 0 : index
    %c0_71 = arith.constant 0 : index
    %89 = vector.load %arg7[%c0_68, %c1_69, %c0_70, %c0_71] : memref<1x18x18x128xbf16, #tpu.memory_space<vmem>>, vector<1x16x16x128xbf16>
    %90 = vector.shape_cast %89 : vector<1x16x16x128xbf16> to vector<16x16x128xbf16>
    %91 = vector.shape_cast %90 : vector<16x16x128xbf16> to vector<256x128xbf16>
    %c3_72 = arith.constant 3 : index
    %c0_73 = arith.constant 0 : index
    %c0_74 = arith.constant 0 : index
    %92 = vector.load %arg4[%c3_72, %c0_73, %c0_74] : memref<9x128x128xbf16, #tpu.memory_space<vmem>>, vector<1x128x128xbf16>
    %93 = vector.shape_cast %92 : vector<1x128x128xbf16> to vector<128x128xbf16>
    %cst_75 = arith.constant dense<0.000000e+00> : vector<256x128xf32>
    %94 = tpu.matmul %91, %93, %cst_75 {dimension_numbers = #tpu.dot_dimension_numbers<[1], [0], [0], [1], [0, 0, 1, 1], [], []>} : vector<256x128xbf16>, vector<128x128xbf16>, vector<256x128xf32> -> vector<256x128xf32>
    %95 = arith.addf %88, %94 : vector<256x128xf32>
    %c0_76 = arith.constant 0 : index
    %c1_77 = arith.constant 1 : index
    %c1_78 = arith.constant 1 : index
    %c0_79 = arith.constant 0 : index
    %96 = vector.load %arg7[%c0_76, %c1_77, %c1_78, %c0_79] : memref<1x18x18x128xbf16, #tpu.memory_space<vmem>>, vector<1x16x16x128xbf16>
    %97 = vector.shape_cast %96 : vector<1x16x16x128xbf16> to vector<16x16x128xbf16>
    %98 = vector.shape_cast %97 : vector<16x16x128xbf16> to vector<256x128xbf16>
    %c4_80 = arith.constant 4 : index
    %c0_81 = arith.constant 0 : index
    %c0_82 = arith.constant 0 : index
    %99 = vector.load %arg4[%c4_80, %c0_81, %c0_82] : memref<9x128x128xbf16, #tpu.memory_space<vmem>>, vector<1x128x128xbf16>
    %100 = vector.shape_cast %99 : vector<1x128x128xbf16> to vector<128x128xbf16>
    %cst_83 = arith.constant dense<0.000000e+00> : vector<256x128xf32>
    %101 = tpu.matmul %98, %100, %cst_83 {dimension_numbers = #tpu.dot_dimension_numbers<[1], [0], [0], [1], [0, 0, 1, 1], [], []>} : vector<256x128xbf16>, vector<128x128xbf16>, vector<256x128xf32> -> vector<256x128xf32>
    %102 = arith.addf %95, %101 : vector<256x128xf32>
    %c0_84 = arith.constant 0 : index
    %c1_85 = arith.constant 1 : index
    %c2_86 = arith.constant 2 : index
    %c0_87 = arith.constant 0 : index
    %103 = vector.load %arg7[%c0_84, %c1_85, %c2_86, %c0_87] : memref<1x18x18x128xbf16, #tpu.memory_space<vmem>>, vector<1x16x16x128xbf16>
    %104 = vector.shape_cast %103 : vector<1x16x16x128xbf16> to vector<16x16x128xbf16>
    %105 = vector.shape_cast %104 : vector<16x16x128xbf16> to vector<256x128xbf16>
    %c5_88 = arith.constant 5 : index
    %c0_89 = arith.constant 0 : index
    %c0_90 = arith.constant 0 : index
    %106 = vector.load %arg4[%c5_88, %c0_89, %c0_90] : memref<9x128x128xbf16, #tpu.memory_space<vmem>>, vector<1x128x128xbf16>
    %107 = vector.shape_cast %106 : vector<1x128x128xbf16> to vector<128x128xbf16>
    %cst_91 = arith.constant dense<0.000000e+00> : vector<256x128xf32>
    %108 = tpu.matmul %105, %107, %cst_91 {dimension_numbers = #tpu.dot_dimension_numbers<[1], [0], [0], [1], [0, 0, 1, 1], [], []>} : vector<256x128xbf16>, vector<128x128xbf16>, vector<256x128xf32> -> vector<256x128xf32>
    %109 = arith.addf %102, %108 : vector<256x128xf32>
    %c0_92 = arith.constant 0 : index
    %c2_93 = arith.constant 2 : index
    %c0_94 = arith.constant 0 : index
    %c0_95 = arith.constant 0 : index
    %110 = vector.load %arg7[%c0_92, %c2_93, %c0_94, %c0_95] : memref<1x18x18x128xbf16, #tpu.memory_space<vmem>>, vector<1x16x16x128xbf16>
    %111 = vector.shape_cast %110 : vector<1x16x16x128xbf16> to vector<16x16x128xbf16>
    %112 = vector.shape_cast %111 : vector<16x16x128xbf16> to vector<256x128xbf16>
    %c6_96 = arith.constant 6 : index
    %c0_97 = arith.constant 0 : index
    %c0_98 = arith.constant 0 : index
    %113 = vector.load %arg4[%c6_96, %c0_97, %c0_98] : memref<9x128x128xbf16, #tpu.memory_space<vmem>>, vector<1x128x128xbf16>
    %114 = vector.shape_cast %113 : vector<1x128x128xbf16> to vector<128x128xbf16>
    %cst_99 = arith.constant dense<0.000000e+00> : vector<256x128xf32>
    %115 = tpu.matmul %112, %114, %cst_99 {dimension_numbers = #tpu.dot_dimension_numbers<[1], [0], [0], [1], [0, 0, 1, 1], [], []>} : vector<256x128xbf16>, vector<128x128xbf16>, vector<256x128xf32> -> vector<256x128xf32>
    %116 = arith.addf %109, %115 : vector<256x128xf32>
    %c0_100 = arith.constant 0 : index
    %c2_101 = arith.constant 2 : index
    %c1_102 = arith.constant 1 : index
    %c0_103 = arith.constant 0 : index
    %117 = vector.load %arg7[%c0_100, %c2_101, %c1_102, %c0_103] : memref<1x18x18x128xbf16, #tpu.memory_space<vmem>>, vector<1x16x16x128xbf16>
    %118 = vector.shape_cast %117 : vector<1x16x16x128xbf16> to vector<16x16x128xbf16>
    %119 = vector.shape_cast %118 : vector<16x16x128xbf16> to vector<256x128xbf16>
    %c7_104 = arith.constant 7 : index
    %c0_105 = arith.constant 0 : index
    %c0_106 = arith.constant 0 : index
    %120 = vector.load %arg4[%c7_104, %c0_105, %c0_106] : memref<9x128x128xbf16, #tpu.memory_space<vmem>>, vector<1x128x128xbf16>
    %121 = vector.shape_cast %120 : vector<1x128x128xbf16> to vector<128x128xbf16>
    %cst_107 = arith.constant dense<0.000000e+00> : vector<256x128xf32>
    %122 = tpu.matmul %119, %121, %cst_107 {dimension_numbers = #tpu.dot_dimension_numbers<[1], [0], [0], [1], [0, 0, 1, 1], [], []>} : vector<256x128xbf16>, vector<128x128xbf16>, vector<256x128xf32> -> vector<256x128xf32>
    %123 = arith.addf %116, %122 : vector<256x128xf32>
    %c0_108 = arith.constant 0 : index
    %c2_109 = arith.constant 2 : index
    %c2_110 = arith.constant 2 : index
    %c0_111 = arith.constant 0 : index
    %124 = vector.load %arg7[%c0_108, %c2_109, %c2_110, %c0_111] : memref<1x18x18x128xbf16, #tpu.memory_space<vmem>>, vector<1x16x16x128xbf16>
    %125 = vector.shape_cast %124 : vector<1x16x16x128xbf16> to vector<16x16x128xbf16>
    %126 = vector.shape_cast %125 : vector<16x16x128xbf16> to vector<256x128xbf16>
    %c8_112 = arith.constant 8 : index
    %c0_113 = arith.constant 0 : index
    %c0_114 = arith.constant 0 : index
    %127 = vector.load %arg4[%c8_112, %c0_113, %c0_114] : memref<9x128x128xbf16, #tpu.memory_space<vmem>>, vector<1x128x128xbf16>
    %128 = vector.shape_cast %127 : vector<1x128x128xbf16> to vector<128x128xbf16>
    %cst_115 = arith.constant dense<0.000000e+00> : vector<256x128xf32>
    %129 = tpu.matmul %126, %128, %cst_115 {dimension_numbers = #tpu.dot_dimension_numbers<[1], [0], [0], [1], [0, 0, 1, 1], [], []>} : vector<256x128xbf16>, vector<128x128xbf16>, vector<256x128xf32> -> vector<256x128xf32>
    %130 = arith.addf %123, %129 : vector<256x128xf32>
    %c0_116 = arith.constant 0 : index
    %c0_117 = arith.constant 0 : index
    %131 = vector.load %arg5[%c0_116, %c0_117] : memref<1x128xf32, #tpu.memory_space<vmem>>, vector<1x128xf32>
    %132 = vector.broadcast %131 : vector<1x128xf32> to vector<256x128xf32>
    %133 = arith.addf %130, %132 : vector<256x128xf32>
    %cst_118 = arith.constant 0.000000e+00 : f32
    %134 = vector.broadcast %cst_118 : f32 to vector<256x128xf32>
    %135 = arith.maximumf %133, %134 : vector<256x128xf32>
    %c0_119 = arith.constant 0 : index
    %c0_120 = arith.constant 0 : index
    %136 = vector.load %arg6[%c0_119, %c0_120] : memref<256x128xf32, #tpu.memory_space<vmem>>, vector<256x128xf32>
    tpu.vector_store %arg6[%c0_119, %c0_120], %135 {strides = array<i32>} : memref<256x128xf32, #tpu.memory_space<vmem>>, vector<256x128xf32>,
    return
  }
  func.func @transform_0(%arg0: i32) -> (i32, i32, i32, i32) {
    %c0_i32 = arith.constant 0 : i32
    %c0_i32_0 = arith.constant 0 : i32
    %c0_i32_1 = arith.constant 0 : i32
    %c0_i32_2 = arith.constant 0 : i32
    return %arg0, %c0_i32, %c0_i32_0, %c0_i32_1 : i32, i32, i32, i32
  }
  func.func @transform_1(%arg0: i32) -> (i32, i32, i32) {
    %c0_i32 = arith.constant 0 : i32
    %c0_i32_0 = arith.constant 0 : i32
    %c0_i32_1 = arith.constant 0 : i32
    %c0_i32_2 = arith.constant 0 : i32
    return %c0_i32, %c0_i32_0, %c0_i32_1 : i32, i32, i32
  }
  func.func @transform_2(%arg0: i32) -> (i32, i32) {
    %c0_i32 = arith.constant 0 : i32
    %c0_i32_0 = arith.constant 0 : i32
    %c0_i32_1 = arith.constant 0 : i32
    return %c0_i32, %c0_i32_0 : i32, i32
  }
  func.func @transform_3(%arg0: i32) -> (i32, i32, i32) {
    %c0_i32 = arith.constant 0 : i32
    %c0_i32_0 = arith.constant 0 : i32
    %c0_i32_1 = arith.constant 0 : i32
    %c0_i32_2 = arith.constant 0 : i32
    return %c0_i32, %c0_i32_0, %c0_i32_1 : i32, i32, i32
  }
  func.func @transform_4(%arg0: i32) -> (i32, i32) {
    %c0_i32 = arith.constant 0 : i32
    %c0_i32_0 = arith.constant 0 : i32
    %c0_i32_1 = arith.constant 0 : i32
    return %c0_i32, %c0_i32_0 : i32, i32
  }
  func.func @transform_5(%arg0: i32) -> (i32, i32) {
    %c0_i32 = arith.constant 0 : i32
    %c0_i32_0 = arith.constant 0 : i32
    return %arg0, %c0_i32 : i32, i32
  }
}

</mosaic_0001>

<llo_original>
// kernel: vanilla_block_pallas.1
$region0: #{vanilla_block_pallas.1}
  #allocation0 [shape = 'u32[]', space=smem, size = 0x4, offset = 0x4, fixed_abs, tag = 'smem constant byte address 0x4 - core index']
  #allocation1 [shape = 'u32[144,128]{1,0:T(1,128)}', space=vmem, size = 0x12000, scoped, tag = 'internal scratch']
  #allocation2 [shape = 'bf16[1,18,18,128]{3,2,1,0:T(8,128)(2,1)}', space=vmem, size = 0x1b000, scoped, tag = 'scratch operand']
  %s0 = inlined_call_operand.vmem [shape: bf16[2,18,18,8], index: 0, kind: input, shape index: {}]
  %s1 = inlined_call_operand.vmem [shape: bf16[9,8,128], index: 1, kind: input, shape index: {}]
  %s2 = inlined_call_operand.vmem [shape: f32[1,128], index: 2, kind: input, shape index: {}]
  %s3 = inlined_call_operand.vmem [shape: bf16[9,128,128], index: 3, kind: input, shape index: {}]
  %s4 = inlined_call_operand.vmem [shape: f32[1,128], index: 4, kind: input, shape index: {}]
  %s5 = inlined_call_operand.vmem [shape: f32[512,128], index: 5, kind: output, shape index: {}]
  %s6 = sld [smem:[#allocation0]]
  $region53: #{vanilla_block_pallas.1} parent=0
    _
  %s8 = ssub.s32 1, %s6
  %s9 = scalar_select 0, %s8, %s6
  loop: start=0, step=1, limit=4
  $region2: #{vanilla_block_pallas.1} parent=0 // loop_pre_header
    _
  $region3: #{vanilla_block_pallas.1} parent=0 // loop_header
    %s11 = sphi 0, %s15
    %p12 = scmp.ge.s32.totalorder %s11, 4
    %s21 = sphi 0, %s23
    %s24 = sphi 0, %s21
    %s25 = sphi 0, %s24
    %s41 = sphi 0, %s25
    %s45 = sphi 0, %s45
    %s47 = sphi 0, %s45
    %s48 = sphi 0, %s47
    %s62 = sphi 0, %s48
    %s66 = sphi 0, %s66
    %s68 = sphi 0, %s66
    %s69 = sphi 0, %s68
    %s83 = sphi 0, %s69
    %s87 = sphi 0, %s87
    %s89 = sphi 0, %s87
    %s90 = sphi 0, %s89
    %s104 = sphi 0, %s90
    %s108 = sphi 0, %s108
    %s110 = sphi 0, %s108
    %s111 = sphi 0, %s110
    %s125 = sphi 0, %s111
    %s131 = sphi 0, %s133
    %s134 = sphi 0, %s131
    %s135 = sphi 0, %s134
    %s151 = sphi 0, %s135
  $region4: #{vanilla_block_pallas.1} parent=0 // loop_header_branch
    %14 = sbr.rel (%p12) target = $region8
  $region5: #{vanilla_block_pallas.1} parent=0 // loop_body
    %s16 = ssub.s32 %s11, 1
    %s17 = ssub.s32 %s11, 2
    %s18 = sadd.s32 %s11, 1
    %s19 = ssub.s32 %s11, %s18
    %p20 = scmp.eq.s32.totalorder %s19, 0
    %s22 = sadd.s32 %s21, 1
    %s23 = scalar_select %p20, %s21, %s22
    %p26 = pneg %p20
    %p27 = scmp.eq.s32.totalorder %s11, 1
    %p28 = por %p26, %p27
    %p29 = scmp.ne.s32.totalorder %s21, %s24
    %p30 = scmp.eq.s32.totalorder %s11, 0
    %p31 = por %p29, %p30
    %p32 = scmp.ne.s32.totalorder %s21, %s24
    %p33 = scmp.eq.s32.totalorder %s16, 1
    %p34 = por %p32, %p33
    %p35 = scmp.ne.s32.totalorder %s24, %s25
    %p36 = scmp.eq.s32.totalorder %s16, 0
    %p37 = por %p35, %p36
    %p38 = scmp.ne.s32.totalorder %s24, %s25
    %p39 = scmp.eq.s32.totalorder %s17, 1
    %p40 = por %p38, %p39
    %p42 = scmp.ne.s32.totalorder %s25, %s41
    %p43 = scmp.eq.s32.totalorder %s17, 0
    %p44 = por %p42, %p43
    %s46 = sadd.s32 %s45, 1
    %p49 = scmp.eq.s32.totalorder %s11, 1
    %p50 = scmp.ne.s32.totalorder %s45, %s47
    %p51 = scmp.eq.s32.totalorder %s11, 0
    %p52 = por %p50, %p51
    %p53 = scmp.ne.s32.totalorder %s45, %s47
    %p54 = scmp.eq.s32.totalorder %s16, 1
    %p55 = por %p53, %p54
    %p56 = scmp.ne.s32.totalorder %s47, %s48
    %p57 = scmp.eq.s32.totalorder %s16, 0
    %p58 = por %p56, %p57
    %p59 = scmp.ne.s32.totalorder %s47, %s48
    %p60 = scmp.eq.s32.totalorder %s17, 1
    %p61 = por %p59, %p60
    %p63 = scmp.ne.s32.totalorder %s48, %s62
    %p64 = scmp.eq.s32.totalorder %s17, 0
    %p65 = por %p63, %p64
    %s67 = sadd.s32 %s66, 1
    %p70 = scmp.eq.s32.totalorder %s11, 1
    %p71 = scmp.ne.s32.totalorder %s66, %s68
    %p72 = scmp.eq.s32.totalorder %s11, 0
    %p73 = por %p71, %p72
    %p74 = scmp.ne.s32.totalorder %s66, %s68
    %p75 = scmp.eq.s32.totalorder %s16, 1
    %p76 = por %p74, %p75
    %p77 = scmp.ne.s32.totalorder %s68, %s69
    %p78 = scmp.eq.s32.totalorder %s16, 0
    %p79 = por %p77, %p78
    %p80 = scmp.ne.s32.totalorder %s68, %s69
    %p81 = scmp.eq.s32.totalorder %s17, 1
    %p82 = por %p80, %p81
    %p84 = scmp.ne.s32.totalorder %s69, %s83
    %p85 = scmp.eq.s32.totalorder %s17, 0
    %p86 = por %p84, %p85
    %s88 = sadd.s32 %s87, 1
    %p91 = scmp.eq.s32.totalorder %s11, 1
    %p92 = scmp.ne.s32.totalorder %s87, %s89
    %p93 = scmp.eq.s32.totalorder %s11, 0
    %p94 = por %p92, %p93
    %p95 = scmp.ne.s32.totalorder %s87, %s89
    %p96 = scmp.eq.s32.totalorder %s16, 1
    %p97 = por %p95, %p96
    %p98 = scmp.ne.s32.totalorder %s89, %s90
    %p99 = scmp.eq.s32.totalorder %s16, 0
    %p100 = por %p98, %p99
    %p101 = scmp.ne.s32.totalorder %s89, %s90
    %p102 = scmp.eq.s32.totalorder %s17, 1
    %p103 = por %p101, %p102
    %p105 = scmp.ne.s32.totalorder %s90, %s104
    %p106 = scmp.eq.s32.totalorder %s17, 0
    %p107 = por %p105, %p106
    %s109 = sadd.s32 %s108, 1
    %p112 = scmp.eq.s32.totalorder %s11, 1
    %p113 = scmp.ne.s32.totalorder %s108, %s110
    %p114 = scmp.eq.s32.totalorder %s11, 0
    %p115 = por %p113, %p114
    %p116 = scmp.ne.s32.totalorder %s108, %s110
    %p117 = scmp.eq.s32.totalorder %s16, 1
    %p118 = por %p116, %p117
    %p119 = scmp.ne.s32.totalorder %s110, %s111
    %p120 = scmp.eq.s32.totalorder %s16, 0
    %p121 = por %p119, %p120
    %p122 = scmp.ne.s32.totalorder %s110, %s111
    %p123 = scmp.eq.s32.totalorder %s17, 1
    %p124 = por %p122, %p123
    %p126 = scmp.ne.s32.totalorder %s111, %s125
    %p127 = scmp.eq.s32.totalorder %s17, 0
    %p128 = por %p126, %p127
    %s129 = ssub.s32 %s11, %s18
    %p130 = scmp.eq.s32.totalorder %s129, 0
    %s132 = sadd.s32 %s131, 1
    %s133 = scalar_select %p130, %s131, %s132
    %p136 = pneg %p130
    %p137 = scmp.eq.s32.totalorder %s11, 1
    %p138 = por %p136, %p137
    %p139 = scmp.ne.s32.totalorder %s131, %s134
    %p140 = scmp.eq.s32.totalorder %s11, 0
    %p141 = por %p139, %p140
    %p142 = scmp.ne.s32.totalorder %s131, %s134
    %p143 = scmp.eq.s32.totalorder %s16, 1
    %p144 = por %p142, %p143
    %p145 = scmp.ne.s32.totalorder %s134, %s135
    %p146 = scmp.eq.s32.totalorder %s16, 0
    %p147 = por %p145, %p146
    %p148 = scmp.ne.s32.totalorder %s134, %s135
    %p149 = scmp.eq.s32.totalorder %s17, 1
    %p150 = por %p148, %p149
    %p152 = scmp.ne.s32.totalorder %s135, %s151
    %p153 = scmp.eq.s32.totalorder %s17, 0
    %p154 = por %p152, %p153
    %p155 = scmp.le.s32.totalorder 1, %s11
    %p156 = scmp.lt.s32.totalorder %s11, 3
    %p157 = pnand %p155, %p156
    %p158 = pneg %p157
    // Predicated region
    $region9: #{vanilla_block_pallas.1} parent=5 // pred_check
      _
    $region10: #{vanilla_block_pallas.1} parent=5 // pred_check_branch
      %160 = sbr.rel (%p157) target = $region12
    $region11: #{vanilla_block_pallas.1} parent=5 // pred_region
      %s161 = ssub.s32 %s11, 1
      // Predicated region
      $region13: #{vanilla_block_pallas.1} parent=11 // pred_check
        %p162 = pneg %p58
      $region14: #{vanilla_block_pallas.1} parent=11 // pred_check_branch
        %164 = sbr.rel (%p162) target = $region16
      $region15: #{vanilla_block_pallas.1} parent=11 // pred_region
        _
      $region16: #{vanilla_block_pallas.1} parent=11 // pred_fallthru
        _
      // Predicated region
      $region17: #{vanilla_block_pallas.1} parent=11 // pred_check
        %p165 = pneg %p79
      $region18: #{vanilla_block_pallas.1} parent=11 // pred_check_branch
        %167 = sbr.rel (%p165) target = $region20
      $region19: #{vanilla_block_pallas.1} parent=11 // pred_region
        _
      $region20: #{vanilla_block_pallas.1} parent=11 // pred_fallthru
        _
      // Predicated region
      $region21: #{vanilla_block_pallas.1} parent=11 // pred_check
        %p168 = pneg %p100
      $region22: #{vanilla_block_pallas.1} parent=11 // pred_check_branch
        %170 = sbr.rel (%p168) target = $region24
      $region23: #{vanilla_block_pallas.1} parent=11 // pred_region
        _
      $region24: #{vanilla_block_pallas.1} parent=11 // pred_fallthru
        _
      // Predicated region
      $region25: #{vanilla_block_pallas.1} parent=11 // pred_check
        %p171 = pneg %p121
      $region26: #{vanilla_block_pallas.1} parent=11 // pred_check_branch
        %173 = sbr.rel (%p171) target = $region28
      $region27: #{vanilla_block_pallas.1} parent=11 // pred_region
        _
      $region28: #{vanilla_block_pallas.1} parent=11 // pred_fallthru
        _
    $region12: #{vanilla_block_pallas.1} parent=5 // pred_fallthru
      _
    %p174 = scmp.lt.s32.totalorder %s11, 2
    // Predicated region
    $region29: #{vanilla_block_pallas.1} parent=5 // pred_check
      %p175 = pneg %p174
    $region30: #{vanilla_block_pallas.1} parent=5 // pred_check_branch
      %177 = sbr.rel (%p175) target = $region32
    $region31: #{vanilla_block_pallas.1} parent=5 // pred_region
      // Predicated region
      $region33: #{vanilla_block_pallas.1} parent=31 // pred_check
        %p178 = pneg %p31
      $region34: #{vanilla_block_pallas.1} parent=31 // pred_check_branch
        %180 = sbr.rel (%p178) target = $region36
      $region35: #{vanilla_block_pallas.1} parent=31 // pred_region
        %p181 = scmp.lt.s32.totalorder %s11, 1
        %s182 = scalar_select %p181, %s11, 1
        %s183 = smul.addr %s182, 54
        %s184 = smul.addr %s183, 4
        %s185 = scalar_lea.vmem %s0, %s184
      $region36: #{vanilla_block_pallas.1} parent=31 // pred_fallthru
        _
    $region32: #{vanilla_block_pallas.1} parent=5 // pred_fallthru
      _
    %p186 = scmp.le.s32.totalorder 1, %s11
    %p187 = scmp.lt.s32.totalorder %s11, 3
    %p188 = pnand %p186, %p187
    %p189 = pneg %p188
    // Predicated region
    $region37: #{vanilla_block_pallas.1} parent=5 // pred_check
      _
    $region38: #{vanilla_block_pallas.1} parent=5 // pred_check_branch
      %191 = sbr.rel (%p188) target = $region40
    $region39: #{vanilla_block_pallas.1} parent=5 // pred_region
      %s192 = ssub.s32 %s11, 1
      %p193 = scmp.lt.s32.totalorder %s16, 1
      %s194 = scalar_select %p193, %s16, 1
      %s195 = smul.addr %s194, 54
      %s196 = smul.addr %s195, 4
      %s197 = scalar_lea.vmem %s0, %s196
      %p198 = pneg %p37
      %p199 = pneg %p34
      %p200 = pneg %p58
      %p201 = pneg %p55
      %p202 = pneg %p79
      %p203 = pneg %p76
      %p204 = pneg %p100
      %p205 = pneg %p97
      %p206 = pneg %p121
      %p207 = pneg %p118
      %p208 = pneg %p147
      %p209 = pneg %p144
      %s210 = smul.u32 32, %s16
      %p211 = scmp.lt.s32.totalorder %s210, 63
      %s212 = scalar_select %p211, %s210, 63
      %s213 = smul.addr %s212, 8
      %s214 = scalar_lea.vmem %s5, %s213
      %p215 = scmp.lt.s32.totalorder %s16, 1
      %s216 = scalar_select %p215, %s16, 1
      %s217 = smul.addr %s216, 54
      %s218 = smul.addr %s217, 4
      %s219 = scalar_lea.vmem %s0, %s218
      %s220 = smul.u32 32, %s16
      %p221 = scmp.lt.s32.totalorder %s220, 63
      %s222 = scalar_select %p221, %s220, 63
      %s223 = smul.addr %s222, 8
      %s224 = scalar_lea.vmem %s5, %s223
      %s225 = smul.u32 32, %s16
      %v227 = vld [vmem:[%s219] sm:$0xf]
      %v228 = vld [vmem:[%s219 + $0x4] sm:$0xf]
      %v229 = vld [vmem:[%s219 + $0x8] sm:$0x1]
      %v230 = vld [vmem:[%s219 + $0xc] sm:$0xf]
      %v231 = vld [vmem:[%s219 + $0x10] sm:$0xf]
      %v232 = vld [vmem:[%s219 + $0x14] sm:$0x1]
      %v233 = vld [vmem:[%s219 + $0x18] sm:$0xf]
      %v234 = vld [vmem:[%s219 + $0x1c] sm:$0xf]
      %v235 = vld [vmem:[%s219 + $0x20] sm:$0x1]
      %v236 = vld [vmem:[%s219 + $0x24] sm:$0xf]
      %v237 = vld [vmem:[%s219 + $0x28] sm:$0xf]
      %v238 = vld [vmem:[%s219 + $0x2c] sm:$0x1]
      %v239 = vld [vmem:[%s219 + $0x30] sm:$0xf]
      %v240 = vld [vmem:[%s219 + $0x34] sm:$0xf]
      %v241 = vld [vmem:[%s219 + $0x38] sm:$0x1]
      %v242 = vld [vmem:[%s219 + $0x3c] sm:$0xf]
      %v243 = vld [vmem:[%s219 + $0x40] sm:$0xf]
      %v244 = vld [vmem:[%s219 + $0x44] sm:$0x1]
      %v245 = vld [vmem:[%s219 + $0x48] sm:$0xf]
      %v246 = vld [vmem:[%s219 + $0x4c] sm:$0xf]
      %v247 = vld [vmem:[%s219 + $0x50] sm:$0x1]
      %v248 = vld [vmem:[%s219 + $0x54] sm:$0xf]
      %v249 = vld [vmem:[%s219 + $0x58] sm:$0xf]
      %v250 = vld [vmem:[%s219 + $0x5c] sm:$0x1]
      %v251 = vld [vmem:[%s219 + $0x60] sm:$0xf]
      %v252 = vld [vmem:[%s219 + $0x64] sm:$0xf]
      %v253 = vld [vmem:[%s219 + $0x68] sm:$0x1]
      %v254 = vld [vmem:[%s219 + $0x6c] sm:$0xf]
      %v255 = vld [vmem:[%s219 + $0x70] sm:$0xf]
      %v256 = vld [vmem:[%s219 + $0x74] sm:$0x1]
      %v257 = vld [vmem:[%s219 + $0x78] sm:$0xf]
      %v258 = vld [vmem:[%s219 + $0x7c] sm:$0xf]
      %v259 = vld [vmem:[%s219 + $0x80] sm:$0x1]
      %v260 = vld [vmem:[%s219 + $0x84] sm:$0xf]
      %v261 = vld [vmem:[%s219 + $0x88] sm:$0xf]
      %v262 = vld [vmem:[%s219 + $0x8c] sm:$0x1]
      %v263 = vld [vmem:[%s219 + $0x90] sm:$0xf]
      %v264 = vld [vmem:[%s219 + $0x94] sm:$0xf]
      %v265 = vld [vmem:[%s219 + $0x98] sm:$0x1]
      %v266 = vld [vmem:[%s219 + $0x9c] sm:$0xf]
      %v267 = vld [vmem:[%s219 + $0xa0] sm:$0xf]
      %v268 = vld [vmem:[%s219 + $0xa4] sm:$0x1]
      %v269 = vld [vmem:[%s219 + $0xa8] sm:$0xf]
      %v270 = vld [vmem:[%s219 + $0xac] sm:$0xf]
      %v271 = vld [vmem:[%s219 + $0xb0] sm:$0x1]
      %v272 = vld [vmem:[%s219 + $0xb4] sm:$0xf]
      %v273 = vld [vmem:[%s219 + $0xb8] sm:$0xf]
      %v274 = vld [vmem:[%s219 + $0xbc] sm:$0x1]
      %v275 = vld [vmem:[%s219 + $0xc0] sm:$0xf]
      %v276 = vld [vmem:[%s219 + $0xc4] sm:$0xf]
      %v277 = vld [vmem:[%s219 + $0xc8] sm:$0x1]
      %v278 = vld [vmem:[%s219 + $0xcc] sm:$0xf]
      %v279 = vld [vmem:[%s219 + $0xd0] sm:$0xf]
      %v280 = vld [vmem:[%s219 + $0xd4] sm:$0x1]
      %v281 = vld [vmem:[%s1] sm:$0xf]
      %vm282 = vsmask.f32 3328
      %vm283 = vsmask.f32 7440
      %vm284 = vmor %vm282, %vm283
      %v286 = vshrl.u32 %v227, 16
      %v288 = vrot.slane %v286, 4
      %v289 = vshll.u32 %v227, 16
      %v291 = vrot.slane %v289, 5
      %v292 = vor.u32 %v288, %v291
      %v293 = vrot.slane %v292, 4
      %v295 = vshll.u32 %v228, 16
      %v297 = vrot.slane %v295, 5
      %v298 = vsel %vm284, %v293, %v297
      %v299 = vshrl.u32 %v228, 16
      %v301 = vrot.slane %v299, 4
      %v302 = vor.u32 %v301, %v297
      %v303 = vrot.slane %v302, 4
      %v305 = vshll.u32 %v229, 16
      %v307 = vrot.slane %v305, 5
      %v308 = vsel %vm284, %v303, %v307
      %v310 = vshrl.u32 %v230, 16
      %v312 = vrot.slane %v310, 4
      %v313 = vshll.u32 %v230, 16
      %v315 = vrot.slane %v313, 5
      %v316 = vor.u32 %v312, %v315
      %v317 = vrot.slane %v316, 4
      %v319 = vshll.u32 %v231, 16
      %v321 = vrot.slane %v319, 5
      %v322 = vsel %vm284, %v317, %v321
      %v323 = vshrl.u32 %v231, 16
      %v325 = vrot.slane %v323, 4
      %v326 = vor.u32 %v325, %v321
      %v327 = vrot.slane %v326, 4
      %v329 = vshll.u32 %v232, 16
      %v331 = vrot.slane %v329, 5
      %v332 = vsel %vm284, %v327, %v331
      %v334 = vshrl.u32 %v233, 16
      %v336 = vrot.slane %v334, 4
      %v337 = vshll.u32 %v233, 16
      %v339 = vrot.slane %v337, 5
      %v340 = vor.u32 %v336, %v339
      %v341 = vrot.slane %v340, 4
      %v343 = vshll.u32 %v234, 16
      %v345 = vrot.slane %v343, 5
      %v346 = vsel %vm284, %v341, %v345
      %v347 = vshrl.u32 %v234, 16
      %v349 = vrot.slane %v347, 4
      %v350 = vor.u32 %v349, %v345
      %v351 = vrot.slane %v350, 4
      %v353 = vshll.u32 %v235, 16
      %v355 = vrot.slane %v353, 5
      %v356 = vsel %vm284, %v351, %v355
      %v358 = vshrl.u32 %v236, 16
      %v360 = vrot.slane %v358, 4
      %v361 = vshll.u32 %v236, 16
      %v363 = vrot.slane %v361, 5
      %v364 = vor.u32 %v360, %v363
      %v365 = vrot.slane %v364, 4
      %v367 = vshll.u32 %v237, 16
      %v369 = vrot.slane %v367, 5
      %v370 = vsel %vm284, %v365, %v369
      %v371 = vshrl.u32 %v237, 16
      %v373 = vrot.slane %v371, 4
      %v374 = vor.u32 %v373, %v369
      %v375 = vrot.slane %v374, 4
      %v377 = vshll.u32 %v238, 16
      %v379 = vrot.slane %v377, 5
      %v380 = vsel %vm284, %v375, %v379
      %v382 = vshrl.u32 %v239, 16
      %v384 = vrot.slane %v382, 4
      %v385 = vshll.u32 %v239, 16
      %v387 = vrot.slane %v385, 5
      %v388 = vor.u32 %v384, %v387
      %v389 = vrot.slane %v388, 4
      %v391 = vshll.u32 %v240, 16
      %v393 = vrot.slane %v391, 5
      %v394 = vsel %vm284, %v389, %v393
      %v395 = vshrl.u32 %v240, 16
      %v397 = vrot.slane %v395, 4
      %v398 = vor.u32 %v397, %v393
      %v399 = vrot.slane %v398, 4
      %v401 = vshll.u32 %v241, 16
      %v403 = vrot.slane %v401, 5
      %v404 = vsel %vm284, %v399, %v403
      %v406 = vshrl.u32 %v242, 16
      %v408 = vrot.slane %v406, 4
      %v409 = vshll.u32 %v242, 16
      %v411 = vrot.slane %v409, 5
      %v412 = vor.u32 %v408, %v411
      %v413 = vrot.slane %v412, 4
      %v415 = vshll.u32 %v243, 16
      %v417 = vrot.slane %v415, 5
      %v418 = vsel %vm284, %v413, %v417
      %v419 = vshrl.u32 %v243, 16
      %v421 = vrot.slane %v419, 4
      %v422 = vor.u32 %v421, %v417
      %v423 = vrot.slane %v422, 4
      %v425 = vshll.u32 %v244, 16
      %v427 = vrot.slane %v425, 5
      %v428 = vsel %vm284, %v423, %v427
      %v430 = vshrl.u32 %v245, 16
      %v432 = vrot.slane %v430, 4
      %v433 = vshll.u32 %v245, 16
      %v435 = vrot.slane %v433, 5
      %v436 = vor.u32 %v432, %v435
      %v437 = vrot.slane %v436, 4
      %v439 = vshll.u32 %v246, 16
      %v441 = vrot.slane %v439, 5
      %v442 = vsel %vm284, %v437, %v441
      %v443 = vshrl.u32 %v246, 16
      %v445 = vrot.slane %v443, 4
      %v446 = vor.u32 %v445, %v441
      %v447 = vrot.slane %v446, 4
      %v449 = vshll.u32 %v247, 16
      %v451 = vrot.slane %v449, 5
      %v452 = vsel %vm284, %v447, %v451
      %v454 = vshrl.u32 %v248, 16
      %v456 = vrot.slane %v454, 4
      %v457 = vshll.u32 %v248, 16
      %v459 = vrot.slane %v457, 5
      %v460 = vor.u32 %v456, %v459
      %v461 = vrot.slane %v460, 4
      %v463 = vshll.u32 %v249, 16
      %v465 = vrot.slane %v463, 5
      %v466 = vsel %vm284, %v461, %v465
      %v467 = vshrl.u32 %v249, 16
      %v469 = vrot.slane %v467, 4
      %v470 = vor.u32 %v469, %v465
      %v471 = vrot.slane %v470, 4
      %v473 = vshll.u32 %v250, 16
      %v475 = vrot.slane %v473, 5
      %v476 = vsel %vm284, %v471, %v475
      %v478 = vshrl.u32 %v251, 16
      %v480 = vrot.slane %v478, 4
      %v481 = vshll.u32 %v251, 16
      %v483 = vrot.slane %v481, 5
      %v484 = vor.u32 %v480, %v483
      %v485 = vrot.slane %v484, 4
      %v487 = vshll.u32 %v252, 16
      %v489 = vrot.slane %v487, 5
      %v490 = vsel %vm284, %v485, %v489
      %v491 = vshrl.u32 %v252, 16
      %v493 = vrot.slane %v491, 4
      %v494 = vor.u32 %v493, %v489
      %v495 = vrot.slane %v494, 4
      %v497 = vshll.u32 %v253, 16
      %v499 = vrot.slane %v497, 5
      %v500 = vsel %vm284, %v495, %v499
      %v502 = vshrl.u32 %v254, 16
      %v504 = vrot.slane %v502, 4
      %v505 = vshll.u32 %v254, 16
      %v507 = vrot.slane %v505, 5
      %v508 = vor.u32 %v504, %v507
      %v509 = vrot.slane %v508, 4
      %v511 = vshll.u32 %v255, 16
      %v513 = vrot.slane %v511, 5
      %v514 = vsel %vm284, %v509, %v513
      %v515 = vshrl.u32 %v255, 16
      %v517 = vrot.slane %v515, 4
      %v518 = vor.u32 %v517, %v513
      %v519 = vrot.slane %v518, 4
      %v521 = vshll.u32 %v256, 16
      %v523 = vrot.slane %v521, 5
      %v524 = vsel %vm284, %v519, %v523
      %v526 = vshrl.u32 %v257, 16
      %v528 = vrot.slane %v526, 4
      %v529 = vshll.u32 %v257, 16
      %v531 = vrot.slane %v529, 5
      %v532 = vor.u32 %v528, %v531
      %v533 = vrot.slane %v532, 4
      %v535 = vshll.u32 %v258, 16
      %v537 = vrot.slane %v535, 5
      %v538 = vsel %vm284, %v533, %v537
      %v539 = vshrl.u32 %v258, 16
      %v541 = vrot.slane %v539, 4
      %v542 = vor.u32 %v541, %v537
      %v543 = vrot.slane %v542, 4
      %v545 = vshll.u32 %v259, 16
      %v547 = vrot.slane %v545, 5
      %v548 = vsel %vm284, %v543, %v547
      %v550 = vshrl.u32 %v260, 16
      %v552 = vrot.slane %v550, 4
      %v553 = vshll.u32 %v260, 16
      %v555 = vrot.slane %v553, 5
      %v556 = vor.u32 %v552, %v555
      %v557 = vrot.slane %v556, 4
      %v559 = vshll.u32 %v261, 16
      %v561 = vrot.slane %v559, 5
      %v562 = vsel %vm284, %v557, %v561
      %v563 = vshrl.u32 %v261, 16
      %v565 = vrot.slane %v563, 4
      %v566 = vor.u32 %v565, %v561
      %v567 = vrot.slane %v566, 4
      %v569 = vshll.u32 %v262, 16
      %v571 = vrot.slane %v569, 5
      %v572 = vsel %vm284, %v567, %v571
      %v574 = vshrl.u32 %v263, 16
      %v576 = vrot.slane %v574, 4
      %v577 = vshll.u32 %v263, 16
      %v579 = vrot.slane %v577, 5
      %v580 = vor.u32 %v576, %v579
      %v581 = vrot.slane %v580, 4
      %v583 = vshll.u32 %v264, 16
      %v585 = vrot.slane %v583, 5
      %v586 = vsel %vm284, %v581, %v585
      %v587 = vshrl.u32 %v264, 16
      %v589 = vrot.slane %v587, 4
      %v590 = vor.u32 %v589, %v585
      %v591 = vrot.slane %v590, 4
      %v593 = vshll.u32 %v265, 16
      %v595 = vrot.slane %v593, 5
      %v596 = vsel %vm284, %v591, %v595
      %v598 = vshrl.u32 %v266, 16
      %v600 = vrot.slane %v598, 4
      %v601 = vshll.u32 %v266, 16
      %v603 = vrot.slane %v601, 5
      %v604 = vor.u32 %v600, %v603
      %v605 = vrot.slane %v604, 4
      %v607 = vshll.u32 %v267, 16
      %v609 = vrot.slane %v607, 5
      %v610 = vsel %vm284, %v605, %v609
      %v611 = vshrl.u32 %v267, 16
      %v613 = vrot.slane %v611, 4
      %v614 = vor.u32 %v613, %v609
      %v615 = vrot.slane %v614, 4
      %v617 = vshll.u32 %v268, 16
      %v619 = vrot.slane %v617, 5
      %v620 = vsel %vm284, %v615, %v619
      %v622 = vshrl.u32 %v269, 16
      %v624 = vrot.slane %v622, 4
      %v625 = vshll.u32 %v269, 16
      %v627 = vrot.slane %v625, 5
      %v628 = vor.u32 %v624, %v627
      %v629 = vrot.slane %v628, 4
      %v631 = vshll.u32 %v270, 16
      %v633 = vrot.slane %v631, 5
      %v634 = vsel %vm284, %v629, %v633
      %v635 = vshrl.u32 %v270, 16
      %v637 = vrot.slane %v635, 4
      %v638 = vor.u32 %v637, %v633
      %v639 = vrot.slane %v638, 4
      %v641 = vshll.u32 %v271, 16
      %v643 = vrot.slane %v641, 5
      %v644 = vsel %vm284, %v639, %v643
      %v646 = vshrl.u32 %v272, 16
      %v648 = vrot.slane %v646, 4
      %v649 = vshll.u32 %v272, 16
      %v651 = vrot.slane %v649, 5
      %v652 = vor.u32 %v648, %v651
      %v653 = vrot.slane %v652, 4
      %v655 = vshll.u32 %v273, 16
      %v657 = vrot.slane %v655, 5
      %v658 = vsel %vm284, %v653, %v657
      %v659 = vshrl.u32 %v273, 16
      %v661 = vrot.slane %v659, 4
      %v662 = vor.u32 %v661, %v657
      %v663 = vrot.slane %v662, 4
      %v665 = vshll.u32 %v274, 16
      %v667 = vrot.slane %v665, 5
      %v668 = vsel %vm284, %v663, %v667
      %s669 = scalar_lea.vmem %s1, 4
      %v670 = vld [vmem:[%s669] sm:$0xf]
      %v671 = vunpack.c.l.b16 %v298
      %v672 = vunpack.c.l.b16 %v308
      %v673 = vunpack.c.l.b16 %v322
      %v674 = vunpack.c.l.b16 %v332
      %v675 = vunpack.c.l.b16 %v346
      %v676 = vunpack.c.l.b16 %v356
      %v677 = vunpack.c.l.b16 %v370
      %v678 = vunpack.c.l.b16 %v380
      %v679 = vunpack.c.l.b16 %v394
      %v680 = vunpack.c.l.b16 %v404
      %v681 = vunpack.c.l.b16 %v418
      %v682 = vunpack.c.l.b16 %v428
      %v683 = vunpack.c.l.b16 %v442
      %v684 = vunpack.c.l.b16 %v452
      %v685 = vunpack.c.l.b16 %v466
      %v686 = vunpack.c.l.b16 %v476
      %v687 = vunpack.c.l.b16 %v490
      %v688 = vunpack.c.l.b16 %v500
      %v689 = vunpack.c.l.b16 %v514
      %v690 = vunpack.c.l.b16 %v524
      %v691 = vunpack.c.l.b16 %v538
      %v692 = vunpack.c.l.b16 %v548
      %v693 = vunpack.c.l.b16 %v562
      %v694 = vunpack.c.l.b16 %v572
      %v695 = vunpack.c.l.b16 %v586
      %v696 = vunpack.c.l.b16 %v596
      %v697 = vunpack.c.l.b16 %v610
      %v698 = vunpack.c.l.b16 %v620
      %v699 = vunpack.c.l.b16 %v634
      %v700 = vunpack.c.l.b16 %v644
      %v701 = vunpack.c.l.b16 %v658
      %v702 = vunpack.c.l.b16 %v668
      %v703 = vpack.c.b16 %v672, %v671
      %v704 = vpack.c.b16 %v674, %v673
      %v705 = vpack.c.b16 %v676, %v675
      %v706 = vpack.c.b16 %v678, %v677
      %v707 = vpack.c.b16 %v680, %v679
      %v708 = vpack.c.b16 %v682, %v681
      %v709 = vpack.c.b16 %v684, %v683
      %v710 = vpack.c.b16 %v686, %v685
      %v711 = vpack.c.b16 %v688, %v687
      %v712 = vpack.c.b16 %v690, %v689
      %v713 = vpack.c.b16 %v692, %v691
      %v714 = vpack.c.b16 %v694, %v693
      %v715 = vpack.c.b16 %v696, %v695
      %v716 = vpack.c.b16 %v698, %v697
      %v717 = vpack.c.b16 %v700, %v699
      %v718 = vpack.c.b16 %v702, %v701
      %vm719 = vcmask 64512
      %v721 = vsel %vm719, %v703, 0
      %v724 = vsel %vm719, %v704, 0
      %v727 = vsel %vm719, %v705, 0
      %v730 = vsel %vm719, %v706, 0
      %v733 = vsel %vm719, %v707, 0
      %v736 = vsel %vm719, %v708, 0
      %v739 = vsel %vm719, %v709, 0
      %v742 = vsel %vm719, %v710, 0
      %v745 = vsel %vm719, %v711, 0
      %v748 = vsel %vm719, %v712, 0
      %v751 = vsel %vm719, %v713, 0
      %v754 = vsel %vm719, %v714, 0
      %v757 = vsel %vm719, %v715, 0
      %v760 = vsel %vm719, %v716, 0
      %v763 = vsel %vm719, %v717, 0
      %v766 = vsel %vm719, %v718, 0
      %vm768 = vcmask 1043456
      %v770 = vsel %vm768, %v670, 0
      %772 = vmatprep.subr.bf16.mxu0 0
      %773 = vmatpush1.bf16.msra.mxu0 %v770
      %774 = vmatprep.subr.bf16.mxu0 0
      %775 = vmatpush1.bf16.msra.mxu0 0
      %776 = vmatprep.subr.bf16.mxu0 0
      %777 = vmatpush1.bf16.msra.mxu0 0
      %778 = vmatprep.subr.bf16.mxu0 0
      %779 = vmatpush1.bf16.msra.mxu0 0
      %780 = vmatprep.subr.bf16.mxu0 0
      %781 = vmatpush1.bf16.msra.mxu0 0
      %782 = vmatprep.subr.bf16.mxu0 0
      %783 = vmatpush1.bf16.msra.mxu0 0
      %784 = vmatprep.subr.bf16.mxu0 0
      %785 = vmatpush1.bf16.msra.mxu0 0
      %786 = vmatprep.subr.bf16.mxu0 0
      %787 = vmatpush1.bf16.msra.mxu0 0
      %788 = vmatprep.subr.bf16.mxu0 0
      %789 = vmatpush1.bf16.msra.mxu0 0
      %790 = vmatprep.subr.bf16.mxu0 0
      %791 = vmatpush1.bf16.msra.mxu0 0
      %792 = vmatprep.subr.bf16.mxu0 0
      %793 = vmatpush1.bf16.msra.mxu0 0
      %794 = vmatprep.subr.bf16.mxu0 0
      %795 = vmatpush1.bf16.msra.mxu0 0
      %796 = vmatprep.subr.bf16.mxu0 0
      %797 = vmatpush1.bf16.msra.mxu0 0
      %798 = vmatprep.subr.bf16.mxu0 0
      %799 = vmatpush1.bf16.msra.mxu0 0
      %800 = vmatprep.subr.bf16.mxu0 0
      %801 = vmatpush1.bf16.msra.mxu0 0
      %802 = vmatprep.subr.bf16.mxu0 0
      %803 = vmatpush1.bf16.msra.mxu0 0
      %804 = vmatprep.mubr.bf16.mxu0 0
      %805 = vmatmul.mubr.bf16.gmra.mrb[0].mxu0 %v721
      %v806 = vpop.f32.mrb[0].mxu0
      %v807 = vadd.f32 0.0, %v806
      %v808 = vpop.f32.mrb[0].mxu0
      %v809 = vpop.f32.mrb[0].mxu0
      %v810 = vadd.f32 0.0, %v809
      %v811 = vpop.f32.mrb[0].mxu0
      %812 = vmatprep.mubr.bf16.mxu0 0
      %813 = vmatmul.mubr.bf16.gmra.mrb[0].mxu0 %v724
      %v814 = vpop.f32.mrb[0].mxu0
      %v815 = vadd.f32 0.0, %v814
      %v816 = vpop.f32.mrb[0].mxu0
      %v817 = vpop.f32.mrb[0].mxu0
      %v818 = vadd.f32 0.0, %v817
      %v819 = vpop.f32.mrb[0].mxu0
      %820 = vmatprep.mubr.bf16.mxu0 0
      %821 = vmatmul.mubr.bf16.gmra.mrb[0].mxu0 %v727
      %v822 = vpop.f32.mrb[0].mxu0
      %v823 = vadd.f32 0.0, %v822
      %v824 = vpop.f32.mrb[0].mxu0
      %v825 = vpop.f32.mrb[0].mxu0
      %v826 = vadd.f32 0.0, %v825
      %v827 = vpop.f32.mrb[0].mxu0
      %828 = vmatprep.mubr.bf16.mxu0 0
      %829 = vmatmul.mubr.bf16.gmra.mrb[0].mxu0 %v730
      %v830 = vpop.f32.mrb[0].mxu0
      %v831 = vadd.f32 0.0, %v830
      %v832 = vpop.f32.mrb[0].mxu0
      %v833 = vpop.f32.mrb[0].mxu0
      %v834 = vadd.f32 0.0, %v833
      %v835 = vpop.f32.mrb[0].mxu0
      %836 = vmatprep.mubr.bf16.mxu0 0
      %837 = vmatmul.mubr.bf16.gmra.mrb[0].mxu0 %v733
      %v838 = vpop.f32.mrb[0].mxu0
      %v839 = vadd.f32 0.0, %v838
      %v840 = vpop.f32.mrb[0].mxu0
      %v841 = vpop.f32.mrb[0].mxu0
      %v842 = vadd.f32 0.0, %v841
      %v843 = vpop.f32.mrb[0].mxu0
      %844 = vmatprep.mubr.bf16.mxu0 0
      %845 = vmatmul.mubr.bf16.gmra.mrb[0].mxu0 %v736
      %v846 = vpop.f32.mrb[0].mxu0
      %v847 = vadd.f32 0.0, %v846
      %v848 = vpop.f32.mrb[0].mxu0
      %v849 = vpop.f32.mrb[0].mxu0
      %v850 = vadd.f32 0.0, %v849
      %v851 = vpop.f32.mrb[0].mxu0
      %852 = vmatprep.mubr.bf16.mxu0 0
      %853 = vmatmul.mubr.bf16.gmra.mrb[0].mxu0 %v739
      %v854 = vpop.f32.mrb[0].mxu0
      %v855 = vadd.f32 0.0, %v854
      %v856 = vpop.f32.mrb[0].mxu0
      %v857 = vpop.f32.mrb[0].mxu0
      %v858 = vadd.f32 0.0, %v857
      %v859 = vpop.f32.mrb[0].mxu0
      %860 = vmatprep.mubr.bf16.mxu0 0
      %861 = vmatmul.mubr.bf16.gmra.mrb[0].mxu0 %v742
      %v862 = vpop.f32.mrb[0].mxu0
      %v863 = vadd.f32 0.0, %v862
      %v864 = vpop.f32.mrb[0].mxu0
      %v865 = vpop.f32.mrb[0].mxu0
      %v866 = vadd.f32 0.0, %v865
      %v867 = vpop.f32.mrb[0].mxu0
      %868 = vmatprep.mubr.bf16.mxu0 0
      %869 = vmatmul.mubr.bf16.gmra.mrb[0].mxu0 %v745
      %v870 = vpop.f32.mrb[0].mxu0
      %v871 = vadd.f32 0.0, %v870
      %v872 = vpop.f32.mrb[0].mxu0
      %v873 = vpop.f32.mrb[0].mxu0
      %v874 = vadd.f32 0.0, %v873
      %v875 = vpop.f32.mrb[0].mxu0
      %876 = vmatprep.mubr.bf16.mxu0 0
      %877 = vmatmul.mubr.bf16.gmra.mrb[0].mxu0 %v748
      %v878 = vpop.f32.mrb[0].mxu0
      %v879 = vadd.f32 0.0, %v878
      %v880 = vpop.f32.mrb[0].mxu0
      %v881 = vpop.f32.mrb[0].mxu0
      %v882 = vadd.f32 0.0, %v881
      %v883 = vpop.f32.mrb[0].mxu0
      %884 = vmatprep.mubr.bf16.mxu0 0
      %885 = vmatmul.mubr.bf16.gmra.mrb[0].mxu0 %v751
      %v886 = vpop.f32.mrb[0].mxu0
      %v887 = vadd.f32 0.0, %v886
      %v888 = vpop.f32.mrb[0].mxu0
      %v889 = vpop.f32.mrb[0].mxu0
      %v890 = vadd.f32 0.0, %v889
      %v891 = vpop.f32.mrb[0].mxu0
      %892 = vmatprep.mubr.bf16.mxu0 0
      %893 = vmatmul.mubr.bf16.gmra.mrb[0].mxu0 %v754
      %v894 = vpop.f32.mrb[0].mxu0
      %v895 = vadd.f32 0.0, %v894
      %v896 = vpop.f32.mrb[0].mxu0
      %v897 = vpop.f32.mrb[0].mxu0
      %v898 = vadd.f32 0.0, %v897
      %v899 = vpop.f32.mrb[0].mxu0
      %900 = vmatprep.mubr.bf16.mxu0 0
      %901 = vmatmul.mubr.bf16.gmra.mrb[0].mxu0 %v757
      %v902 = vpop.f32.mrb[0].mxu0
      %v903 = vadd.f32 0.0, %v902
      %v904 = vpop.f32.mrb[0].mxu0
      %v905 = vpop.f32.mrb[0].mxu0
      %v906 = vadd.f32 0.0, %v905
      %v907 = vpop.f32.mrb[0].mxu0
      %908 = vmatprep.mubr.bf16.mxu0 0
      %909 = vmatmul.mubr.bf16.gmra.mrb[0].mxu0 %v760
      %v910 = vpop.f32.mrb[0].mxu0
      %v911 = vadd.f32 0.0, %v910
      %v912 = vpop.f32.mrb[0].mxu0
      %v913 = vpop.f32.mrb[0].mxu0
      %v914 = vadd.f32 0.0, %v913
      %v915 = vpop.f32.mrb[0].mxu0
      %916 = vmatprep.mubr.bf16.mxu0 0
      %917 = vmatmul.mubr.bf16.gmra.mrb[0].mxu0 %v763
      %v918 = vpop.f32.mrb[0].mxu0
      %v919 = vadd.f32 0.0, %v918
      %v920 = vpop.f32.mrb[0].mxu0
      %v921 = vpop.f32.mrb[0].mxu0
      %v922 = vadd.f32 0.0, %v921
      %v923 = vpop.f32.mrb[0].mxu0
      %924 = vmatprep.mubr.bf16.mxu0 0
      %925 = vmatmul.mubr.bf16.gmra.mrb[0].mxu0 %v766
      %v926 = vpop.f32.mrb[0].mxu0
      %v927 = vadd.f32 0.0, %v926
      %v928 = vpop.f32.mrb[0].mxu0
      %v929 = vpop.f32.mrb[0].mxu0
      %v930 = vadd.f32 0.0, %v929
      %v931 = vpop.f32.mrb[0].mxu0
      %932 = vdwg.mxu0
      %v965 = vunpack.c.l.b16 %v227
      %v966 = vunpack.c.l.b16 %v228
      %v967 = vunpack.c.l.b16 %v230
      %v968 = vunpack.c.l.b16 %v231
      %v969 = vunpack.c.l.b16 %v233
      %v970 = vunpack.c.l.b16 %v234
      %v971 = vunpack.c.l.b16 %v236
      %v972 = vunpack.c.l.b16 %v237
      %v973 = vunpack.c.l.b16 %v239
      %v974 = vunpack.c.l.b16 %v240
      %v975 = vunpack.c.l.b16 %v242
      %v976 = vunpack.c.l.b16 %v243
      %v977 = vunpack.c.l.b16 %v245
      %v978 = vunpack.c.l.b16 %v246
      %v979 = vunpack.c.l.b16 %v248
      %v980 = vunpack.c.l.b16 %v249
      %v981 = vunpack.c.l.b16 %v251
      %v982 = vunpack.c.l.b16 %v252
      %v983 = vunpack.c.l.b16 %v254
      %v984 = vunpack.c.l.b16 %v255
      %v985 = vunpack.c.l.b16 %v257
      %v986 = vunpack.c.l.b16 %v258
      %v987 = vunpack.c.l.b16 %v260
      %v988 = vunpack.c.l.b16 %v261
      %v989 = vunpack.c.l.b16 %v263
      %v990 = vunpack.c.l.b16 %v264
      %v991 = vunpack.c.l.b16 %v266
      %v992 = vunpack.c.l.b16 %v267
      %v993 = vunpack.c.l.b16 %v269
      %v994 = vunpack.c.l.b16 %v270
      %v995 = vunpack.c.l.b16 %v272
      %v996 = vunpack.c.l.b16 %v273
      %v997 = vpack.c.b16 %v966, %v965
      %v998 = vpack.c.b16 %v968, %v967
      %v999 = vpack.c.b16 %v970, %v969
      %v1000 = vpack.c.b16 %v972, %v971
      %v1001 = vpack.c.b16 %v974, %v973
      %v1002 = vpack.c.b16 %v976, %v975
      %v1003 = vpack.c.b16 %v978, %v977
      %v1004 = vpack.c.b16 %v980, %v979
      %v1005 = vpack.c.b16 %v982, %v981
      %v1006 = vpack.c.b16 %v984, %v983
      %v1007 = vpack.c.b16 %v986, %v985
      %v1008 = vpack.c.b16 %v988, %v987
      %v1009 = vpack.c.b16 %v990, %v989
      %v1010 = vpack.c.b16 %v992, %v991
      %v1011 = vpack.c.b16 %v994, %v993
      %v1012 = vpack.c.b16 %v996, %v995
      %v1014 = vsel %vm719, %v997, 0
      %v1017 = vsel %vm719, %v998, 0
      %v1020 = vsel %vm719, %v999, 0
      %v1023 = vsel %vm719, %v1000, 0
      %v1026 = vsel %vm719, %v1001, 0
      %v1029 = vsel %vm719, %v1002, 0
      %v1032 = vsel %vm719, %v1003, 0
      %v1035 = vsel %vm719, %v1004, 0
      %v1038 = vsel %vm719, %v1005, 0
      %v1041 = vsel %vm719, %v1006, 0
      %v1044 = vsel %vm719, %v1007, 0
      %v1047 = vsel %vm719, %v1008, 0
      %v1050 = vsel %vm719, %v1009, 0
      %v1053 = vsel %vm719, %v1010, 0
      %v1056 = vsel %vm719, %v1011, 0
      %v1059 = vsel %vm719, %v1012, 0
      %v1062 = vsel %vm768, %v281, 0
      %1064 = vmatprep.subr.bf16.mxu0 0
      %1065 = vmatpush1.bf16.msra.mxu0 %v1062
      %1066 = vmatprep.subr.bf16.mxu0 0
      %1067 = vmatpush1.bf16.msra.mxu0 0
      %1068 = vmatprep.subr.bf16.mxu0 0
      %1069 = vmatpush1.bf16.msra.mxu0 0
      %1070 = vmatprep.subr.bf16.mxu0 0
      %1071 = vmatpush1.bf16.msra.mxu0 0
      %1072 = vmatprep.subr.bf16.mxu0 0
      %1073 = vmatpush1.bf16.msra.mxu0 0
      %1074 = vmatprep.subr.bf16.mxu0 0
      %1075 = vmatpush1.bf16.msra.mxu0 0
      %1076 = vmatprep.subr.bf16.mxu0 0
      %1077 = vmatpush1.bf16.msra.mxu0 0
      %1078 = vmatprep.subr.bf16.mxu0 0
      %1079 = vmatpush1.bf16.msra.mxu0 0
      %1080 = vmatprep.subr.bf16.mxu0 0
      %1081 = vmatpush1.bf16.msra.mxu0 0
      %1082 = vmatprep.subr.bf16.mxu0 0
      %1083 = vmatpush1.bf16.msra.mxu0 0
      %1084 = vmatprep.subr.bf16.mxu0 0
      %1085 = vmatpush1.bf16.msra.mxu0 0
      %1086 = vmatprep.subr.bf16.mxu0 0
      %1087 = vmatpush1.bf16.msra.mxu0 0
      %1088 = vmatprep.subr.bf16.mxu0 0
      %1089 = vmatpush1.bf16.msra.mxu0 0
      %1090 = vmatprep.subr.bf16.mxu0 0
      %1091 = vmatpush1.bf16.msra.mxu0 0
      %1092 = vmatprep.subr.bf16.mxu0 0
      %1093 = vmatpush1.bf16.msra.mxu0 0
      %1094 = vmatprep.subr.bf16.mxu0 0
      %1095 = vmatpush1.bf16.msra.mxu0 0
      %1096 = vmatprep.mubr.bf16.mxu0 0
      %1097 = vmatmul.mubr.bf16.gmra.mrb[0].mxu0 %v1014
      %v1098 = vpop.f32.mrb[0].mxu0
      %v1099 = vadd.f32 %v807, %v1098
      %v1100 = vpop.f32.mrb[0].mxu0
      %v1101 = vpop.f32.mrb[0].mxu0
      %v1102 = vadd.f32 %v810, %v1101
      %v1103 = vpop.f32.mrb[0].mxu0
      %1104 = vmatprep.mubr.bf16.mxu0 0
      %1105 = vmatmul.mubr.bf16.gmra.mrb[0].mxu0 %v1017
      %v1106 = vpop.f32.mrb[0].mxu0
      %v1107 = vadd.f32 %v815, %v1106
      %v1108 = vpop.f32.mrb[0].mxu0
      %v1109 = vpop.f32.mrb[0].mxu0
      %v1110 = vadd.f32 %v818, %v1109
      %v1111 = vpop.f32.mrb[0].mxu0
      %1112 = vmatprep.mubr.bf16.mxu0 0
      %1113 = vmatmul.mubr.bf16.gmra.mrb[0].mxu0 %v1020
      %v1114 = vpop.f32.mrb[0].mxu0
      %v1115 = vadd.f32 %v823, %v1114
      %v1116 = vpop.f32.mrb[0].mxu0
      %v1117 = vpop.f32.mrb[0].mxu0
      %v1118 = vadd.f32 %v826, %v1117
      %v1119 = vpop.f32.mrb[0].mxu0
      %1120 = vmatprep.mubr.bf16.mxu0 0
      %1121 = vmatmul.mubr.bf16.gmra.mrb[0].mxu0 %v1023
      %v1122 = vpop.f32.mrb[0].mxu0
      %v1123 = vadd.f32 %v831, %v1122
      %v1124 = vpop.f32.mrb[0].mxu0
      %v1125 = vpop.f32.mrb[0].mxu0
      %v1126 = vadd.f32 %v834, %v1125
      %v1127 = vpop.f32.mrb[0].mxu0
      %1128 = vmatprep.mubr.bf16.mxu0 0
      %1129 = vmatmul.mubr.bf16.gmra.mrb[0].mxu0 %v1026
      %v1130 = vpop.f32.mrb[0].mxu0
      %v1131 = vadd.f32 %v839, %v1130
      %v1132 = vpop.f32.mrb[0].mxu0
      %v1133 = vpop.f32.mrb[0].mxu0
      %v1134 = vadd.f32 %v842, %v1133
      %v1135 = vpop.f32.mrb[0].mxu0
      %1136 = vmatprep.mubr.bf16.mxu0 0
      %1137 = vmatmul.mubr.bf16.gmra.mrb[0].mxu0 %v1029
      %v1138 = vpop.f32.mrb[0].mxu0
      %v1139 = vadd.f32 %v847, %v1138
      %v1140 = vpop.f32.mrb[0].mxu0
      %v1141 = vpop.f32.mrb[0].mxu0
      %v1142 = vadd.f32 %v850, %v1141
      %v1143 = vpop.f32.mrb[0].mxu0
      %1144 = vmatprep.mubr.bf16.mxu0 0
      %1145 = vmatmul.mubr.bf16.gmra.mrb[0].mxu0 %v1032
      %v1146 = vpop.f32.mrb[0].mxu0
      %v1147 = vadd.f32 %v855, %v1146
      %v1148 = vpop.f32.mrb[0].mxu0
      %v1149 = vpop.f32.mrb[0].mxu0
      %v1150 = vadd.f32 %v858, %v1149
      %v1151 = vpop.f32.mrb[0].mxu0
      %1152 = vmatprep.mubr.bf16.mxu0 0
      %1153 = vmatmul.mubr.bf16.gmra.mrb[0].mxu0 %v1035
      %v1154 = vpop.f32.mrb[0].mxu0
      %v1155 = vadd.f32 %v863, %v1154
      %v1156 = vpop.f32.mrb[0].mxu0
      %v1157 = vpop.f32.mrb[0].mxu0
      %v1158 = vadd.f32 %v866, %v1157
      %v1159 = vpop.f32.mrb[0].mxu0
      %1160 = vmatprep.mubr.bf16.mxu0 0
      %1161 = vmatmul.mubr.bf16.gmra.mrb[0].mxu0 %v1038
      %v1162 = vpop.f32.mrb[0].mxu0
      %v1163 = vadd.f32 %v871, %v1162
      %v1164 = vpop.f32.mrb[0].mxu0
      %v1165 = vpop.f32.mrb[0].mxu0
      %v1166 = vadd.f32 %v874, %v1165
      %v1167 = vpop.f32.mrb[0].mxu0
      %1168 = vmatprep.mubr.bf16.mxu0 0
      %1169 = vmatmul.mubr.bf16.gmra.mrb[0].mxu0 %v1041
      %v1170 = vpop.f32.mrb[0].mxu0
      %v1171 = vadd.f32 %v879, %v1170
      %v1172 = vpop.f32.mrb[0].mxu0
      %v1173 = vpop.f32.mrb[0].mxu0
      %v1174 = vadd.f32 %v882, %v1173
      %v1175 = vpop.f32.mrb[0].mxu0
      %1176 = vmatprep.mubr.bf16.mxu0 0
      %1177 = vmatmul.mubr.bf16.gmra.mrb[0].mxu0 %v1044
      %v1178 = vpop.f32.mrb[0].mxu0
      %v1179 = vadd.f32 %v887, %v1178
      %v1180 = vpop.f32.mrb[0].mxu0
      %v1181 = vpop.f32.mrb[0].mxu0
      %v1182 = vadd.f32 %v890, %v1181
      %v1183 = vpop.f32.mrb[0].mxu0
      %1184 = vmatprep.mubr.bf16.mxu0 0
      %1185 = vmatmul.mubr.bf16.gmra.mrb[0].mxu0 %v1047
      %v1186 = vpop.f32.mrb[0].mxu0
      %v1187 = vadd.f32 %v895, %v1186
      %v1188 = vpop.f32.mrb[0].mxu0
      %v1189 = vpop.f32.mrb[0].mxu0
      %v1190 = vadd.f32 %v898, %v1189
      %v1191 = vpop.f32.mrb[0].mxu0
      %1192 = vmatprep.mubr.bf16.mxu0 0
      %1193 = vmatmul.mubr.bf16.gmra.mrb[0].mxu0 %v1050
      %v1194 = vpop.f32.mrb[0].mxu0
      %v1195 = vadd.f32 %v903, %v1194
      %v1196 = vpop.f32.mrb[0].mxu0
      %v1197 = vpop.f32.mrb[0].mxu0
      %v1198 = vadd.f32 %v906, %v1197
      %v1199 = vpop.f32.mrb[0].mxu0
      %1200 = vmatprep.mubr.bf16.mxu0 0
      %1201 = vmatmul.mubr.bf16.gmra.mrb[0].mxu0 %v1053
      %v1202 = vpop.f32.mrb[0].mxu0
      %v1203 = vadd.f32 %v911, %v1202
      %v1204 = vpop.f32.mrb[0].mxu0
      %v1205 = vpop.f32.mrb[0].mxu0
      %v1206 = vadd.f32 %v914, %v1205
      %v1207 = vpop.f32.mrb[0].mxu0
      %1208 = vmatprep.mubr.bf16.mxu0 0
      %1209 = vmatmul.mubr.bf16.gmra.mrb[0].mxu0 %v1056
      %v1210 = vpop.f32.mrb[0].mxu0
      %v1211 = vadd.f32 %v919, %v1210
      %v1212 = vpop.f32.mrb[0].mxu0
      %v1213 = vpop.f32.mrb[0].mxu0
      %v1214 = vadd.f32 %v922, %v1213
      %v1215 = vpop.f32.mrb[0].mxu0
      %1216 = vmatprep.mubr.bf16.mxu0 0
      %1217 = vmatmul.mubr.bf16.gmra.mrb[0].mxu0 %v1059
      %v1218 = vpop.f32.mrb[0].mxu0
      %v1219 = vadd.f32 %v927, %v1218
      %v1220 = vpop.f32.mrb[0].mxu0
      %v1221 = vpop.f32.mrb[0].mxu0
      %v1222 = vadd.f32 %v930, %v1221
      %v1223 = vpop.f32.mrb[0].mxu0
      %1224 = vdwg.mxu0
      %vm1241 = vcmask 1042432
      %vm1242 = vcmask 1046532
      %vm1243 = vmor %vm1241, %vm1242
      %v1244 = vrot.slane %v227, 5
      %v1245 = vrot.slane %v1244, 4
      %v1246 = vrot.slane %v228, 5
      %v1247 = vsel %vm1243, %v1245, %v1246
      %v1248 = vrot.slane %v1246, 4
      %v1249 = vrot.slane %v229, 5
      %v1250 = vsel %vm1243, %v1248, %v1249
      %v1251 = vrot.slane %v230, 5
      %v1252 = vrot.slane %v1251, 4
      %v1253 = vrot.slane %v231, 5
      %v1254 = vsel %vm1243, %v1252, %v1253
      %v1255 = vrot.slane %v1253, 4
      %v1256 = vrot.slane %v232, 5
      %v1257 = vsel %vm1243, %v1255, %v1256
      %v1258 = vrot.slane %v233, 5
      %v1259 = vrot.slane %v1258, 4
      %v1260 = vrot.slane %v234, 5
      %v1261 = vsel %vm1243, %v1259, %v1260
      %v1262 = vrot.slane %v1260, 4
      %v1263 = vrot.slane %v235, 5
      %v1264 = vsel %vm1243, %v1262, %v1263
      %v1265 = vrot.slane %v236, 5
      %v1266 = vrot.slane %v1265, 4
      %v1267 = vrot.slane %v237, 5
      %v1268 = vsel %vm1243, %v1266, %v1267
      %v1269 = vrot.slane %v1267, 4
      %v1270 = vrot.slane %v238, 5
      %v1271 = vsel %vm1243, %v1269, %v1270
      %v1272 = vrot.slane %v239, 5
      %v1273 = vrot.slane %v1272, 4
      %v1274 = vrot.slane %v240, 5
      %v1275 = vsel %vm1243, %v1273, %v1274
      %v1276 = vrot.slane %v1274, 4
      %v1277 = vrot.slane %v241, 5
      %v1278 = vsel %vm1243, %v1276, %v1277
      %v1279 = vrot.slane %v242, 5
      %v1280 = vrot.slane %v1279, 4
      %v1281 = vrot.slane %v243, 5
      %v1282 = vsel %vm1243, %v1280, %v1281
      %v1283 = vrot.slane %v1281, 4
      %v1284 = vrot.slane %v244, 5
      %v1285 = vsel %vm1243, %v1283, %v1284
      %v1286 = vrot.slane %v245, 5
      %v1287 = vrot.slane %v1286, 4
      %v1288 = vrot.slane %v246, 5
      %v1289 = vsel %vm1243, %v1287, %v1288
      %v1290 = vrot.slane %v1288, 4
      %v1291 = vrot.slane %v247, 5
      %v1292 = vsel %vm1243, %v1290, %v1291
      %v1293 = vrot.slane %v248, 5
      %v1294 = vrot.slane %v1293, 4
      %v1295 = vrot.slane %v249, 5
      %v1296 = vsel %vm1243, %v1294, %v1295
      %v1297 = vrot.slane %v1295, 4
      %v1298 = vrot.slane %v250, 5
      %v1299 = vsel %vm1243, %v1297, %v1298
      %v1300 = vrot.slane %v251, 5
      %v1301 = vrot.slane %v1300, 4
      %v1302 = vrot.slane %v252, 5
      %v1303 = vsel %vm1243, %v1301, %v1302
      %v1304 = vrot.slane %v1302, 4
      %v1305 = vrot.slane %v253, 5
      %v1306 = vsel %vm1243, %v1304, %v1305
      %v1307 = vrot.slane %v254, 5
      %v1308 = vrot.slane %v1307, 4
      %v1309 = vrot.slane %v255, 5
      %v1310 = vsel %vm1243, %v1308, %v1309
      %v1311 = vrot.slane %v1309, 4
      %v1312 = vrot.slane %v256, 5
      %v1313 = vsel %vm1243, %v1311, %v1312
      %v1314 = vrot.slane %v257, 5
      %v1315 = vrot.slane %v1314, 4
      %v1316 = vrot.slane %v258, 5
      %v1317 = vsel %vm1243, %v1315, %v1316
      %v1318 = vrot.slane %v1316, 4
      %v1319 = vrot.slane %v259, 5
      %v1320 = vsel %vm1243, %v1318, %v1319
      %v1321 = vrot.slane %v260, 5
      %v1322 = vrot.slane %v1321, 4
      %v1323 = vrot.slane %v261, 5
      %v1324 = vsel %vm1243, %v1322, %v1323
      %v1325 = vrot.slane %v1323, 4
      %v1326 = vrot.slane %v262, 5
      %v1327 = vsel %vm1243, %v1325, %v1326
      %v1328 = vrot.slane %v263, 5
      %v1329 = vrot.slane %v1328, 4
      %v1330 = vrot.slane %v264, 5
      %v1331 = vsel %vm1243, %v1329, %v1330
      %v1332 = vrot.slane %v1330, 4
      %v1333 = vrot.slane %v265, 5
      %v1334 = vsel %vm1243, %v1332, %v1333
      %v1335 = vrot.slane %v266, 5
      %v1336 = vrot.slane %v1335, 4
      %v1337 = vrot.slane %v267, 5
      %v1338 = vsel %vm1243, %v1336, %v1337
      %v1339 = vrot.slane %v1337, 4
      %v1340 = vrot.slane %v268, 5
      %v1341 = vsel %vm1243, %v1339, %v1340
      %v1342 = vrot.slane %v269, 5
      %v1343 = vrot.slane %v1342, 4
      %v1344 = vrot.slane %v270, 5
      %v1345 = vsel %vm1243, %v1343, %v1344
      %v1346 = vrot.slane %v1344, 4
      %v1347 = vrot.slane %v271, 5
      %v1348 = vsel %vm1243, %v1346, %v1347
      %v1349 = vrot.slane %v272, 5
      %v1350 = vrot.slane %v1349, 4
      %v1351 = vrot.slane %v273, 5
      %v1352 = vsel %vm1243, %v1350, %v1351
      %v1353 = vrot.slane %v1351, 4
      %v1354 = vrot.slane %v274, 5
      %v1355 = vsel %vm1243, %v1353, %v1354
      %s1356 = scalar_lea.vmem %s1, 8
      %v1357 = vld [vmem:[%s1356] sm:$0xf]
      %v1358 = vunpack.c.l.b16 %v1247
      %v1359 = vunpack.c.l.b16 %v1250
      %v1360 = vunpack.c.l.b16 %v1254
      %v1361 = vunpack.c.l.b16 %v1257
      %v1362 = vunpack.c.l.b16 %v1261
      %v1363 = vunpack.c.l.b16 %v1264
      %v1364 = vunpack.c.l.b16 %v1268
      %v1365 = vunpack.c.l.b16 %v1271
      %v1366 = vunpack.c.l.b16 %v1275
      %v1367 = vunpack.c.l.b16 %v1278
      %v1368 = vunpack.c.l.b16 %v1282
      %v1369 = vunpack.c.l.b16 %v1285
      %v1370 = vunpack.c.l.b16 %v1289
      %v1371 = vunpack.c.l.b16 %v1292
      %v1372 = vunpack.c.l.b16 %v1296
      %v1373 = vunpack.c.l.b16 %v1299
      %v1374 = vunpack.c.l.b16 %v1303
      %v1375 = vunpack.c.l.b16 %v1306
      %v1376 = vunpack.c.l.b16 %v1310
      %v1377 = vunpack.c.l.b16 %v1313
      %v1378 = vunpack.c.l.b16 %v1317
      %v1379 = vunpack.c.l.b16 %v1320
      %v1380 = vunpack.c.l.b16 %v1324
      %v1381 = vunpack.c.l.b16 %v1327
      %v1382 = vunpack.c.l.b16 %v1331
      %v1383 = vunpack.c.l.b16 %v1334
      %v1384 = vunpack.c.l.b16 %v1338
      %v1385 = vunpack.c.l.b16 %v1341
      %v1386 = vunpack.c.l.b16 %v1345
      %v1387 = vunpack.c.l.b16 %v1348
      %v1388 = vunpack.c.l.b16 %v1352
      %v1389 = vunpack.c.l.b16 %v1355
      %v1390 = vpack.c.b16 %v1359, %v1358
      %v1391 = vpack.c.b16 %v1361, %v1360
      %v1392 = vpack.c.b16 %v1363, %v1362
      %v1393 = vpack.c.b16 %v1365, %v1364
      %v1394 = vpack.c.b16 %v1367, %v1366
      %v1395 = vpack.c.b16 %v1369, %v1368
      %v1396 = vpack.c.b16 %v1371, %v1370
      %v1397 = vpack.c.b16 %v1373, %v1372
      %v1398 = vpack.c.b16 %v1375, %v1374
      %v1399 = vpack.c.b16 %v1377, %v1376
      %v1400 = vpack.c.b16 %v1379, %v1378
      %v1401 = vpack.c.b16 %v1381, %v1380
      %v1402 = vpack.c.b16 %v1383, %v1382
      %v1403 = vpack.c.b16 %v1385, %v1384
      %v1404 = vpack.c.b16 %v1387, %v1386
      %v1405 = vpack.c.b16 %v1389, %v1388
      %v1407 = vsel %vm719, %v1390, 0
      %v1410 = vsel %vm719, %v1391, 0
      %v1413 = vsel %vm719, %v1392, 0
      %v1416 = vsel %vm719, %v1393, 0
      %v1419 = vsel %vm719, %v1394, 0
      %v1422 = vsel %vm719, %v1395, 0
      %v1425 = vsel %vm719, %v1396, 0
      %v1428 = vsel %vm719, %v1397, 0
      %v1431 = vsel %vm719, %v1398, 0
      %v1434 = vsel %vm719, %v1399, 0
      %v1437 = vsel %vm719, %v1400, 0
      %v1440 = vsel %vm719, %v1401, 0
      %v1443 = vsel %vm719, %v1402, 0
      %v1446 = vsel %vm719, %v1403, 0
      %v1449 = vsel %vm719, %v1404, 0
      %v1452 = vsel %vm719, %v1405, 0
      %v1455 = vsel %vm768, %v1357, 0
      %1457 = vmatprep.subr.bf16.mxu0 0
      %1458 = vmatpush1.bf16.msra.mxu0 %v1455
      %1459 = vmatprep.subr.bf16.mxu0 0
      %1460 = vmatpush1.bf16.msra.mxu0 0
      %1461 = vmatprep.subr.bf16.mxu0 0
      %1462 = vmatpush1.bf16.msra.mxu0 0
      %1463 = vmatprep.subr.bf16.mxu0 0
      %1464 = vmatpush1.bf16.msra.mxu0 0
      %1465 = vmatprep.subr.bf16.mxu0 0
      %1466 = vmatpush1.bf16.msra.mxu0 0
      %1467 = vmatprep.subr.bf16.mxu0 0
      %1468 = vmatpush1.bf16.msra.mxu0 0
      %1469 = vmatprep.subr.bf16.mxu0 0
      %1470 = vmatpush1.bf16.msra.mxu0 0
      %1471 = vmatprep.subr.bf16.mxu0 0
      %1472 = vmatpush1.bf16.msra.mxu0 0
      %1473 = vmatprep.subr.bf16.mxu0 0
      %1474 = vmatpush1.bf16.msra.mxu0 0
      %1475 = vmatprep.subr.bf16.mxu0 0
      %1476 = vmatpush1.bf16.msra.mxu0 0
      %1477 = vmatprep.subr.bf16.mxu0 0
      %1478 = vmatpush1.bf16.msra.mxu0 0
      %1479 = vmatprep.subr.bf16.mxu0 0
      %1480 = vmatpush1.bf16.msra.mxu0 0
      %1481 = vmatprep.subr.bf16.mxu0 0
      %1482 = vmatpush1.bf16.msra.mxu0 0
      %1483 = vmatprep.subr.bf16.mxu0 0
      %1484 = vmatpush1.bf16.msra.mxu0 0
      %1485 = vmatprep.subr.bf16.mxu0 0
      %1486 = vmatpush1.bf16.msra.mxu0 0
      %1487 = vmatprep.subr.bf16.mxu0 0
      %1488 = vmatpush1.bf16.msra.mxu0 0
      %1489 = vmatprep.mubr.bf16.mxu0 0
      %1490 = vmatmul.mubr.bf16.gmra.mrb[0].mxu0 %v1407
      %v1491 = vpop.f32.mrb[0].mxu0
      %v1492 = vadd.f32 0.0, %v1491
      %v1493 = vpop.f32.mrb[0].mxu0
      %v1494 = vpop.f32.mrb[0].mxu0
      %v1495 = vadd.f32 0.0, %v1494
      %v1496 = vpop.f32.mrb[0].mxu0
      %1497 = vmatprep.mubr.bf16.mxu0 0
      %1498 = vmatmul.mubr.bf16.gmra.mrb[0].mxu0 %v1410
      %v1499 = vpop.f32.mrb[0].mxu0
      %v1500 = vadd.f32 0.0, %v1499
      %v1501 = vpop.f32.mrb[0].mxu0
      %v1502 = vpop.f32.mrb[0].mxu0
      %v1503 = vadd.f32 0.0, %v1502
      %v1504 = vpop.f32.mrb[0].mxu0
      %1505 = vmatprep.mubr.bf16.mxu0 0
      %1506 = vmatmul.mubr.bf16.gmra.mrb[0].mxu0 %v1413
      %v1507 = vpop.f32.mrb[0].mxu0
      %v1508 = vadd.f32 0.0, %v1507
      %v1509 = vpop.f32.mrb[0].mxu0
      %v1510 = vpop.f32.mrb[0].mxu0
      %v1511 = vadd.f32 0.0, %v1510
      %v1512 = vpop.f32.mrb[0].mxu0
      %1513 = vmatprep.mubr.bf16.mxu0 0
      %1514 = vmatmul.mubr.bf16.gmra.mrb[0].mxu0 %v1416
      %v1515 = vpop.f32.mrb[0].mxu0
      %v1516 = vadd.f32 0.0, %v1515
      %v1517 = vpop.f32.mrb[0].mxu0
      %v1518 = vpop.f32.mrb[0].mxu0
      %v1519 = vadd.f32 0.0, %v1518
      %v1520 = vpop.f32.mrb[0].mxu0
      %1521 = vmatprep.mubr.bf16.mxu0 0
      %1522 = vmatmul.mubr.bf16.gmra.mrb[0].mxu0 %v1419
      %v1523 = vpop.f32.mrb[0].mxu0
      %v1524 = vadd.f32 0.0, %v1523
      %v1525 = vpop.f32.mrb[0].mxu0
      %v1526 = vpop.f32.mrb[0].mxu0
      %v1527 = vadd.f32 0.0, %v1526
      %v1528 = vpop.f32.mrb[0].mxu0
      %1529 = vmatprep.mubr.bf16.mxu0 0
      %1530 = vmatmul.mubr.bf16.gmra.mrb[0].mxu0 %v1422
      %v1531 = vpop.f32.mrb[0].mxu0
      %v1532 = vadd.f32 0.0, %v1531
      %v1533 = vpop.f32.mrb[0].mxu0
      %v1534 = vpop.f32.mrb[0].mxu0
      %v1535 = vadd.f32 0.0, %v1534
      %v1536 = vpop.f32.mrb[0].mxu0
      %1537 = vmatprep.mubr.bf16.mxu0 0
      %1538 = vmatmul.mubr.bf16.gmra.mrb[0].mxu0 %v1425
      %v1539 = vpop.f32.mrb[0].mxu0
      %v1540 = vadd.f32 0.0, %v1539
      %v1541 = vpop.f32.mrb[0].mxu0
      %v1542 = vpop.f32.mrb[0].mxu0
      %v1543 = vadd.f32 0.0, %v1542
      %v1544 = vpop.f32.mrb[0].mxu0
      %1545 = vmatprep.mubr.bf16.mxu0 0
      %1546 = vmatmul.mubr.bf16.gmra.mrb[0].mxu0 %v1428
      %v1547 = vpop.f32.mrb[0].mxu0
      %v1548 = vadd.f32 0.0, %v1547
      %v1549 = vpop.f32.mrb[0].mxu0
      %v1550 = vpop.f32.mrb[0].mxu0
      %v1551 = vadd.f32 0.0, %v1550
      %v1552 = vpop.f32.mrb[0].mxu0
      %1553 = vmatprep.mubr.bf16.mxu0 0
      %1554 = vmatmul.mubr.bf16.gmra.mrb[0].mxu0 %v1431
      %v1555 = vpop.f32.mrb[0].mxu0
      %v1556 = vadd.f32 0.0, %v1555
      %v1557 = vpop.f32.mrb[0].mxu0
      %v1558 = vpop.f32.mrb[0].mxu0
      %v1559 = vadd.f32 0.0, %v1558
      %v1560 = vpop.f32.mrb[0].mxu0
      %1561 = vmatprep.mubr.bf16.mxu0 0
      %1562 = vmatmul.mubr.bf16.gmra.mrb[0].mxu0 %v1434
      %v1563 = vpop.f32.mrb[0].mxu0
      %v1564 = vadd.f32 0.0, %v1563
      %v1565 = vpop.f32.mrb[0].mxu0
      %v1566 = vpop.f32.mrb[0].mxu0
      %v1567 = vadd.f32 0.0, %v1566
      %v1568 = vpop.f32.mrb[0].mxu0
      %1569 = vmatprep.mubr.bf16.mxu0 0
      %1570 = vmatmul.mubr.bf16.gmra.mrb[0].mxu0 %v1437
      %v1571 = vpop.f32.mrb[0].mxu0
      %v1572 = vadd.f32 0.0, %v1571
      %v1573 = vpop.f32.mrb[0].mxu0
      %v1574 = vpop.f32.mrb[0].mxu0
      %v1575 = vadd.f32 0.0, %v1574
      %v1576 = vpop.f32.mrb[0].mxu0
      %1577 = vmatprep.mubr.bf16.mxu0 0
      %1578 = vmatmul.mubr.bf16.gmra.mrb[0].mxu0 %v1440
      %v1579 = vpop.f32.mrb[0].mxu0
      %v1580 = vadd.f32 0.0, %v1579
      %v1581 = vpop.f32.mrb[0].mxu0
      %v1582 = vpop.f32.mrb[0].mxu0
      %v1583 = vadd.f32 0.0, %v1582
      %v1584 = vpop.f32.mrb[0].mxu0
      %1585 = vmatprep.mubr.bf16.mxu0 0
      %1586 = vmatmul.mubr.bf16.gmra.mrb[0].mxu0 %v1443
      %v1587 = vpop.f32.mrb[0].mxu0
      %v1588 = vadd.f32 0.0, %v1587
      %v1589 = vpop.f32.mrb[0].mxu0
      %v1590 = vpop.f32.mrb[0].mxu0
      %v1591 = vadd.f32 0.0, %v1590
      %v1592 = vpop.f32.mrb[0].mxu0
      %1593 = vmatprep.mubr.bf16.mxu0 0
      %1594 = vmatmul.mubr.bf16.gmra.mrb[0].mxu0 %v1446
      %v1595 = vpop.f32.mrb[0].mxu0
      %v1596 = vadd.f32 0.0, %v1595
      %v1597 = vpop.f32.mrb[0].mxu0
      %v1598 = vpop.f32.mrb[0].mxu0
      %v1599 = vadd.f32 0.0, %v1598
      %v1600 = vpop.f32.mrb[0].mxu0
      %1601 = vmatprep.mubr.bf16.mxu0 0
      %1602 = vmatmul.mubr.bf16.gmra.mrb[0].mxu0 %v1449
      %v1603 = vpop.f32.mrb[0].mxu0
      %v1604 = vadd.f32 0.0, %v1603
      %v1605 = vpop.f32.mrb[0].mxu0
      %v1606 = vpop.f32.mrb[0].mxu0
      %v1607 = vadd.f32 0.0, %v1606
      %v1608 = vpop.f32.mrb[0].mxu0
      %1609 = vmatprep.mubr.bf16.mxu0 0
      %1610 = vmatmul.mubr.bf16.gmra.mrb[0].mxu0 %v1452
      %v1611 = vpop.f32.mrb[0].mxu0
      %v1612 = vadd.f32 0.0, %v1611
      %v1613 = vpop.f32.mrb[0].mxu0
      %v1614 = vpop.f32.mrb[0].mxu0
      %v1615 = vadd.f32 0.0, %v1614
      %v1616 = vpop.f32.mrb[0].mxu0
      %1617 = vdwg.mxu0
      %v1618 = vadd.f32 %v1099, %v1492
      %v1619 = vadd.f32 %v1102, %v1495
      %v1620 = vadd.f32 %v1107, %v1500
      %v1621 = vadd.f32 %v1110, %v1503
      %v1622 = vadd.f32 %v1115, %v1508
      %v1623 = vadd.f32 %v1118, %v1511
      %v1624 = vadd.f32 %v1123, %v1516
      %v1625 = vadd.f32 %v1126, %v1519
      %v1626 = vadd.f32 %v1131, %v1524
      %v1627 = vadd.f32 %v1134, %v1527
      %v1628 = vadd.f32 %v1139, %v1532
      %v1629 = vadd.f32 %v1142, %v1535
      %v1630 = vadd.f32 %v1147, %v1540
      %v1631 = vadd.f32 %v1150, %v1543
      %v1632 = vadd.f32 %v1155, %v1548
      %v1633 = vadd.f32 %v1158, %v1551
      %v1634 = vadd.f32 %v1163, %v1556
      %v1635 = vadd.f32 %v1166, %v1559
      %v1636 = vadd.f32 %v1171, %v1564
      %v1637 = vadd.f32 %v1174, %v1567
      %v1638 = vadd.f32 %v1179, %v1572
      %v1639 = vadd.f32 %v1182, %v1575
      %v1640 = vadd.f32 %v1187, %v1580
      %v1641 = vadd.f32 %v1190, %v1583
      %v1642 = vadd.f32 %v1195, %v1588
      %v1643 = vadd.f32 %v1198, %v1591
      %v1644 = vadd.f32 %v1203, %v1596
      %v1645 = vadd.f32 %v1206, %v1599
      %v1646 = vadd.f32 %v1211, %v1604
      %v1647 = vadd.f32 %v1214, %v1607
      %v1648 = vadd.f32 %v1219, %v1612
      %v1649 = vadd.f32 %v1222, %v1615
      %s1650 = scalar_lea.vmem %s1, 12
      %v1651 = vld [vmem:[%s1650] sm:$0xf]
      %v1654 = vunpack.c.l.b16 %v275
      %v1655 = vunpack.c.l.b16 %v276
      %v1656 = vpack.c.b16 %v1655, %v1654
      %v1658 = vsel %vm719, %v1656, 0
      %v1661 = vsel %vm768, %v1651, 0
      %1663 = vmatprep.subr.bf16.mxu0 0
      %1664 = vmatpush1.bf16.msra.mxu0 %v1661
      %1665 = vmatprep.subr.bf16.mxu0 0
      %1666 = vmatpush1.bf16.msra.mxu0 0
      %1667 = vmatprep.subr.bf16.mxu0 0
      %1668 = vmatpush1.bf16.msra.mxu0 0
      %1669 = vmatprep.subr.bf16.mxu0 0
      %1670 = vmatpush1.bf16.msra.mxu0 0
      %1671 = vmatprep.subr.bf16.mxu0 0
      %1672 = vmatpush1.bf16.msra.mxu0 0
      %1673 = vmatprep.subr.bf16.mxu0 0
      %1674 = vmatpush1.bf16.msra.mxu0 0
      %1675 = vmatprep.subr.bf16.mxu0 0
      %1676 = vmatpush1.bf16.msra.mxu0 0
      %1677 = vmatprep.subr.bf16.mxu0 0
      %1678 = vmatpush1.bf16.msra.mxu0 0
      %1679 = vmatprep.subr.bf16.mxu0 0
      %1680 = vmatpush1.bf16.msra.mxu0 0
      %1681 = vmatprep.subr.bf16.mxu0 0
      %1682 = vmatpush1.bf16.msra.mxu0 0
      %1683 = vmatprep.subr.bf16.mxu0 0
      %1684 = vmatpush1.bf16.msra.mxu0 0
      %1685 = vmatprep.subr.bf16.mxu0 0
      %1686 = vmatpush1.bf16.msra.mxu0 0
      %1687 = vmatprep.subr.bf16.mxu0 0
      %1688 = vmatpush1.bf16.msra.mxu0 0
      %1689 = vmatprep.subr.bf16.mxu0 0
      %1690 = vmatpush1.bf16.msra.mxu0 0
      %1691 = vmatprep.subr.bf16.mxu0 0
      %1692 = vmatpush1.bf16.msra.mxu0 0
      %1693 = vmatprep.subr.bf16.mxu0 0
      %1694 = vmatpush1.bf16.msra.mxu0 0
      %1695 = vmatprep.mubr.bf16.mxu0 0
      %1696 = vmatmul.mubr.bf16.gmra.mrb[0].mxu0 %v1017
      %v1697 = vpop.f32.mrb[0].mxu0
      %v1698 = vadd.f32 0.0, %v1697
      %v1699 = vpop.f32.mrb[0].mxu0
      %v1700 = vpop.f32.mrb[0].mxu0
      %v1701 = vadd.f32 0.0, %v1700
      %v1702 = vpop.f32.mrb[0].mxu0
      %1703 = vmatprep.mubr.bf16.mxu0 0
      %1704 = vmatmul.mubr.bf16.gmra.mrb[0].mxu0 %v1020
      %v1705 = vpop.f32.mrb[0].mxu0
      %v1706 = vadd.f32 0.0, %v1705
      %v1707 = vpop.f32.mrb[0].mxu0
      %v1708 = vpop.f32.mrb[0].mxu0
      %v1709 = vadd.f32 0.0, %v1708
      %v1710 = vpop.f32.mrb[0].mxu0
      %1711 = vmatprep.mubr.bf16.mxu0 0
      %1712 = vmatmul.mubr.bf16.gmra.mrb[0].mxu0 %v1023
      %v1713 = vpop.f32.mrb[0].mxu0
      %v1714 = vadd.f32 0.0, %v1713
      %v1715 = vpop.f32.mrb[0].mxu0
      %v1716 = vpop.f32.mrb[0].mxu0
      %v1717 = vadd.f32 0.0, %v1716
      %v1718 = vpop.f32.mrb[0].mxu0
      %1719 = vmatprep.mubr.bf16.mxu0 0
      %1720 = vmatmul.mubr.bf16.gmra.mrb[0].mxu0 %v1026
      %v1721 = vpop.f32.mrb[0].mxu0
      %v1722 = vadd.f32 0.0, %v1721
      %v1723 = vpop.f32.mrb[0].mxu0
      %v1724 = vpop.f32.mrb[0].mxu0
      %v1725 = vadd.f32 0.0, %v1724
      %v1726 = vpop.f32.mrb[0].mxu0
      %1727 = vmatprep.mubr.bf16.mxu0 0
      %1728 = vmatmul.mubr.bf16.gmra.mrb[0].mxu0 %v1029
      %v1729 = vpop.f32.mrb[0].mxu0
      %v1730 = vadd.f32 0.0, %v1729
      %v1731 = vpop.f32.mrb[0].mxu0
      %v1732 = vpop.f32.mrb[0].mxu0
      %v1733 = vadd.f32 0.0, %v1732
      %v1734 = vpop.f32.mrb[0].mxu0
      %1735 = vmatprep.mubr.bf16.mxu0 0
      %1736 = vmatmul.mubr.bf16.gmra.mrb[0].mxu0 %v1032
      %v1737 = vpop.f32.mrb[0].mxu0
      %v1738 = vadd.f32 0.0, %v1737
      %v1739 = vpop.f32.mrb[0].mxu0
      %v1740 = vpop.f32.mrb[0].mxu0
      %v1741 = vadd.f32 0.0, %v1740
      %v1742 = vpop.f32.mrb[0].mxu0
      %1743 = vmatprep.mubr.bf16.mxu0 0
      %1744 = vmatmul.mubr.bf16.gmra.mrb[0].mxu0 %v1035
      %v1745 = vpop.f32.mrb[0].mxu0
      %v1746 = vadd.f32 0.0, %v1745
      %v1747 = vpop.f32.mrb[0].mxu0
      %v1748 = vpop.f32.mrb[0].mxu0
      %v1749 = vadd.f32 0.0, %v1748
      %v1750 = vpop.f32.mrb[0].mxu0
      %1751 = vmatprep.mubr.bf16.mxu0 0
      %1752 = vmatmul.mubr.bf16.gmra.mrb[0].mxu0 %v1038
      %v1753 = vpop.f32.mrb[0].mxu0
      %v1754 = vadd.f32 0.0, %v1753
      %v1755 = vpop.f32.mrb[0].mxu0
      %v1756 = vpop.f32.mrb[0].mxu0
      %v1757 = vadd.f32 0.0, %v1756
      %v1758 = vpop.f32.mrb[0].mxu0
      %1759 = vmatprep.mubr.bf16.mxu0 0
      %1760 = vmatmul.mubr.bf16.gmra.mrb[0].mxu0 %v1041
      %v1761 = vpop.f32.mrb[0].mxu0
      %v1762 = vadd.f32 0.0, %v1761
      %v1763 = vpop.f32.mrb[0].mxu0
      %v1764 = vpop.f32.mrb[0].mxu0
      %v1765 = vadd.f32 0.0, %v1764
      %v1766 = vpop.f32.mrb[0].mxu0
      %1767 = vmatprep.mubr.bf16.mxu0 0
      %1768 = vmatmul.mubr.bf16.gmra.mrb[0].mxu0 %v1044
      %v1769 = vpop.f32.mrb[0].mxu0
      %v1770 = vadd.f32 0.0, %v1769
      %v1771 = vpop.f32.mrb[0].mxu0
      %v1772 = vpop.f32.mrb[0].mxu0
      %v1773 = vadd.f32 0.0, %v1772
      %v1774 = vpop.f32.mrb[0].mxu0
      %1775 = vmatprep.mubr.bf16.mxu0 0
      %1776 = vmatmul.mubr.bf16.gmra.mrb[0].mxu0 %v1047
      %v1777 = vpop.f32.mrb[0].mxu0
      %v1778 = vadd.f32 0.0, %v1777
      %v1779 = vpop.f32.mrb[0].mxu0
      %v1780 = vpop.f32.mrb[0].mxu0
      %v1781 = vadd.f32 0.0, %v1780
      %v1782 = vpop.f32.mrb[0].mxu0
      %1783 = vmatprep.mubr.bf16.mxu0 0
      %1784 = vmatmul.mubr.bf16.gmra.mrb[0].mxu0 %v1050
      %v1785 = vpop.f32.mrb[0].mxu0
      %v1786 = vadd.f32 0.0, %v1785
      %v1787 = vpop.f32.mrb[0].mxu0
      %v1788 = vpop.f32.mrb[0].mxu0
      %v1789 = vadd.f32 0.0, %v1788
      %v1790 = vpop.f32.mrb[0].mxu0
      %1791 = vmatprep.mubr.bf16.mxu0 0
      %1792 = vmatmul.mubr.bf16.gmra.mrb[0].mxu0 %v1053
      %v1793 = vpop.f32.mrb[0].mxu0
      %v1794 = vadd.f32 0.0, %v1793
      %v1795 = vpop.f32.mrb[0].mxu0
      %v1796 = vpop.f32.mrb[0].mxu0
      %v1797 = vadd.f32 0.0, %v1796
      %v1798 = vpop.f32.mrb[0].mxu0
      %1799 = vmatprep.mubr.bf16.mxu0 0
      %1800 = vmatmul.mubr.bf16.gmra.mrb[0].mxu0 %v1056
      %v1801 = vpop.f32.mrb[0].mxu0
      %v1802 = vadd.f32 0.0, %v1801
      %v1803 = vpop.f32.mrb[0].mxu0
      %v1804 = vpop.f32.mrb[0].mxu0
      %v1805 = vadd.f32 0.0, %v1804
      %v1806 = vpop.f32.mrb[0].mxu0
      %1807 = vmatprep.mubr.bf16.mxu0 0
      %1808 = vmatmul.mubr.bf16.gmra.mrb[0].mxu0 %v1059
      %v1809 = vpop.f32.mrb[0].mxu0
      %v1810 = vadd.f32 0.0, %v1809
      %v1811 = vpop.f32.mrb[0].mxu0
      %v1812 = vpop.f32.mrb[0].mxu0
      %v1813 = vadd.f32 0.0, %v1812
      %v1814 = vpop.f32.mrb[0].mxu0
      %1815 = vmatprep.mubr.bf16.mxu0 0
      %1816 = vmatmul.mubr.bf16.gmra.mrb[0].mxu0 %v1658
      %v1817 = vpop.f32.mrb[0].mxu0
      %v1818 = vadd.f32 0.0, %v1817
      %v1819 = vpop.f32.mrb[0].mxu0
      %v1820 = vpop.f32.mrb[0].mxu0
      %v1821 = vadd.f32 0.0, %v1820
      %v1822 = vpop.f32.mrb[0].mxu0
      %1823 = vdwg.mxu0
      %v1824 = vadd.f32 %v1618, %v1698
      %v1825 = vadd.f32 %v1619, %v1701
      %v1826 = vadd.f32 %v1620, %v1706
      %v1827 = vadd.f32 %v1621, %v1709
      %v1828 = vadd.f32 %v1622, %v1714
      %v1829 = vadd.f32 %v1623, %v1717
      %v1830 = vadd.f32 %v1624, %v1722
      %v1831 = vadd.f32 %v1625, %v1725
      %v1832 = vadd.f32 %v1626, %v1730
      %v1833 = vadd.f32 %v1627, %v1733
      %v1834 = vadd.f32 %v1628, %v1738
      %v1835 = vadd.f32 %v1629, %v1741
      %v1836 = vadd.f32 %v1630, %v1746
      %v1837 = vadd.f32 %v1631, %v1749
      %v1838 = vadd.f32 %v1632, %v1754
      %v1839 = vadd.f32 %v1633, %v1757
      %v1840 = vadd.f32 %v1634, %v1762
      %v1841 = vadd.f32 %v1635, %v1765
      %v1842 = vadd.f32 %v1636, %v1770
      %v1843 = vadd.f32 %v1637, %v1773
      %v1844 = vadd.f32 %v1638, %v1778
      %v1845 = vadd.f32 %v1639, %v1781
      %v1846 = vadd.f32 %v1640, %v1786
      %v1847 = vadd.f32 %v1641, %v1789
      %v1848 = vadd.f32 %v1642, %v1794
      %v1849 = vadd.f32 %v1643, %v1797
      %v1850 = vadd.f32 %v1644, %v1802
      %v1851 = vadd.f32 %v1645, %v1805
      %v1852 = vadd.f32 %v1646, %v1810
      %v1853 = vadd.f32 %v1647, %v1813
      %v1854 = vadd.f32 %v1648, %v1818
      %v1855 = vadd.f32 %v1649, %v1821
      %v1857 = vshrl.u32 %v275, 16
      %v1859 = vrot.slane %v1857, 4
      %v1860 = vshll.u32 %v275, 16
      %v1862 = vrot.slane %v1860, 5
      %v1863 = vor.u32 %v1859, %v1862
      %v1864 = vrot.slane %v1863, 4
      %v1866 = vshll.u32 %v276, 16
      %v1868 = vrot.slane %v1866, 5
      %v1869 = vsel %vm284, %v1864, %v1868
      %v1870 = vshrl.u32 %v276, 16
      %v1872 = vrot.slane %v1870, 4
      %v1873 = vor.u32 %v1872, %v1868
      %v1874 = vrot.slane %v1873, 4
      %v1876 = vshll.u32 %v277, 16
      %v1878 = vrot.slane %v1876, 5
      %v1879 = vsel %vm284, %v1874, %v1878
      %s1880 = scalar_lea.vmem %s1, 16
      %v1881 = vld [vmem:[%s1880] sm:$0xf]
      %v1882 = vunpack.c.l.b16 %v1869
      %v1883 = vunpack.c.l.b16 %v1879
      %v1884 = vpack.c.b16 %v1883, %v1882
      %v1886 = vsel %vm719, %v1884, 0
      %v1889 = vsel %vm768, %v1881, 0
      %1891 = vmatprep.subr.bf16.mxu0 0
      %1892 = vmatpush1.bf16.msra.mxu0 %v1889
      %1893 = vmatprep.subr.bf16.mxu0 0
      %1894 = vmatpush1.bf16.msra.mxu0 0
      %1895 = vmatprep.subr.bf16.mxu0 0
      %1896 = vmatpush1.bf16.msra.mxu0 0
      %1897 = vmatprep.subr.bf16.mxu0 0
      %1898 = vmatpush1.bf16.msra.mxu0 0
      %1899 = vmatprep.subr.bf16.mxu0 0
      %1900 = vmatpush1.bf16.msra.mxu0 0
      %1901 = vmatprep.subr.bf16.mxu0 0
      %1902 = vmatpush1.bf16.msra.mxu0 0
      %1903 = vmatprep.subr.bf16.mxu0 0
      %1904 = vmatpush1.bf16.msra.mxu0 0
      %1905 = vmatprep.subr.bf16.mxu0 0
      %1906 = vmatpush1.bf16.msra.mxu0 0
      %1907 = vmatprep.subr.bf16.mxu0 0
      %1908 = vmatpush1.bf16.msra.mxu0 0
      %1909 = vmatprep.subr.bf16.mxu0 0
      %1910 = vmatpush1.bf16.msra.mxu0 0
      %1911 = vmatprep.subr.bf16.mxu0 0
      %1912 = vmatpush1.bf16.msra.mxu0 0
      %1913 = vmatprep.subr.bf16.mxu0 0
      %1914 = vmatpush1.bf16.msra.mxu0 0
      %1915 = vmatprep.subr.bf16.mxu0 0
      %1916 = vmatpush1.bf16.msra.mxu0 0
      %1917 = vmatprep.subr.bf16.mxu0 0
      %1918 = vmatpush1.bf16.msra.mxu0 0
      %1919 = vmatprep.subr.bf16.mxu0 0
      %1920 = vmatpush1.bf16.msra.mxu0 0
      %1921 = vmatprep.subr.bf16.mxu0 0
      %1922 = vmatpush1.bf16.msra.mxu0 0
      %1923 = vmatprep.mubr.bf16.mxu0 0
      %1924 = vmatmul.mubr.bf16.gmra.mrb[0].mxu0 %v724
      %v1925 = vpop.f32.mrb[0].mxu0
      %v1926 = vadd.f32 0.0, %v1925
      %v1927 = vpop.f32.mrb[0].mxu0
      %v1928 = vpop.f32.mrb[0].mxu0
      %v1929 = vadd.f32 0.0, %v1928
      %v1930 = vpop.f32.mrb[0].mxu0
      %1931 = vmatprep.mubr.bf16.mxu0 0
      %1932 = vmatmul.mubr.bf16.gmra.mrb[0].mxu0 %v727
      %v1933 = vpop.f32.mrb[0].mxu0
      %v1934 = vadd.f32 0.0, %v1933
      %v1935 = vpop.f32.mrb[0].mxu0
      %v1936 = vpop.f32.mrb[0].mxu0
      %v1937 = vadd.f32 0.0, %v1936
      %v1938 = vpop.f32.mrb[0].mxu0
      %1939 = vmatprep.mubr.bf16.mxu0 0
      %1940 = vmatmul.mubr.bf16.gmra.mrb[0].mxu0 %v730
      %v1941 = vpop.f32.mrb[0].mxu0
      %v1942 = vadd.f32 0.0, %v1941
      %v1943 = vpop.f32.mrb[0].mxu0
      %v1944 = vpop.f32.mrb[0].mxu0
      %v1945 = vadd.f32 0.0, %v1944
      %v1946 = vpop.f32.mrb[0].mxu0
      %1947 = vmatprep.mubr.bf16.mxu0 0
      %1948 = vmatmul.mubr.bf16.gmra.mrb[0].mxu0 %v733
      %v1949 = vpop.f32.mrb[0].mxu0
      %v1950 = vadd.f32 0.0, %v1949
      %v1951 = vpop.f32.mrb[0].mxu0
      %v1952 = vpop.f32.mrb[0].mxu0
      %v1953 = vadd.f32 0.0, %v1952
      %v1954 = vpop.f32.mrb[0].mxu0
      %1955 = vmatprep.mubr.bf16.mxu0 0
      %1956 = vmatmul.mubr.bf16.gmra.mrb[0].mxu0 %v736
      %v1957 = vpop.f32.mrb[0].mxu0
      %v1958 = vadd.f32 0.0, %v1957
      %v1959 = vpop.f32.mrb[0].mxu0
      %v1960 = vpop.f32.mrb[0].mxu0
      %v1961 = vadd.f32 0.0, %v1960
      %v1962 = vpop.f32.mrb[0].mxu0
      %1963 = vmatprep.mubr.bf16.mxu0 0
      %1964 = vmatmul.mubr.bf16.gmra.mrb[0].mxu0 %v739
      %v1965 = vpop.f32.mrb[0].mxu0
      %v1966 = vadd.f32 0.0, %v1965
      %v1967 = vpop.f32.mrb[0].mxu0
      %v1968 = vpop.f32.mrb[0].mxu0
      %v1969 = vadd.f32 0.0, %v1968
      %v1970 = vpop.f32.mrb[0].mxu0
      %1971 = vmatprep.mubr.bf16.mxu0 0
      %1972 = vmatmul.mubr.bf16.gmra.mrb[0].mxu0 %v742
      %v1973 = vpop.f32.mrb[0].mxu0
      %v1974 = vadd.f32 0.0, %v1973
      %v1975 = vpop.f32.mrb[0].mxu0
      %v1976 = vpop.f32.mrb[0].mxu0
      %v1977 = vadd.f32 0.0, %v1976
      %v1978 = vpop.f32.mrb[0].mxu0
      %1979 = vmatprep.mubr.bf16.mxu0 0
      %1980 = vmatmul.mubr.bf16.gmra.mrb[0].mxu0 %v745
      %v1981 = vpop.f32.mrb[0].mxu0
      %v1982 = vadd.f32 0.0, %v1981
      %v1983 = vpop.f32.mrb[0].mxu0
      %v1984 = vpop.f32.mrb[0].mxu0
      %v1985 = vadd.f32 0.0, %v1984
      %v1986 = vpop.f32.mrb[0].mxu0
      %1987 = vmatprep.mubr.bf16.mxu0 0
      %1988 = vmatmul.mubr.bf16.gmra.mrb[0].mxu0 %v748
      %v1989 = vpop.f32.mrb[0].mxu0
      %v1990 = vadd.f32 0.0, %v1989
      %v1991 = vpop.f32.mrb[0].mxu0
      %v1992 = vpop.f32.mrb[0].mxu0
      %v1993 = vadd.f32 0.0, %v1992
      %v1994 = vpop.f32.mrb[0].mxu0
      %1995 = vmatprep.mubr.bf16.mxu0 0
      %1996 = vmatmul.mubr.bf16.gmra.mrb[0].mxu0 %v751
      %v1997 = vpop.f32.mrb[0].mxu0
      %v1998 = vadd.f32 0.0, %v1997
      %v1999 = vpop.f32.mrb[0].mxu0
      %v2000 = vpop.f32.mrb[0].mxu0
      %v2001 = vadd.f32 0.0, %v2000
      %v2002 = vpop.f32.mrb[0].mxu0
      %2003 = vmatprep.mubr.bf16.mxu0 0
      %2004 = vmatmul.mubr.bf16.gmra.mrb[0].mxu0 %v754
      %v2005 = vpop.f32.mrb[0].mxu0
      %v2006 = vadd.f32 0.0, %v2005
      %v2007 = vpop.f32.mrb[0].mxu0
      %v2008 = vpop.f32.mrb[0].mxu0
      %v2009 = vadd.f32 0.0, %v2008
      %v2010 = vpop.f32.mrb[0].mxu0
      %2011 = vmatprep.mubr.bf16.mxu0 0
      %2012 = vmatmul.mubr.bf16.gmra.mrb[0].mxu0 %v757
      %v2013 = vpop.f32.mrb[0].mxu0
      %v2014 = vadd.f32 0.0, %v2013
      %v2015 = vpop.f32.mrb[0].mxu0
      %v2016 = vpop.f32.mrb[0].mxu0
      %v2017 = vadd.f32 0.0, %v2016
      %v2018 = vpop.f32.mrb[0].mxu0
      %2019 = vmatprep.mubr.bf16.mxu0 0
      %2020 = vmatmul.mubr.bf16.gmra.mrb[0].mxu0 %v760
      %v2021 = vpop.f32.mrb[0].mxu0
      %v2022 = vadd.f32 0.0, %v2021
      %v2023 = vpop.f32.mrb[0].mxu0
      %v2024 = vpop.f32.mrb[0].mxu0
      %v2025 = vadd.f32 0.0, %v2024
      %v2026 = vpop.f32.mrb[0].mxu0
      %2027 = vmatprep.mubr.bf16.mxu0 0
      %2028 = vmatmul.mubr.bf16.gmra.mrb[0].mxu0 %v763
      %v2029 = vpop.f32.mrb[0].mxu0
      %v2030 = vadd.f32 0.0, %v2029
      %v2031 = vpop.f32.mrb[0].mxu0
      %v2032 = vpop.f32.mrb[0].mxu0
      %v2033 = vadd.f32 0.0, %v2032
      %v2034 = vpop.f32.mrb[0].mxu0
      %2035 = vmatprep.mubr.bf16.mxu0 0
      %2036 = vmatmul.mubr.bf16.gmra.mrb[0].mxu0 %v766
      %v2037 = vpop.f32.mrb[0].mxu0
      %v2038 = vadd.f32 0.0, %v2037
      %v2039 = vpop.f32.mrb[0].mxu0
      %v2040 = vpop.f32.mrb[0].mxu0
      %v2041 = vadd.f32 0.0, %v2040
      %v2042 = vpop.f32.mrb[0].mxu0
      %2043 = vmatprep.mubr.bf16.mxu0 0
      %2044 = vmatmul.mubr.bf16.gmra.mrb[0].mxu0 %v1886
      %v2045 = vpop.f32.mrb[0].mxu0
      %v2046 = vadd.f32 0.0, %v2045
      %v2047 = vpop.f32.mrb[0].mxu0
      %v2048 = vpop.f32.mrb[0].mxu0
      %v2049 = vadd.f32 0.0, %v2048
      %v2050 = vpop.f32.mrb[0].mxu0
      %2051 = vdwg.mxu0
      %v2052 = vadd.f32 %v1824, %v1926
      %v2053 = vadd.f32 %v1825, %v1929
      %v2054 = vadd.f32 %v1826, %v1934
      %v2055 = vadd.f32 %v1827, %v1937
      %v2056 = vadd.f32 %v1828, %v1942
      %v2057 = vadd.f32 %v1829, %v1945
      %v2058 = vadd.f32 %v1830, %v1950
      %v2059 = vadd.f32 %v1831, %v1953
      %v2060 = vadd.f32 %v1832, %v1958
      %v2061 = vadd.f32 %v1833, %v1961
      %v2062 = vadd.f32 %v1834, %v1966
      %v2063 = vadd.f32 %v1835, %v1969
      %v2064 = vadd.f32 %v1836, %v1974
      %v2065 = vadd.f32 %v1837, %v1977
      %v2066 = vadd.f32 %v1838, %v1982
      %v2067 = vadd.f32 %v1839, %v1985
      %v2068 = vadd.f32 %v1840, %v1990
      %v2069 = vadd.f32 %v1841, %v1993
      %v2070 = vadd.f32 %v1842, %v1998
      %v2071 = vadd.f32 %v1843, %v2001
      %v2072 = vadd.f32 %v1844, %v2006
      %v2073 = vadd.f32 %v1845, %v2009
      %v2074 = vadd.f32 %v1846, %v2014
      %v2075 = vadd.f32 %v1847, %v2017
      %v2076 = vadd.f32 %v1848, %v2022
      %v2077 = vadd.f32 %v1849, %v2025
      %v2078 = vadd.f32 %v1850, %v2030
      %v2079 = vadd.f32 %v1851, %v2033
      %v2080 = vadd.f32 %v1852, %v2038
      %v2081 = vadd.f32 %v1853, %v2041
      %v2082 = vadd.f32 %v1854, %v2046
      %v2083 = vadd.f32 %v1855, %v2049
      %v2085 = vrot.slane %v275, 5
      %v2086 = vrot.slane %v2085, 4
      %v2087 = vrot.slane %v276, 5
      %v2088 = vsel %vm1243, %v2086, %v2087
      %v2089 = vrot.slane %v2087, 4
      %v2090 = vrot.slane %v277, 5
      %v2091 = vsel %vm1243, %v2089, %v2090
      %s2092 = scalar_lea.vmem %s1, 20
      %v2093 = vld [vmem:[%s2092] sm:$0xf]
      %v2094 = vunpack.c.l.b16 %v2088
      %v2095 = vunpack.c.l.b16 %v2091
      %v2096 = vpack.c.b16 %v2095, %v2094
      %v2098 = vsel %vm719, %v2096, 0
      %v2101 = vsel %vm768, %v2093, 0
      %2103 = vmatprep.subr.bf16.mxu0 0
      %2104 = vmatpush1.bf16.msra.mxu0 %v2101
      %2105 = vmatprep.subr.bf16.mxu0 0
      %2106 = vmatpush1.bf16.msra.mxu0 0
      %2107 = vmatprep.subr.bf16.mxu0 0
      %2108 = vmatpush1.bf16.msra.mxu0 0
      %2109 = vmatprep.subr.bf16.mxu0 0
      %2110 = vmatpush1.bf16.msra.mxu0 0
      %2111 = vmatprep.subr.bf16.mxu0 0
      %2112 = vmatpush1.bf16.msra.mxu0 0
      %2113 = vmatprep.subr.bf16.mxu0 0
      %2114 = vmatpush1.bf16.msra.mxu0 0
      %2115 = vmatprep.subr.bf16.mxu0 0
      %2116 = vmatpush1.bf16.msra.mxu0 0
      %2117 = vmatprep.subr.bf16.mxu0 0
      %2118 = vmatpush1.bf16.msra.mxu0 0
      %2119 = vmatprep.subr.bf16.mxu0 0
      %2120 = vmatpush1.bf16.msra.mxu0 0
      %2121 = vmatprep.subr.bf16.mxu0 0
      %2122 = vmatpush1.bf16.msra.mxu0 0
      %2123 = vmatprep.subr.bf16.mxu0 0
      %2124 = vmatpush1.bf16.msra.mxu0 0
      %2125 = vmatprep.subr.bf16.mxu0 0
      %2126 = vmatpush1.bf16.msra.mxu0 0
      %2127 = vmatprep.subr.bf16.mxu0 0
      %2128 = vmatpush1.bf16.msra.mxu0 0
      %2129 = vmatprep.subr.bf16.mxu0 0
      %2130 = vmatpush1.bf16.msra.mxu0 0
      %2131 = vmatprep.subr.bf16.mxu0 0
      %2132 = vmatpush1.bf16.msra.mxu0 0
      %2133 = vmatprep.subr.bf16.mxu0 0
      %2134 = vmatpush1.bf16.msra.mxu0 0
      %2135 = vmatprep.mubr.bf16.mxu0 0
      %2136 = vmatmul.mubr.bf16.gmra.mrb[0].mxu0 %v1410
      %v2137 = vpop.f32.mrb[0].mxu0
      %v2138 = vadd.f32 0.0, %v2137
      %v2139 = vpop.f32.mrb[0].mxu0
      %v2140 = vpop.f32.mrb[0].mxu0
      %v2141 = vadd.f32 0.0, %v2140
      %v2142 = vpop.f32.mrb[0].mxu0
      %2143 = vmatprep.mubr.bf16.mxu0 0
      %2144 = vmatmul.mubr.bf16.gmra.mrb[0].mxu0 %v1413
      %v2145 = vpop.f32.mrb[0].mxu0
      %v2146 = vadd.f32 0.0, %v2145
      %v2147 = vpop.f32.mrb[0].mxu0
      %v2148 = vpop.f32.mrb[0].mxu0
      %v2149 = vadd.f32 0.0, %v2148
      %v2150 = vpop.f32.mrb[0].mxu0
      %2151 = vmatprep.mubr.bf16.mxu0 0
      %2152 = vmatmul.mubr.bf16.gmra.mrb[0].mxu0 %v1416
      %v2153 = vpop.f32.mrb[0].mxu0
      %v2154 = vadd.f32 0.0, %v2153
      %v2155 = vpop.f32.mrb[0].mxu0
      %v2156 = vpop.f32.mrb[0].mxu0
      %v2157 = vadd.f32 0.0, %v2156
      %v2158 = vpop.f32.mrb[0].mxu0
      %2159 = vmatprep.mubr.bf16.mxu0 0
      %2160 = vmatmul.mubr.bf16.gmra.mrb[0].mxu0 %v1419
      %v2161 = vpop.f32.mrb[0].mxu0
      %v2162 = vadd.f32 0.0, %v2161
      %v2163 = vpop.f32.mrb[0].mxu0
      %v2164 = vpop.f32.mrb[0].mxu0
      %v2165 = vadd.f32 0.0, %v2164
      %v2166 = vpop.f32.mrb[0].mxu0
      %2167 = vmatprep.mubr.bf16.mxu0 0
      %2168 = vmatmul.mubr.bf16.gmra.mrb[0].mxu0 %v1422
      %v2169 = vpop.f32.mrb[0].mxu0
      %v2170 = vadd.f32 0.0, %v2169
      %v2171 = vpop.f32.mrb[0].mxu0
      %v2172 = vpop.f32.mrb[0].mxu0
      %v2173 = vadd.f32 0.0, %v2172
      %v2174 = vpop.f32.mrb[0].mxu0
      %2175 = vmatprep.mubr.bf16.mxu0 0
      %2176 = vmatmul.mubr.bf16.gmra.mrb[0].mxu0 %v1425
      %v2177 = vpop.f32.mrb[0].mxu0
      %v2178 = vadd.f32 0.0, %v2177
      %v2179 = vpop.f32.mrb[0].mxu0
      %v2180 = vpop.f32.mrb[0].mxu0
      %v2181 = vadd.f32 0.0, %v2180
      %v2182 = vpop.f32.mrb[0].mxu0
      %2183 = vmatprep.mubr.bf16.mxu0 0
      %2184 = vmatmul.mubr.bf16.gmra.mrb[0].mxu0 %v1428
      %v2185 = vpop.f32.mrb[0].mxu0
      %v2186 = vadd.f32 0.0, %v2185
      %v2187 = vpop.f32.mrb[0].mxu0
      %v2188 = vpop.f32.mrb[0].mxu0
      %v2189 = vadd.f32 0.0, %v2188
      %v2190 = vpop.f32.mrb[0].mxu0
      %2191 = vmatprep.mubr.bf16.mxu0 0
      %2192 = vmatmul.mubr.bf16.gmra.mrb[0].mxu0 %v1431
      %v2193 = vpop.f32.mrb[0].mxu0
      %v2194 = vadd.f32 0.0, %v2193
      %v2195 = vpop.f32.mrb[0].mxu0
      %v2196 = vpop.f32.mrb[0].mxu0
      %v2197 = vadd.f32 0.0, %v2196
      %v2198 = vpop.f32.mrb[0].mxu0
      %2199 = vmatprep.mubr.bf16.mxu0 0
      %2200 = vmatmul.mubr.bf16.gmra.mrb[0].mxu0 %v1434
      %v2201 = vpop.f32.mrb[0].mxu0
      %v2202 = vadd.f32 0.0, %v2201
      %v2203 = vpop.f32.mrb[0].mxu0
      %v2204 = vpop.f32.mrb[0].mxu0
      %v2205 = vadd.f32 0.0, %v2204
      %v2206 = vpop.f32.mrb[0].mxu0
      %2207 = vmatprep.mubr.bf16.mxu0 0
      %2208 = vmatmul.mubr.bf16.gmra.mrb[0].mxu0 %v1437
      %v2209 = vpop.f32.mrb[0].mxu0
      %v2210 = vadd.f32 0.0, %v2209
      %v2211 = vpop.f32.mrb[0].mxu0
      %v2212 = vpop.f32.mrb[0].mxu0
      %v2213 = vadd.f32 0.0, %v2212
      %v2214 = vpop.f32.mrb[0].mxu0
      %2215 = vmatprep.mubr.bf16.mxu0 0
      %2216 = vmatmul.mubr.bf16.gmra.mrb[0].mxu0 %v1440
      %v2217 = vpop.f32.mrb[0].mxu0
      %v2218 = vadd.f32 0.0, %v2217
      %v2219 = vpop.f32.mrb[0].mxu0
      %v2220 = vpop.f32.mrb[0].mxu0
      %v2221 = vadd.f32 0.0, %v2220
      %v2222 = vpop.f32.mrb[0].mxu0
      %2223 = vmatprep.mubr.bf16.mxu0 0
      %2224 = vmatmul.mubr.bf16.gmra.mrb[0].mxu0 %v1443
      %v2225 = vpop.f32.mrb[0].mxu0
      %v2226 = vadd.f32 0.0, %v2225
      %v2227 = vpop.f32.mrb[0].mxu0
      %v2228 = vpop.f32.mrb[0].mxu0
      %v2229 = vadd.f32 0.0, %v2228
      %v2230 = vpop.f32.mrb[0].mxu0
      %2231 = vmatprep.mubr.bf16.mxu0 0
      %2232 = vmatmul.mubr.bf16.gmra.mrb[0].mxu0 %v1446
      %v2233 = vpop.f32.mrb[0].mxu0
      %v2234 = vadd.f32 0.0, %v2233
      %v2235 = vpop.f32.mrb[0].mxu0
      %v2236 = vpop.f32.mrb[0].mxu0
      %v2237 = vadd.f32 0.0, %v2236
      %v2238 = vpop.f32.mrb[0].mxu0
      %2239 = vmatprep.mubr.bf16.mxu0 0
      %2240 = vmatmul.mubr.bf16.gmra.mrb[0].mxu0 %v1449
      %v2241 = vpop.f32.mrb[0].mxu0
      %v2242 = vadd.f32 0.0, %v2241
      %v2243 = vpop.f32.mrb[0].mxu0
      %v2244 = vpop.f32.mrb[0].mxu0
      %v2245 = vadd.f32 0.0, %v2244
      %v2246 = vpop.f32.mrb[0].mxu0
      %2247 = vmatprep.mubr.bf16.mxu0 0
      %2248 = vmatmul.mubr.bf16.gmra.mrb[0].mxu0 %v1452
      %v2249 = vpop.f32.mrb[0].mxu0
      %v2250 = vadd.f32 0.0, %v2249
      %v2251 = vpop.f32.mrb[0].mxu0
      %v2252 = vpop.f32.mrb[0].mxu0
      %v2253 = vadd.f32 0.0, %v2252
      %v2254 = vpop.f32.mrb[0].mxu0
      %2255 = vmatprep.mubr.bf16.mxu0 0
      %2256 = vmatmul.mubr.bf16.gmra.mrb[0].mxu0 %v2098
      %v2257 = vpop.f32.mrb[0].mxu0
      %v2258 = vadd.f32 0.0, %v2257
      %v2259 = vpop.f32.mrb[0].mxu0
      %v2260 = vpop.f32.mrb[0].mxu0
      %v2261 = vadd.f32 0.0, %v2260
      %v2262 = vpop.f32.mrb[0].mxu0
      %2263 = vdwg.mxu0
      %v2264 = vadd.f32 %v2052, %v2138
      %v2265 = vadd.f32 %v2053, %v2141
      %v2266 = vadd.f32 %v2054, %v2146
      %v2267 = vadd.f32 %v2055, %v2149
      %v2268 = vadd.f32 %v2056, %v2154
      %v2269 = vadd.f32 %v2057, %v2157
      %v2270 = vadd.f32 %v2058, %v2162
      %v2271 = vadd.f32 %v2059, %v2165
      %v2272 = vadd.f32 %v2060, %v2170
      %v2273 = vadd.f32 %v2061, %v2173
      %v2274 = vadd.f32 %v2062, %v2178
      %v2275 = vadd.f32 %v2063, %v2181
      %v2276 = vadd.f32 %v2064, %v2186
      %v2277 = vadd.f32 %v2065, %v2189
      %v2278 = vadd.f32 %v2066, %v2194
      %v2279 = vadd.f32 %v2067, %v2197
      %v2280 = vadd.f32 %v2068, %v2202
      %v2281 = vadd.f32 %v2069, %v2205
      %v2282 = vadd.f32 %v2070, %v2210
      %v2283 = vadd.f32 %v2071, %v2213
      %v2284 = vadd.f32 %v2072, %v2218
      %v2285 = vadd.f32 %v2073, %v2221
      %v2286 = vadd.f32 %v2074, %v2226
      %v2287 = vadd.f32 %v2075, %v2229
      %v2288 = vadd.f32 %v2076, %v2234
      %v2289 = vadd.f32 %v2077, %v2237
      %v2290 = vadd.f32 %v2078, %v2242
      %v2291 = vadd.f32 %v2079, %v2245
      %v2292 = vadd.f32 %v2080, %v2250
      %v2293 = vadd.f32 %v2081, %v2253
      %v2294 = vadd.f32 %v2082, %v2258
      %v2295 = vadd.f32 %v2083, %v2261
      %s2296 = scalar_lea.vmem %s1, 24
      %v2297 = vld [vmem:[%s2296] sm:$0xf]
      %v2300 = vunpack.c.l.b16 %v278
      %v2301 = vunpack.c.l.b16 %v279
      %v2302 = vpack.c.b16 %v2301, %v2300
      %v2304 = vsel %vm719, %v2302, 0
      %v2307 = vsel %vm768, %v2297, 0
      %2309 = vmatprep.subr.bf16.mxu0 0
      %2310 = vmatpush1.bf16.msra.mxu0 %v2307
      %2311 = vmatprep.subr.bf16.mxu0 0
      %2312 = vmatpush1.bf16.msra.mxu0 0
      %2313 = vmatprep.subr.bf16.mxu0 0
      %2314 = vmatpush1.bf16.msra.mxu0 0
      %2315 = vmatprep.subr.bf16.mxu0 0
      %2316 = vmatpush1.bf16.msra.mxu0 0
      %2317 = vmatprep.subr.bf16.mxu0 0
      %2318 = vmatpush1.bf16.msra.mxu0 0
      %2319 = vmatprep.subr.bf16.mxu0 0
      %2320 = vmatpush1.bf16.msra.mxu0 0
      %2321 = vmatprep.subr.bf16.mxu0 0
      %2322 = vmatpush1.bf16.msra.mxu0 0
      %2323 = vmatprep.subr.bf16.mxu0 0
      %2324 = vmatpush1.bf16.msra.mxu0 0
      %2325 = vmatprep.subr.bf16.mxu0 0
      %2326 = vmatpush1.bf16.msra.mxu0 0
      %2327 = vmatprep.subr.bf16.mxu0 0
      %2328 = vmatpush1.bf16.msra.mxu0 0
      %2329 = vmatprep.subr.bf16.mxu0 0
      %2330 = vmatpush1.bf16.msra.mxu0 0
      %2331 = vmatprep.subr.bf16.mxu0 0
      %2332 = vmatpush1.bf16.msra.mxu0 0
      %2333 = vmatprep.subr.bf16.mxu0 0
      %2334 = vmatpush1.bf16.msra.mxu0 0
      %2335 = vmatprep.subr.bf16.mxu0 0
      %2336 = vmatpush1.bf16.msra.mxu0 0
      %2337 = vmatprep.subr.bf16.mxu0 0
      %2338 = vmatpush1.bf16.msra.mxu0 0
      %2339 = vmatprep.subr.bf16.mxu0 0
      %2340 = vmatpush1.bf16.msra.mxu0 0
      %2341 = vmatprep.mubr.bf16.mxu0 0
      %2342 = vmatmul.mubr.bf16.gmra.mrb[0].mxu0 %v1020
      %v2343 = vpop.f32.mrb[0].mxu0
      %v2344 = vadd.f32 0.0, %v2343
      %v2345 = vpop.f32.mrb[0].mxu0
      %v2346 = vpop.f32.mrb[0].mxu0
      %v2347 = vadd.f32 0.0, %v2346
      %v2348 = vpop.f32.mrb[0].mxu0
      %2349 = vmatprep.mubr.bf16.mxu0 0
      %2350 = vmatmul.mubr.bf16.gmra.mrb[0].mxu0 %v1023
      %v2351 = vpop.f32.mrb[0].mxu0
      %v2352 = vadd.f32 0.0, %v2351
      %v2353 = vpop.f32.mrb[0].mxu0
      %v2354 = vpop.f32.mrb[0].mxu0
      %v2355 = vadd.f32 0.0, %v2354
      %v2356 = vpop.f32.mrb[0].mxu0
      %2357 = vmatprep.mubr.bf16.mxu0 0
      %2358 = vmatmul.mubr.bf16.gmra.mrb[0].mxu0 %v1026
      %v2359 = vpop.f32.mrb[0].mxu0
      %v2360 = vadd.f32 0.0, %v2359
      %v2361 = vpop.f32.mrb[0].mxu0
      %v2362 = vpop.f32.mrb[0].mxu0
      %v2363 = vadd.f32 0.0, %v2362
      %v2364 = vpop.f32.mrb[0].mxu0
      %2365 = vmatprep.mubr.bf16.mxu0 0
      %2366 = vmatmul.mubr.bf16.gmra.mrb[0].mxu0 %v1029
      %v2367 = vpop.f32.mrb[0].mxu0
      %v2368 = vadd.f32 0.0, %v2367
      %v2369 = vpop.f32.mrb[0].mxu0
      %v2370 = vpop.f32.mrb[0].mxu0
      %v2371 = vadd.f32 0.0, %v2370
      %v2372 = vpop.f32.mrb[0].mxu0
      %2373 = vmatprep.mubr.bf16.mxu0 0
      %2374 = vmatmul.mubr.bf16.gmra.mrb[0].mxu0 %v1032
      %v2375 = vpop.f32.mrb[0].mxu0
      %v2376 = vadd.f32 0.0, %v2375
      %v2377 = vpop.f32.mrb[0].mxu0
      %v2378 = vpop.f32.mrb[0].mxu0
      %v2379 = vadd.f32 0.0, %v2378
      %v2380 = vpop.f32.mrb[0].mxu0
      %2381 = vmatprep.mubr.bf16.mxu0 0
      %2382 = vmatmul.mubr.bf16.gmra.mrb[0].mxu0 %v1035
      %v2383 = vpop.f32.mrb[0].mxu0
      %v2384 = vadd.f32 0.0, %v2383
      %v2385 = vpop.f32.mrb[0].mxu0
      %v2386 = vpop.f32.mrb[0].mxu0
      %v2387 = vadd.f32 0.0, %v2386
      %v2388 = vpop.f32.mrb[0].mxu0
      %2389 = vmatprep.mubr.bf16.mxu0 0
      %2390 = vmatmul.mubr.bf16.gmra.mrb[0].mxu0 %v1038
      %v2391 = vpop.f32.mrb[0].mxu0
      %v2392 = vadd.f32 0.0, %v2391
      %v2393 = vpop.f32.mrb[0].mxu0
      %v2394 = vpop.f32.mrb[0].mxu0
      %v2395 = vadd.f32 0.0, %v2394
      %v2396 = vpop.f32.mrb[0].mxu0
      %2397 = vmatprep.mubr.bf16.mxu0 0
      %2398 = vmatmul.mubr.bf16.gmra.mrb[0].mxu0 %v1041
      %v2399 = vpop.f32.mrb[0].mxu0
      %v2400 = vadd.f32 0.0, %v2399
      %v2401 = vpop.f32.mrb[0].mxu0
      %v2402 = vpop.f32.mrb[0].mxu0
      %v2403 = vadd.f32 0.0, %v2402
      %v2404 = vpop.f32.mrb[0].mxu0
      %2405 = vmatprep.mubr.bf16.mxu0 0
      %2406 = vmatmul.mubr.bf16.gmra.mrb[0].mxu0 %v1044
      %v2407 = vpop.f32.mrb[0].mxu0
      %v2408 = vadd.f32 0.0, %v2407
      %v2409 = vpop.f32.mrb[0].mxu0
      %v2410 = vpop.f32.mrb[0].mxu0
      %v2411 = vadd.f32 0.0, %v2410
      %v2412 = vpop.f32.mrb[0].mxu0
      %2413 = vmatprep.mubr.bf16.mxu0 0
      %2414 = vmatmul.mubr.bf16.gmra.mrb[0].mxu0 %v1047
      %v2415 = vpop.f32.mrb[0].mxu0
      %v2416 = vadd.f32 0.0, %v2415
      %v2417 = vpop.f32.mrb[0].mxu0
      %v2418 = vpop.f32.mrb[0].mxu0
      %v2419 = vadd.f32 0.0, %v2418
      %v2420 = vpop.f32.mrb[0].mxu0
      %2421 = vmatprep.mubr.bf16.mxu0 0
      %2422 = vmatmul.mubr.bf16.gmra.mrb[0].mxu0 %v1050
      %v2423 = vpop.f32.mrb[0].mxu0
      %v2424 = vadd.f32 0.0, %v2423
      %v2425 = vpop.f32.mrb[0].mxu0
      %v2426 = vpop.f32.mrb[0].mxu0
      %v2427 = vadd.f32 0.0, %v2426
      %v2428 = vpop.f32.mrb[0].mxu0
      %2429 = vmatprep.mubr.bf16.mxu0 0
      %2430 = vmatmul.mubr.bf16.gmra.mrb[0].mxu0 %v1053
      %v2431 = vpop.f32.mrb[0].mxu0
      %v2432 = vadd.f32 0.0, %v2431
      %v2433 = vpop.f32.mrb[0].mxu0
      %v2434 = vpop.f32.mrb[0].mxu0
      %v2435 = vadd.f32 0.0, %v2434
      %v2436 = vpop.f32.mrb[0].mxu0
      %2437 = vmatprep.mubr.bf16.mxu0 0
      %2438 = vmatmul.mubr.bf16.gmra.mrb[0].mxu0 %v1056
      %v2439 = vpop.f32.mrb[0].mxu0
      %v2440 = vadd.f32 0.0, %v2439
      %v2441 = vpop.f32.mrb[0].mxu0
      %v2442 = vpop.f32.mrb[0].mxu0
      %v2443 = vadd.f32 0.0, %v2442
      %v2444 = vpop.f32.mrb[0].mxu0
      %2445 = vmatprep.mubr.bf16.mxu0 0
      %2446 = vmatmul.mubr.bf16.gmra.mrb[0].mxu0 %v1059
      %v2447 = vpop.f32.mrb[0].mxu0
      %v2448 = vadd.f32 0.0, %v2447
      %v2449 = vpop.f32.mrb[0].mxu0
      %v2450 = vpop.f32.mrb[0].mxu0
      %v2451 = vadd.f32 0.0, %v2450
      %v2452 = vpop.f32.mrb[0].mxu0
      %2453 = vmatprep.mubr.bf16.mxu0 0
      %2454 = vmatmul.mubr.bf16.gmra.mrb[0].mxu0 %v1658
      %v2455 = vpop.f32.mrb[0].mxu0
      %v2456 = vadd.f32 0.0, %v2455
      %v2457 = vpop.f32.mrb[0].mxu0
      %v2458 = vpop.f32.mrb[0].mxu0
      %v2459 = vadd.f32 0.0, %v2458
      %v2460 = vpop.f32.mrb[0].mxu0
      %2461 = vmatprep.mubr.bf16.mxu0 0
      %2462 = vmatmul.mubr.bf16.gmra.mrb[0].mxu0 %v2304
      %v2463 = vpop.f32.mrb[0].mxu0
      %v2464 = vadd.f32 0.0, %v2463
      %v2465 = vpop.f32.mrb[0].mxu0
      %v2466 = vpop.f32.mrb[0].mxu0
      %v2467 = vadd.f32 0.0, %v2466
      %v2468 = vpop.f32.mrb[0].mxu0
      %2469 = vdwg.mxu0
      %v2470 = vadd.f32 %v2264, %v2344
      %v2471 = vadd.f32 %v2265, %v2347
      %v2472 = vadd.f32 %v2266, %v2352
      %v2473 = vadd.f32 %v2267, %v2355
      %v2474 = vadd.f32 %v2268, %v2360
      %v2475 = vadd.f32 %v2269, %v2363
      %v2476 = vadd.f32 %v2270, %v2368
      %v2477 = vadd.f32 %v2271, %v2371
      %v2478 = vadd.f32 %v2272, %v2376
      %v2479 = vadd.f32 %v2273, %v2379
      %v2480 = vadd.f32 %v2274, %v2384
      %v2481 = vadd.f32 %v2275, %v2387
      %v2482 = vadd.f32 %v2276, %v2392
      %v2483 = vadd.f32 %v2277, %v2395
      %v2484 = vadd.f32 %v2278, %v2400
      %v2485 = vadd.f32 %v2279, %v2403
      %v2486 = vadd.f32 %v2280, %v2408
      %v2487 = vadd.f32 %v2281, %v2411
      %v2488 = vadd.f32 %v2282, %v2416
      %v2489 = vadd.f32 %v2283, %v2419
      %v2490 = vadd.f32 %v2284, %v2424
      %v2491 = vadd.f32 %v2285, %v2427
      %v2492 = vadd.f32 %v2286, %v2432
      %v2493 = vadd.f32 %v2287, %v2435
      %v2494 = vadd.f32 %v2288, %v2440
      %v2495 = vadd.f32 %v2289, %v2443
      %v2496 = vadd.f32 %v2290, %v2448
      %v2497 = vadd.f32 %v2291, %v2451
      %v2498 = vadd.f32 %v2292, %v2456
      %v2499 = vadd.f32 %v2293, %v2459
      %v2500 = vadd.f32 %v2294, %v2464
      %v2501 = vadd.f32 %v2295, %v2467
      %v2503 = vshrl.u32 %v278, 16
      %v2505 = vrot.slane %v2503, 4
      %v2506 = vshll.u32 %v278, 16
      %v2508 = vrot.slane %v2506, 5
      %v2509 = vor.u32 %v2505, %v2508
      %v2510 = vrot.slane %v2509, 4
      %v2512 = vshll.u32 %v279, 16
      %v2514 = vrot.slane %v2512, 5
      %v2515 = vsel %vm284, %v2510, %v2514
      %v2516 = vshrl.u32 %v279, 16
      %v2518 = vrot.slane %v2516, 4
      %v2519 = vor.u32 %v2518, %v2514
      %v2520 = vrot.slane %v2519, 4
      %v2522 = vshll.u32 %v280, 16
      %v2524 = vrot.slane %v2522, 5
      %v2525 = vsel %vm284, %v2520, %v2524
      %s2526 = scalar_lea.vmem %s1, 28
      %v2527 = vld [vmem:[%s2526] sm:$0xf]
      %v2528 = vunpack.c.l.b16 %v2515
      %v2529 = vunpack.c.l.b16 %v2525
      %v2530 = vpack.c.b16 %v2529, %v2528
      %v2532 = vsel %vm719, %v2530, 0
      %v2535 = vsel %vm768, %v2527, 0
      %2537 = vmatprep.subr.bf16.mxu0 0
      %2538 = vmatpush1.bf16.msra.mxu0 %v2535
      %2539 = vmatprep.subr.bf16.mxu0 0
      %2540 = vmatpush1.bf16.msra.mxu0 0
      %2541 = vmatprep.subr.bf16.mxu0 0
      %2542 = vmatpush1.bf16.msra.mxu0 0
      %2543 = vmatprep.subr.bf16.mxu0 0
      %2544 = vmatpush1.bf16.msra.mxu0 0
      %2545 = vmatprep.subr.bf16.mxu0 0
      %2546 = vmatpush1.bf16.msra.mxu0 0
      %2547 = vmatprep.subr.bf16.mxu0 0
      %2548 = vmatpush1.bf16.msra.mxu0 0
      %2549 = vmatprep.subr.bf16.mxu0 0
      %2550 = vmatpush1.bf16.msra.mxu0 0
      %2551 = vmatprep.subr.bf16.mxu0 0
      %2552 = vmatpush1.bf16.msra.mxu0 0
      %2553 = vmatprep.subr.bf16.mxu0 0
      %2554 = vmatpush1.bf16.msra.mxu0 0
      %2555 = vmatprep.subr.bf16.mxu0 0
      %2556 = vmatpush1.bf16.msra.mxu0 0
      %2557 = vmatprep.subr.bf16.mxu0 0
      %2558 = vmatpush1.bf16.msra.mxu0 0
      %2559 = vmatprep.subr.bf16.mxu0 0
      %2560 = vmatpush1.bf16.msra.mxu0 0
      %2561 = vmatprep.subr.bf16.mxu0 0
      %2562 = vmatpush1.bf16.msra.mxu0 0
      %2563 = vmatprep.subr.bf16.mxu0 0
      %2564 = vmatpush1.bf16.msra.mxu0 0
      %2565 = vmatprep.subr.bf16.mxu0 0
      %2566 = vmatpush1.bf16.msra.mxu0 0
      %2567 = vmatprep.subr.bf16.mxu0 0
      %2568 = vmatpush1.bf16.msra.mxu0 0
      %2569 = vmatprep.mubr.bf16.mxu0 0
      %2570 = vmatmul.mubr.bf16.gmra.mrb[0].mxu0 %v727
      %v2571 = vpop.f32.mrb[0].mxu0
      %v2572 = vadd.f32 0.0, %v2571
      %v2573 = vpop.f32.mrb[0].mxu0
      %v2574 = vpop.f32.mrb[0].mxu0
      %v2575 = vadd.f32 0.0, %v2574
      %v2576 = vpop.f32.mrb[0].mxu0
      %2577 = vmatprep.mubr.bf16.mxu0 0
      %2578 = vmatmul.mubr.bf16.gmra.mrb[0].mxu0 %v730
      %v2579 = vpop.f32.mrb[0].mxu0
      %v2580 = vadd.f32 0.0, %v2579
      %v2581 = vpop.f32.mrb[0].mxu0
      %v2582 = vpop.f32.mrb[0].mxu0
      %v2583 = vadd.f32 0.0, %v2582
      %v2584 = vpop.f32.mrb[0].mxu0
      %2585 = vmatprep.mubr.bf16.mxu0 0
      %2586 = vmatmul.mubr.bf16.gmra.mrb[0].mxu0 %v733
      %v2587 = vpop.f32.mrb[0].mxu0
      %v2588 = vadd.f32 0.0, %v2587
      %v2589 = vpop.f32.mrb[0].mxu0
      %v2590 = vpop.f32.mrb[0].mxu0
      %v2591 = vadd.f32 0.0, %v2590
      %v2592 = vpop.f32.mrb[0].mxu0
      %2593 = vmatprep.mubr.bf16.mxu0 0
      %2594 = vmatmul.mubr.bf16.gmra.mrb[0].mxu0 %v736
      %v2595 = vpop.f32.mrb[0].mxu0
      %v2596 = vadd.f32 0.0, %v2595
      %v2597 = vpop.f32.mrb[0].mxu0
      %v2598 = vpop.f32.mrb[0].mxu0
      %v2599 = vadd.f32 0.0, %v2598
      %v2600 = vpop.f32.mrb[0].mxu0
      %2601 = vmatprep.mubr.bf16.mxu0 0
      %2602 = vmatmul.mubr.bf16.gmra.mrb[0].mxu0 %v739
      %v2603 = vpop.f32.mrb[0].mxu0
      %v2604 = vadd.f32 0.0, %v2603
      %v2605 = vpop.f32.mrb[0].mxu0
      %v2606 = vpop.f32.mrb[0].mxu0
      %v2607 = vadd.f32 0.0, %v2606
      %v2608 = vpop.f32.mrb[0].mxu0
      %2609 = vmatprep.mubr.bf16.mxu0 0
      %2610 = vmatmul.mubr.bf16.gmra.mrb[0].mxu0 %v742
      %v2611 = vpop.f32.mrb[0].mxu0
      %v2612 = vadd.f32 0.0, %v2611
      %v2613 = vpop.f32.mrb[0].mxu0
      %v2614 = vpop.f32.mrb[0].mxu0
      %v2615 = vadd.f32 0.0, %v2614
      %v2616 = vpop.f32.mrb[0].mxu0
      %2617 = vmatprep.mubr.bf16.mxu0 0
      %2618 = vmatmul.mubr.bf16.gmra.mrb[0].mxu0 %v745
      %v2619 = vpop.f32.mrb[0].mxu0
      %v2620 = vadd.f32 0.0, %v2619
      %v2621 = vpop.f32.mrb[0].mxu0
      %v2622 = vpop.f32.mrb[0].mxu0
      %v2623 = vadd.f32 0.0, %v2622
      %v2624 = vpop.f32.mrb[0].mxu0
      %2625 = vmatprep.mubr.bf16.mxu0 0
      %2626 = vmatmul.mubr.bf16.gmra.mrb[0].mxu0 %v748
      %v2627 = vpop.f32.mrb[0].mxu0
      %v2628 = vadd.f32 0.0, %v2627
      %v2629 = vpop.f32.mrb[0].mxu0
      %v2630 = vpop.f32.mrb[0].mxu0
      %v2631 = vadd.f32 0.0, %v2630
      %v2632 = vpop.f32.mrb[0].mxu0
      %2633 = vmatprep.mubr.bf16.mxu0 0
      %2634 = vmatmul.mubr.bf16.gmra.mrb[0].mxu0 %v751
      %v2635 = vpop.f32.mrb[0].mxu0
      %v2636 = vadd.f32 0.0, %v2635
      %v2637 = vpop.f32.mrb[0].mxu0
      %v2638 = vpop.f32.mrb[0].mxu0
      %v2639 = vadd.f32 0.0, %v2638
      %v2640 = vpop.f32.mrb[0].mxu0
      %2641 = vmatprep.mubr.bf16.mxu0 0
      %2642 = vmatmul.mubr.bf16.gmra.mrb[0].mxu0 %v754
      %v2643 = vpop.f32.mrb[0].mxu0
      %v2644 = vadd.f32 0.0, %v2643
      %v2645 = vpop.f32.mrb[0].mxu0
      %v2646 = vpop.f32.mrb[0].mxu0
      %v2647 = vadd.f32 0.0, %v2646
      %v2648 = vpop.f32.mrb[0].mxu0
      %2649 = vmatprep.mubr.bf16.mxu0 0
      %2650 = vmatmul.mubr.bf16.gmra.mrb[0].mxu0 %v757
      %v2651 = vpop.f32.mrb[0].mxu0
      %v2652 = vadd.f32 0.0, %v2651
      %v2653 = vpop.f32.mrb[0].mxu0
      %v2654 = vpop.f32.mrb[0].mxu0
      %v2655 = vadd.f32 0.0, %v2654
      %v2656 = vpop.f32.mrb[0].mxu0
      %2657 = vmatprep.mubr.bf16.mxu0 0
      %2658 = vmatmul.mubr.bf16.gmra.mrb[0].mxu0 %v760
      %v2659 = vpop.f32.mrb[0].mxu0
      %v2660 = vadd.f32 0.0, %v2659
      %v2661 = vpop.f32.mrb[0].mxu0
      %v2662 = vpop.f32.mrb[0].mxu0
      %v2663 = vadd.f32 0.0, %v2662
      %v2664 = vpop.f32.mrb[0].mxu0
      %2665 = vmatprep.mubr.bf16.mxu0 0
      %2666 = vmatmul.mubr.bf16.gmra.mrb[0].mxu0 %v763
      %v2667 = vpop.f32.mrb[0].mxu0
      %v2668 = vadd.f32 0.0, %v2667
      %v2669 = vpop.f32.mrb[0].mxu0
      %v2670 = vpop.f32.mrb[0].mxu0
      %v2671 = vadd.f32 0.0, %v2670
      %v2672 = vpop.f32.mrb[0].mxu0
      %2673 = vmatprep.mubr.bf16.mxu0 0
      %2674 = vmatmul.mubr.bf16.gmra.mrb[0].mxu0 %v766
      %v2675 = vpop.f32.mrb[0].mxu0
      %v2676 = vadd.f32 0.0, %v2675
      %v2677 = vpop.f32.mrb[0].mxu0
      %v2678 = vpop.f32.mrb[0].mxu0
      %v2679 = vadd.f32 0.0, %v2678
      %v2680 = vpop.f32.mrb[0].mxu0
      %2681 = vmatprep.mubr.bf16.mxu0 0
      %2682 = vmatmul.mubr.bf16.gmra.mrb[0].mxu0 %v1886
      %v2683 = vpop.f32.mrb[0].mxu0
      %v2684 = vadd.f32 0.0, %v2683
      %v2685 = vpop.f32.mrb[0].mxu0
      %v2686 = vpop.f32.mrb[0].mxu0
      %v2687 = vadd.f32 0.0, %v2686
      %v2688 = vpop.f32.mrb[0].mxu0
      %2689 = vmatprep.mubr.bf16.mxu0 0
      %2690 = vmatmul.mubr.bf16.gmra.mrb[0].mxu0 %v2532
      %v2691 = vpop.f32.mrb[0].mxu0
      %v2692 = vadd.f32 0.0, %v2691
      %v2693 = vpop.f32.mrb[0].mxu0
      %v2694 = vpop.f32.mrb[0].mxu0
      %v2695 = vadd.f32 0.0, %v2694
      %v2696 = vpop.f32.mrb[0].mxu0
      %2697 = vdwg.mxu0
      %v2698 = vadd.f32 %v2470, %v2572
      %v2699 = vadd.f32 %v2471, %v2575
      %v2700 = vadd.f32 %v2472, %v2580
      %v2701 = vadd.f32 %v2473, %v2583
      %v2702 = vadd.f32 %v2474, %v2588
      %v2703 = vadd.f32 %v2475, %v2591
      %v2704 = vadd.f32 %v2476, %v2596
      %v2705 = vadd.f32 %v2477, %v2599
      %v2706 = vadd.f32 %v2478, %v2604
      %v2707 = vadd.f32 %v2479, %v2607
      %v2708 = vadd.f32 %v2480, %v2612
      %v2709 = vadd.f32 %v2481, %v2615
      %v2710 = vadd.f32 %v2482, %v2620
      %v2711 = vadd.f32 %v2483, %v2623
      %v2712 = vadd.f32 %v2484, %v2628
      %v2713 = vadd.f32 %v2485, %v2631
      %v2714 = vadd.f32 %v2486, %v2636
      %v2715 = vadd.f32 %v2487, %v2639
      %v2716 = vadd.f32 %v2488, %v2644
      %v2717 = vadd.f32 %v2489, %v2647
      %v2718 = vadd.f32 %v2490, %v2652
      %v2719 = vadd.f32 %v2491, %v2655
      %v2720 = vadd.f32 %v2492, %v2660
      %v2721 = vadd.f32 %v2493, %v2663
      %v2722 = vadd.f32 %v2494, %v2668
      %v2723 = vadd.f32 %v2495, %v2671
      %v2724 = vadd.f32 %v2496, %v2676
      %v2725 = vadd.f32 %v2497, %v2679
      %v2726 = vadd.f32 %v2498, %v2684
      %v2727 = vadd.f32 %v2499, %v2687
      %v2728 = vadd.f32 %v2500, %v2692
      %v2729 = vadd.f32 %v2501, %v2695
      %v2731 = vrot.slane %v278, 5
      %v2732 = vrot.slane %v2731, 4
      %v2733 = vrot.slane %v279, 5
      %v2734 = vsel %vm1243, %v2732, %v2733
      %v2735 = vrot.slane %v2733, 4
      %v2736 = vrot.slane %v280, 5
      %v2737 = vsel %vm1243, %v2735, %v2736
      %s2738 = scalar_lea.vmem %s1, 32
      %v2739 = vld [vmem:[%s2738] sm:$0xf]
      %v2740 = vunpack.c.l.b16 %v2734
      %v2741 = vunpack.c.l.b16 %v2737
      %v2742 = vpack.c.b16 %v2741, %v2740
      %v2744 = vsel %vm719, %v2742, 0
      %v2747 = vsel %vm768, %v2739, 0
      %2749 = vmatprep.subr.bf16.mxu0 0
      %2750 = vmatpush1.bf16.msra.mxu0 %v2747
      %2751 = vmatprep.subr.bf16.mxu0 0
      %2752 = vmatpush1.bf16.msra.mxu0 0
      %2753 = vmatprep.subr.bf16.mxu0 0
      %2754 = vmatpush1.bf16.msra.mxu0 0
      %2755 = vmatprep.subr.bf16.mxu0 0
      %2756 = vmatpush1.bf16.msra.mxu0 0
      %2757 = vmatprep.subr.bf16.mxu0 0
      %2758 = vmatpush1.bf16.msra.mxu0 0
      %2759 = vmatprep.subr.bf16.mxu0 0
      %2760 = vmatpush1.bf16.msra.mxu0 0
      %2761 = vmatprep.subr.bf16.mxu0 0
      %2762 = vmatpush1.bf16.msra.mxu0 0
      %2763 = vmatprep.subr.bf16.mxu0 0
      %2764 = vmatpush1.bf16.msra.mxu0 0
      %2765 = vmatprep.subr.bf16.mxu0 0
      %2766 = vmatpush1.bf16.msra.mxu0 0
      %2767 = vmatprep.subr.bf16.mxu0 0
      %2768 = vmatpush1.bf16.msra.mxu0 0
      %2769 = vmatprep.subr.bf16.mxu0 0
      %2770 = vmatpush1.bf16.msra.mxu0 0
      %2771 = vmatprep.subr.bf16.mxu0 0
      %2772 = vmatpush1.bf16.msra.mxu0 0
      %2773 = vmatprep.subr.bf16.mxu0 0
      %2774 = vmatpush1.bf16.msra.mxu0 0
      %2775 = vmatprep.subr.bf16.mxu0 0
      %2776 = vmatpush1.bf16.msra.mxu0 0
      %2777 = vmatprep.subr.bf16.mxu0 0
      %2778 = vmatpush1.bf16.msra.mxu0 0
      %2779 = vmatprep.subr.bf16.mxu0 0
      %2780 = vmatpush1.bf16.msra.mxu0 0
      %2781 = vmatprep.mubr.bf16.mxu0 0
      %2782 = vmatmul.mubr.bf16.gmra.mrb[0].mxu0 %v1413
      %v2783 = vpop.f32.mrb[0].mxu0
      %v2784 = vadd.f32 0.0, %v2783
      %v2785 = vpop.f32.mrb[0].mxu0
      %v2786 = vpop.f32.mrb[0].mxu0
      %v2787 = vadd.f32 0.0, %v2786
      %v2788 = vpop.f32.mrb[0].mxu0
      %2789 = vmatprep.mubr.bf16.mxu0 0
      %2790 = vmatmul.mubr.bf16.gmra.mrb[0].mxu0 %v1416
      %v2791 = vpop.f32.mrb[0].mxu0
      %v2792 = vadd.f32 0.0, %v2791
      %v2793 = vpop.f32.mrb[0].mxu0
      %v2794 = vpop.f32.mrb[0].mxu0
      %v2795 = vadd.f32 0.0, %v2794
      %v2796 = vpop.f32.mrb[0].mxu0
      %2797 = vmatprep.mubr.bf16.mxu0 0
      %2798 = vmatmul.mubr.bf16.gmra.mrb[0].mxu0 %v1419
      %v2799 = vpop.f32.mrb[0].mxu0
      %v2800 = vadd.f32 0.0, %v2799
      %v2801 = vpop.f32.mrb[0].mxu0
      %v2802 = vpop.f32.mrb[0].mxu0
      %v2803 = vadd.f32 0.0, %v2802
      %v2804 = vpop.f32.mrb[0].mxu0
      %2805 = vmatprep.mubr.bf16.mxu0 0
      %2806 = vmatmul.mubr.bf16.gmra.mrb[0].mxu0 %v1422
      %v2807 = vpop.f32.mrb[0].mxu0
      %v2808 = vadd.f32 0.0, %v2807
      %v2809 = vpop.f32.mrb[0].mxu0
      %v2810 = vpop.f32.mrb[0].mxu0
      %v2811 = vadd.f32 0.0, %v2810
      %v2812 = vpop.f32.mrb[0].mxu0
      %2813 = vmatprep.mubr.bf16.mxu0 0
      %2814 = vmatmul.mubr.bf16.gmra.mrb[0].mxu0 %v1425
      %v2815 = vpop.f32.mrb[0].mxu0
      %v2816 = vadd.f32 0.0, %v2815
      %v2817 = vpop.f32.mrb[0].mxu0
      %v2818 = vpop.f32.mrb[0].mxu0
      %v2819 = vadd.f32 0.0, %v2818
      %v2820 = vpop.f32.mrb[0].mxu0
      %2821 = vmatprep.mubr.bf16.mxu0 0
      %2822 = vmatmul.mubr.bf16.gmra.mrb[0].mxu0 %v1428
      %v2823 = vpop.f32.mrb[0].mxu0
      %v2824 = vadd.f32 0.0, %v2823
      %v2825 = vpop.f32.mrb[0].mxu0
      %v2826 = vpop.f32.mrb[0].mxu0
      %v2827 = vadd.f32 0.0, %v2826
      %v2828 = vpop.f32.mrb[0].mxu0
      %2829 = vmatprep.mubr.bf16.mxu0 0
      %2830 = vmatmul.mubr.bf16.gmra.mrb[0].mxu0 %v1431
      %v2831 = vpop.f32.mrb[0].mxu0
      %v2832 = vadd.f32 0.0, %v2831
      %v2833 = vpop.f32.mrb[0].mxu0
      %v2834 = vpop.f32.mrb[0].mxu0
      %v2835 = vadd.f32 0.0, %v2834
      %v2836 = vpop.f32.mrb[0].mxu0
      %2837 = vmatprep.mubr.bf16.mxu0 0
      %2838 = vmatmul.mubr.bf16.gmra.mrb[0].mxu0 %v1434
      %v2839 = vpop.f32.mrb[0].mxu0
      %v2840 = vadd.f32 0.0, %v2839
      %v2841 = vpop.f32.mrb[0].mxu0
      %v2842 = vpop.f32.mrb[0].mxu0
      %v2843 = vadd.f32 0.0, %v2842
      %v2844 = vpop.f32.mrb[0].mxu0
      %2845 = vmatprep.mubr.bf16.mxu0 0
      %2846 = vmatmul.mubr.bf16.gmra.mrb[0].mxu0 %v1437
      %v2847 = vpop.f32.mrb[0].mxu0
      %v2848 = vadd.f32 0.0, %v2847
      %v2849 = vpop.f32.mrb[0].mxu0
      %v2850 = vpop.f32.mrb[0].mxu0
      %v2851 = vadd.f32 0.0, %v2850
      %v2852 = vpop.f32.mrb[0].mxu0
      %2853 = vmatprep.mubr.bf16.mxu0 0
      %2854 = vmatmul.mubr.bf16.gmra.mrb[0].mxu0 %v1440
      %v2855 = vpop.f32.mrb[0].mxu0
      %v2856 = vadd.f32 0.0, %v2855
      %v2857 = vpop.f32.mrb[0].mxu0
      %v2858 = vpop.f32.mrb[0].mxu0
      %v2859 = vadd.f32 0.0, %v2858
      %v2860 = vpop.f32.mrb[0].mxu0
      %2861 = vmatprep.mubr.bf16.mxu0 0
      %2862 = vmatmul.mubr.bf16.gmra.mrb[0].mxu0 %v1443
      %v2863 = vpop.f32.mrb[0].mxu0
      %v2864 = vadd.f32 0.0, %v2863
      %v2865 = vpop.f32.mrb[0].mxu0
      %v2866 = vpop.f32.mrb[0].mxu0
      %v2867 = vadd.f32 0.0, %v2866
      %v2868 = vpop.f32.mrb[0].mxu0
      %2869 = vmatprep.mubr.bf16.mxu0 0
      %2870 = vmatmul.mubr.bf16.gmra.mrb[0].mxu0 %v1446
      %v2871 = vpop.f32.mrb[0].mxu0
      %v2872 = vadd.f32 0.0, %v2871
      %v2873 = vpop.f32.mrb[0].mxu0
      %v2874 = vpop.f32.mrb[0].mxu0
      %v2875 = vadd.f32 0.0, %v2874
      %v2876 = vpop.f32.mrb[0].mxu0
      %2877 = vmatprep.mubr.bf16.mxu0 0
      %2878 = vmatmul.mubr.bf16.gmra.mrb[0].mxu0 %v1449
      %v2879 = vpop.f32.mrb[0].mxu0
      %v2880 = vadd.f32 0.0, %v2879
      %v2881 = vpop.f32.mrb[0].mxu0
      %v2882 = vpop.f32.mrb[0].mxu0
      %v2883 = vadd.f32 0.0, %v2882
      %v2884 = vpop.f32.mrb[0].mxu0
      %2885 = vmatprep.mubr.bf16.mxu0 0
      %2886 = vmatmul.mubr.bf16.gmra.mrb[0].mxu0 %v1452
      %v2887 = vpop.f32.mrb[0].mxu0
      %v2888 = vadd.f32 0.0, %v2887
      %v2889 = vpop.f32.mrb[0].mxu0
      %v2890 = vpop.f32.mrb[0].mxu0
      %v2891 = vadd.f32 0.0, %v2890
      %v2892 = vpop.f32.mrb[0].mxu0
      %2893 = vmatprep.mubr.bf16.mxu0 0
      %2894 = vmatmul.mubr.bf16.gmra.mrb[0].mxu0 %v2098
      %v2895 = vpop.f32.mrb[0].mxu0
      %v2896 = vadd.f32 0.0, %v2895
      %v2897 = vpop.f32.mrb[0].mxu0
      %v2898 = vpop.f32.mrb[0].mxu0
      %v2899 = vadd.f32 0.0, %v2898
      %v2900 = vpop.f32.mrb[0].mxu0
      %2901 = vmatprep.mubr.bf16.mxu0 0
      %2902 = vmatmul.mubr.bf16.gmra.mrb[0].mxu0 %v2744
      %v2903 = vpop.f32.mrb[0].mxu0
      %v2904 = vadd.f32 0.0, %v2903
      %v2905 = vpop.f32.mrb[0].mxu0
      %v2906 = vpop.f32.mrb[0].mxu0
      %v2907 = vadd.f32 0.0, %v2906
      %v2908 = vpop.f32.mrb[0].mxu0
      %2909 = vdwg.mxu0
      %v2910 = vadd.f32 %v2698, %v2784
      %v2911 = vadd.f32 %v2699, %v2787
      %v2912 = vadd.f32 %v2700, %v2792
      %v2913 = vadd.f32 %v2701, %v2795
      %v2914 = vadd.f32 %v2702, %v2800
      %v2915 = vadd.f32 %v2703, %v2803
      %v2916 = vadd.f32 %v2704, %v2808
      %v2917 = vadd.f32 %v2705, %v2811
      %v2918 = vadd.f32 %v2706, %v2816
      %v2919 = vadd.f32 %v2707, %v2819
      %v2920 = vadd.f32 %v2708, %v2824
      %v2921 = vadd.f32 %v2709, %v2827
      %v2922 = vadd.f32 %v2710, %v2832
      %v2923 = vadd.f32 %v2711, %v2835
      %v2924 = vadd.f32 %v2712, %v2840
      %v2925 = vadd.f32 %v2713, %v2843
      %v2926 = vadd.f32 %v2714, %v2848
      %v2927 = vadd.f32 %v2715, %v2851
      %v2928 = vadd.f32 %v2716, %v2856
      %v2929 = vadd.f32 %v2717, %v2859
      %v2930 = vadd.f32 %v2718, %v2864
      %v2931 = vadd.f32 %v2719, %v2867
      %v2932 = vadd.f32 %v2720, %v2872
      %v2933 = vadd.f32 %v2721, %v2875
      %v2934 = vadd.f32 %v2722, %v2880
      %v2935 = vadd.f32 %v2723, %v2883
      %v2936 = vadd.f32 %v2724, %v2888
      %v2937 = vadd.f32 %v2725, %v2891
      %v2938 = vadd.f32 %v2726, %v2896
      %v2939 = vadd.f32 %v2727, %v2899
      %v2940 = vadd.f32 %v2728, %v2904
      %v2941 = vadd.f32 %v2729, %v2907
      %v2942 = vld [vmem:[%s2] sm:$0x1]
      %v2944 = vlaneseq
      %v2945 = vshrl.u32 %v2944, 7
      %v2946 = vsub.s32 0, %v2945
      %v2947 = vrot.slane %v2942, %v2946
      %v2949 = vadd.f32 %v2910, %v2947
      %v2950 = vadd.f32 %v2911, %v2947
      %v2951 = vadd.f32 %v2912, %v2947
      %v2952 = vadd.f32 %v2913, %v2947
      %v2953 = vadd.f32 %v2914, %v2947
      %v2954 = vadd.f32 %v2915, %v2947
      %v2955 = vadd.f32 %v2916, %v2947
      %v2956 = vadd.f32 %v2917, %v2947
      %v2957 = vadd.f32 %v2918, %v2947
      %v2958 = vadd.f32 %v2919, %v2947
      %v2959 = vadd.f32 %v2920, %v2947
      %v2960 = vadd.f32 %v2921, %v2947
      %v2961 = vadd.f32 %v2922, %v2947
      %v2962 = vadd.f32 %v2923, %v2947
      %v2963 = vadd.f32 %v2924, %v2947
      %v2964 = vadd.f32 %v2925, %v2947
      %v2965 = vadd.f32 %v2926, %v2947
      %v2966 = vadd.f32 %v2927, %v2947
      %v2967 = vadd.f32 %v2928, %v2947
      %v2968 = vadd.f32 %v2929, %v2947
      %v2969 = vadd.f32 %v2930, %v2947
      %v2970 = vadd.f32 %v2931, %v2947
      %v2971 = vadd.f32 %v2932, %v2947
      %v2972 = vadd.f32 %v2933, %v2947
      %v2973 = vadd.f32 %v2934, %v2947
      %v2974 = vadd.f32 %v2935, %v2947
      %v2975 = vadd.f32 %v2936, %v2947
      %v2976 = vadd.f32 %v2937, %v2947
      %v2977 = vadd.f32 %v2938, %v2947
      %v2978 = vadd.f32 %v2939, %v2947
      %v2979 = vadd.f32 %v2940, %v2947
      %v2980 = vadd.f32 %v2941, %v2947
      %v2981 = vmax.f32 %v2949, 0.0
      %v2982 = vmax.f32 %v2950, 0.0
      %v2983 = vmax.f32 %v2951, 0.0
      %v2984 = vmax.f32 %v2952, 0.0
      %v2985 = vmax.f32 %v2953, 0.0
      %v2986 = vmax.f32 %v2954, 0.0
      %v2987 = vmax.f32 %v2955, 0.0
      %v2988 = vmax.f32 %v2956, 0.0
      %v2989 = vmax.f32 %v2957, 0.0
      %v2990 = vmax.f32 %v2958, 0.0
      %v2991 = vmax.f32 %v2959, 0.0
      %v2992 = vmax.f32 %v2960, 0.0
      %v2993 = vmax.f32 %v2961, 0.0
      %v2994 = vmax.f32 %v2962, 0.0
      %v2995 = vmax.f32 %v2963, 0.0
      %v2996 = vmax.f32 %v2964, 0.0
      %v2997 = vmax.f32 %v2965, 0.0
      %v2998 = vmax.f32 %v2966, 0.0
      %v2999 = vmax.f32 %v2967, 0.0
      %v3000 = vmax.f32 %v2968, 0.0
      %v3001 = vmax.f32 %v2969, 0.0
      %v3002 = vmax.f32 %v2970, 0.0
      %v3003 = vmax.f32 %v2971, 0.0
      %v3004 = vmax.f32 %v2972, 0.0
      %v3005 = vmax.f32 %v2973, 0.0
      %v3006 = vmax.f32 %v2974, 0.0
      %v3007 = vmax.f32 %v2975, 0.0
      %v3008 = vmax.f32 %v2976, 0.0
      %v3009 = vmax.f32 %v2977, 0.0
      %v3010 = vmax.f32 %v2978, 0.0
      %v3011 = vmax.f32 %v2979, 0.0
      %v3012 = vmax.f32 %v2980, 0.0
      %3013 = vst [vmem:[#allocation2] sm:$0xf] 0
      %3014 = vst [vmem:[#allocation2 + $0x4] sm:$0xf] 0
      %3015 = vst [vmem:[#allocation2 + $0x8] sm:$0x1] 0
      %3016 = vst [vmem:[#allocation2 + $0xc] sm:$0xf] 0
      %3017 = vst [vmem:[#allocation2 + $0x10] sm:$0xf] 0
      %3018 = vst [vmem:[#allocation2 + $0x14] sm:$0x1] 0
      %3019 = vst [vmem:[#allocation2 + $0x18] sm:$0xf] 0
      %3020 = vst [vmem:[#allocation2 + $0x1c] sm:$0xf] 0
      %3021 = vst [vmem:[#allocation2 + $0x20] sm:$0x1] 0
      %3022 = vst [vmem:[#allocation2 + $0x24] sm:$0xf] 0
      %3023 = vst [vmem:[#allocation2 + $0x28] sm:$0xf] 0
      %3024 = vst [vmem:[#allocation2 + $0x2c] sm:$0x1] 0
      %3025 = vst [vmem:[#allocation2 + $0x30] sm:$0xf] 0
      %3026 = vst [vmem:[#allocation2 + $0x34] sm:$0xf] 0
      %3027 = vst [vmem:[#allocation2 + $0x38] sm:$0x1] 0
      %3028 = vst [vmem:[#allocation2 + $0x3c] sm:$0xf] 0
      %3029 = vst [vmem:[#allocation2 + $0x40] sm:$0xf] 0
      %3030 = vst [vmem:[#allocation2 + $0x44] sm:$0x1] 0
      %3031 = vst [vmem:[#allocation2 + $0x48] sm:$0xf] 0
      %3032 = vst [vmem:[#allocation2 + $0x4c] sm:$0xf] 0
      %3033 = vst [vmem:[#allocation2 + $0x50] sm:$0x1] 0
      %3034 = vst [vmem:[#allocation2 + $0x54] sm:$0xf] 0
      %3035 = vst [vmem:[#allocation2 + $0x58] sm:$0xf] 0
      %3036 = vst [vmem:[#allocation2 + $0x5c] sm:$0x1] 0
      %3037 = vst [vmem:[#allocation2 + $0x60] sm:$0xf] 0
      %3038 = vst [vmem:[#allocation2 + $0x64] sm:$0xf] 0
      %3039 = vst [vmem:[#allocation2 + $0x68] sm:$0x1] 0
      %3040 = vst [vmem:[#allocation2 + $0x6c] sm:$0xf] 0
      %3041 = vst [vmem:[#allocation2 + $0x70] sm:$0xf] 0
      %3042 = vst [vmem:[#allocation2 + $0x74] sm:$0x1] 0
      %3043 = vst [vmem:[#allocation2 + $0x78] sm:$0xf] 0
      %3044 = vst [vmem:[#allocation2 + $0x7c] sm:$0xf] 0
      %3045 = vst [vmem:[#allocation2 + $0x80] sm:$0x1] 0
      %3046 = vst [vmem:[#allocation2 + $0x84] sm:$0xf] 0
      %3047 = vst [vmem:[#allocation2 + $0x88] sm:$0xf] 0
      %3048 = vst [vmem:[#allocation2 + $0x8c] sm:$0x1] 0
      %3049 = vst [vmem:[#allocation2 + $0x90] sm:$0xf] 0
      %3050 = vst [vmem:[#allocation2 + $0x94] sm:$0xf] 0
      %3051 = vst [vmem:[#allocation2 + $0x98] sm:$0x1] 0
      %3052 = vst [vmem:[#allocation2 + $0x9c] sm:$0xf] 0
      %3053 = vst [vmem:[#allocation2 + $0xa0] sm:$0xf] 0
      %3054 = vst [vmem:[#allocation2 + $0xa4] sm:$0x1] 0
      %3055 = vst [vmem:[#allocation2 + $0xa8] sm:$0xf] 0
      %3056 = vst [vmem:[#allocation2 + $0xac] sm:$0xf] 0
      %3057 = vst [vmem:[#allocation2 + $0xb0] sm:$0x1] 0
      %3058 = vst [vmem:[#allocation2 + $0xb4] sm:$0xf] 0
      %3059 = vst [vmem:[#allocation2 + $0xb8] sm:$0xf] 0
      %3060 = vst [vmem:[#allocation2 + $0xbc] sm:$0x1] 0
      %3061 = vst [vmem:[#allocation2 + $0xc0] sm:$0xf] 0
      %3062 = vst [vmem:[#allocation2 + $0xc4] sm:$0xf] 0
      %3063 = vst [vmem:[#allocation2 + $0xc8] sm:$0x1] 0
      %3064 = vst [vmem:[#allocation2 + $0xcc] sm:$0xf] 0
      %3065 = vst [vmem:[#allocation2 + $0xd0] sm:$0xf] 0
      %3066 = vst [vmem:[#allocation2 + $0xd4] sm:$0x1] 0
      %v3067 = vpack.c.bf16 %v2982, %v2981
      %v3068 = vpack.c.bf16 %v2984, %v2983
      %v3069 = vpack.c.bf16 %v2986, %v2985
      %v3070 = vpack.c.bf16 %v2988, %v2987
      %v3071 = vpack.c.bf16 %v2990, %v2989
      %v3072 = vpack.c.bf16 %v2992, %v2991
      %v3073 = vpack.c.bf16 %v2994, %v2993
      %v3074 = vpack.c.bf16 %v2996, %v2995
      %v3075 = vpack.c.bf16 %v2998, %v2997
      %v3076 = vpack.c.bf16 %v3000, %v2999
      %v3077 = vpack.c.bf16 %v3002, %v3001
      %v3078 = vpack.c.bf16 %v3004, %v3003
      %v3079 = vpack.c.bf16 %v3006, %v3005
      %v3080 = vpack.c.bf16 %v3008, %v3007
      %v3081 = vpack.c.bf16 %v3010, %v3009
      %v3082 = vpack.c.bf16 %v3012, %v3011
      %v3099 = vunpack.c.l.b16 %v3067
      %v3100 = vunpack.c.h.b16 %v3067
      %v3101 = vunpack.c.l.b16 %v3068
      %v3102 = vunpack.c.h.b16 %v3068
      %v3103 = vunpack.c.l.b16 %v3069
      %v3104 = vunpack.c.h.b16 %v3069
      %v3105 = vunpack.c.l.b16 %v3070
      %v3106 = vunpack.c.h.b16 %v3070
      %v3107 = vunpack.c.l.b16 %v3071
      %v3108 = vunpack.c.h.b16 %v3071
      %v3109 = vunpack.c.l.b16 %v3072
      %v3110 = vunpack.c.h.b16 %v3072
      %v3111 = vunpack.c.l.b16 %v3073
      %v3112 = vunpack.c.h.b16 %v3073
      %v3113 = vunpack.c.l.b16 %v3074
      %v3114 = vunpack.c.h.b16 %v3074
      %v3115 = vunpack.c.l.b16 %v3075
      %v3116 = vunpack.c.h.b16 %v3075
      %v3117 = vunpack.c.l.b16 %v3076
      %v3118 = vunpack.c.h.b16 %v3076
      %v3119 = vunpack.c.l.b16 %v3077
      %v3120 = vunpack.c.h.b16 %v3077
      %v3121 = vunpack.c.l.b16 %v3078
      %v3122 = vunpack.c.h.b16 %v3078
      %v3123 = vunpack.c.l.b16 %v3079
      %v3124 = vunpack.c.h.b16 %v3079
      %v3125 = vunpack.c.l.b16 %v3080
      %v3126 = vunpack.c.h.b16 %v3080
      %v3127 = vunpack.c.l.b16 %v3081
      %v3128 = vunpack.c.h.b16 %v3081
      %v3129 = vunpack.c.l.b16 %v3082
      %v3130 = vunpack.c.h.b16 %v3082
      %v3131 = vpack.c.b16 %v3099, %v3099
      %v3132 = vpack.c.b16 %v3100, %v3100
      %v3133 = vpack.c.b16 %v3101, %v3101
      %v3134 = vpack.c.b16 %v3102, %v3102
      %v3135 = vpack.c.b16 %v3103, %v3103
      %v3136 = vpack.c.b16 %v3104, %v3104
      %v3137 = vpack.c.b16 %v3105, %v3105
      %v3138 = vpack.c.b16 %v3106, %v3106
      %v3139 = vpack.c.b16 %v3107, %v3107
      %v3140 = vpack.c.b16 %v3108, %v3108
      %v3141 = vpack.c.b16 %v3109, %v3109
      %v3142 = vpack.c.b16 %v3110, %v3110
      %v3143 = vpack.c.b16 %v3111, %v3111
      %v3144 = vpack.c.b16 %v3112, %v3112
      %v3145 = vpack.c.b16 %v3113, %v3113
      %v3146 = vpack.c.b16 %v3114, %v3114
      %v3147 = vpack.c.b16 %v3115, %v3115
      %v3148 = vpack.c.b16 %v3116, %v3116
      %v3149 = vpack.c.b16 %v3117, %v3117
      %v3150 = vpack.c.b16 %v3118, %v3118
      %v3151 = vpack.c.b16 %v3119, %v3119
      %v3152 = vpack.c.b16 %v3120, %v3120
      %v3153 = vpack.c.b16 %v3121, %v3121
      %v3154 = vpack.c.b16 %v3122, %v3122
      %v3155 = vpack.c.b16 %v3123, %v3123
      %v3156 = vpack.c.b16 %v3124, %v3124
      %v3157 = vpack.c.b16 %v3125, %v3125
      %v3158 = vpack.c.b16 %v3126, %v3126
      %v3159 = vpack.c.b16 %v3127, %v3127
      %v3160 = vpack.c.b16 %v3128, %v3128
      %v3161 = vpack.c.b16 %v3129, %v3129
      %v3162 = vpack.c.b16 %v3130, %v3130
      %vm3163 = vsmask.f32 256
      %vm3164 = vsmask.f32 4368
      %vm3165 = vmor %vm3163, %vm3164
      %v3167 = vshrl.u32 %v3131, 16
      %v3169 = vrot.slane %v3167, 7
      %v3170 = vshll.u32 %v3131, 16
      %v3172 = vor.u32 %v3169, %v3170
      %v3173 = vrot.slane %v3169, 4
      %v3175 = vshrl.u32 %v3132, 16
      %v3177 = vrot.slane %v3175, 7
      %v3178 = vshll.u32 %v3132, 16
      %v3180 = vor.u32 %v3177, %v3178
      %v3181 = vsel %vm3165, %v3173, %v3180
      %v3182 = vrot.slane %v3177, 4
      %v3184 = vshrl.u32 %v3133, 16
      %v3186 = vrot.slane %v3184, 7
      %v3187 = vshll.u32 %v3133, 16
      %v3189 = vor.u32 %v3186, %v3187
      %v3190 = vrot.slane %v3186, 4
      %v3192 = vshrl.u32 %v3134, 16
      %v3194 = vrot.slane %v3192, 7
      %v3195 = vshll.u32 %v3134, 16
      %v3197 = vor.u32 %v3194, %v3195
      %v3198 = vsel %vm3165, %v3190, %v3197
      %v3199 = vrot.slane %v3194, 4
      %v3201 = vshrl.u32 %v3135, 16
      %v3203 = vrot.slane %v3201, 7
      %v3204 = vshll.u32 %v3135, 16
      %v3206 = vor.u32 %v3203, %v3204
      %v3207 = vrot.slane %v3203, 4
      %v3209 = vshrl.u32 %v3136, 16
      %v3211 = vrot.slane %v3209, 7
      %v3212 = vshll.u32 %v3136, 16
      %v3214 = vor.u32 %v3211, %v3212
      %v3215 = vsel %vm3165, %v3207, %v3214
      %v3216 = vrot.slane %v3211, 4
      %v3218 = vshrl.u32 %v3137, 16
      %v3220 = vrot.slane %v3218, 7
      %v3221 = vshll.u32 %v3137, 16
      %v3223 = vor.u32 %v3220, %v3221
      %v3224 = vrot.slane %v3220, 4
      %v3226 = vshrl.u32 %v3138, 16
      %v3228 = vrot.slane %v3226, 7
      %v3229 = vshll.u32 %v3138, 16
      %v3231 = vor.u32 %v3228, %v3229
      %v3232 = vsel %vm3165, %v3224, %v3231
      %v3233 = vrot.slane %v3228, 4
      %v3235 = vshrl.u32 %v3139, 16
      %v3237 = vrot.slane %v3235, 7
      %v3238 = vshll.u32 %v3139, 16
      %v3240 = vor.u32 %v3237, %v3238
      %v3241 = vrot.slane %v3237, 4
      %v3243 = vshrl.u32 %v3140, 16
      %v3245 = vrot.slane %v3243, 7
      %v3246 = vshll.u32 %v3140, 16
      %v3248 = vor.u32 %v3245, %v3246
      %v3249 = vsel %vm3165, %v3241, %v3248
      %v3250 = vrot.slane %v3245, 4
      %v3252 = vshrl.u32 %v3141, 16
      %v3254 = vrot.slane %v3252, 7
      %v3255 = vshll.u32 %v3141, 16
      %v3257 = vor.u32 %v3254, %v3255
      %v3258 = vrot.slane %v3254, 4
      %v3260 = vshrl.u32 %v3142, 16
      %v3262 = vrot.slane %v3260, 7
      %v3263 = vshll.u32 %v3142, 16
      %v3265 = vor.u32 %v3262, %v3263
      %v3266 = vsel %vm3165, %v3258, %v3265
      %v3267 = vrot.slane %v3262, 4
      %v3269 = vshrl.u32 %v3143, 16
      %v3271 = vrot.slane %v3269, 7
      %v3272 = vshll.u32 %v3143, 16
      %v3274 = vor.u32 %v3271, %v3272
      %v3275 = vrot.slane %v3271, 4
      %v3277 = vshrl.u32 %v3144, 16
      %v3279 = vrot.slane %v3277, 7
      %v3280 = vshll.u32 %v3144, 16
      %v3282 = vor.u32 %v3279, %v3280
      %v3283 = vsel %vm3165, %v3275, %v3282
      %v3284 = vrot.slane %v3279, 4
      %v3286 = vshrl.u32 %v3145, 16
      %v3288 = vrot.slane %v3286, 7
      %v3289 = vshll.u32 %v3145, 16
      %v3291 = vor.u32 %v3288, %v3289
      %v3292 = vrot.slane %v3288, 4
      %v3294 = vshrl.u32 %v3146, 16
      %v3296 = vrot.slane %v3294, 7
      %v3297 = vshll.u32 %v3146, 16
      %v3299 = vor.u32 %v3296, %v3297
      %v3300 = vsel %vm3165, %v3292, %v3299
      %v3301 = vrot.slane %v3296, 4
      %v3303 = vshrl.u32 %v3147, 16
      %v3305 = vrot.slane %v3303, 7
      %v3306 = vshll.u32 %v3147, 16
      %v3308 = vor.u32 %v3305, %v3306
      %v3309 = vrot.slane %v3305, 4
      %v3311 = vshrl.u32 %v3148, 16
      %v3313 = vrot.slane %v3311, 7
      %v3314 = vshll.u32 %v3148, 16
      %v3316 = vor.u32 %v3313, %v3314
      %v3317 = vsel %vm3165, %v3309, %v3316
      %v3318 = vrot.slane %v3313, 4
      %v3320 = vshrl.u32 %v3149, 16
      %v3322 = vrot.slane %v3320, 7
      %v3323 = vshll.u32 %v3149, 16
      %v3325 = vor.u32 %v3322, %v3323
      %v3326 = vrot.slane %v3322, 4
      %v3328 = vshrl.u32 %v3150, 16
      %v3330 = vrot.slane %v3328, 7
      %v3331 = vshll.u32 %v3150, 16
      %v3333 = vor.u32 %v3330, %v3331
      %v3334 = vsel %vm3165, %v3326, %v3333
      %v3335 = vrot.slane %v3330, 4
      %v3337 = vshrl.u32 %v3151, 16
      %v3339 = vrot.slane %v3337, 7
      %v3340 = vshll.u32 %v3151, 16
      %v3342 = vor.u32 %v3339, %v3340
      %v3343 = vrot.slane %v3339, 4
      %v3345 = vshrl.u32 %v3152, 16
      %v3347 = vrot.slane %v3345, 7
      %v3348 = vshll.u32 %v3152, 16
      %v3350 = vor.u32 %v3347, %v3348
      %v3351 = vsel %vm3165, %v3343, %v3350
      %v3352 = vrot.slane %v3347, 4
      %v3354 = vshrl.u32 %v3153, 16
      %v3356 = vrot.slane %v3354, 7
      %v3357 = vshll.u32 %v3153, 16
      %v3359 = vor.u32 %v3356, %v3357
      %v3360 = vrot.slane %v3356, 4
      %v3362 = vshrl.u32 %v3154, 16
      %v3364 = vrot.slane %v3362, 7
      %v3365 = vshll.u32 %v3154, 16
      %v3367 = vor.u32 %v3364, %v3365
      %v3368 = vsel %vm3165, %v3360, %v3367
      %v3369 = vrot.slane %v3364, 4
      %v3371 = vshrl.u32 %v3155, 16
      %v3373 = vrot.slane %v3371, 7
      %v3374 = vshll.u32 %v3155, 16
      %v3376 = vor.u32 %v3373, %v3374
      %v3377 = vrot.slane %v3373, 4
      %v3379 = vshrl.u32 %v3156, 16
      %v3381 = vrot.slane %v3379, 7
      %v3382 = vshll.u32 %v3156, 16
      %v3384 = vor.u32 %v3381, %v3382
      %v3385 = vsel %vm3165, %v3377, %v3384
      %v3386 = vrot.slane %v3381, 4
      %v3388 = vshrl.u32 %v3157, 16
      %v3390 = vrot.slane %v3388, 7
      %v3391 = vshll.u32 %v3157, 16
      %v3393 = vor.u32 %v3390, %v3391
      %v3394 = vrot.slane %v3390, 4
      %v3396 = vshrl.u32 %v3158, 16
      %v3398 = vrot.slane %v3396, 7
      %v3399 = vshll.u32 %v3158, 16
      %v3401 = vor.u32 %v3398, %v3399
      %v3402 = vsel %vm3165, %v3394, %v3401
      %v3403 = vrot.slane %v3398, 4
      %v3405 = vshrl.u32 %v3159, 16
      %v3407 = vrot.slane %v3405, 7
      %v3408 = vshll.u32 %v3159, 16
      %v3410 = vor.u32 %v3407, %v3408
      %v3411 = vrot.slane %v3407, 4
      %v3413 = vshrl.u32 %v3160, 16
      %v3415 = vrot.slane %v3413, 7
      %v3416 = vshll.u32 %v3160, 16
      %v3418 = vor.u32 %v3415, %v3416
      %v3419 = vsel %vm3165, %v3411, %v3418
      %v3420 = vrot.slane %v3415, 4
      %v3422 = vshrl.u32 %v3161, 16
      %v3424 = vrot.slane %v3422, 7
      %v3425 = vshll.u32 %v3161, 16
      %v3427 = vor.u32 %v3424, %v3425
      %v3428 = vrot.slane %v3424, 4
      %v3430 = vshrl.u32 %v3162, 16
      %v3432 = vrot.slane %v3430, 7
      %v3433 = vshll.u32 %v3162, 16
      %v3435 = vor.u32 %v3432, %v3433
      %v3436 = vsel %vm3165, %v3428, %v3435
      %v3437 = vrot.slane %v3432, 4
      %s3486 = scalar_lea.vmem [#allocation2], 12
      %vm3487 = vcmask 1043456
      %vm3488 = vsmask.f32 7938
      %vm3489 = vmand %vm3487, %vm3488
      %v3490 = vld [vmem:[%s3486] sm:$0xf]
      %v3491 = vsel %vm3489, %v3172, %v3490
      %3492 = vst [vmem:[%s3486] sm:$0xf] %v3491
      %3493 = vst [vmem:[%s3486 + $0x4] sm:$0xf] %v3181
      %vm3494 = vcmask 1040384
      %vm3495 = vmand %vm3494, %vm3163
      %v3496 = vld [vmem:[%s3486 + $0x8] sm:$0x1]
      %v3497 = vsel %vm3495, %v3182, %v3496
      %3498 = vst [vmem:[%s3486 + $0x8] sm:$0x1] %v3497
      %v3499 = vld [vmem:[%s3486 + $0xc] sm:$0xf]
      %v3500 = vsel %vm3489, %v3189, %v3499
      %3501 = vst [vmem:[%s3486 + $0xc] sm:$0xf] %v3500
      %3502 = vst [vmem:[%s3486 + $0x10] sm:$0xf] %v3198
      %v3503 = vld [vmem:[%s3486 + $0x14] sm:$0x1]
      %v3504 = vsel %vm3495, %v3199, %v3503
      %3505 = vst [vmem:[%s3486 + $0x14] sm:$0x1] %v3504
      %v3506 = vld [vmem:[%s3486 + $0x18] sm:$0xf]
      %v3507 = vsel %vm3489, %v3206, %v3506
      %3508 = vst [vmem:[%s3486 + $0x18] sm:$0xf] %v3507
      %3509 = vst [vmem:[%s3486 + $0x1c] sm:$0xf] %v3215
      %v3510 = vld [vmem:[%s3486 + $0x20] sm:$0x1]
      %v3511 = vsel %vm3495, %v3216, %v3510
      %3512 = vst [vmem:[%s3486 + $0x20] sm:$0x1] %v3511
      %v3513 = vld [vmem:[%s3486 + $0x24] sm:$0xf]
      %v3514 = vsel %vm3489, %v3223, %v3513
      %3515 = vst [vmem:[%s3486 + $0x24] sm:$0xf] %v3514
      %3516 = vst [vmem:[%s3486 + $0x28] sm:$0xf] %v3232
      %v3517 = vld [vmem:[%s3486 + $0x2c] sm:$0x1]
      %v3518 = vsel %vm3495, %v3233, %v3517
      %3519 = vst [vmem:[%s3486 + $0x2c] sm:$0x1] %v3518
      %v3520 = vld [vmem:[%s3486 + $0x30] sm:$0xf]
      %v3521 = vsel %vm3489, %v3240, %v3520
      %3522 = vst [vmem:[%s3486 + $0x30] sm:$0xf] %v3521
      %3523 = vst [vmem:[%s3486 + $0x34] sm:$0xf] %v3249
      %v3524 = vld [vmem:[%s3486 + $0x38] sm:$0x1]
      %v3525 = vsel %vm3495, %v3250, %v3524
      %3526 = vst [vmem:[%s3486 + $0x38] sm:$0x1] %v3525
      %v3527 = vld [vmem:[%s3486 + $0x3c] sm:$0xf]
      %v3528 = vsel %vm3489, %v3257, %v3527
      %3529 = vst [vmem:[%s3486 + $0x3c] sm:$0xf] %v3528
      %3530 = vst [vmem:[%s3486 + $0x40] sm:$0xf] %v3266
      %v3531 = vld [vmem:[%s3486 + $0x44] sm:$0x1]
      %v3532 = vsel %vm3495, %v3267, %v3531
      %3533 = vst [vmem:[%s3486 + $0x44] sm:$0x1] %v3532
      %v3534 = vld [vmem:[%s3486 + $0x48] sm:$0xf]
      %v3535 = vsel %vm3489, %v3274, %v3534
      %3536 = vst [vmem:[%s3486 + $0x48] sm:$0xf] %v3535
      %3537 = vst [vmem:[%s3486 + $0x4c] sm:$0xf] %v3283
      %v3538 = vld [vmem:[%s3486 + $0x50] sm:$0x1]
      %v3539 = vsel %vm3495, %v3284, %v3538
      %3540 = vst [vmem:[%s3486 + $0x50] sm:$0x1] %v3539
      %v3541 = vld [vmem:[%s3486 + $0x54] sm:$0xf]
      %v3542 = vsel %vm3489, %v3291, %v3541
      %3543 = vst [vmem:[%s3486 + $0x54] sm:$0xf] %v3542
      %3544 = vst [vmem:[%s3486 + $0x58] sm:$0xf] %v3300
      %v3545 = vld [vmem:[%s3486 + $0x5c] sm:$0x1]
      %v3546 = vsel %vm3495, %v3301, %v3545
      %3547 = vst [vmem:[%s3486 + $0x5c] sm:$0x1] %v3546
      %v3548 = vld [vmem:[%s3486 + $0x60] sm:$0xf]
      %v3549 = vsel %vm3489, %v3308, %v3548
      %3550 = vst [vmem:[%s3486 + $0x60] sm:$0xf] %v3549
      %3551 = vst [vmem:[%s3486 + $0x64] sm:$0xf] %v3317
      %v3552 = vld [vmem:[%s3486 + $0x68] sm:$0x1]
      %v3553 = vsel %vm3495, %v3318, %v3552
      %3554 = vst [vmem:[%s3486 + $0x68] sm:$0x1] %v3553
      %v3555 = vld [vmem:[%s3486 + $0x6c] sm:$0xf]
      %v3556 = vsel %vm3489, %v3325, %v3555
      %3557 = vst [vmem:[%s3486 + $0x6c] sm:$0xf] %v3556
      %3558 = vst [vmem:[%s3486 + $0x70] sm:$0xf] %v3334
      %v3559 = vld [vmem:[%s3486 + $0x74] sm:$0x1]
      %v3560 = vsel %vm3495, %v3335, %v3559
      %3561 = vst [vmem:[%s3486 + $0x74] sm:$0x1] %v3560
      %v3562 = vld [vmem:[%s3486 + $0x78] sm:$0xf]
      %v3563 = vsel %vm3489, %v3342, %v3562
      %3564 = vst [vmem:[%s3486 + $0x78] sm:$0xf] %v3563
      %3565 = vst [vmem:[%s3486 + $0x7c] sm:$0xf] %v3351
      %v3566 = vld [vmem:[%s3486 + $0x80] sm:$0x1]
      %v3567 = vsel %vm3495, %v3352, %v3566
      %3568 = vst [vmem:[%s3486 + $0x80] sm:$0x1] %v3567
      %v3569 = vld [vmem:[%s3486 + $0x84] sm:$0xf]
      %v3570 = vsel %vm3489, %v3359, %v3569
      %3571 = vst [vmem:[%s3486 + $0x84] sm:$0xf] %v3570
      %3572 = vst [vmem:[%s3486 + $0x88] sm:$0xf] %v3368
      %v3573 = vld [vmem:[%s3486 + $0x8c] sm:$0x1]
      %v3574 = vsel %vm3495, %v3369, %v3573
      %3575 = vst [vmem:[%s3486 + $0x8c] sm:$0x1] %v3574
      %v3576 = vld [vmem:[%s3486 + $0x90] sm:$0xf]
      %v3577 = vsel %vm3489, %v3376, %v3576
      %3578 = vst [vmem:[%s3486 + $0x90] sm:$0xf] %v3577
      %3579 = vst [vmem:[%s3486 + $0x94] sm:$0xf] %v3385
      %v3580 = vld [vmem:[%s3486 + $0x98] sm:$0x1]
      %v3581 = vsel %vm3495, %v3386, %v3580
      %3582 = vst [vmem:[%s3486 + $0x98] sm:$0x1] %v3581
      %v3583 = vld [vmem:[%s3486 + $0x9c] sm:$0xf]
      %v3584 = vsel %vm3489, %v3393, %v3583
      %3585 = vst [vmem:[%s3486 + $0x9c] sm:$0xf] %v3584
      %3586 = vst [vmem:[%s3486 + $0xa0] sm:$0xf] %v3402
      %v3587 = vld [vmem:[%s3486 + $0xa4] sm:$0x1]
      %v3588 = vsel %vm3495, %v3403, %v3587
      %3589 = vst [vmem:[%s3486 + $0xa4] sm:$0x1] %v3588
      %v3590 = vld [vmem:[%s3486 + $0xa8] sm:$0xf]
      %v3591 = vsel %vm3489, %v3410, %v3590
      %3592 = vst [vmem:[%s3486 + $0xa8] sm:$0xf] %v3591
      %3593 = vst [vmem:[%s3486 + $0xac] sm:$0xf] %v3419
      %v3594 = vld [vmem:[%s3486 + $0xb0] sm:$0x1]
      %v3595 = vsel %vm3495, %v3420, %v3594
      %3596 = vst [vmem:[%s3486 + $0xb0] sm:$0x1] %v3595
      %v3597 = vld [vmem:[%s3486 + $0xb4] sm:$0xf]
      %v3598 = vsel %vm3489, %v3427, %v3597
      %3599 = vst [vmem:[%s3486 + $0xb4] sm:$0xf] %v3598
      %3600 = vst [vmem:[%s3486 + $0xb8] sm:$0xf] %v3436
      %v3601 = vld [vmem:[%s3486 + $0xbc] sm:$0x1]
      %v3602 = vsel %vm3495, %v3437, %v3601
      %3603 = vst [vmem:[%s3486 + $0xbc] sm:$0x1] %v3602
      %v3604 = vld [vmem:[#allocation2] sm:$0xf]
      %v3605 = vld [vmem:[#allocation2 + $0x4] sm:$0xf]
      %v3606 = vld [vmem:[#allocation2 + $0xc] sm:$0xf]
      %v3607 = vld [vmem:[#allocation2 + $0x10] sm:$0xf]
      %v3608 = vld [vmem:[#allocation2 + $0x18] sm:$0xf]
      %v3609 = vld [vmem:[#allocation2 + $0x1c] sm:$0xf]
      %v3610 = vld [vmem:[#allocation2 + $0x24] sm:$0xf]
      %v3611 = vld [vmem:[#allocation2 + $0x28] sm:$0xf]
      %v3612 = vld [vmem:[#allocation2 + $0x30] sm:$0xf]
      %v3613 = vld [vmem:[#allocation2 + $0x34] sm:$0xf]
      %v3614 = vld [vmem:[#allocation2 + $0x3c] sm:$0xf]
      %v3615 = vld [vmem:[#allocation2 + $0x40] sm:$0xf]
      %v3616 = vld [vmem:[#allocation2 + $0x48] sm:$0xf]
      %v3617 = vld [vmem:[#allocation2 + $0x4c] sm:$0xf]
      %v3618 = vld [vmem:[#allocation2 + $0x54] sm:$0xf]
      %v3619 = vld [vmem:[#allocation2 + $0x58] sm:$0xf]
      %v3620 = vld [vmem:[#allocation2 + $0x60] sm:$0xf]
      %v3621 = vld [vmem:[#allocation2 + $0x64] sm:$0xf]
      %v3622 = vld [vmem:[#allocation2 + $0x6c] sm:$0xf]
      %v3623 = vld [vmem:[#allocation2 + $0x70] sm:$0xf]
      %v3624 = vld [vmem:[#allocation2 + $0x78] sm:$0xf]
      %v3625 = vld [vmem:[#allocation2 + $0x7c] sm:$0xf]
      %v3626 = vld [vmem:[#allocation2 + $0x84] sm:$0xf]
      %v3627 = vld [vmem:[#allocation2 + $0x88] sm:$0xf]
      %v3628 = vld [vmem:[#allocation2 + $0x90] sm:$0xf]
      %v3629 = vld [vmem:[#allocation2 + $0x94] sm:$0xf]
      %v3630 = vld [vmem:[#allocation2 + $0x9c] sm:$0xf]
      %v3631 = vld [vmem:[#allocation2 + $0xa0] sm:$0xf]
      %v3632 = vld [vmem:[#allocation2 + $0xa8] sm:$0xf]
      %v3633 = vld [vmem:[#allocation2 + $0xac] sm:$0xf]
      %v3634 = vld [vmem:[#allocation2 + $0xb4] sm:$0xf]
      %v3635 = vld [vmem:[#allocation2 + $0xb8] sm:$0xf]
      %v3636 = vld [vmem:[%s3] sm:$0xf]
      %v3637 = vld [vmem:[%s3 + $0x4] sm:$0xf]
      %v3638 = vld [vmem:[%s3 + $0x8] sm:$0xf]
      %v3639 = vld [vmem:[%s3 + $0xc] sm:$0xf]
      %v3640 = vld [vmem:[%s3 + $0x10] sm:$0xf]
      %v3641 = vld [vmem:[%s3 + $0x14] sm:$0xf]
      %v3642 = vld [vmem:[%s3 + $0x18] sm:$0xf]
      %v3643 = vld [vmem:[%s3 + $0x1c] sm:$0xf]
      %v3644 = vld [vmem:[%s3 + $0x20] sm:$0xf]
      %v3645 = vld [vmem:[%s3 + $0x24] sm:$0xf]
      %v3646 = vld [vmem:[%s3 + $0x28] sm:$0xf]
      %v3647 = vld [vmem:[%s3 + $0x2c] sm:$0xf]
      %v3648 = vld [vmem:[%s3 + $0x30] sm:$0xf]
      %v3649 = vld [vmem:[%s3 + $0x34] sm:$0xf]
      %v3650 = vld [vmem:[%s3 + $0x38] sm:$0xf]
      %v3651 = vld [vmem:[%s3 + $0x3c] sm:$0xf]
      %v3652 = vld [vmem:[#allocation2 + $0x8] sm:$0x1]
      %v3653 = vld [vmem:[#allocation2 + $0x14] sm:$0x1]
      %v3654 = vld [vmem:[#allocation2 + $0x20] sm:$0x1]
      %v3655 = vld [vmem:[#allocation2 + $0x2c] sm:$0x1]
      %v3656 = vld [vmem:[#allocation2 + $0x38] sm:$0x1]
      %v3657 = vld [vmem:[#allocation2 + $0x44] sm:$0x1]
      %v3658 = vld [vmem:[#allocation2 + $0x50] sm:$0x1]
      %v3659 = vld [vmem:[#allocation2 + $0x5c] sm:$0x1]
      %v3660 = vld [vmem:[#allocation2 + $0x68] sm:$0x1]
      %v3661 = vld [vmem:[#allocation2 + $0x74] sm:$0x1]
      %v3662 = vld [vmem:[#allocation2 + $0x80] sm:$0x1]
      %v3663 = vld [vmem:[#allocation2 + $0x8c] sm:$0x1]
      %v3664 = vld [vmem:[#allocation2 + $0x98] sm:$0x1]
      %v3665 = vld [vmem:[#allocation2 + $0xa4] sm:$0x1]
      %v3666 = vld [vmem:[#allocation2 + $0xb0] sm:$0x1]
      %v3667 = vld [vmem:[#allocation2 + $0xbc] sm:$0x1]
      %v3669 = vshrl.u32 %v3604, 16
      %v3671 = vrot.slane %v3669, 4
      %v3672 = vshll.u32 %v3604, 16
      %v3674 = vrot.slane %v3672, 5
      %v3675 = vor.u32 %v3671, %v3674
      %v3676 = vrot.slane %v3675, 4
      %v3678 = vshll.u32 %v3605, 16
      %v3680 = vrot.slane %v3678, 5
      %v3681 = vsel %vm284, %v3676, %v3680
      %v3682 = vshrl.u32 %v3605, 16
      %v3684 = vrot.slane %v3682, 4
      %v3685 = vor.u32 %v3684, %v3680
      %v3686 = vrot.slane %v3685, 4
      %v3688 = vshll.u32 %v3652, 16
      %v3690 = vrot.slane %v3688, 5
      %v3691 = vsel %vm284, %v3686, %v3690
      %v3693 = vshrl.u32 %v3606, 16
      %v3695 = vrot.slane %v3693, 4
      %v3696 = vshll.u32 %v3606, 16
      %v3698 = vrot.slane %v3696, 5
      %v3699 = vor.u32 %v3695, %v3698
      %v3700 = vrot.slane %v3699, 4
      %v3702 = vshll.u32 %v3607, 16
      %v3704 = vrot.slane %v3702, 5
      %v3705 = vsel %vm284, %v3700, %v3704
      %v3706 = vshrl.u32 %v3607, 16
      %v3708 = vrot.slane %v3706, 4
      %v3709 = vor.u32 %v3708, %v3704
      %v3710 = vrot.slane %v3709, 4
      %v3712 = vshll.u32 %v3653, 16
      %v3714 = vrot.slane %v3712, 5
      %v3715 = vsel %vm284, %v3710, %v3714
      %v3717 = vshrl.u32 %v3608, 16
      %v3719 = vrot.slane %v3717, 4
      %v3720 = vshll.u32 %v3608, 16
      %v3722 = vrot.slane %v3720, 5
      %v3723 = vor.u32 %v3719, %v3722
      %v3724 = vrot.slane %v3723, 4
      %v3726 = vshll.u32 %v3609, 16
      %v3728 = vrot.slane %v3726, 5
      %v3729 = vsel %vm284, %v3724, %v3728
      %v3730 = vshrl.u32 %v3609, 16
      %v3732 = vrot.slane %v3730, 4
      %v3733 = vor.u32 %v3732, %v3728
      %v3734 = vrot.slane %v3733, 4
      %v3736 = vshll.u32 %v3654, 16
      %v3738 = vrot.slane %v3736, 5
      %v3739 = vsel %vm284, %v3734, %v3738
      %v3741 = vshrl.u32 %v3610, 16
      %v3743 = vrot.slane %v3741, 4
      %v3744 = vshll.u32 %v3610, 16
      %v3746 = vrot.slane %v3744, 5
      %v3747 = vor.u32 %v3743, %v3746
      %v3748 = vrot.slane %v3747, 4
      %v3750 = vshll.u32 %v3611, 16
      %v3752 = vrot.slane %v3750, 5
      %v3753 = vsel %vm284, %v3748, %v3752
      %v3754 = vshrl.u32 %v3611, 16
      %v3756 = vrot.slane %v3754, 4
      %v3757 = vor.u32 %v3756, %v3752
      %v3758 = vrot.slane %v3757, 4
      %v3760 = vshll.u32 %v3655, 16
      %v3762 = vrot.slane %v3760, 5
      %v3763 = vsel %vm284, %v3758, %v3762
      %v3765 = vshrl.u32 %v3612, 16
      %v3767 = vrot.slane %v3765, 4
      %v3768 = vshll.u32 %v3612, 16
      %v3770 = vrot.slane %v3768, 5
      %v3771 = vor.u32 %v3767, %v3770
      %v3772 = vrot.slane %v3771, 4
      %v3774 = vshll.u32 %v3613, 16
      %v3776 = vrot.slane %v3774, 5
      %v3777 = vsel %vm284, %v3772, %v3776
      %v3778 = vshrl.u32 %v3613, 16
      %v3780 = vrot.slane %v3778, 4
      %v3781 = vor.u32 %v3780, %v3776
      %v3782 = vrot.slane %v3781, 4
      %v3784 = vshll.u32 %v3656, 16
      %v3786 = vrot.slane %v3784, 5
      %v3787 = vsel %vm284, %v3782, %v3786
      %v3789 = vshrl.u32 %v3614, 16
      %v3791 = vrot.slane %v3789, 4
      %v3792 = vshll.u32 %v3614, 16
      %v3794 = vrot.slane %v3792, 5
      %v3795 = vor.u32 %v3791, %v3794
      %v3796 = vrot.slane %v3795, 4
      %v3798 = vshll.u32 %v3615, 16
      %v3800 = vrot.slane %v3798, 5
      %v3801 = vsel %vm284, %v3796, %v3800
      %v3802 = vshrl.u32 %v3615, 16
      %v3804 = vrot.slane %v3802, 4
      %v3805 = vor.u32 %v3804, %v3800
      %v3806 = vrot.slane %v3805, 4
      %v3808 = vshll.u32 %v3657, 16
      %v3810 = vrot.slane %v3808, 5
      %v3811 = vsel %vm284, %v3806, %v3810
      %v3813 = vshrl.u32 %v3616, 16
      %v3815 = vrot.slane %v3813, 4
      %v3816 = vshll.u32 %v3616, 16
      %v3818 = vrot.slane %v3816, 5
      %v3819 = vor.u32 %v3815, %v3818
      %v3820 = vrot.slane %v3819, 4
      %v3822 = vshll.u32 %v3617, 16
      %v3824 = vrot.slane %v3822, 5
      %v3825 = vsel %vm284, %v3820, %v3824
      %v3826 = vshrl.u32 %v3617, 16
      %v3828 = vrot.slane %v3826, 4
      %v3829 = vor.u32 %v3828, %v3824
      %v3830 = vrot.slane %v3829, 4
      %v3832 = vshll.u32 %v3658, 16
      %v3834 = vrot.slane %v3832, 5
      %v3835 = vsel %vm284, %v3830, %v3834
      %v3837 = vshrl.u32 %v3618, 16
      %v3839 = vrot.slane %v3837, 4
      %v3840 = vshll.u32 %v3618, 16
      %v3842 = vrot.slane %v3840, 5
      %v3843 = vor.u32 %v3839, %v3842
      %v3844 = vrot.slane %v3843, 4
      %v3846 = vshll.u32 %v3619, 16
      %v3848 = vrot.slane %v3846, 5
      %v3849 = vsel %vm284, %v3844, %v3848
      %v3850 = vshrl.u32 %v3619, 16
      %v3852 = vrot.slane %v3850, 4
      %v3853 = vor.u32 %v3852, %v3848
      %v3854 = vrot.slane %v3853, 4
      %v3856 = vshll.u32 %v3659, 16
      %v3858 = vrot.slane %v3856, 5
      %v3859 = vsel %vm284, %v3854, %v3858
      %v3861 = vshrl.u32 %v3620, 16
      %v3863 = vrot.slane %v3861, 4
      %v3864 = vshll.u32 %v3620, 16
      %v3866 = vrot.slane %v3864, 5
      %v3867 = vor.u32 %v3863, %v3866
      %v3868 = vrot.slane %v3867, 4
      %v3870 = vshll.u32 %v3621, 16
      %v3872 = vrot.slane %v3870, 5
      %v3873 = vsel %vm284, %v3868, %v3872
      %v3874 = vshrl.u32 %v3621, 16
      %v3876 = vrot.slane %v3874, 4
      %v3877 = vor.u32 %v3876, %v3872
      %v3878 = vrot.slane %v3877, 4
      %v3880 = vshll.u32 %v3660, 16
      %v3882 = vrot.slane %v3880, 5
      %v3883 = vsel %vm284, %v3878, %v3882
      %v3885 = vshrl.u32 %v3622, 16
      %v3887 = vrot.slane %v3885, 4
      %v3888 = vshll.u32 %v3622, 16
      %v3890 = vrot.slane %v3888, 5
      %v3891 = vor.u32 %v3887, %v3890
      %v3892 = vrot.slane %v3891, 4
      %v3894 = vshll.u32 %v3623, 16
      %v3896 = vrot.slane %v3894, 5
      %v3897 = vsel %vm284, %v3892, %v3896
      %v3898 = vshrl.u32 %v3623, 16
      %v3900 = vrot.slane %v3898, 4
      %v3901 = vor.u32 %v3900, %v3896
      %v3902 = vrot.slane %v3901, 4
      %v3904 = vshll.u32 %v3661, 16
      %v3906 = vrot.slane %v3904, 5
      %v3907 = vsel %vm284, %v3902, %v3906
      %v3909 = vshrl.u32 %v3624, 16
      %v3911 = vrot.slane %v3909, 4
      %v3912 = vshll.u32 %v3624, 16
      %v3914 = vrot.slane %v3912, 5
      %v3915 = vor.u32 %v3911, %v3914
      %v3916 = vrot.slane %v3915, 4
      %v3918 = vshll.u32 %v3625, 16
      %v3920 = vrot.slane %v3918, 5
      %v3921 = vsel %vm284, %v3916, %v3920
      %v3922 = vshrl.u32 %v3625, 16
      %v3924 = vrot.slane %v3922, 4
      %v3925 = vor.u32 %v3924, %v3920
      %v3926 = vrot.slane %v3925, 4
      %v3928 = vshll.u32 %v3662, 16
      %v3930 = vrot.slane %v3928, 5
      %v3931 = vsel %vm284, %v3926, %v3930
      %v3933 = vshrl.u32 %v3626, 16
      %v3935 = vrot.slane %v3933, 4
      %v3936 = vshll.u32 %v3626, 16
      %v3938 = vrot.slane %v3936, 5
      %v3939 = vor.u32 %v3935, %v3938
      %v3940 = vrot.slane %v3939, 4
      %v3942 = vshll.u32 %v3627, 16
      %v3944 = vrot.slane %v3942, 5
      %v3945 = vsel %vm284, %v3940, %v3944
      %v3946 = vshrl.u32 %v3627, 16
      %v3948 = vrot.slane %v3946, 4
      %v3949 = vor.u32 %v3948, %v3944
      %v3950 = vrot.slane %v3949, 4
      %v3952 = vshll.u32 %v3663, 16
      %v3954 = vrot.slane %v3952, 5
      %v3955 = vsel %vm284, %v3950, %v3954
      %v3957 = vshrl.u32 %v3628, 16
      %v3959 = vrot.slane %v3957, 4
      %v3960 = vshll.u32 %v3628, 16
      %v3962 = vrot.slane %v3960, 5
      %v3963 = vor.u32 %v3959, %v3962
      %v3964 = vrot.slane %v3963, 4
      %v3966 = vshll.u32 %v3629, 16
      %v3968 = vrot.slane %v3966, 5
      %v3969 = vsel %vm284, %v3964, %v3968
      %v3970 = vshrl.u32 %v3629, 16
      %v3972 = vrot.slane %v3970, 4
      %v3973 = vor.u32 %v3972, %v3968
      %v3974 = vrot.slane %v3973, 4
      %v3976 = vshll.u32 %v3664, 16
      %v3978 = vrot.slane %v3976, 5
      %v3979 = vsel %vm284, %v3974, %v3978
      %v3981 = vshrl.u32 %v3630, 16
      %v3983 = vrot.slane %v3981, 4
      %v3984 = vshll.u32 %v3630, 16
      %v3986 = vrot.slane %v3984, 5
      %v3987 = vor.u32 %v3983, %v3986
      %v3988 = vrot.slane %v3987, 4
      %v3990 = vshll.u32 %v3631, 16
      %v3992 = vrot.slane %v3990, 5
      %v3993 = vsel %vm284, %v3988, %v3992
      %v3994 = vshrl.u32 %v3631, 16
      %v3996 = vrot.slane %v3994, 4
      %v3997 = vor.u32 %v3996, %v3992
      %v3998 = vrot.slane %v3997, 4
      %v4000 = vshll.u32 %v3665, 16
      %v4002 = vrot.slane %v4000, 5
      %v4003 = vsel %vm284, %v3998, %v4002
      %v4005 = vshrl.u32 %v3632, 16
      %v4007 = vrot.slane %v4005, 4
      %v4008 = vshll.u32 %v3632, 16
      %v4010 = vrot.slane %v4008, 5
      %v4011 = vor.u32 %v4007, %v4010
      %v4012 = vrot.slane %v4011, 4
      %v4014 = vshll.u32 %v3633, 16
      %v4016 = vrot.slane %v4014, 5
      %v4017 = vsel %vm284, %v4012, %v4016
      %v4018 = vshrl.u32 %v3633, 16
      %v4020 = vrot.slane %v4018, 4
      %v4021 = vor.u32 %v4020, %v4016
      %v4022 = vrot.slane %v4021, 4
      %v4024 = vshll.u32 %v3666, 16
      %v4026 = vrot.slane %v4024, 5
      %v4027 = vsel %vm284, %v4022, %v4026
      %v4029 = vshrl.u32 %v3634, 16
      %v4031 = vrot.slane %v4029, 4
      %v4032 = vshll.u32 %v3634, 16
      %v4034 = vrot.slane %v4032, 5
      %v4035 = vor.u32 %v4031, %v4034
      %v4036 = vrot.slane %v4035, 4
      %v4038 = vshll.u32 %v3635, 16
      %v4040 = vrot.slane %v4038, 5
      %v4041 = vsel %vm284, %v4036, %v4040
      %v4042 = vshrl.u32 %v3635, 16
      %v4044 = vrot.slane %v4042, 4
      %v4045 = vor.u32 %v4044, %v4040
      %v4046 = vrot.slane %v4045, 4
      %v4048 = vshll.u32 %v3667, 16
      %v4050 = vrot.slane %v4048, 5
      %v4051 = vsel %vm284, %v4046, %v4050
      %s4052 = scalar_lea.vmem %s3, 64
      %v4053 = vld [vmem:[%s4052] sm:$0xf]
      %v4054 = vld [vmem:[%s4052 + $0x4] sm:$0xf]
      %v4055 = vld [vmem:[%s4052 + $0x8] sm:$0xf]
      %v4056 = vld [vmem:[%s4052 + $0xc] sm:$0xf]
      %v4057 = vld [vmem:[%s4052 + $0x10] sm:$0xf]
      %v4058 = vld [vmem:[%s4052 + $0x14] sm:$0xf]
      %v4059 = vld [vmem:[%s4052 + $0x18] sm:$0xf]
      %v4060 = vld [vmem:[%s4052 + $0x1c] sm:$0xf]
      %v4061 = vld [vmem:[%s4052 + $0x20] sm:$0xf]
      %v4062 = vld [vmem:[%s4052 + $0x24] sm:$0xf]
      %v4063 = vld [vmem:[%s4052 + $0x28] sm:$0xf]
      %v4064 = vld [vmem:[%s4052 + $0x2c] sm:$0xf]
      %v4065 = vld [vmem:[%s4052 + $0x30] sm:$0xf]
      %v4066 = vld [vmem:[%s4052 + $0x34] sm:$0xf]
      %v4067 = vld [vmem:[%s4052 + $0x38] sm:$0xf]
      %v4068 = vld [vmem:[%s4052 + $0x3c] sm:$0xf]
      %v4069 = vunpack.c.l.b16 %v3681
      %v4070 = vunpack.c.l.b16 %v3691
      %v4071 = vunpack.c.l.b16 %v3705
      %v4072 = vunpack.c.l.b16 %v3715
      %v4073 = vunpack.c.l.b16 %v3729
      %v4074 = vunpack.c.l.b16 %v3739
      %v4075 = vunpack.c.l.b16 %v3753
      %v4076 = vunpack.c.l.b16 %v3763
      %v4077 = vunpack.c.l.b16 %v3777
      %v4078 = vunpack.c.l.b16 %v3787
      %v4079 = vunpack.c.l.b16 %v3801
      %v4080 = vunpack.c.l.b16 %v3811
      %v4081 = vunpack.c.l.b16 %v3825
      %v4082 = vunpack.c.l.b16 %v3835
      %v4083 = vunpack.c.l.b16 %v3849
      %v4084 = vunpack.c.l.b16 %v3859
      %v4085 = vunpack.c.l.b16 %v3873
      %v4086 = vunpack.c.l.b16 %v3883
      %v4087 = vunpack.c.l.b16 %v3897
      %v4088 = vunpack.c.l.b16 %v3907
      %v4089 = vunpack.c.l.b16 %v3921
      %v4090 = vunpack.c.l.b16 %v3931
      %v4091 = vunpack.c.l.b16 %v3945
      %v4092 = vunpack.c.l.b16 %v3955
      %v4093 = vunpack.c.l.b16 %v3969
      %v4094 = vunpack.c.l.b16 %v3979
      %v4095 = vunpack.c.l.b16 %v3993
      %v4096 = vunpack.c.l.b16 %v4003
      %v4097 = vunpack.c.l.b16 %v4017
      %v4098 = vunpack.c.l.b16 %v4027
      %v4099 = vunpack.c.l.b16 %v4041
      %v4100 = vunpack.c.l.b16 %v4051
      %v4101 = vpack.c.b16 %v4070, %v4069
      %v4102 = vpack.c.b16 %v4072, %v4071
      %v4103 = vpack.c.b16 %v4074, %v4073
      %v4104 = vpack.c.b16 %v4076, %v4075
      %v4105 = vpack.c.b16 %v4078, %v4077
      %v4106 = vpack.c.b16 %v4080, %v4079
      %v4107 = vpack.c.b16 %v4082, %v4081
      %v4108 = vpack.c.b16 %v4084, %v4083
      %v4109 = vpack.c.b16 %v4086, %v4085
      %v4110 = vpack.c.b16 %v4088, %v4087
      %v4111 = vpack.c.b16 %v4090, %v4089
      %v4112 = vpack.c.b16 %v4092, %v4091
      %v4113 = vpack.c.b16 %v4094, %v4093
      %v4114 = vpack.c.b16 %v4096, %v4095
      %v4115 = vpack.c.b16 %v4098, %v4097
      %v4116 = vpack.c.b16 %v4100, %v4099
      %v4149 = vunpack.c.l.b16 %v4053
      %v4150 = vunpack.c.l.b16 %v4054
      %v4151 = vunpack.c.l.b16 %v4055
      %v4152 = vunpack.c.l.b16 %v4056
      %v4153 = vunpack.c.l.b16 %v4057
      %v4154 = vunpack.c.l.b16 %v4058
      %v4155 = vunpack.c.l.b16 %v4059
      %v4156 = vunpack.c.l.b16 %v4060
      %v4157 = vunpack.c.l.b16 %v4061
      %v4158 = vunpack.c.l.b16 %v4062
      %v4159 = vunpack.c.l.b16 %v4063
      %v4160 = vunpack.c.l.b16 %v4064
      %v4161 = vunpack.c.l.b16 %v4065
      %v4162 = vunpack.c.l.b16 %v4066
      %v4163 = vunpack.c.l.b16 %v4067
      %v4164 = vunpack.c.l.b16 %v4068
      %v4165 = vpack.c.b16 %v4150, %v4149
      %v4166 = vpack.c.b16 %v4152, %v4151
      %v4167 = vpack.c.b16 %v4154, %v4153
      %v4168 = vpack.c.b16 %v4156, %v4155
      %v4169 = vpack.c.b16 %v4158, %v4157
      %v4170 = vpack.c.b16 %v4160, %v4159
      %v4171 = vpack.c.b16 %v4162, %v4161
      %v4172 = vpack.c.b16 %v4164, %v4163
      %4181 = vmatprep.subr.bf16.mxu0 0
      %4182 = vmatpush1.bf16.msra.mxu0 %v4165
      %4183 = vmatprep.subr.bf16.mxu0 0
      %4184 = vmatpush1.bf16.msra.mxu0 %v4166
      %4185 = vmatprep.subr.bf16.mxu0 0
      %4186 = vmatpush1.bf16.msra.mxu0 %v4167
      %4187 = vmatprep.subr.bf16.mxu0 0
      %4188 = vmatpush1.bf16.msra.mxu0 %v4168
      %4189 = vmatprep.subr.bf16.mxu0 0
      %4190 = vmatpush1.bf16.msra.mxu0 %v4169
      %4191 = vmatprep.subr.bf16.mxu0 0
      %4192 = vmatpush1.bf16.msra.mxu0 %v4170
      %4193 = vmatprep.subr.bf16.mxu0 0
      %4194 = vmatpush1.bf16.msra.mxu0 %v4171
      %4195 = vmatprep.subr.bf16.mxu0 0
      %4196 = vmatpush1.bf16.msra.mxu0 %v4172
      %4197 = vmatprep.subr.bf16.mxu0 0
      %4198 = vmatpush1.bf16.msra.mxu0 0
      %4199 = vmatprep.subr.bf16.mxu0 0
      %4200 = vmatpush1.bf16.msra.mxu0 0
      %4201 = vmatprep.subr.bf16.mxu0 0
      %4202 = vmatpush1.bf16.msra.mxu0 0
      %4203 = vmatprep.subr.bf16.mxu0 0
      %4204 = vmatpush1.bf16.msra.mxu0 0
      %4205 = vmatprep.subr.bf16.mxu0 0
      %4206 = vmatpush1.bf16.msra.mxu0 0
      %4207 = vmatprep.subr.bf16.mxu0 0
      %4208 = vmatpush1.bf16.msra.mxu0 0
      %4209 = vmatprep.subr.bf16.mxu0 0
      %4210 = vmatpush1.bf16.msra.mxu0 0
      %4211 = vmatprep.subr.bf16.mxu0 0
      %4212 = vmatpush1.bf16.msra.mxu0 0
      %4213 = vmatprep.mubr.bf16.mxu0 0
      %4214 = vmatmul.mubr.bf16.gmra.mrb[0].mxu0 %v4101
      %v4215 = vpop.f32.mrb[0].mxu0
      %v4216 = vadd.f32 0.0, %v4215
      %v4217 = vpop.f32.mrb[0].mxu0
      %v4218 = vpop.f32.mrb[0].mxu0
      %v4219 = vadd.f32 0.0, %v4218
      %v4220 = vpop.f32.mrb[0].mxu0
      %4221 = vmatprep.mubr.bf16.mxu0 0
      %4222 = vmatmul.mubr.bf16.gmra.mrb[0].mxu0 %v4102
      %v4223 = vpop.f32.mrb[0].mxu0
      %v4224 = vadd.f32 0.0, %v4223
      %v4225 = vpop.f32.mrb[0].mxu0
      %v4226 = vpop.f32.mrb[0].mxu0
      %v4227 = vadd.f32 0.0, %v4226
      %v4228 = vpop.f32.mrb[0].mxu0
      %4229 = vmatprep.mubr.bf16.mxu0 0
      %4230 = vmatmul.mubr.bf16.gmra.mrb[0].mxu0 %v4103
      %v4231 = vpop.f32.mrb[0].mxu0
      %v4232 = vadd.f32 0.0, %v4231
      %v4233 = vpop.f32.mrb[0].mxu0
      %v4234 = vpop.f32.mrb[0].mxu0
      %v4235 = vadd.f32 0.0, %v4234
      %v4236 = vpop.f32.mrb[0].mxu0
      %4237 = vmatprep.mubr.bf16.mxu0 0
      %4238 = vmatmul.mubr.bf16.gmra.mrb[0].mxu0 %v4104
      %v4239 = vpop.f32.mrb[0].mxu0
      %v4240 = vadd.f32 0.0, %v4239
      %v4241 = vpop.f32.mrb[0].mxu0
      %v4242 = vpop.f32.mrb[0].mxu0
      %v4243 = vadd.f32 0.0, %v4242
      %v4244 = vpop.f32.mrb[0].mxu0
      %4245 = vmatprep.mubr.bf16.mxu0 0
      %4246 = vmatmul.mubr.bf16.gmra.mrb[0].mxu0 %v4105
      %v4247 = vpop.f32.mrb[0].mxu0
      %v4248 = vadd.f32 0.0, %v4247
      %v4249 = vpop.f32.mrb[0].mxu0
      %v4250 = vpop.f32.mrb[0].mxu0
      %v4251 = vadd.f32 0.0, %v4250
      %v4252 = vpop.f32.mrb[0].mxu0
      %4253 = vmatprep.mubr.bf16.mxu0 0
      %4254 = vmatmul.mubr.bf16.gmra.mrb[0].mxu0 %v4106
      %v4255 = vpop.f32.mrb[0].mxu0
      %v4256 = vadd.f32 0.0, %v4255
      %v4257 = vpop.f32.mrb[0].mxu0
      %v4258 = vpop.f32.mrb[0].mxu0
      %v4259 = vadd.f32 0.0, %v4258
      %v4260 = vpop.f32.mrb[0].mxu0
      %4261 = vmatprep.mubr.bf16.mxu0 0
      %4262 = vmatmul.mubr.bf16.gmra.mrb[0].mxu0 %v4107
      %v4263 = vpop.f32.mrb[0].mxu0
      %v4264 = vadd.f32 0.0, %v4263
      %v4265 = vpop.f32.mrb[0].mxu0
      %v4266 = vpop.f32.mrb[0].mxu0
      %v4267 = vadd.f32 0.0, %v4266
      %v4268 = vpop.f32.mrb[0].mxu0
      %4269 = vmatprep.mubr.bf16.mxu0 0
      %4270 = vmatmul.mubr.bf16.gmra.mrb[0].mxu0 %v4108
      %v4271 = vpop.f32.mrb[0].mxu0
      %v4272 = vadd.f32 0.0, %v4271
      %v4273 = vpop.f32.mrb[0].mxu0
      %v4274 = vpop.f32.mrb[0].mxu0
      %v4275 = vadd.f32 0.0, %v4274
      %v4276 = vpop.f32.mrb[0].mxu0
      %4277 = vmatprep.mubr.bf16.mxu0 0
      %4278 = vmatmul.mubr.bf16.gmra.mrb[0].mxu0 %v4109
      %v4279 = vpop.f32.mrb[0].mxu0
      %v4280 = vadd.f32 0.0, %v4279
      %v4281 = vpop.f32.mrb[0].mxu0
      %v4282 = vpop.f32.mrb[0].mxu0
      %v4283 = vadd.f32 0.0, %v4282
      %v4284 = vpop.f32.mrb[0].mxu0
      %4285 = vmatprep.mubr.bf16.mxu0 0
      %4286 = vmatmul.mubr.bf16.gmra.mrb[0].mxu0 %v4110
      %v4287 = vpop.f32.mrb[0].mxu0
      %v4288 = vadd.f32 0.0, %v4287
      %v4289 = vpop.f32.mrb[0].mxu0
      %v4290 = vpop.f32.mrb[0].mxu0
      %v4291 = vadd.f32 0.0, %v4290
      %v4292 = vpop.f32.mrb[0].mxu0
      %4293 = vmatprep.mubr.bf16.mxu0 0
      %4294 = vmatmul.mubr.bf16.gmra.mrb[0].mxu0 %v4111
      %v4295 = vpop.f32.mrb[0].mxu0
      %v4296 = vadd.f32 0.0, %v4295
      %v4297 = vpop.f32.mrb[0].mxu0
      %v4298 = vpop.f32.mrb[0].mxu0
      %v4299 = vadd.f32 0.0, %v4298
      %v4300 = vpop.f32.mrb[0].mxu0
      %4301 = vmatprep.mubr.bf16.mxu0 0
      %4302 = vmatmul.mubr.bf16.gmra.mrb[0].mxu0 %v4112
      %v4303 = vpop.f32.mrb[0].mxu0
      %v4304 = vadd.f32 0.0, %v4303
      %v4305 = vpop.f32.mrb[0].mxu0
      %v4306 = vpop.f32.mrb[0].mxu0
      %v4307 = vadd.f32 0.0, %v4306
      %v4308 = vpop.f32.mrb[0].mxu0
      %4309 = vmatprep.mubr.bf16.mxu0 0
      %4310 = vmatmul.mubr.bf16.gmra.mrb[0].mxu0 %v4113
      %v4311 = vpop.f32.mrb[0].mxu0
      %v4312 = vadd.f32 0.0, %v4311
      %v4313 = vpop.f32.mrb[0].mxu0
      %v4314 = vpop.f32.mrb[0].mxu0
      %v4315 = vadd.f32 0.0, %v4314
      %v4316 = vpop.f32.mrb[0].mxu0
      %4317 = vmatprep.mubr.bf16.mxu0 0
      %4318 = vmatmul.mubr.bf16.gmra.mrb[0].mxu0 %v4114
      %v4319 = vpop.f32.mrb[0].mxu0
      %v4320 = vadd.f32 0.0, %v4319
      %v4321 = vpop.f32.mrb[0].mxu0
      %v4322 = vpop.f32.mrb[0].mxu0
      %v4323 = vadd.f32 0.0, %v4322
      %v4324 = vpop.f32.mrb[0].mxu0
      %4325 = vmatprep.mubr.bf16.mxu0 0
      %4326 = vmatmul.mubr.bf16.gmra.mrb[0].mxu0 %v4115
      %v4327 = vpop.f32.mrb[0].mxu0
      %v4328 = vadd.f32 0.0, %v4327
      %v4329 = vpop.f32.mrb[0].mxu0
      %v4330 = vpop.f32.mrb[0].mxu0
      %v4331 = vadd.f32 0.0, %v4330
      %v4332 = vpop.f32.mrb[0].mxu0
      %4333 = vmatprep.mubr.bf16.mxu0 0
      %4334 = vmatmul.mubr.bf16.gmra.mrb[0].mxu0 %v4116
      %v4335 = vpop.f32.mrb[0].mxu0
      %v4336 = vadd.f32 0.0, %v4335
      %v4337 = vpop.f32.mrb[0].mxu0
      %v4338 = vpop.f32.mrb[0].mxu0
      %v4339 = vadd.f32 0.0, %v4338
      %v4340 = vpop.f32.mrb[0].mxu0
      %4341 = vdwg.mxu0
      %v4374 = vunpack.c.l.b16 %v3604
      %v4375 = vunpack.c.l.b16 %v3605
      %v4376 = vunpack.c.l.b16 %v3606
      %v4377 = vunpack.c.l.b16 %v3607
      %v4378 = vunpack.c.l.b16 %v3608
      %v4379 = vunpack.c.l.b16 %v3609
      %v4380 = vunpack.c.l.b16 %v3610
      %v4381 = vunpack.c.l.b16 %v3611
      %v4382 = vunpack.c.l.b16 %v3612
      %v4383 = vunpack.c.l.b16 %v3613
      %v4384 = vunpack.c.l.b16 %v3614
      %v4385 = vunpack.c.l.b16 %v3615
      %v4386 = vunpack.c.l.b16 %v3616
      %v4387 = vunpack.c.l.b16 %v3617
      %v4388 = vunpack.c.l.b16 %v3618
      %v4389 = vunpack.c.l.b16 %v3619
      %v4390 = vunpack.c.l.b16 %v3620
      %v4391 = vunpack.c.l.b16 %v3621
      %v4392 = vunpack.c.l.b16 %v3622
      %v4393 = vunpack.c.l.b16 %v3623
      %v4394 = vunpack.c.l.b16 %v3624
      %v4395 = vunpack.c.l.b16 %v3625
      %v4396 = vunpack.c.l.b16 %v3626
      %v4397 = vunpack.c.l.b16 %v3627
      %v4398 = vunpack.c.l.b16 %v3628
      %v4399 = vunpack.c.l.b16 %v3629
      %v4400 = vunpack.c.l.b16 %v3630
      %v4401 = vunpack.c.l.b16 %v3631
      %v4402 = vunpack.c.l.b16 %v3632
      %v4403 = vunpack.c.l.b16 %v3633
      %v4404 = vunpack.c.l.b16 %v3634
      %v4405 = vunpack.c.l.b16 %v3635
      %v4406 = vpack.c.b16 %v4375, %v4374
      %v4407 = vpack.c.b16 %v4377, %v4376
      %v4408 = vpack.c.b16 %v4379, %v4378
      %v4409 = vpack.c.b16 %v4381, %v4380
      %v4410 = vpack.c.b16 %v4383, %v4382
      %v4411 = vpack.c.b16 %v4385, %v4384
      %v4412 = vpack.c.b16 %v4387, %v4386
      %v4413 = vpack.c.b16 %v4389, %v4388
      %v4414 = vpack.c.b16 %v4391, %v4390
      %v4415 = vpack.c.b16 %v4393, %v4392
      %v4416 = vpack.c.b16 %v4395, %v4394
      %v4417 = vpack.c.b16 %v4397, %v4396
      %v4418 = vpack.c.b16 %v4399, %v4398
      %v4419 = vpack.c.b16 %v4401, %v4400
      %v4420 = vpack.c.b16 %v4403, %v4402
      %v4421 = vpack.c.b16 %v4405, %v4404
      %v4454 = vunpack.c.l.b16 %v3636
      %v4455 = vunpack.c.l.b16 %v3637
      %v4456 = vunpack.c.l.b16 %v3638
      %v4457 = vunpack.c.l.b16 %v3639
      %v4458 = vunpack.c.l.b16 %v3640
      %v4459 = vunpack.c.l.b16 %v3641
      %v4460 = vunpack.c.l.b16 %v3642
      %v4461 = vunpack.c.l.b16 %v3643
      %v4462 = vunpack.c.l.b16 %v3644
      %v4463 = vunpack.c.l.b16 %v3645
      %v4464 = vunpack.c.l.b16 %v3646
      %v4465 = vunpack.c.l.b16 %v3647
      %v4466 = vunpack.c.l.b16 %v3648
      %v4467 = vunpack.c.l.b16 %v3649
      %v4468 = vunpack.c.l.b16 %v3650
      %v4469 = vunpack.c.l.b16 %v3651
      %v4470 = vpack.c.b16 %v4455, %v4454
      %v4471 = vpack.c.b16 %v4457, %v4456
      %v4472 = vpack.c.b16 %v4459, %v4458
      %v4473 = vpack.c.b16 %v4461, %v4460
      %v4474 = vpack.c.b16 %v4463, %v4462
      %v4475 = vpack.c.b16 %v4465, %v4464
      %v4476 = vpack.c.b16 %v4467, %v4466
      %v4477 = vpack.c.b16 %v4469, %v4468
      %4486 = vmatprep.subr.bf16.mxu0 0
      %4487 = vmatpush1.bf16.msra.mxu0 %v4470
      %4488 = vmatprep.subr.bf16.mxu0 0
      %4489 = vmatpush1.bf16.msra.mxu0 %v4471
      %4490 = vmatprep.subr.bf16.mxu0 0
      %4491 = vmatpush1.bf16.msra.mxu0 %v4472
      %4492 = vmatprep.subr.bf16.mxu0 0
      %4493 = vmatpush1.bf16.msra.mxu0 %v4473
      %4494 = vmatprep.subr.bf16.mxu0 0
      %4495 = vmatpush1.bf16.msra.mxu0 %v4474
      %4496 = vmatprep.subr.bf16.mxu0 0
      %4497 = vmatpush1.bf16.msra.mxu0 %v4475
      %4498 = vmatprep.subr.bf16.mxu0 0
      %4499 = vmatpush1.bf16.msra.mxu0 %v4476
      %4500 = vmatprep.subr.bf16.mxu0 0
      %4501 = vmatpush1.bf16.msra.mxu0 %v4477
      %4502 = vmatprep.subr.bf16.mxu0 0
      %4503 = vmatpush1.bf16.msra.mxu0 0
      %4504 = vmatprep.subr.bf16.mxu0 0
      %4505 = vmatpush1.bf16.msra.mxu0 0
      %4506 = vmatprep.subr.bf16.mxu0 0
      %4507 = vmatpush1.bf16.msra.mxu0 0
      %4508 = vmatprep.subr.bf16.mxu0 0
      %4509 = vmatpush1.bf16.msra.mxu0 0
      %4510 = vmatprep.subr.bf16.mxu0 0
      %4511 = vmatpush1.bf16.msra.mxu0 0
      %4512 = vmatprep.subr.bf16.mxu0 0
      %4513 = vmatpush1.bf16.msra.mxu0 0
      %4514 = vmatprep.subr.bf16.mxu0 0
      %4515 = vmatpush1.bf16.msra.mxu0 0
      %4516 = vmatprep.subr.bf16.mxu0 0
      %4517 = vmatpush1.bf16.msra.mxu0 0
      %4518 = vmatprep.mubr.bf16.mxu0 0
      %4519 = vmatmul.mubr.bf16.gmra.mrb[0].mxu0 %v4406
      %v4520 = vpop.f32.mrb[0].mxu0
      %v4521 = vadd.f32 %v4216, %v4520
      %v4522 = vpop.f32.mrb[0].mxu0
      %v4523 = vpop.f32.mrb[0].mxu0
      %v4524 = vadd.f32 %v4219, %v4523
      %v4525 = vpop.f32.mrb[0].mxu0
      %4526 = vmatprep.mubr.bf16.mxu0 0
      %4527 = vmatmul.mubr.bf16.gmra.mrb[0].mxu0 %v4407
      %v4528 = vpop.f32.mrb[0].mxu0
      %v4529 = vadd.f32 %v4224, %v4528
      %v4530 = vpop.f32.mrb[0].mxu0
      %v4531 = vpop.f32.mrb[0].mxu0
      %v4532 = vadd.f32 %v4227, %v4531
      %v4533 = vpop.f32.mrb[0].mxu0
      %4534 = vmatprep.mubr.bf16.mxu0 0
      %4535 = vmatmul.mubr.bf16.gmra.mrb[0].mxu0 %v4408
      %v4536 = vpop.f32.mrb[0].mxu0
      %v4537 = vadd.f32 %v4232, %v4536
      %v4538 = vpop.f32.mrb[0].mxu0
      %v4539 = vpop.f32.mrb[0].mxu0
      %v4540 = vadd.f32 %v4235, %v4539
      %v4541 = vpop.f32.mrb[0].mxu0
      %4542 = vmatprep.mubr.bf16.mxu0 0
      %4543 = vmatmul.mubr.bf16.gmra.mrb[0].mxu0 %v4409
      %v4544 = vpop.f32.mrb[0].mxu0
      %v4545 = vadd.f32 %v4240, %v4544
      %v4546 = vpop.f32.mrb[0].mxu0
      %v4547 = vpop.f32.mrb[0].mxu0
      %v4548 = vadd.f32 %v4243, %v4547
      %v4549 = vpop.f32.mrb[0].mxu0
      %4550 = vmatprep.mubr.bf16.mxu0 0
      %4551 = vmatmul.mubr.bf16.gmra.mrb[0].mxu0 %v4410
      %v4552 = vpop.f32.mrb[0].mxu0
      %v4553 = vadd.f32 %v4248, %v4552
      %v4554 = vpop.f32.mrb[0].mxu0
      %v4555 = vpop.f32.mrb[0].mxu0
      %v4556 = vadd.f32 %v4251, %v4555
      %v4557 = vpop.f32.mrb[0].mxu0
      %4558 = vmatprep.mubr.bf16.mxu0 0
      %4559 = vmatmul.mubr.bf16.gmra.mrb[0].mxu0 %v4411
      %v4560 = vpop.f32.mrb[0].mxu0
      %v4561 = vadd.f32 %v4256, %v4560
      %v4562 = vpop.f32.mrb[0].mxu0
      %v4563 = vpop.f32.mrb[0].mxu0
      %v4564 = vadd.f32 %v4259, %v4563
      %v4565 = vpop.f32.mrb[0].mxu0
      %4566 = vmatprep.mubr.bf16.mxu0 0
      %4567 = vmatmul.mubr.bf16.gmra.mrb[0].mxu0 %v4412
      %v4568 = vpop.f32.mrb[0].mxu0
      %v4569 = vadd.f32 %v4264, %v4568
      %v4570 = vpop.f32.mrb[0].mxu0
      %v4571 = vpop.f32.mrb[0].mxu0
      %v4572 = vadd.f32 %v4267, %v4571
      %v4573 = vpop.f32.mrb[0].mxu0
      %4574 = vmatprep.mubr.bf16.mxu0 0
      %4575 = vmatmul.mubr.bf16.gmra.mrb[0].mxu0 %v4413
      %v4576 = vpop.f32.mrb[0].mxu0
      %v4577 = vadd.f32 %v4272, %v4576
      %v4578 = vpop.f32.mrb[0].mxu0
      %v4579 = vpop.f32.mrb[0].mxu0
      %v4580 = vadd.f32 %v4275, %v4579
      %v4581 = vpop.f32.mrb[0].mxu0
      %4582 = vmatprep.mubr.bf16.mxu0 0
      %4583 = vmatmul.mubr.bf16.gmra.mrb[0].mxu0 %v4414
      %v4584 = vpop.f32.mrb[0].mxu0
      %v4585 = vadd.f32 %v4280, %v4584
      %v4586 = vpop.f32.mrb[0].mxu0
      %v4587 = vpop.f32.mrb[0].mxu0
      %v4588 = vadd.f32 %v4283, %v4587
      %v4589 = vpop.f32.mrb[0].mxu0
      %4590 = vmatprep.mubr.bf16.mxu0 0
      %4591 = vmatmul.mubr.bf16.gmra.mrb[0].mxu0 %v4415
      %v4592 = vpop.f32.mrb[0].mxu0
      %v4593 = vadd.f32 %v4288, %v4592
      %v4594 = vpop.f32.mrb[0].mxu0
      %v4595 = vpop.f32.mrb[0].mxu0
      %v4596 = vadd.f32 %v4291, %v4595
      %v4597 = vpop.f32.mrb[0].mxu0
      %4598 = vmatprep.mubr.bf16.mxu0 0
      %4599 = vmatmul.mubr.bf16.gmra.mrb[0].mxu0 %v4416
      %v4600 = vpop.f32.mrb[0].mxu0
      %v4601 = vadd.f32 %v4296, %v4600
      %v4602 = vpop.f32.mrb[0].mxu0
      %v4603 = vpop.f32.mrb[0].mxu0
      %v4604 = vadd.f32 %v4299, %v4603
      %v4605 = vpop.f32.mrb[0].mxu0
      %4606 = vmatprep.mubr.bf16.mxu0 0
      %4607 = vmatmul.mubr.bf16.gmra.mrb[0].mxu0 %v4417
      %v4608 = vpop.f32.mrb[0].mxu0
      %v4609 = vadd.f32 %v4304, %v4608
      %v4610 = vpop.f32.mrb[0].mxu0
      %v4611 = vpop.f32.mrb[0].mxu0
      %v4612 = vadd.f32 %v4307, %v4611
      %v4613 = vpop.f32.mrb[0].mxu0
      %4614 = vmatprep.mubr.bf16.mxu0 0
      %4615 = vmatmul.mubr.bf16.gmra.mrb[0].mxu0 %v4418
      %v4616 = vpop.f32.mrb[0].mxu0
      %v4617 = vadd.f32 %v4312, %v4616
      %v4618 = vpop.f32.mrb[0].mxu0
      %v4619 = vpop.f32.mrb[0].mxu0
      %v4620 = vadd.f32 %v4315, %v4619
      %v4621 = vpop.f32.mrb[0].mxu0
      %4622 = vmatprep.mubr.bf16.mxu0 0
      %4623 = vmatmul.mubr.bf16.gmra.mrb[0].mxu0 %v4419
      %v4624 = vpop.f32.mrb[0].mxu0
      %v4625 = vadd.f32 %v4320, %v4624
      %v4626 = vpop.f32.mrb[0].mxu0
      %v4627 = vpop.f32.mrb[0].mxu0
      %v4628 = vadd.f32 %v4323, %v4627
      %v4629 = vpop.f32.mrb[0].mxu0
      %4630 = vmatprep.mubr.bf16.mxu0 0
      %4631 = vmatmul.mubr.bf16.gmra.mrb[0].mxu0 %v4420
      %v4632 = vpop.f32.mrb[0].mxu0
      %v4633 = vadd.f32 %v4328, %v4632
      %v4634 = vpop.f32.mrb[0].mxu0
      %v4635 = vpop.f32.mrb[0].mxu0
      %v4636 = vadd.f32 %v4331, %v4635
      %v4637 = vpop.f32.mrb[0].mxu0
      %4638 = vmatprep.mubr.bf16.mxu0 0
      %4639 = vmatmul.mubr.bf16.gmra.mrb[0].mxu0 %v4421
      %v4640 = vpop.f32.mrb[0].mxu0
      %v4641 = vadd.f32 %v4336, %v4640
      %v4642 = vpop.f32.mrb[0].mxu0
      %v4643 = vpop.f32.mrb[0].mxu0
      %v4644 = vadd.f32 %v4339, %v4643
      %v4645 = vpop.f32.mrb[0].mxu0
      %4646 = vdwg.mxu0
      %v4647 = vld [vmem:[#allocation2] sm:$0xe]
      %v4648 = vld [vmem:[#allocation2 + $0xc] sm:$0xe]
      %v4649 = vld [vmem:[#allocation2 + $0x18] sm:$0xe]
      %v4650 = vld [vmem:[#allocation2 + $0x24] sm:$0xe]
      %v4651 = vld [vmem:[#allocation2 + $0x30] sm:$0xe]
      %v4652 = vld [vmem:[#allocation2 + $0x3c] sm:$0xe]
      %v4653 = vld [vmem:[#allocation2 + $0x48] sm:$0xe]
      %v4654 = vld [vmem:[#allocation2 + $0x54] sm:$0xe]
      %v4655 = vld [vmem:[#allocation2 + $0x60] sm:$0xe]
      %v4656 = vld [vmem:[#allocation2 + $0x6c] sm:$0xe]
      %v4657 = vld [vmem:[#allocation2 + $0x78] sm:$0xe]
      %v4658 = vld [vmem:[#allocation2 + $0x84] sm:$0xe]
      %v4659 = vld [vmem:[#allocation2 + $0x90] sm:$0xe]
      %v4660 = vld [vmem:[#allocation2 + $0x9c] sm:$0xe]
      %v4661 = vld [vmem:[#allocation2 + $0xa8] sm:$0xe]
      %v4662 = vld [vmem:[#allocation2 + $0xb4] sm:$0xe]
      %v4695 = vrot.slane %v4647, 5
      %v4696 = vrot.slane %v4695, 4
      %v4697 = vrot.slane %v3605, 5
      %v4698 = vsel %vm1243, %v4696, %v4697
      %v4699 = vrot.slane %v4697, 4
      %v4700 = vrot.slane %v3652, 5
      %v4701 = vsel %vm1243, %v4699, %v4700
      %v4702 = vrot.slane %v4648, 5
      %v4703 = vrot.slane %v4702, 4
      %v4704 = vrot.slane %v3607, 5
      %v4705 = vsel %vm1243, %v4703, %v4704
      %v4706 = vrot.slane %v4704, 4
      %v4707 = vrot.slane %v3653, 5
      %v4708 = vsel %vm1243, %v4706, %v4707
      %v4709 = vrot.slane %v4649, 5
      %v4710 = vrot.slane %v4709, 4
      %v4711 = vrot.slane %v3609, 5
      %v4712 = vsel %vm1243, %v4710, %v4711
      %v4713 = vrot.slane %v4711, 4
      %v4714 = vrot.slane %v3654, 5
      %v4715 = vsel %vm1243, %v4713, %v4714
      %v4716 = vrot.slane %v4650, 5
      %v4717 = vrot.slane %v4716, 4
      %v4718 = vrot.slane %v3611, 5
      %v4719 = vsel %vm1243, %v4717, %v4718
      %v4720 = vrot.slane %v4718, 4
      %v4721 = vrot.slane %v3655, 5
      %v4722 = vsel %vm1243, %v4720, %v4721
      %v4723 = vrot.slane %v4651, 5
      %v4724 = vrot.slane %v4723, 4
      %v4725 = vrot.slane %v3613, 5
      %v4726 = vsel %vm1243, %v4724, %v4725
      %v4727 = vrot.slane %v4725, 4
      %v4728 = vrot.slane %v3656, 5
      %v4729 = vsel %vm1243, %v4727, %v4728
      %v4730 = vrot.slane %v4652, 5
      %v4731 = vrot.slane %v4730, 4
      %v4732 = vrot.slane %v3615, 5
      %v4733 = vsel %vm1243, %v4731, %v4732
      %v4734 = vrot.slane %v4732, 4
      %v4735 = vrot.slane %v3657, 5
      %v4736 = vsel %vm1243, %v4734, %v4735
      %v4737 = vrot.slane %v4653, 5
      %v4738 = vrot.slane %v4737, 4
      %v4739 = vrot.slane %v3617, 5
      %v4740 = vsel %vm1243, %v4738, %v4739
      %v4741 = vrot.slane %v4739, 4
      %v4742 = vrot.slane %v3658, 5
      %v4743 = vsel %vm1243, %v4741, %v4742
      %v4744 = vrot.slane %v4654, 5
      %v4745 = vrot.slane %v4744, 4
      %v4746 = vrot.slane %v3619, 5
      %v4747 = vsel %vm1243, %v4745, %v4746
      %v4748 = vrot.slane %v4746, 4
      %v4749 = vrot.slane %v3659, 5
      %v4750 = vsel %vm1243, %v4748, %v4749
      %v4751 = vrot.slane %v4655, 5
      %v4752 = vrot.slane %v4751, 4
      %v4753 = vrot.slane %v3621, 5
      %v4754 = vsel %vm1243, %v4752, %v4753
      %v4755 = vrot.slane %v4753, 4
      %v4756 = vrot.slane %v3660, 5
      %v4757 = vsel %vm1243, %v4755, %v4756
      %v4758 = vrot.slane %v4656, 5
      %v4759 = vrot.slane %v4758, 4
      %v4760 = vrot.slane %v3623, 5
      %v4761 = vsel %vm1243, %v4759, %v4760
      %v4762 = vrot.slane %v4760, 4
      %v4763 = vrot.slane %v3661, 5
      %v4764 = vsel %vm1243, %v4762, %v4763
      %v4765 = vrot.slane %v4657, 5
      %v4766 = vrot.slane %v4765, 4
      %v4767 = vrot.slane %v3625, 5
      %v4768 = vsel %vm1243, %v4766, %v4767
      %v4769 = vrot.slane %v4767, 4
      %v4770 = vrot.slane %v3662, 5
      %v4771 = vsel %vm1243, %v4769, %v4770
      %v4772 = vrot.slane %v4658, 5
      %v4773 = vrot.slane %v4772, 4
      %v4774 = vrot.slane %v3627, 5
      %v4775 = vsel %vm1243, %v4773, %v4774
      %v4776 = vrot.slane %v4774, 4
      %v4777 = vrot.slane %v3663, 5
      %v4778 = vsel %vm1243, %v4776, %v4777
      %v4779 = vrot.slane %v4659, 5
      %v4780 = vrot.slane %v4779, 4
      %v4781 = vrot.slane %v3629, 5
      %v4782 = vsel %vm1243, %v4780, %v4781
      %v4783 = vrot.slane %v4781, 4
      %v4784 = vrot.slane %v3664, 5
      %v4785 = vsel %vm1243, %v4783, %v4784
      %v4786 = vrot.slane %v4660, 5
      %v4787 = vrot.slane %v4786, 4
      %v4788 = vrot.slane %v3631, 5
      %v4789 = vsel %vm1243, %v4787, %v4788
      %v4790 = vrot.slane %v4788, 4
      %v4791 = vrot.slane %v3665, 5
      %v4792 = vsel %vm1243, %v4790, %v4791
      %v4793 = vrot.slane %v4661, 5
      %v4794 = vrot.slane %v4793, 4
      %v4795 = vrot.slane %v3633, 5
      %v4796 = vsel %vm1243, %v4794, %v4795
      %v4797 = vrot.slane %v4795, 4
      %v4798 = vrot.slane %v3666, 5
      %v4799 = vsel %vm1243, %v4797, %v4798
      %v4800 = vrot.slane %v4662, 5
      %v4801 = vrot.slane %v4800, 4
      %v4802 = vrot.slane %v3635, 5
      %v4803 = vsel %vm1243, %v4801, %v4802
      %v4804 = vrot.slane %v4802, 4
      %v4805 = vrot.slane %v3667, 5
      %v4806 = vsel %vm1243, %v4804, %v4805
      %s4807 = scalar_lea.vmem %s3, 128
      %v4808 = vld [vmem:[%s4807] sm:$0xf]
      %v4809 = vld [vmem:[%s4807 + $0x4] sm:$0xf]
      %v4810 = vld [vmem:[%s4807 + $0x8] sm:$0xf]
      %v4811 = vld [vmem:[%s4807 + $0xc] sm:$0xf]
      %v4812 = vld [vmem:[%s4807 + $0x10] sm:$0xf]
      %v4813 = vld [vmem:[%s4807 + $0x14] sm:$0xf]
      %v4814 = vld [vmem:[%s4807 + $0x18] sm:$0xf]
      %v4815 = vld [vmem:[%s4807 + $0x1c] sm:$0xf]
      %v4816 = vld [vmem:[%s4807 + $0x20] sm:$0xf]
      %v4817 = vld [vmem:[%s4807 + $0x24] sm:$0xf]
      %v4818 = vld [vmem:[%s4807 + $0x28] sm:$0xf]
      %v4819 = vld [vmem:[%s4807 + $0x2c] sm:$0xf]
      %v4820 = vld [vmem:[%s4807 + $0x30] sm:$0xf]
      %v4821 = vld [vmem:[%s4807 + $0x34] sm:$0xf]
      %v4822 = vld [vmem:[%s4807 + $0x38] sm:$0xf]
      %v4823 = vld [vmem:[%s4807 + $0x3c] sm:$0xf]
      %v4824 = vunpack.c.l.b16 %v4698
      %v4825 = vunpack.c.l.b16 %v4701
      %v4826 = vunpack.c.l.b16 %v4705
      %v4827 = vunpack.c.l.b16 %v4708
      %v4828 = vunpack.c.l.b16 %v4712
      %v4829 = vunpack.c.l.b16 %v4715
      %v4830 = vunpack.c.l.b16 %v4719
      %v4831 = vunpack.c.l.b16 %v4722
      %v4832 = vunpack.c.l.b16 %v4726
      %v4833 = vunpack.c.l.b16 %v4729
      %v4834 = vunpack.c.l.b16 %v4733
      %v4835 = vunpack.c.l.b16 %v4736
      %v4836 = vunpack.c.l.b16 %v4740
      %v4837 = vunpack.c.l.b16 %v4743
      %v4838 = vunpack.c.l.b16 %v4747
      %v4839 = vunpack.c.l.b16 %v4750
      %v4840 = vunpack.c.l.b16 %v4754
      %v4841 = vunpack.c.l.b16 %v4757
      %v4842 = vunpack.c.l.b16 %v4761
      %v4843 = vunpack.c.l.b16 %v4764
      %v4844 = vunpack.c.l.b16 %v4768
      %v4845 = vunpack.c.l.b16 %v4771
      %v4846 = vunpack.c.l.b16 %v4775
      %v4847 = vunpack.c.l.b16 %v4778
      %v4848 = vunpack.c.l.b16 %v4782
      %v4849 = vunpack.c.l.b16 %v4785
      %v4850 = vunpack.c.l.b16 %v4789
      %v4851 = vunpack.c.l.b16 %v4792
      %v4852 = vunpack.c.l.b16 %v4796
      %v4853 = vunpack.c.l.b16 %v4799
      %v4854 = vunpack.c.l.b16 %v4803
      %v4855 = vunpack.c.l.b16 %v4806
      %v4856 = vpack.c.b16 %v4825, %v4824
      %v4857 = vpack.c.b16 %v4827, %v4826
      %v4858 = vpack.c.b16 %v4829, %v4828
      %v4859 = vpack.c.b16 %v4831, %v4830
      %v4860 = vpack.c.b16 %v4833, %v4832
      %v4861 = vpack.c.b16 %v4835, %v4834
      %v4862 = vpack.c.b16 %v4837, %v4836
      %v4863 = vpack.c.b16 %v4839, %v4838
      %v4864 = vpack.c.b16 %v4841, %v4840
      %v4865 = vpack.c.b16 %v4843, %v4842
      %v4866 = vpack.c.b16 %v4845, %v4844
      %v4867 = vpack.c.b16 %v4847, %v4846
      %v4868 = vpack.c.b16 %v4849, %v4848
      %v4869 = vpack.c.b16 %v4851, %v4850
      %v4870 = vpack.c.b16 %v4853, %v4852
      %v4871 = vpack.c.b16 %v4855, %v4854
      %v4904 = vunpack.c.l.b16 %v4808
      %v4905 = vunpack.c.l.b16 %v4809
      %v4906 = vunpack.c.l.b16 %v4810
      %v4907 = vunpack.c.l.b16 %v4811
      %v4908 = vunpack.c.l.b16 %v4812
      %v4909 = vunpack.c.l.b16 %v4813
      %v4910 = vunpack.c.l.b16 %v4814
      %v4911 = vunpack.c.l.b16 %v4815
      %v4912 = vunpack.c.l.b16 %v4816
      %v4913 = vunpack.c.l.b16 %v4817
      %v4914 = vunpack.c.l.b16 %v4818
      %v4915 = vunpack.c.l.b16 %v4819
      %v4916 = vunpack.c.l.b16 %v4820
      %v4917 = vunpack.c.l.b16 %v4821
      %v4918 = vunpack.c.l.b16 %v4822
      %v4919 = vunpack.c.l.b16 %v4823
      %v4920 = vpack.c.b16 %v4905, %v4904
      %v4921 = vpack.c.b16 %v4907, %v4906
      %v4922 = vpack.c.b16 %v4909, %v4908
      %v4923 = vpack.c.b16 %v4911, %v4910
      %v4924 = vpack.c.b16 %v4913, %v4912
      %v4925 = vpack.c.b16 %v4915, %v4914
      %v4926 = vpack.c.b16 %v4917, %v4916
      %v4927 = vpack.c.b16 %v4919, %v4918
      %4936 = vmatprep.subr.bf16.mxu0 0
      %4937 = vmatpush1.bf16.msra.mxu0 %v4920
      %4938 = vmatprep.subr.bf16.mxu0 0
      %4939 = vmatpush1.bf16.msra.mxu0 %v4921
      %4940 = vmatprep.subr.bf16.mxu0 0
      %4941 = vmatpush1.bf16.msra.mxu0 %v4922
      %4942 = vmatprep.subr.bf16.mxu0 0
      %4943 = vmatpush1.bf16.msra.mxu0 %v4923
      %4944 = vmatprep.subr.bf16.mxu0 0
      %4945 = vmatpush1.bf16.msra.mxu0 %v4924
      %4946 = vmatprep.subr.bf16.mxu0 0
      %4947 = vmatpush1.bf16.msra.mxu0 %v4925
      %4948 = vmatprep.subr.bf16.mxu0 0
      %4949 = vmatpush1.bf16.msra.mxu0 %v4926
      %4950 = vmatprep.subr.bf16.mxu0 0
      %4951 = vmatpush1.bf16.msra.mxu0 %v4927
      %4952 = vmatprep.subr.bf16.mxu0 0
      %4953 = vmatpush1.bf16.msra.mxu0 0
      %4954 = vmatprep.subr.bf16.mxu0 0
      %4955 = vmatpush1.bf16.msra.mxu0 0
      %4956 = vmatprep.subr.bf16.mxu0 0
      %4957 = vmatpush1.bf16.msra.mxu0 0
      %4958 = vmatprep.subr.bf16.mxu0 0
      %4959 = vmatpush1.bf16.msra.mxu0 0
      %4960 = vmatprep.subr.bf16.mxu0 0
      %4961 = vmatpush1.bf16.msra.mxu0 0
      %4962 = vmatprep.subr.bf16.mxu0 0
      %4963 = vmatpush1.bf16.msra.mxu0 0
      %4964 = vmatprep.subr.bf16.mxu0 0
      %4965 = vmatpush1.bf16.msra.mxu0 0
      %4966 = vmatprep.subr.bf16.mxu0 0
      %4967 = vmatpush1.bf16.msra.mxu0 0
      %4968 = vmatprep.mubr.bf16.mxu0 0
      %4969 = vmatmul.mubr.bf16.gmra.mrb[0].mxu0 %v4856
      %v4970 = vpop.f32.mrb[0].mxu0
      %v4971 = vadd.f32 0.0, %v4970
      %v4972 = vpop.f32.mrb[0].mxu0
      %v4973 = vpop.f32.mrb[0].mxu0
      %v4974 = vadd.f32 0.0, %v4973
      %v4975 = vpop.f32.mrb[0].mxu0
      %4976 = vmatprep.mubr.bf16.mxu0 0
      %4977 = vmatmul.mubr.bf16.gmra.mrb[0].mxu0 %v4857
      %v4978 = vpop.f32.mrb[0].mxu0
      %v4979 = vadd.f32 0.0, %v4978
      %v4980 = vpop.f32.mrb[0].mxu0
      %v4981 = vpop.f32.mrb[0].mxu0
      %v4982 = vadd.f32 0.0, %v4981
      %v4983 = vpop.f32.mrb[0].mxu0
      %4984 = vmatprep.mubr.bf16.mxu0 0
      %4985 = vmatmul.mubr.bf16.gmra.mrb[0].mxu0 %v4858
      %v4986 = vpop.f32.mrb[0].mxu0
      %v4987 = vadd.f32 0.0, %v4986
      %v4988 = vpop.f32.mrb[0].mxu0
      %v4989 = vpop.f32.mrb[0].mxu0
      %v4990 = vadd.f32 0.0, %v4989
      %v4991 = vpop.f32.mrb[0].mxu0
      %4992 = vmatprep.mubr.bf16.mxu0 0
      %4993 = vmatmul.mubr.bf16.gmra.mrb[0].mxu0 %v4859
      %v4994 = vpop.f32.mrb[0].mxu0
      %v4995 = vadd.f32 0.0, %v4994
      %v4996 = vpop.f32.mrb[0].mxu0
      %v4997 = vpop.f32.mrb[0].mxu0
      %v4998 = vadd.f32 0.0, %v4997
      %v4999 = vpop.f32.mrb[0].mxu0
      %5000 = vmatprep.mubr.bf16.mxu0 0
      %5001 = vmatmul.mubr.bf16.gmra.mrb[0].mxu0 %v4860
      %v5002 = vpop.f32.mrb[0].mxu0
      %v5003 = vadd.f32 0.0, %v5002
      %v5004 = vpop.f32.mrb[0].mxu0
      %v5005 = vpop.f32.mrb[0].mxu0
      %v5006 = vadd.f32 0.0, %v5005
      %v5007 = vpop.f32.mrb[0].mxu0
      %5008 = vmatprep.mubr.bf16.mxu0 0
      %5009 = vmatmul.mubr.bf16.gmra.mrb[0].mxu0 %v4861
      %v5010 = vpop.f32.mrb[0].mxu0
      %v5011 = vadd.f32 0.0, %v5010
      %v5012 = vpop.f32.mrb[0].mxu0
      %v5013 = vpop.f32.mrb[0].mxu0
      %v5014 = vadd.f32 0.0, %v5013
      %v5015 = vpop.f32.mrb[0].mxu0
      %5016 = vmatprep.mubr.bf16.mxu0 0
      %5017 = vmatmul.mubr.bf16.gmra.mrb[0].mxu0 %v4862
      %v5018 = vpop.f32.mrb[0].mxu0
      %v5019 = vadd.f32 0.0, %v5018
      %v5020 = vpop.f32.mrb[0].mxu0
      %v5021 = vpop.f32.mrb[0].mxu0
      %v5022 = vadd.f32 0.0, %v5021
      %v5023 = vpop.f32.mrb[0].mxu0
      %5024 = vmatprep.mubr.bf16.mxu0 0
      %5025 = vmatmul.mubr.bf16.gmra.mrb[0].mxu0 %v4863
      %v5026 = vpop.f32.mrb[0].mxu0
      %v5027 = vadd.f32 0.0, %v5026
      %v5028 = vpop.f32.mrb[0].mxu0
      %v5029 = vpop.f32.mrb[0].mxu0
      %v5030 = vadd.f32 0.0, %v5029
      %v5031 = vpop.f32.mrb[0].mxu0
      %5032 = vmatprep.mubr.bf16.mxu0 0
      %5033 = vmatmul.mubr.bf16.gmra.mrb[0].mxu0 %v4864
      %v5034 = vpop.f32.mrb[0].mxu0
      %v5035 = vadd.f32 0.0, %v5034
      %v5036 = vpop.f32.mrb[0].mxu0
      %v5037 = vpop.f32.mrb[0].mxu0
      %v5038 = vadd.f32 0.0, %v5037
      %v5039 = vpop.f32.mrb[0].mxu0
      %5040 = vmatprep.mubr.bf16.mxu0 0
      %5041 = vmatmul.mubr.bf16.gmra.mrb[0].mxu0 %v4865
      %v5042 = vpop.f32.mrb[0].mxu0
      %v5043 = vadd.f32 0.0, %v5042
      %v5044 = vpop.f32.mrb[0].mxu0
      %v5045 = vpop.f32.mrb[0].mxu0
      %v5046 = vadd.f32 0.0, %v5045
      %v5047 = vpop.f32.mrb[0].mxu0
      %5048 = vmatprep.mubr.bf16.mxu0 0
      %5049 = vmatmul.mubr.bf16.gmra.mrb[0].mxu0 %v4866
      %v5050 = vpop.f32.mrb[0].mxu0
      %v5051 = vadd.f32 0.0, %v5050
      %v5052 = vpop.f32.mrb[0].mxu0
      %v5053 = vpop.f32.mrb[0].mxu0
      %v5054 = vadd.f32 0.0, %v5053
      %v5055 = vpop.f32.mrb[0].mxu0
      %5056 = vmatprep.mubr.bf16.mxu0 0
      %5057 = vmatmul.mubr.bf16.gmra.mrb[0].mxu0 %v4867
      %v5058 = vpop.f32.mrb[0].mxu0
      %v5059 = vadd.f32 0.0, %v5058
      %v5060 = vpop.f32.mrb[0].mxu0
      %v5061 = vpop.f32.mrb[0].mxu0
      %v5062 = vadd.f32 0.0, %v5061
      %v5063 = vpop.f32.mrb[0].mxu0
      %5064 = vmatprep.mubr.bf16.mxu0 0
      %5065 = vmatmul.mubr.bf16.gmra.mrb[0].mxu0 %v4868
      %v5066 = vpop.f32.mrb[0].mxu0
      %v5067 = vadd.f32 0.0, %v5066
      %v5068 = vpop.f32.mrb[0].mxu0
      %v5069 = vpop.f32.mrb[0].mxu0
      %v5070 = vadd.f32 0.0, %v5069
      %v5071 = vpop.f32.mrb[0].mxu0
      %5072 = vmatprep.mubr.bf16.mxu0 0
      %5073 = vmatmul.mubr.bf16.gmra.mrb[0].mxu0 %v4869
      %v5074 = vpop.f32.mrb[0].mxu0
      %v5075 = vadd.f32 0.0, %v5074
      %v5076 = vpop.f32.mrb[0].mxu0
      %v5077 = vpop.f32.mrb[0].mxu0
      %v5078 = vadd.f32 0.0, %v5077
      %v5079 = vpop.f32.mrb[0].mxu0
      %5080 = vmatprep.mubr.bf16.mxu0 0
      %5081 = vmatmul.mubr.bf16.gmra.mrb[0].mxu0 %v4870
      %v5082 = vpop.f32.mrb[0].mxu0
      %v5083 = vadd.f32 0.0, %v5082
      %v5084 = vpop.f32.mrb[0].mxu0
      %v5085 = vpop.f32.mrb[0].mxu0
      %v5086 = vadd.f32 0.0, %v5085
      %v5087 = vpop.f32.mrb[0].mxu0
      %5088 = vmatprep.mubr.bf16.mxu0 0
      %5089 = vmatmul.mubr.bf16.gmra.mrb[0].mxu0 %v4871
      %v5090 = vpop.f32.mrb[0].mxu0
      %v5091 = vadd.f32 0.0, %v5090
      %v5092 = vpop.f32.mrb[0].mxu0
      %v5093 = vpop.f32.mrb[0].mxu0
      %v5094 = vadd.f32 0.0, %v5093
      %v5095 = vpop.f32.mrb[0].mxu0
      %5096 = vdwg.mxu0
      %v5097 = vadd.f32 %v4521, %v4971
      %v5098 = vadd.f32 %v4524, %v4974
      %v5099 = vadd.f32 %v4529, %v4979
      %v5100 = vadd.f32 %v4532, %v4982
      %v5101 = vadd.f32 %v4537, %v4987
      %v5102 = vadd.f32 %v4540, %v4990
      %v5103 = vadd.f32 %v4545, %v4995
      %v5104 = vadd.f32 %v4548, %v4998
      %v5105 = vadd.f32 %v4553, %v5003
      %v5106 = vadd.f32 %v4556, %v5006
      %v5107 = vadd.f32 %v4561, %v5011
      %v5108 = vadd.f32 %v4564, %v5014
      %v5109 = vadd.f32 %v4569, %v5019
      %v5110 = vadd.f32 %v4572, %v5022
      %v5111 = vadd.f32 %v4577, %v5027
      %v5112 = vadd.f32 %v4580, %v5030
      %v5113 = vadd.f32 %v4585, %v5035
      %v5114 = vadd.f32 %v4588, %v5038
      %v5115 = vadd.f32 %v4593, %v5043
      %v5116 = vadd.f32 %v4596, %v5046
      %v5117 = vadd.f32 %v4601, %v5051
      %v5118 = vadd.f32 %v4604, %v5054
      %v5119 = vadd.f32 %v4609, %v5059
      %v5120 = vadd.f32 %v4612, %v5062
      %v5121 = vadd.f32 %v4617, %v5067
      %v5122 = vadd.f32 %v4620, %v5070
      %v5123 = vadd.f32 %v4625, %v5075
      %v5124 = vadd.f32 %v4628, %v5078
      %v5125 = vadd.f32 %v4633, %v5083
      %v5126 = vadd.f32 %v4636, %v5086
      %v5127 = vadd.f32 %v4641, %v5091
      %v5128 = vadd.f32 %v4644, %v5094
      %v5129 = vld [vmem:[%s3486] sm:$0xf]
      %v5130 = vld [vmem:[%s3486 + $0x4] sm:$0xf]
      %v5131 = vld [vmem:[%s3486 + $0xc] sm:$0xf]
      %v5132 = vld [vmem:[%s3486 + $0x10] sm:$0xf]
      %v5133 = vld [vmem:[%s3486 + $0x18] sm:$0xf]
      %v5134 = vld [vmem:[%s3486 + $0x1c] sm:$0xf]
      %v5135 = vld [vmem:[%s3486 + $0x24] sm:$0xf]
      %v5136 = vld [vmem:[%s3486 + $0x28] sm:$0xf]
      %v5137 = vld [vmem:[%s3486 + $0x30] sm:$0xf]
      %v5138 = vld [vmem:[%s3486 + $0x34] sm:$0xf]
      %v5139 = vld [vmem:[%s3486 + $0x3c] sm:$0xf]
      %v5140 = vld [vmem:[%s3486 + $0x40] sm:$0xf]
      %v5141 = vld [vmem:[%s3486 + $0x48] sm:$0xf]
      %v5142 = vld [vmem:[%s3486 + $0x4c] sm:$0xf]
      %v5143 = vld [vmem:[%s3486 + $0x54] sm:$0xf]
      %v5144 = vld [vmem:[%s3486 + $0x58] sm:$0xf]
      %v5145 = vld [vmem:[%s3486 + $0x60] sm:$0xf]
      %v5146 = vld [vmem:[%s3486 + $0x64] sm:$0xf]
      %v5147 = vld [vmem:[%s3486 + $0x6c] sm:$0xf]
      %v5148 = vld [vmem:[%s3486 + $0x70] sm:$0xf]
      %v5149 = vld [vmem:[%s3486 + $0x78] sm:$0xf]
      %v5150 = vld [vmem:[%s3486 + $0x7c] sm:$0xf]
      %v5151 = vld [vmem:[%s3486 + $0x84] sm:$0xf]
      %v5152 = vld [vmem:[%s3486 + $0x88] sm:$0xf]
      %v5153 = vld [vmem:[%s3486 + $0x90] sm:$0xf]
      %v5154 = vld [vmem:[%s3486 + $0x94] sm:$0xf]
      %v5155 = vld [vmem:[%s3486 + $0x9c] sm:$0xf]
      %v5156 = vld [vmem:[%s3486 + $0xa0] sm:$0xf]
      %v5157 = vld [vmem:[%s3486 + $0xa8] sm:$0xf]
      %v5158 = vld [vmem:[%s3486 + $0xac] sm:$0xf]
      %v5159 = vld [vmem:[%s3486 + $0xb4] sm:$0xf]
      %v5160 = vld [vmem:[%s3486 + $0xb8] sm:$0xf]
      %s5161 = scalar_lea.vmem %s3, 192
      %v5162 = vld [vmem:[%s5161] sm:$0xf]
      %v5163 = vld [vmem:[%s5161 + $0x4] sm:$0xf]
      %v5164 = vld [vmem:[%s5161 + $0x8] sm:$0xf]
      %v5165 = vld [vmem:[%s5161 + $0xc] sm:$0xf]
      %v5166 = vld [vmem:[%s5161 + $0x10] sm:$0xf]
      %v5167 = vld [vmem:[%s5161 + $0x14] sm:$0xf]
      %v5168 = vld [vmem:[%s5161 + $0x18] sm:$0xf]
      %v5169 = vld [vmem:[%s5161 + $0x1c] sm:$0xf]
      %v5170 = vld [vmem:[%s5161 + $0x20] sm:$0xf]
      %v5171 = vld [vmem:[%s5161 + $0x24] sm:$0xf]
      %v5172 = vld [vmem:[%s5161 + $0x28] sm:$0xf]
      %v5173 = vld [vmem:[%s5161 + $0x2c] sm:$0xf]
      %v5174 = vld [vmem:[%s5161 + $0x30] sm:$0xf]
      %v5175 = vld [vmem:[%s5161 + $0x34] sm:$0xf]
      %v5176 = vld [vmem:[%s5161 + $0x38] sm:$0xf]
      %v5177 = vld [vmem:[%s5161 + $0x3c] sm:$0xf]
      %v5210 = vunpack.c.l.b16 %v5129
      %v5211 = vunpack.c.l.b16 %v5130
      %v5212 = vunpack.c.l.b16 %v5131
      %v5213 = vunpack.c.l.b16 %v5132
      %v5214 = vunpack.c.l.b16 %v5133
      %v5215 = vunpack.c.l.b16 %v5134
      %v5216 = vunpack.c.l.b16 %v5135
      %v5217 = vunpack.c.l.b16 %v5136
      %v5218 = vunpack.c.l.b16 %v5137
      %v5219 = vunpack.c.l.b16 %v5138
      %v5220 = vunpack.c.l.b16 %v5139
      %v5221 = vunpack.c.l.b16 %v5140
      %v5222 = vunpack.c.l.b16 %v5141
      %v5223 = vunpack.c.l.b16 %v5142
      %v5224 = vunpack.c.l.b16 %v5143
      %v5225 = vunpack.c.l.b16 %v5144
      %v5226 = vunpack.c.l.b16 %v5145
      %v5227 = vunpack.c.l.b16 %v5146
      %v5228 = vunpack.c.l.b16 %v5147
      %v5229 = vunpack.c.l.b16 %v5148
      %v5230 = vunpack.c.l.b16 %v5149
      %v5231 = vunpack.c.l.b16 %v5150
      %v5232 = vunpack.c.l.b16 %v5151
      %v5233 = vunpack.c.l.b16 %v5152
      %v5234 = vunpack.c.l.b16 %v5153
      %v5235 = vunpack.c.l.b16 %v5154
      %v5236 = vunpack.c.l.b16 %v5155
      %v5237 = vunpack.c.l.b16 %v5156
      %v5238 = vunpack.c.l.b16 %v5157
      %v5239 = vunpack.c.l.b16 %v5158
      %v5240 = vunpack.c.l.b16 %v5159
      %v5241 = vunpack.c.l.b16 %v5160
      %v5242 = vpack.c.b16 %v5211, %v5210
      %v5243 = vpack.c.b16 %v5213, %v5212
      %v5244 = vpack.c.b16 %v5215, %v5214
      %v5245 = vpack.c.b16 %v5217, %v5216
      %v5246 = vpack.c.b16 %v5219, %v5218
      %v5247 = vpack.c.b16 %v5221, %v5220
      %v5248 = vpack.c.b16 %v5223, %v5222
      %v5249 = vpack.c.b16 %v5225, %v5224
      %v5250 = vpack.c.b16 %v5227, %v5226
      %v5251 = vpack.c.b16 %v5229, %v5228
      %v5252 = vpack.c.b16 %v5231, %v5230
      %v5253 = vpack.c.b16 %v5233, %v5232
      %v5254 = vpack.c.b16 %v5235, %v5234
      %v5255 = vpack.c.b16 %v5237, %v5236
      %v5256 = vpack.c.b16 %v5239, %v5238
      %v5257 = vpack.c.b16 %v5241, %v5240
      %v5290 = vunpack.c.l.b16 %v5162
      %v5291 = vunpack.c.l.b16 %v5163
      %v5292 = vunpack.c.l.b16 %v5164
      %v5293 = vunpack.c.l.b16 %v5165
      %v5294 = vunpack.c.l.b16 %v5166
      %v5295 = vunpack.c.l.b16 %v5167
      %v5296 = vunpack.c.l.b16 %v5168
      %v5297 = vunpack.c.l.b16 %v5169
      %v5298 = vunpack.c.l.b16 %v5170
      %v5299 = vunpack.c.l.b16 %v5171
      %v5300 = vunpack.c.l.b16 %v5172
      %v5301 = vunpack.c.l.b16 %v5173
      %v5302 = vunpack.c.l.b16 %v5174
      %v5303 = vunpack.c.l.b16 %v5175
      %v5304 = vunpack.c.l.b16 %v5176
      %v5305 = vunpack.c.l.b16 %v5177
      %v5306 = vpack.c.b16 %v5291, %v5290
      %v5307 = vpack.c.b16 %v5293, %v5292
      %v5308 = vpack.c.b16 %v5295, %v5294
      %v5309 = vpack.c.b16 %v5297, %v5296
      %v5310 = vpack.c.b16 %v5299, %v5298
      %v5311 = vpack.c.b16 %v5301, %v5300
      %v5312 = vpack.c.b16 %v5303, %v5302
      %v5313 = vpack.c.b16 %v5305, %v5304
      %5322 = vmatprep.subr.bf16.mxu0 0
      %5323 = vmatpush1.bf16.msra.mxu0 %v5306
      %5324 = vmatprep.subr.bf16.mxu0 0
      %5325 = vmatpush1.bf16.msra.mxu0 %v5307
      %5326 = vmatprep.subr.bf16.mxu0 0
      %5327 = vmatpush1.bf16.msra.mxu0 %v5308
      %5328 = vmatprep.subr.bf16.mxu0 0
      %5329 = vmatpush1.bf16.msra.mxu0 %v5309
      %5330 = vmatprep.subr.bf16.mxu0 0
      %5331 = vmatpush1.bf16.msra.mxu0 %v5310
      %5332 = vmatprep.subr.bf16.mxu0 0
      %5333 = vmatpush1.bf16.msra.mxu0 %v5311
      %5334 = vmatprep.subr.bf16.mxu0 0
      %5335 = vmatpush1.bf16.msra.mxu0 %v5312
      %5336 = vmatprep.subr.bf16.mxu0 0
      %5337 = vmatpush1.bf16.msra.mxu0 %v5313
      %5338 = vmatprep.subr.bf16.mxu0 0
      %5339 = vmatpush1.bf16.msra.mxu0 0
      %5340 = vmatprep.subr.bf16.mxu0 0
      %5341 = vmatpush1.bf16.msra.mxu0 0
      %5342 = vmatprep.subr.bf16.mxu0 0
      %5343 = vmatpush1.bf16.msra.mxu0 0
      %5344 = vmatprep.subr.bf16.mxu0 0
      %5345 = vmatpush1.bf16.msra.mxu0 0
      %5346 = vmatprep.subr.bf16.mxu0 0
      %5347 = vmatpush1.bf16.msra.mxu0 0
      %5348 = vmatprep.subr.bf16.mxu0 0
      %5349 = vmatpush1.bf16.msra.mxu0 0
      %5350 = vmatprep.subr.bf16.mxu0 0
      %5351 = vmatpush1.bf16.msra.mxu0 0
      %5352 = vmatprep.subr.bf16.mxu0 0
      %5353 = vmatpush1.bf16.msra.mxu0 0
      %5354 = vmatprep.mubr.bf16.mxu0 0
      %5355 = vmatmul.mubr.bf16.gmra.mrb[0].mxu0 %v5242
      %v5356 = vpop.f32.mrb[0].mxu0
      %v5357 = vadd.f32 0.0, %v5356
      %v5358 = vpop.f32.mrb[0].mxu0
      %v5359 = vpop.f32.mrb[0].mxu0
      %v5360 = vadd.f32 0.0, %v5359
      %v5361 = vpop.f32.mrb[0].mxu0
      %5362 = vmatprep.mubr.bf16.mxu0 0
      %5363 = vmatmul.mubr.bf16.gmra.mrb[0].mxu0 %v5243
      %v5364 = vpop.f32.mrb[0].mxu0
      %v5365 = vadd.f32 0.0, %v5364
      %v5366 = vpop.f32.mrb[0].mxu0
      %v5367 = vpop.f32.mrb[0].mxu0
      %v5368 = vadd.f32 0.0, %v5367
      %v5369 = vpop.f32.mrb[0].mxu0
      %5370 = vmatprep.mubr.bf16.mxu0 0
      %5371 = vmatmul.mubr.bf16.gmra.mrb[0].mxu0 %v5244
      %v5372 = vpop.f32.mrb[0].mxu0
      %v5373 = vadd.f32 0.0, %v5372
      %v5374 = vpop.f32.mrb[0].mxu0
      %v5375 = vpop.f32.mrb[0].mxu0
      %v5376 = vadd.f32 0.0, %v5375
      %v5377 = vpop.f32.mrb[0].mxu0
      %5378 = vmatprep.mubr.bf16.mxu0 0
      %5379 = vmatmul.mubr.bf16.gmra.mrb[0].mxu0 %v5245
      %v5380 = vpop.f32.mrb[0].mxu0
      %v5381 = vadd.f32 0.0, %v5380
      %v5382 = vpop.f32.mrb[0].mxu0
      %v5383 = vpop.f32.mrb[0].mxu0
      %v5384 = vadd.f32 0.0, %v5383
      %v5385 = vpop.f32.mrb[0].mxu0
      %5386 = vmatprep.mubr.bf16.mxu0 0
      %5387 = vmatmul.mubr.bf16.gmra.mrb[0].mxu0 %v5246
      %v5388 = vpop.f32.mrb[0].mxu0
      %v5389 = vadd.f32 0.0, %v5388
      %v5390 = vpop.f32.mrb[0].mxu0
      %v5391 = vpop.f32.mrb[0].mxu0
      %v5392 = vadd.f32 0.0, %v5391
      %v5393 = vpop.f32.mrb[0].mxu0
      %5394 = vmatprep.mubr.bf16.mxu0 0
      %5395 = vmatmul.mubr.bf16.gmra.mrb[0].mxu0 %v5247
      %v5396 = vpop.f32.mrb[0].mxu0
      %v5397 = vadd.f32 0.0, %v5396
      %v5398 = vpop.f32.mrb[0].mxu0
      %v5399 = vpop.f32.mrb[0].mxu0
      %v5400 = vadd.f32 0.0, %v5399
      %v5401 = vpop.f32.mrb[0].mxu0
      %5402 = vmatprep.mubr.bf16.mxu0 0
      %5403 = vmatmul.mubr.bf16.gmra.mrb[0].mxu0 %v5248
      %v5404 = vpop.f32.mrb[0].mxu0
      %v5405 = vadd.f32 0.0, %v5404
      %v5406 = vpop.f32.mrb[0].mxu0
      %v5407 = vpop.f32.mrb[0].mxu0
      %v5408 = vadd.f32 0.0, %v5407
      %v5409 = vpop.f32.mrb[0].mxu0
      %5410 = vmatprep.mubr.bf16.mxu0 0
      %5411 = vmatmul.mubr.bf16.gmra.mrb[0].mxu0 %v5249
      %v5412 = vpop.f32.mrb[0].mxu0
      %v5413 = vadd.f32 0.0, %v5412
      %v5414 = vpop.f32.mrb[0].mxu0
      %v5415 = vpop.f32.mrb[0].mxu0
      %v5416 = vadd.f32 0.0, %v5415
      %v5417 = vpop.f32.mrb[0].mxu0
      %5418 = vmatprep.mubr.bf16.mxu0 0
      %5419 = vmatmul.mubr.bf16.gmra.mrb[0].mxu0 %v5250
      %v5420 = vpop.f32.mrb[0].mxu0
      %v5421 = vadd.f32 0.0, %v5420
      %v5422 = vpop.f32.mrb[0].mxu0
      %v5423 = vpop.f32.mrb[0].mxu0
      %v5424 = vadd.f32 0.0, %v5423
      %v5425 = vpop.f32.mrb[0].mxu0
      %5426 = vmatprep.mubr.bf16.mxu0 0
      %5427 = vmatmul.mubr.bf16.gmra.mrb[0].mxu0 %v5251
      %v5428 = vpop.f32.mrb[0].mxu0
      %v5429 = vadd.f32 0.0, %v5428
      %v5430 = vpop.f32.mrb[0].mxu0
      %v5431 = vpop.f32.mrb[0].mxu0
      %v5432 = vadd.f32 0.0, %v5431
      %v5433 = vpop.f32.mrb[0].mxu0
      %5434 = vmatprep.mubr.bf16.mxu0 0
      %5435 = vmatmul.mubr.bf16.gmra.mrb[0].mxu0 %v5252
      %v5436 = vpop.f32.mrb[0].mxu0
      %v5437 = vadd.f32 0.0, %v5436
      %v5438 = vpop.f32.mrb[0].mxu0
      %v5439 = vpop.f32.mrb[0].mxu0
      %v5440 = vadd.f32 0.0, %v5439
      %v5441 = vpop.f32.mrb[0].mxu0
      %5442 = vmatprep.mubr.bf16.mxu0 0
      %5443 = vmatmul.mubr.bf16.gmra.mrb[0].mxu0 %v5253
      %v5444 = vpop.f32.mrb[0].mxu0
      %v5445 = vadd.f32 0.0, %v5444
      %v5446 = vpop.f32.mrb[0].mxu0
      %v5447 = vpop.f32.mrb[0].mxu0
      %v5448 = vadd.f32 0.0, %v5447
      %v5449 = vpop.f32.mrb[0].mxu0
      %5450 = vmatprep.mubr.bf16.mxu0 0
      %5451 = vmatmul.mubr.bf16.gmra.mrb[0].mxu0 %v5254
      %v5452 = vpop.f32.mrb[0].mxu0
      %v5453 = vadd.f32 0.0, %v5452
      %v5454 = vpop.f32.mrb[0].mxu0
      %v5455 = vpop.f32.mrb[0].mxu0
      %v5456 = vadd.f32 0.0, %v5455
      %v5457 = vpop.f32.mrb[0].mxu0
      %5458 = vmatprep.mubr.bf16.mxu0 0
      %5459 = vmatmul.mubr.bf16.gmra.mrb[0].mxu0 %v5255
      %v5460 = vpop.f32.mrb[0].mxu0
      %v5461 = vadd.f32 0.0, %v5460
      %v5462 = vpop.f32.mrb[0].mxu0
      %v5463 = vpop.f32.mrb[0].mxu0
      %v5464 = vadd.f32 0.0, %v5463
      %v5465 = vpop.f32.mrb[0].mxu0
      %5466 = vmatprep.mubr.bf16.mxu0 0
      %5467 = vmatmul.mubr.bf16.gmra.mrb[0].mxu0 %v5256
      %v5468 = vpop.f32.mrb[0].mxu0
      %v5469 = vadd.f32 0.0, %v5468
      %v5470 = vpop.f32.mrb[0].mxu0
      %v5471 = vpop.f32.mrb[0].mxu0
      %v5472 = vadd.f32 0.0, %v5471
      %v5473 = vpop.f32.mrb[0].mxu0
      %5474 = vmatprep.mubr.bf16.mxu0 0
      %5475 = vmatmul.mubr.bf16.gmra.mrb[0].mxu0 %v5257
      %v5476 = vpop.f32.mrb[0].mxu0
      %v5477 = vadd.f32 0.0, %v5476
      %v5478 = vpop.f32.mrb[0].mxu0
      %v5479 = vpop.f32.mrb[0].mxu0
      %v5480 = vadd.f32 0.0, %v5479
      %v5481 = vpop.f32.mrb[0].mxu0
      %5482 = vdwg.mxu0
      %v5483 = vadd.f32 %v5097, %v5357
      %v5484 = vadd.f32 %v5098, %v5360
      %v5485 = vadd.f32 %v5099, %v5365
      %v5486 = vadd.f32 %v5100, %v5368
      %v5487 = vadd.f32 %v5101, %v5373
      %v5488 = vadd.f32 %v5102, %v5376
      %v5489 = vadd.f32 %v5103, %v5381
      %v5490 = vadd.f32 %v5104, %v5384
      %v5491 = vadd.f32 %v5105, %v5389
      %v5492 = vadd.f32 %v5106, %v5392
      %v5493 = vadd.f32 %v5107, %v5397
      %v5494 = vadd.f32 %v5108, %v5400
      %v5495 = vadd.f32 %v5109, %v5405
      %v5496 = vadd.f32 %v5110, %v5408
      %v5497 = vadd.f32 %v5111, %v5413
      %v5498 = vadd.f32 %v5112, %v5416
      %v5499 = vadd.f32 %v5113, %v5421
      %v5500 = vadd.f32 %v5114, %v5424
      %v5501 = vadd.f32 %v5115, %v5429
      %v5502 = vadd.f32 %v5116, %v5432
      %v5503 = vadd.f32 %v5117, %v5437
      %v5504 = vadd.f32 %v5118, %v5440
      %v5505 = vadd.f32 %v5119, %v5445
      %v5506 = vadd.f32 %v5120, %v5448
      %v5507 = vadd.f32 %v5121, %v5453
      %v5508 = vadd.f32 %v5122, %v5456
      %v5509 = vadd.f32 %v5123, %v5461
      %v5510 = vadd.f32 %v5124, %v5464
      %v5511 = vadd.f32 %v5125, %v5469
      %v5512 = vadd.f32 %v5126, %v5472
      %v5513 = vadd.f32 %v5127, %v5477
      %v5514 = vadd.f32 %v5128, %v5480
      %v5515 = vld [vmem:[%s3486] sm:$0xf]
      %v5516 = vld [vmem:[%s3486 + $0x4] sm:$0xf]
      %v5517 = vld [vmem:[%s3486 + $0x8] sm:$0x1]
      %v5518 = vld [vmem:[%s3486 + $0xc] sm:$0xf]
      %v5519 = vld [vmem:[%s3486 + $0x10] sm:$0xf]
      %v5520 = vld [vmem:[%s3486 + $0x14] sm:$0x1]
      %v5521 = vld [vmem:[%s3486 + $0x18] sm:$0xf]
      %v5522 = vld [vmem:[%s3486 + $0x1c] sm:$0xf]
      %v5523 = vld [vmem:[%s3486 + $0x20] sm:$0x1]
      %v5524 = vld [vmem:[%s3486 + $0x24] sm:$0xf]
      %v5525 = vld [vmem:[%s3486 + $0x28] sm:$0xf]
      %v5526 = vld [vmem:[%s3486 + $0x2c] sm:$0x1]
      %v5527 = vld [vmem:[%s3486 + $0x30] sm:$0xf]
      %v5528 = vld [vmem:[%s3486 + $0x34] sm:$0xf]
      %v5529 = vld [vmem:[%s3486 + $0x38] sm:$0x1]
      %v5530 = vld [vmem:[%s3486 + $0x3c] sm:$0xf]
      %v5531 = vld [vmem:[%s3486 + $0x40] sm:$0xf]
      %v5532 = vld [vmem:[%s3486 + $0x44] sm:$0x1]
      %v5533 = vld [vmem:[%s3486 + $0x48] sm:$0xf]
      %v5534 = vld [vmem:[%s3486 + $0x4c] sm:$0xf]
      %v5535 = vld [vmem:[%s3486 + $0x50] sm:$0x1]
      %v5536 = vld [vmem:[%s3486 + $0x54] sm:$0xf]
      %v5537 = vld [vmem:[%s3486 + $0x58] sm:$0xf]
      %v5538 = vld [vmem:[%s3486 + $0x5c] sm:$0x1]
      %v5539 = vld [vmem:[%s3486 + $0x60] sm:$0xf]
      %v5540 = vld [vmem:[%s3486 + $0x64] sm:$0xf]
      %v5541 = vld [vmem:[%s3486 + $0x68] sm:$0x1]
      %v5542 = vld [vmem:[%s3486 + $0x6c] sm:$0xf]
      %v5543 = vld [vmem:[%s3486 + $0x70] sm:$0xf]
      %v5544 = vld [vmem:[%s3486 + $0x74] sm:$0x1]
      %v5545 = vld [vmem:[%s3486 + $0x78] sm:$0xf]
      %v5546 = vld [vmem:[%s3486 + $0x7c] sm:$0xf]
      %v5547 = vld [vmem:[%s3486 + $0x80] sm:$0x1]
      %v5548 = vld [vmem:[%s3486 + $0x84] sm:$0xf]
      %v5549 = vld [vmem:[%s3486 + $0x88] sm:$0xf]
      %v5550 = vld [vmem:[%s3486 + $0x8c] sm:$0x1]
      %v5551 = vld [vmem:[%s3486 + $0x90] sm:$0xf]
      %v5552 = vld [vmem:[%s3486 + $0x94] sm:$0xf]
      %v5553 = vld [vmem:[%s3486 + $0x98] sm:$0x1]
      %v5554 = vld [vmem:[%s3486 + $0x9c] sm:$0xf]
      %v5555 = vld [vmem:[%s3486 + $0xa0] sm:$0xf]
      %v5556 = vld [vmem:[%s3486 + $0xa4] sm:$0x1]
      %v5557 = vld [vmem:[%s3486 + $0xa8] sm:$0xf]
      %v5558 = vld [vmem:[%s3486 + $0xac] sm:$0xf]
      %v5559 = vld [vmem:[%s3486 + $0xb0] sm:$0x1]
      %v5560 = vld [vmem:[%s3486 + $0xb4] sm:$0xf]
      %v5561 = vld [vmem:[%s3486 + $0xb8] sm:$0xf]
      %v5562 = vld [vmem:[%s3486 + $0xbc] sm:$0x1]
      %v5564 = vshrl.u32 %v5515, 16
      %v5566 = vrot.slane %v5564, 4
      %v5567 = vshll.u32 %v5515, 16
      %v5569 = vrot.slane %v5567, 5
      %v5570 = vor.u32 %v5566, %v5569
      %v5571 = vrot.slane %v5570, 4
      %v5573 = vshll.u32 %v5516, 16
      %v5575 = vrot.slane %v5573, 5
      %v5576 = vsel %vm284, %v5571, %v5575
      %v5577 = vshrl.u32 %v5516, 16
      %v5579 = vrot.slane %v5577, 4
      %v5580 = vor.u32 %v5579, %v5575
      %v5581 = vrot.slane %v5580, 4
      %v5583 = vshll.u32 %v5517, 16
      %v5585 = vrot.slane %v5583, 5
      %v5586 = vsel %vm284, %v5581, %v5585
      %v5588 = vshrl.u32 %v5518, 16
      %v5590 = vrot.slane %v5588, 4
      %v5591 = vshll.u32 %v5518, 16
      %v5593 = vrot.slane %v5591, 5
      %v5594 = vor.u32 %v5590, %v5593
      %v5595 = vrot.slane %v5594, 4
      %v5597 = vshll.u32 %v5519, 16
      %v5599 = vrot.slane %v5597, 5
      %v5600 = vsel %vm284, %v5595, %v5599
      %v5601 = vshrl.u32 %v5519, 16
      %v5603 = vrot.slane %v5601, 4
      %v5604 = vor.u32 %v5603, %v5599
      %v5605 = vrot.slane %v5604, 4
      %v5607 = vshll.u32 %v5520, 16
      %v5609 = vrot.slane %v5607, 5
      %v5610 = vsel %vm284, %v5605, %v5609
      %v5612 = vshrl.u32 %v5521, 16
      %v5614 = vrot.slane %v5612, 4
      %v5615 = vshll.u32 %v5521, 16
      %v5617 = vrot.slane %v5615, 5
      %v5618 = vor.u32 %v5614, %v5617
      %v5619 = vrot.slane %v5618, 4
      %v5621 = vshll.u32 %v5522, 16
      %v5623 = vrot.slane %v5621, 5
      %v5624 = vsel %vm284, %v5619, %v5623
      %v5625 = vshrl.u32 %v5522, 16
      %v5627 = vrot.slane %v5625, 4
      %v5628 = vor.u32 %v5627, %v5623
      %v5629 = vrot.slane %v5628, 4
      %v5631 = vshll.u32 %v5523, 16
      %v5633 = vrot.slane %v5631, 5
      %v5634 = vsel %vm284, %v5629, %v5633
      %v5636 = vshrl.u32 %v5524, 16
      %v5638 = vrot.slane %v5636, 4
      %v5639 = vshll.u32 %v5524, 16
      %v5641 = vrot.slane %v5639, 5
      %v5642 = vor.u32 %v5638, %v5641
      %v5643 = vrot.slane %v5642, 4
      %v5645 = vshll.u32 %v5525, 16
      %v5647 = vrot.slane %v5645, 5
      %v5648 = vsel %vm284, %v5643, %v5647
      %v5649 = vshrl.u32 %v5525, 16
      %v5651 = vrot.slane %v5649, 4
      %v5652 = vor.u32 %v5651, %v5647
      %v5653 = vrot.slane %v5652, 4
      %v5655 = vshll.u32 %v5526, 16
      %v5657 = vrot.slane %v5655, 5
      %v5658 = vsel %vm284, %v5653, %v5657
      %v5660 = vshrl.u32 %v5527, 16
      %v5662 = vrot.slane %v5660, 4
      %v5663 = vshll.u32 %v5527, 16
      %v5665 = vrot.slane %v5663, 5
      %v5666 = vor.u32 %v5662, %v5665
      %v5667 = vrot.slane %v5666, 4
      %v5669 = vshll.u32 %v5528, 16
      %v5671 = vrot.slane %v5669, 5
      %v5672 = vsel %vm284, %v5667, %v5671
      %v5673 = vshrl.u32 %v5528, 16
      %v5675 = vrot.slane %v5673, 4
      %v5676 = vor.u32 %v5675, %v5671
      %v5677 = vrot.slane %v5676, 4
      %v5679 = vshll.u32 %v5529, 16
      %v5681 = vrot.slane %v5679, 5
      %v5682 = vsel %vm284, %v5677, %v5681
      %v5684 = vshrl.u32 %v5530, 16
      %v5686 = vrot.slane %v5684, 4
      %v5687 = vshll.u32 %v5530, 16
      %v5689 = vrot.slane %v5687, 5
      %v5690 = vor.u32 %v5686, %v5689
      %v5691 = vrot.slane %v5690, 4
      %v5693 = vshll.u32 %v5531, 16
      %v5695 = vrot.slane %v5693, 5
      %v5696 = vsel %vm284, %v5691, %v5695
      %v5697 = vshrl.u32 %v5531, 16
      %v5699 = vrot.slane %v5697, 4
      %v5700 = vor.u32 %v5699, %v5695
      %v5701 = vrot.slane %v5700, 4
      %v5703 = vshll.u32 %v5532, 16
      %v5705 = vrot.slane %v5703, 5
      %v5706 = vsel %vm284, %v5701, %v5705
      %v5708 = vshrl.u32 %v5533, 16
      %v5710 = vrot.slane %v5708, 4
      %v5711 = vshll.u32 %v5533, 16
      %v5713 = vrot.slane %v5711, 5
      %v5714 = vor.u32 %v5710, %v5713
      %v5715 = vrot.slane %v5714, 4
      %v5717 = vshll.u32 %v5534, 16
      %v5719 = vrot.slane %v5717, 5
      %v5720 = vsel %vm284, %v5715, %v5719
      %v5721 = vshrl.u32 %v5534, 16
      %v5723 = vrot.slane %v5721, 4
      %v5724 = vor.u32 %v5723, %v5719
      %v5725 = vrot.slane %v5724, 4
      %v5727 = vshll.u32 %v5535, 16
      %v5729 = vrot.slane %v5727, 5
      %v5730 = vsel %vm284, %v5725, %v5729
      %v5732 = vshrl.u32 %v5536, 16
      %v5734 = vrot.slane %v5732, 4
      %v5735 = vshll.u32 %v5536, 16
      %v5737 = vrot.slane %v5735, 5
      %v5738 = vor.u32 %v5734, %v5737
      %v5739 = vrot.slane %v5738, 4
      %v5741 = vshll.u32 %v5537, 16
      %v5743 = vrot.slane %v5741, 5
      %v5744 = vsel %vm284, %v5739, %v5743
      %v5745 = vshrl.u32 %v5537, 16
      %v5747 = vrot.slane %v5745, 4
      %v5748 = vor.u32 %v5747, %v5743
      %v5749 = vrot.slane %v5748, 4
      %v5751 = vshll.u32 %v5538, 16
      %v5753 = vrot.slane %v5751, 5
      %v5754 = vsel %vm284, %v5749, %v5753
      %v5756 = vshrl.u32 %v5539, 16
      %v5758 = vrot.slane %v5756, 4
      %v5759 = vshll.u32 %v5539, 16
      %v5761 = vrot.slane %v5759, 5
      %v5762 = vor.u32 %v5758, %v5761
      %v5763 = vrot.slane %v5762, 4
      %v5765 = vshll.u32 %v5540, 16
      %v5767 = vrot.slane %v5765, 5
      %v5768 = vsel %vm284, %v5763, %v5767
      %v5769 = vshrl.u32 %v5540, 16
      %v5771 = vrot.slane %v5769, 4
      %v5772 = vor.u32 %v5771, %v5767
      %v5773 = vrot.slane %v5772, 4
      %v5775 = vshll.u32 %v5541, 16
      %v5777 = vrot.slane %v5775, 5
      %v5778 = vsel %vm284, %v5773, %v5777
      %v5780 = vshrl.u32 %v5542, 16
      %v5782 = vrot.slane %v5780, 4
      %v5783 = vshll.u32 %v5542, 16
      %v5785 = vrot.slane %v5783, 5
      %v5786 = vor.u32 %v5782, %v5785
      %v5787 = vrot.slane %v5786, 4
      %v5789 = vshll.u32 %v5543, 16
      %v5791 = vrot.slane %v5789, 5
      %v5792 = vsel %vm284, %v5787, %v5791
      %v5793 = vshrl.u32 %v5543, 16
      %v5795 = vrot.slane %v5793, 4
      %v5796 = vor.u32 %v5795, %v5791
      %v5797 = vrot.slane %v5796, 4
      %v5799 = vshll.u32 %v5544, 16
      %v5801 = vrot.slane %v5799, 5
      %v5802 = vsel %vm284, %v5797, %v5801
      %v5804 = vshrl.u32 %v5545, 16
      %v5806 = vrot.slane %v5804, 4
      %v5807 = vshll.u32 %v5545, 16
      %v5809 = vrot.slane %v5807, 5
      %v5810 = vor.u32 %v5806, %v5809
      %v5811 = vrot.slane %v5810, 4
      %v5813 = vshll.u32 %v5546, 16
      %v5815 = vrot.slane %v5813, 5
      %v5816 = vsel %vm284, %v5811, %v5815
      %v5817 = vshrl.u32 %v5546, 16
      %v5819 = vrot.slane %v5817, 4
      %v5820 = vor.u32 %v5819, %v5815
      %v5821 = vrot.slane %v5820, 4
      %v5823 = vshll.u32 %v5547, 16
      %v5825 = vrot.slane %v5823, 5
      %v5826 = vsel %vm284, %v5821, %v5825
      %v5828 = vshrl.u32 %v5548, 16
      %v5830 = vrot.slane %v5828, 4
      %v5831 = vshll.u32 %v5548, 16
      %v5833 = vrot.slane %v5831, 5
      %v5834 = vor.u32 %v5830, %v5833
      %v5835 = vrot.slane %v5834, 4
      %v5837 = vshll.u32 %v5549, 16
      %v5839 = vrot.slane %v5837, 5
      %v5840 = vsel %vm284, %v5835, %v5839
      %v5841 = vshrl.u32 %v5549, 16
      %v5843 = vrot.slane %v5841, 4
      %v5844 = vor.u32 %v5843, %v5839
      %v5845 = vrot.slane %v5844, 4
      %v5847 = vshll.u32 %v5550, 16
      %v5849 = vrot.slane %v5847, 5
      %v5850 = vsel %vm284, %v5845, %v5849
      %v5852 = vshrl.u32 %v5551, 16
      %v5854 = vrot.slane %v5852, 4
      %v5855 = vshll.u32 %v5551, 16
      %v5857 = vrot.slane %v5855, 5
      %v5858 = vor.u32 %v5854, %v5857
      %v5859 = vrot.slane %v5858, 4
      %v5861 = vshll.u32 %v5552, 16
      %v5863 = vrot.slane %v5861, 5
      %v5864 = vsel %vm284, %v5859, %v5863
      %v5865 = vshrl.u32 %v5552, 16
      %v5867 = vrot.slane %v5865, 4
      %v5868 = vor.u32 %v5867, %v5863
      %v5869 = vrot.slane %v5868, 4
      %v5871 = vshll.u32 %v5553, 16
      %v5873 = vrot.slane %v5871, 5
      %v5874 = vsel %vm284, %v5869, %v5873
      %v5876 = vshrl.u32 %v5554, 16
      %v5878 = vrot.slane %v5876, 4
      %v5879 = vshll.u32 %v5554, 16
      %v5881 = vrot.slane %v5879, 5
      %v5882 = vor.u32 %v5878, %v5881
      %v5883 = vrot.slane %v5882, 4
      %v5885 = vshll.u32 %v5555, 16
      %v5887 = vrot.slane %v5885, 5
      %v5888 = vsel %vm284, %v5883, %v5887
      %v5889 = vshrl.u32 %v5555, 16
      %v5891 = vrot.slane %v5889, 4
      %v5892 = vor.u32 %v5891, %v5887
      %v5893 = vrot.slane %v5892, 4
      %v5895 = vshll.u32 %v5556, 16
      %v5897 = vrot.slane %v5895, 5
      %v5898 = vsel %vm284, %v5893, %v5897
      %v5900 = vshrl.u32 %v5557, 16
      %v5902 = vrot.slane %v5900, 4
      %v5903 = vshll.u32 %v5557, 16
      %v5905 = vrot.slane %v5903, 5
      %v5906 = vor.u32 %v5902, %v5905
      %v5907 = vrot.slane %v5906, 4
      %v5909 = vshll.u32 %v5558, 16
      %v5911 = vrot.slane %v5909, 5
      %v5912 = vsel %vm284, %v5907, %v5911
      %v5913 = vshrl.u32 %v5558, 16
      %v5915 = vrot.slane %v5913, 4
      %v5916 = vor.u32 %v5915, %v5911
      %v5917 = vrot.slane %v5916, 4
      %v5919 = vshll.u32 %v5559, 16
      %v5921 = vrot.slane %v5919, 5
      %v5922 = vsel %vm284, %v5917, %v5921
      %v5924 = vshrl.u32 %v5560, 16
      %v5926 = vrot.slane %v5924, 4
      %v5927 = vshll.u32 %v5560, 16
      %v5929 = vrot.slane %v5927, 5
      %v5930 = vor.u32 %v5926, %v5929
      %v5931 = vrot.slane %v5930, 4
      %v5933 = vshll.u32 %v5561, 16
      %v5935 = vrot.slane %v5933, 5
      %v5936 = vsel %vm284, %v5931, %v5935
      %v5937 = vshrl.u32 %v5561, 16
      %v5939 = vrot.slane %v5937, 4
      %v5940 = vor.u32 %v5939, %v5935
      %v5941 = vrot.slane %v5940, 4
      %v5943 = vshll.u32 %v5562, 16
      %v5945 = vrot.slane %v5943, 5
      %v5946 = vsel %vm284, %v5941, %v5945
      %s5947 = scalar_lea.vmem %s3, 256
      %v5948 = vld [vmem:[%s5947] sm:$0xf]
      %v5949 = vld [vmem:[%s5947 + $0x4] sm:$0xf]
      %v5950 = vld [vmem:[%s5947 + $0x8] sm:$0xf]
      %v5951 = vld [vmem:[%s5947 + $0xc] sm:$0xf]
      %v5952 = vld [vmem:[%s5947 + $0x10] sm:$0xf]
      %v5953 = vld [vmem:[%s5947 + $0x14] sm:$0xf]
      %v5954 = vld [vmem:[%s5947 + $0x18] sm:$0xf]
      %v5955 = vld [vmem:[%s5947 + $0x1c] sm:$0xf]
      %v5956 = vld [vmem:[%s5947 + $0x20] sm:$0xf]
      %v5957 = vld [vmem:[%s5947 + $0x24] sm:$0xf]
      %v5958 = vld [vmem:[%s5947 + $0x28] sm:$0xf]
      %v5959 = vld [vmem:[%s5947 + $0x2c] sm:$0xf]
      %v5960 = vld [vmem:[%s5947 + $0x30] sm:$0xf]
      %v5961 = vld [vmem:[%s5947 + $0x34] sm:$0xf]
      %v5962 = vld [vmem:[%s5947 + $0x38] sm:$0xf]
      %v5963 = vld [vmem:[%s5947 + $0x3c] sm:$0xf]
      %v5964 = vunpack.c.l.b16 %v5576
      %v5965 = vunpack.c.l.b16 %v5586
      %v5966 = vunpack.c.l.b16 %v5600
      %v5967 = vunpack.c.l.b16 %v5610
      %v5968 = vunpack.c.l.b16 %v5624
      %v5969 = vunpack.c.l.b16 %v5634
      %v5970 = vunpack.c.l.b16 %v5648
      %v5971 = vunpack.c.l.b16 %v5658
      %v5972 = vunpack.c.l.b16 %v5672
      %v5973 = vunpack.c.l.b16 %v5682
      %v5974 = vunpack.c.l.b16 %v5696
      %v5975 = vunpack.c.l.b16 %v5706
      %v5976 = vunpack.c.l.b16 %v5720
      %v5977 = vunpack.c.l.b16 %v5730
      %v5978 = vunpack.c.l.b16 %v5744
      %v5979 = vunpack.c.l.b16 %v5754
      %v5980 = vunpack.c.l.b16 %v5768
      %v5981 = vunpack.c.l.b16 %v5778
      %v5982 = vunpack.c.l.b16 %v5792
      %v5983 = vunpack.c.l.b16 %v5802
      %v5984 = vunpack.c.l.b16 %v5816
      %v5985 = vunpack.c.l.b16 %v5826
      %v5986 = vunpack.c.l.b16 %v5840
      %v5987 = vunpack.c.l.b16 %v5850
      %v5988 = vunpack.c.l.b16 %v5864
      %v5989 = vunpack.c.l.b16 %v5874
      %v5990 = vunpack.c.l.b16 %v5888
      %v5991 = vunpack.c.l.b16 %v5898
      %v5992 = vunpack.c.l.b16 %v5912
      %v5993 = vunpack.c.l.b16 %v5922
      %v5994 = vunpack.c.l.b16 %v5936
      %v5995 = vunpack.c.l.b16 %v5946
      %v5996 = vpack.c.b16 %v5965, %v5964
      %v5997 = vpack.c.b16 %v5967, %v5966
      %v5998 = vpack.c.b16 %v5969, %v5968
      %v5999 = vpack.c.b16 %v5971, %v5970
      %v6000 = vpack.c.b16 %v5973, %v5972
      %v6001 = vpack.c.b16 %v5975, %v5974
      %v6002 = vpack.c.b16 %v5977, %v5976
      %v6003 = vpack.c.b16 %v5979, %v5978
      %v6004 = vpack.c.b16 %v5981, %v5980
      %v6005 = vpack.c.b16 %v5983, %v5982
      %v6006 = vpack.c.b16 %v5985, %v5984
      %v6007 = vpack.c.b16 %v5987, %v5986
      %v6008 = vpack.c.b16 %v5989, %v5988
      %v6009 = vpack.c.b16 %v5991, %v5990
      %v6010 = vpack.c.b16 %v5993, %v5992
      %v6011 = vpack.c.b16 %v5995, %v5994
      %v6044 = vunpack.c.l.b16 %v5948
      %v6045 = vunpack.c.l.b16 %v5949
      %v6046 = vunpack.c.l.b16 %v5950
      %v6047 = vunpack.c.l.b16 %v5951
      %v6048 = vunpack.c.l.b16 %v5952
      %v6049 = vunpack.c.l.b16 %v5953
      %v6050 = vunpack.c.l.b16 %v5954
      %v6051 = vunpack.c.l.b16 %v5955
      %v6052 = vunpack.c.l.b16 %v5956
      %v6053 = vunpack.c.l.b16 %v5957
      %v6054 = vunpack.c.l.b16 %v5958
      %v6055 = vunpack.c.l.b16 %v5959
      %v6056 = vunpack.c.l.b16 %v5960
      %v6057 = vunpack.c.l.b16 %v5961
      %v6058 = vunpack.c.l.b16 %v5962
      %v6059 = vunpack.c.l.b16 %v5963
      %v6060 = vpack.c.b16 %v6045, %v6044
      %v6061 = vpack.c.b16 %v6047, %v6046
      %v6062 = vpack.c.b16 %v6049, %v6048
      %v6063 = vpack.c.b16 %v6051, %v6050
      %v6064 = vpack.c.b16 %v6053, %v6052
      %v6065 = vpack.c.b16 %v6055, %v6054
      %v6066 = vpack.c.b16 %v6057, %v6056
      %v6067 = vpack.c.b16 %v6059, %v6058
      %6076 = vmatprep.subr.bf16.mxu0 0
      %6077 = vmatpush1.bf16.msra.mxu0 %v6060
      %6078 = vmatprep.subr.bf16.mxu0 0
      %6079 = vmatpush1.bf16.msra.mxu0 %v6061
      %6080 = vmatprep.subr.bf16.mxu0 0
      %6081 = vmatpush1.bf16.msra.mxu0 %v6062
      %6082 = vmatprep.subr.bf16.mxu0 0
      %6083 = vmatpush1.bf16.msra.mxu0 %v6063
      %6084 = vmatprep.subr.bf16.mxu0 0
      %6085 = vmatpush1.bf16.msra.mxu0 %v6064
      %6086 = vmatprep.subr.bf16.mxu0 0
      %6087 = vmatpush1.bf16.msra.mxu0 %v6065
      %6088 = vmatprep.subr.bf16.mxu0 0
      %6089 = vmatpush1.bf16.msra.mxu0 %v6066
      %6090 = vmatprep.subr.bf16.mxu0 0
      %6091 = vmatpush1.bf16.msra.mxu0 %v6067
      %6092 = vmatprep.subr.bf16.mxu0 0
      %6093 = vmatpush1.bf16.msra.mxu0 0
      %6094 = vmatprep.subr.bf16.mxu0 0
      %6095 = vmatpush1.bf16.msra.mxu0 0
      %6096 = vmatprep.subr.bf16.mxu0 0
      %6097 = vmatpush1.bf16.msra.mxu0 0
      %6098 = vmatprep.subr.bf16.mxu0 0
      %6099 = vmatpush1.bf16.msra.mxu0 0
      %6100 = vmatprep.subr.bf16.mxu0 0
      %6101 = vmatpush1.bf16.msra.mxu0 0
      %6102 = vmatprep.subr.bf16.mxu0 0
      %6103 = vmatpush1.bf16.msra.mxu0 0
      %6104 = vmatprep.subr.bf16.mxu0 0
      %6105 = vmatpush1.bf16.msra.mxu0 0
      %6106 = vmatprep.subr.bf16.mxu0 0
      %6107 = vmatpush1.bf16.msra.mxu0 0
      %6108 = vmatprep.mubr.bf16.mxu0 0
      %6109 = vmatmul.mubr.bf16.gmra.mrb[0].mxu0 %v5996
      %v6110 = vpop.f32.mrb[0].mxu0
      %v6111 = vadd.f32 0.0, %v6110
      %v6112 = vpop.f32.mrb[0].mxu0
      %v6113 = vpop.f32.mrb[0].mxu0
      %v6114 = vadd.f32 0.0, %v6113
      %v6115 = vpop.f32.mrb[0].mxu0
      %6116 = vmatprep.mubr.bf16.mxu0 0
      %6117 = vmatmul.mubr.bf16.gmra.mrb[0].mxu0 %v5997
      %v6118 = vpop.f32.mrb[0].mxu0
      %v6119 = vadd.f32 0.0, %v6118
      %v6120 = vpop.f32.mrb[0].mxu0
      %v6121 = vpop.f32.mrb[0].mxu0
      %v6122 = vadd.f32 0.0, %v6121
      %v6123 = vpop.f32.mrb[0].mxu0
      %6124 = vmatprep.mubr.bf16.mxu0 0
      %6125 = vmatmul.mubr.bf16.gmra.mrb[0].mxu0 %v5998
      %v6126 = vpop.f32.mrb[0].mxu0
      %v6127 = vadd.f32 0.0, %v6126
      %v6128 = vpop.f32.mrb[0].mxu0
      %v6129 = vpop.f32.mrb[0].mxu0
      %v6130 = vadd.f32 0.0, %v6129
      %v6131 = vpop.f32.mrb[0].mxu0
      %6132 = vmatprep.mubr.bf16.mxu0 0
      %6133 = vmatmul.mubr.bf16.gmra.mrb[0].mxu0 %v5999
      %v6134 = vpop.f32.mrb[0].mxu0
      %v6135 = vadd.f32 0.0, %v6134
      %v6136 = vpop.f32.mrb[0].mxu0
      %v6137 = vpop.f32.mrb[0].mxu0
      %v6138 = vadd.f32 0.0, %v6137
      %v6139 = vpop.f32.mrb[0].mxu0
      %6140 = vmatprep.mubr.bf16.mxu0 0
      %6141 = vmatmul.mubr.bf16.gmra.mrb[0].mxu0 %v6000
      %v6142 = vpop.f32.mrb[0].mxu0
      %v6143 = vadd.f32 0.0, %v6142
      %v6144 = vpop.f32.mrb[0].mxu0
      %v6145 = vpop.f32.mrb[0].mxu0
      %v6146 = vadd.f32 0.0, %v6145
      %v6147 = vpop.f32.mrb[0].mxu0
      %6148 = vmatprep.mubr.bf16.mxu0 0
      %6149 = vmatmul.mubr.bf16.gmra.mrb[0].mxu0 %v6001
      %v6150 = vpop.f32.mrb[0].mxu0
      %v6151 = vadd.f32 0.0, %v6150
      %v6152 = vpop.f32.mrb[0].mxu0
      %v6153 = vpop.f32.mrb[0].mxu0
      %v6154 = vadd.f32 0.0, %v6153
      %v6155 = vpop.f32.mrb[0].mxu0
      %6156 = vmatprep.mubr.bf16.mxu0 0
      %6157 = vmatmul.mubr.bf16.gmra.mrb[0].mxu0 %v6002
      %v6158 = vpop.f32.mrb[0].mxu0
      %v6159 = vadd.f32 0.0, %v6158
      %v6160 = vpop.f32.mrb[0].mxu0
      %v6161 = vpop.f32.mrb[0].mxu0
      %v6162 = vadd.f32 0.0, %v6161
      %v6163 = vpop.f32.mrb[0].mxu0
      %6164 = vmatprep.mubr.bf16.mxu0 0
      %6165 = vmatmul.mubr.bf16.gmra.mrb[0].mxu0 %v6003
      %v6166 = vpop.f32.mrb[0].mxu0
      %v6167 = vadd.f32 0.0, %v6166
      %v6168 = vpop.f32.mrb[0].mxu0
      %v6169 = vpop.f32.mrb[0].mxu0
      %v6170 = vadd.f32 0.0, %v6169
      %v6171 = vpop.f32.mrb[0].mxu0
      %6172 = vmatprep.mubr.bf16.mxu0 0
      %6173 = vmatmul.mubr.bf16.gmra.mrb[0].mxu0 %v6004
      %v6174 = vpop.f32.mrb[0].mxu0
      %v6175 = vadd.f32 0.0, %v6174
      %v6176 = vpop.f32.mrb[0].mxu0
      %v6177 = vpop.f32.mrb[0].mxu0
      %v6178 = vadd.f32 0.0, %v6177
      %v6179 = vpop.f32.mrb[0].mxu0
      %6180 = vmatprep.mubr.bf16.mxu0 0
      %6181 = vmatmul.mubr.bf16.gmra.mrb[0].mxu0 %v6005
      %v6182 = vpop.f32.mrb[0].mxu0
      %v6183 = vadd.f32 0.0, %v6182
      %v6184 = vpop.f32.mrb[0].mxu0
      %v6185 = vpop.f32.mrb[0].mxu0
      %v6186 = vadd.f32 0.0, %v6185
      %v6187 = vpop.f32.mrb[0].mxu0
      %6188 = vmatprep.mubr.bf16.mxu0 0
      %6189 = vmatmul.mubr.bf16.gmra.mrb[0].mxu0 %v6006
      %v6190 = vpop.f32.mrb[0].mxu0
      %v6191 = vadd.f32 0.0, %v6190
      %v6192 = vpop.f32.mrb[0].mxu0
      %v6193 = vpop.f32.mrb[0].mxu0
      %v6194 = vadd.f32 0.0, %v6193
      %v6195 = vpop.f32.mrb[0].mxu0
      %6196 = vmatprep.mubr.bf16.mxu0 0
      %6197 = vmatmul.mubr.bf16.gmra.mrb[0].mxu0 %v6007
      %v6198 = vpop.f32.mrb[0].mxu0
      %v6199 = vadd.f32 0.0, %v6198
      %v6200 = vpop.f32.mrb[0].mxu0
      %v6201 = vpop.f32.mrb[0].mxu0
      %v6202 = vadd.f32 0.0, %v6201
      %v6203 = vpop.f32.mrb[0].mxu0
      %6204 = vmatprep.mubr.bf16.mxu0 0
      %6205 = vmatmul.mubr.bf16.gmra.mrb[0].mxu0 %v6008
      %v6206 = vpop.f32.mrb[0].mxu0
      %v6207 = vadd.f32 0.0, %v6206
      %v6208 = vpop.f32.mrb[0].mxu0
      %v6209 = vpop.f32.mrb[0].mxu0
      %v6210 = vadd.f32 0.0, %v6209
      %v6211 = vpop.f32.mrb[0].mxu0
      %6212 = vmatprep.mubr.bf16.mxu0 0
      %6213 = vmatmul.mubr.bf16.gmra.mrb[0].mxu0 %v6009
      %v6214 = vpop.f32.mrb[0].mxu0
      %v6215 = vadd.f32 0.0, %v6214
      %v6216 = vpop.f32.mrb[0].mxu0
      %v6217 = vpop.f32.mrb[0].mxu0
      %v6218 = vadd.f32 0.0, %v6217
      %v6219 = vpop.f32.mrb[0].mxu0
      %6220 = vmatprep.mubr.bf16.mxu0 0
      %6221 = vmatmul.mubr.bf16.gmra.mrb[0].mxu0 %v6010
      %v6222 = vpop.f32.mrb[0].mxu0
      %v6223 = vadd.f32 0.0, %v6222
      %v6224 = vpop.f32.mrb[0].mxu0
      %v6225 = vpop.f32.mrb[0].mxu0
      %v6226 = vadd.f32 0.0, %v6225
      %v6227 = vpop.f32.mrb[0].mxu0
      %6228 = vmatprep.mubr.bf16.mxu0 0
      %6229 = vmatmul.mubr.bf16.gmra.mrb[0].mxu0 %v6011
      %v6230 = vpop.f32.mrb[0].mxu0
      %v6231 = vadd.f32 0.0, %v6230
      %v6232 = vpop.f32.mrb[0].mxu0
      %v6233 = vpop.f32.mrb[0].mxu0
      %v6234 = vadd.f32 0.0, %v6233
      %v6235 = vpop.f32.mrb[0].mxu0
      %6236 = vdwg.mxu0
      %v6237 = vadd.f32 %v5483, %v6111
      %v6238 = vadd.f32 %v5484, %v6114
      %v6239 = vadd.f32 %v5485, %v6119
      %v6240 = vadd.f32 %v5486, %v6122
      %v6241 = vadd.f32 %v5487, %v6127
      %v6242 = vadd.f32 %v5488, %v6130
      %v6243 = vadd.f32 %v5489, %v6135
      %v6244 = vadd.f32 %v5490, %v6138
      %v6245 = vadd.f32 %v5491, %v6143
      %v6246 = vadd.f32 %v5492, %v6146
      %v6247 = vadd.f32 %v5493, %v6151
      %v6248 = vadd.f32 %v5494, %v6154
      %v6249 = vadd.f32 %v5495, %v6159
      %v6250 = vadd.f32 %v5496, %v6162
      %v6251 = vadd.f32 %v5497, %v6167
      %v6252 = vadd.f32 %v5498, %v6170
      %v6253 = vadd.f32 %v5499, %v6175
      %v6254 = vadd.f32 %v5500, %v6178
      %v6255 = vadd.f32 %v5501, %v6183
      %v6256 = vadd.f32 %v5502, %v6186
      %v6257 = vadd.f32 %v5503, %v6191
      %v6258 = vadd.f32 %v5504, %v6194
      %v6259 = vadd.f32 %v5505, %v6199
      %v6260 = vadd.f32 %v5506, %v6202
      %v6261 = vadd.f32 %v5507, %v6207
      %v6262 = vadd.f32 %v5508, %v6210
      %v6263 = vadd.f32 %v5509, %v6215
      %v6264 = vadd.f32 %v5510, %v6218
      %v6265 = vadd.f32 %v5511, %v6223
      %v6266 = vadd.f32 %v5512, %v6226
      %v6267 = vadd.f32 %v5513, %v6231
      %v6268 = vadd.f32 %v5514, %v6234
      %v6269 = vld [vmem:[%s3486] sm:$0xe]
      %v6270 = vld [vmem:[%s3486 + $0xc] sm:$0xe]
      %v6271 = vld [vmem:[%s3486 + $0x18] sm:$0xe]
      %v6272 = vld [vmem:[%s3486 + $0x24] sm:$0xe]
      %v6273 = vld [vmem:[%s3486 + $0x30] sm:$0xe]
      %v6274 = vld [vmem:[%s3486 + $0x3c] sm:$0xe]
      %v6275 = vld [vmem:[%s3486 + $0x48] sm:$0xe]
      %v6276 = vld [vmem:[%s3486 + $0x54] sm:$0xe]
      %v6277 = vld [vmem:[%s3486 + $0x60] sm:$0xe]
      %v6278 = vld [vmem:[%s3486 + $0x6c] sm:$0xe]
      %v6279 = vld [vmem:[%s3486 + $0x78] sm:$0xe]
      %v6280 = vld [vmem:[%s3486 + $0x84] sm:$0xe]
      %v6281 = vld [vmem:[%s3486 + $0x90] sm:$0xe]
      %v6282 = vld [vmem:[%s3486 + $0x9c] sm:$0xe]
      %v6283 = vld [vmem:[%s3486 + $0xa8] sm:$0xe]
      %v6284 = vld [vmem:[%s3486 + $0xb4] sm:$0xe]
      %v6333 = vrot.slane %v6269, 5
      %v6334 = vrot.slane %v6333, 4
      %v6335 = vrot.slane %v5516, 5
      %v6336 = vsel %vm1243, %v6334, %v6335
      %v6337 = vrot.slane %v6335, 4
      %v6338 = vrot.slane %v5517, 5
      %v6339 = vsel %vm1243, %v6337, %v6338
      %v6340 = vrot.slane %v6270, 5
      %v6341 = vrot.slane %v6340, 4
      %v6342 = vrot.slane %v5519, 5
      %v6343 = vsel %vm1243, %v6341, %v6342
      %v6344 = vrot.slane %v6342, 4
      %v6345 = vrot.slane %v5520, 5
      %v6346 = vsel %vm1243, %v6344, %v6345
      %v6347 = vrot.slane %v6271, 5
      %v6348 = vrot.slane %v6347, 4
      %v6349 = vrot.slane %v5522, 5
      %v6350 = vsel %vm1243, %v6348, %v6349
      %v6351 = vrot.slane %v6349, 4
      %v6352 = vrot.slane %v5523, 5
      %v6353 = vsel %vm1243, %v6351, %v6352
      %v6354 = vrot.slane %v6272, 5
      %v6355 = vrot.slane %v6354, 4
      %v6356 = vrot.slane %v5525, 5
      %v6357 = vsel %vm1243, %v6355, %v6356
      %v6358 = vrot.slane %v6356, 4
      %v6359 = vrot.slane %v5526, 5
      %v6360 = vsel %vm1243, %v6358, %v6359
      %v6361 = vrot.slane %v6273, 5
      %v6362 = vrot.slane %v6361, 4
      %v6363 = vrot.slane %v5528, 5
      %v6364 = vsel %vm1243, %v6362, %v6363
      %v6365 = vrot.slane %v6363, 4
      %v6366 = vrot.slane %v5529, 5
      %v6367 = vsel %vm1243, %v6365, %v6366
      %v6368 = vrot.slane %v6274, 5
      %v6369 = vrot.slane %v6368, 4
      %v6370 = vrot.slane %v5531, 5
      %v6371 = vsel %vm1243, %v6369, %v6370
      %v6372 = vrot.slane %v6370, 4
      %v6373 = vrot.slane %v5532, 5
      %v6374 = vsel %vm1243, %v6372, %v6373
      %v6375 = vrot.slane %v6275, 5
      %v6376 = vrot.slane %v6375, 4
      %v6377 = vrot.slane %v5534, 5
      %v6378 = vsel %vm1243, %v6376, %v6377
      %v6379 = vrot.slane %v6377, 4
      %v6380 = vrot.slane %v5535, 5
      %v6381 = vsel %vm1243, %v6379, %v6380
      %v6382 = vrot.slane %v6276, 5
      %v6383 = vrot.slane %v6382, 4
      %v6384 = vrot.slane %v5537, 5
      %v6385 = vsel %vm1243, %v6383, %v6384
      %v6386 = vrot.slane %v6384, 4
      %v6387 = vrot.slane %v5538, 5
      %v6388 = vsel %vm1243, %v6386, %v6387
      %v6389 = vrot.slane %v6277, 5
      %v6390 = vrot.slane %v6389, 4
      %v6391 = vrot.slane %v5540, 5
      %v6392 = vsel %vm1243, %v6390, %v6391
      %v6393 = vrot.slane %v6391, 4
      %v6394 = vrot.slane %v5541, 5
      %v6395 = vsel %vm1243, %v6393, %v6394
      %v6396 = vrot.slane %v6278, 5
      %v6397 = vrot.slane %v6396, 4
      %v6398 = vrot.slane %v5543, 5
      %v6399 = vsel %vm1243, %v6397, %v6398
      %v6400 = vrot.slane %v6398, 4
      %v6401 = vrot.slane %v5544, 5
      %v6402 = vsel %vm1243, %v6400, %v6401
      %v6403 = vrot.slane %v6279, 5
      %v6404 = vrot.slane %v6403, 4
      %v6405 = vrot.slane %v5546, 5
      %v6406 = vsel %vm1243, %v6404, %v6405
      %v6407 = vrot.slane %v6405, 4
      %v6408 = vrot.slane %v5547, 5
      %v6409 = vsel %vm1243, %v6407, %v6408
      %v6410 = vrot.slane %v6280, 5
      %v6411 = vrot.slane %v6410, 4
      %v6412 = vrot.slane %v5549, 5
      %v6413 = vsel %vm1243, %v6411, %v6412
      %v6414 = vrot.slane %v6412, 4
      %v6415 = vrot.slane %v5550, 5
      %v6416 = vsel %vm1243, %v6414, %v6415
      %v6417 = vrot.slane %v6281, 5
      %v6418 = vrot.slane %v6417, 4
      %v6419 = vrot.slane %v5552, 5
      %v6420 = vsel %vm1243, %v6418, %v6419
      %v6421 = vrot.slane %v6419, 4
      %v6422 = vrot.slane %v5553, 5
      %v6423 = vsel %vm1243, %v6421, %v6422
      %v6424 = vrot.slane %v6282, 5
      %v6425 = vrot.slane %v6424, 4
      %v6426 = vrot.slane %v5555, 5
      %v6427 = vsel %vm1243, %v6425, %v6426
      %v6428 = vrot.slane %v6426, 4
      %v6429 = vrot.slane %v5556, 5
      %v6430 = vsel %vm1243, %v6428, %v6429
      %v6431 = vrot.slane %v6283, 5
      %v6432 = vrot.slane %v6431, 4
      %v6433 = vrot.slane %v5558, 5
      %v6434 = vsel %vm1243, %v6432, %v6433
      %v6435 = vrot.slane %v6433, 4
      %v6436 = vrot.slane %v5559, 5
      %v6437 = vsel %vm1243, %v6435, %v6436
      %v6438 = vrot.slane %v6284, 5
      %v6439 = vrot.slane %v6438, 4
      %v6440 = vrot.slane %v5561, 5
      %v6441 = vsel %vm1243, %v6439, %v6440
      %v6442 = vrot.slane %v6440, 4
      %v6443 = vrot.slane %v5562, 5
      %v6444 = vsel %vm1243, %v6442, %v6443
      %s6445 = scalar_lea.vmem %s3, 320
      %v6446 = vld [vmem:[%s6445] sm:$0xf]
      %v6447 = vld [vmem:[%s6445 + $0x4] sm:$0xf]
      %v6448 = vld [vmem:[%s6445 + $0x8] sm:$0xf]
      %v6449 = vld [vmem:[%s6445 + $0xc] sm:$0xf]
      %v6450 = vld [vmem:[%s6445 + $0x10] sm:$0xf]
      %v6451 = vld [vmem:[%s6445 + $0x14] sm:$0xf]
      %v6452 = vld [vmem:[%s6445 + $0x18] sm:$0xf]
      %v6453 = vld [vmem:[%s6445 + $0x1c] sm:$0xf]
      %v6454 = vld [vmem:[%s6445 + $0x20] sm:$0xf]
      %v6455 = vld [vmem:[%s6445 + $0x24] sm:$0xf]
      %v6456 = vld [vmem:[%s6445 + $0x28] sm:$0xf]
      %v6457 = vld [vmem:[%s6445 + $0x2c] sm:$0xf]
      %v6458 = vld [vmem:[%s6445 + $0x30] sm:$0xf]
      %v6459 = vld [vmem:[%s6445 + $0x34] sm:$0xf]
      %v6460 = vld [vmem:[%s6445 + $0x38] sm:$0xf]
      %v6461 = vld [vmem:[%s6445 + $0x3c] sm:$0xf]
      %v6462 = vunpack.c.l.b16 %v6336
      %v6463 = vunpack.c.l.b16 %v6339
      %v6464 = vunpack.c.l.b16 %v6343
      %v6465 = vunpack.c.l.b16 %v6346
      %v6466 = vunpack.c.l.b16 %v6350
      %v6467 = vunpack.c.l.b16 %v6353
      %v6468 = vunpack.c.l.b16 %v6357
      %v6469 = vunpack.c.l.b16 %v6360
      %v6470 = vunpack.c.l.b16 %v6364
      %v6471 = vunpack.c.l.b16 %v6367
      %v6472 = vunpack.c.l.b16 %v6371
      %v6473 = vunpack.c.l.b16 %v6374
      %v6474 = vunpack.c.l.b16 %v6378
      %v6475 = vunpack.c.l.b16 %v6381
      %v6476 = vunpack.c.l.b16 %v6385
      %v6477 = vunpack.c.l.b16 %v6388
      %v6478 = vunpack.c.l.b16 %v6392
      %v6479 = vunpack.c.l.b16 %v6395
      %v6480 = vunpack.c.l.b16 %v6399
      %v6481 = vunpack.c.l.b16 %v6402
      %v6482 = vunpack.c.l.b16 %v6406
      %v6483 = vunpack.c.l.b16 %v6409
      %v6484 = vunpack.c.l.b16 %v6413
      %v6485 = vunpack.c.l.b16 %v6416
      %v6486 = vunpack.c.l.b16 %v6420
      %v6487 = vunpack.c.l.b16 %v6423
      %v6488 = vunpack.c.l.b16 %v6427
      %v6489 = vunpack.c.l.b16 %v6430
      %v6490 = vunpack.c.l.b16 %v6434
      %v6491 = vunpack.c.l.b16 %v6437
      %v6492 = vunpack.c.l.b16 %v6441
      %v6493 = vunpack.c.l.b16 %v6444
      %v6494 = vpack.c.b16 %v6463, %v6462
      %v6495 = vpack.c.b16 %v6465, %v6464
      %v6496 = vpack.c.b16 %v6467, %v6466
      %v6497 = vpack.c.b16 %v6469, %v6468
      %v6498 = vpack.c.b16 %v6471, %v6470
      %v6499 = vpack.c.b16 %v6473, %v6472
      %v6500 = vpack.c.b16 %v6475, %v6474
      %v6501 = vpack.c.b16 %v6477, %v6476
      %v6502 = vpack.c.b16 %v6479, %v6478
      %v6503 = vpack.c.b16 %v6481, %v6480
      %v6504 = vpack.c.b16 %v6483, %v6482
      %v6505 = vpack.c.b16 %v6485, %v6484
      %v6506 = vpack.c.b16 %v6487, %v6486
      %v6507 = vpack.c.b16 %v6489, %v6488
      %v6508 = vpack.c.b16 %v6491, %v6490
      %v6509 = vpack.c.b16 %v6493, %v6492
      %v6542 = vunpack.c.l.b16 %v6446
      %v6543 = vunpack.c.l.b16 %v6447
      %v6544 = vunpack.c.l.b16 %v6448
      %v6545 = vunpack.c.l.b16 %v6449
      %v6546 = vunpack.c.l.b16 %v6450
      %v6547 = vunpack.c.l.b16 %v6451
      %v6548 = vunpack.c.l.b16 %v6452
      %v6549 = vunpack.c.l.b16 %v6453
      %v6550 = vunpack.c.l.b16 %v6454
      %v6551 = vunpack.c.l.b16 %v6455
      %v6552 = vunpack.c.l.b16 %v6456
      %v6553 = vunpack.c.l.b16 %v6457
      %v6554 = vunpack.c.l.b16 %v6458
      %v6555 = vunpack.c.l.b16 %v6459
      %v6556 = vunpack.c.l.b16 %v6460
      %v6557 = vunpack.c.l.b16 %v6461
      %v6558 = vpack.c.b16 %v6543, %v6542
      %v6559 = vpack.c.b16 %v6545, %v6544
      %v6560 = vpack.c.b16 %v6547, %v6546
      %v6561 = vpack.c.b16 %v6549, %v6548
      %v6562 = vpack.c.b16 %v6551, %v6550
      %v6563 = vpack.c.b16 %v6553, %v6552
      %v6564 = vpack.c.b16 %v6555, %v6554
      %v6565 = vpack.c.b16 %v6557, %v6556
      %6574 = vmatprep.subr.bf16.mxu0 0
      %6575 = vmatpush1.bf16.msra.mxu0 %v6558
      %6576 = vmatprep.subr.bf16.mxu0 0
      %6577 = vmatpush1.bf16.msra.mxu0 %v6559
      %6578 = vmatprep.subr.bf16.mxu0 0
      %6579 = vmatpush1.bf16.msra.mxu0 %v6560
      %6580 = vmatprep.subr.bf16.mxu0 0
      %6581 = vmatpush1.bf16.msra.mxu0 %v6561
      %6582 = vmatprep.subr.bf16.mxu0 0
      %6583 = vmatpush1.bf16.msra.mxu0 %v6562
      %6584 = vmatprep.subr.bf16.mxu0 0
      %6585 = vmatpush1.bf16.msra.mxu0 %v6563
      %6586 = vmatprep.subr.bf16.mxu0 0
      %6587 = vmatpush1.bf16.msra.mxu0 %v6564
      %6588 = vmatprep.subr.bf16.mxu0 0
      %6589 = vmatpush1.bf16.msra.mxu0 %v6565
      %6590 = vmatprep.subr.bf16.mxu0 0
      %6591 = vmatpush1.bf16.msra.mxu0 0
      %6592 = vmatprep.subr.bf16.mxu0 0
      %6593 = vmatpush1.bf16.msra.mxu0 0
      %6594 = vmatprep.subr.bf16.mxu0 0
      %6595 = vmatpush1.bf16.msra.mxu0 0
      %6596 = vmatprep.subr.bf16.mxu0 0
      %6597 = vmatpush1.bf16.msra.mxu0 0
      %6598 = vmatprep.subr.bf16.mxu0 0
      %6599 = vmatpush1.bf16.msra.mxu0 0
      %6600 = vmatprep.subr.bf16.mxu0 0
      %6601 = vmatpush1.bf16.msra.mxu0 0
      %6602 = vmatprep.subr.bf16.mxu0 0
      %6603 = vmatpush1.bf16.msra.mxu0 0
      %6604 = vmatprep.subr.bf16.mxu0 0
      %6605 = vmatpush1.bf16.msra.mxu0 0
      %6606 = vmatprep.mubr.bf16.mxu0 0
      %6607 = vmatmul.mubr.bf16.gmra.mrb[0].mxu0 %v6494
      %v6608 = vpop.f32.mrb[0].mxu0
      %v6609 = vadd.f32 0.0, %v6608
      %v6610 = vpop.f32.mrb[0].mxu0
      %v6611 = vpop.f32.mrb[0].mxu0
      %v6612 = vadd.f32 0.0, %v6611
      %v6613 = vpop.f32.mrb[0].mxu0
      %6614 = vmatprep.mubr.bf16.mxu0 0
      %6615 = vmatmul.mubr.bf16.gmra.mrb[0].mxu0 %v6495
      %v6616 = vpop.f32.mrb[0].mxu0
      %v6617 = vadd.f32 0.0, %v6616
      %v6618 = vpop.f32.mrb[0].mxu0
      %v6619 = vpop.f32.mrb[0].mxu0
      %v6620 = vadd.f32 0.0, %v6619
      %v6621 = vpop.f32.mrb[0].mxu0
      %6622 = vmatprep.mubr.bf16.mxu0 0
      %6623 = vmatmul.mubr.bf16.gmra.mrb[0].mxu0 %v6496
      %v6624 = vpop.f32.mrb[0].mxu0
      %v6625 = vadd.f32 0.0, %v6624
      %v6626 = vpop.f32.mrb[0].mxu0
      %v6627 = vpop.f32.mrb[0].mxu0
      %v6628 = vadd.f32 0.0, %v6627
      %v6629 = vpop.f32.mrb[0].mxu0
      %6630 = vmatprep.mubr.bf16.mxu0 0
      %6631 = vmatmul.mubr.bf16.gmra.mrb[0].mxu0 %v6497
      %v6632 = vpop.f32.mrb[0].mxu0
      %v6633 = vadd.f32 0.0, %v6632
      %v6634 = vpop.f32.mrb[0].mxu0
      %v6635 = vpop.f32.mrb[0].mxu0
      %v6636 = vadd.f32 0.0, %v6635
      %v6637 = vpop.f32.mrb[0].mxu0
      %6638 = vmatprep.mubr.bf16.mxu0 0
      %6639 = vmatmul.mubr.bf16.gmra.mrb[0].mxu0 %v6498
      %v6640 = vpop.f32.mrb[0].mxu0
      %v6641 = vadd.f32 0.0, %v6640
      %v6642 = vpop.f32.mrb[0].mxu0
      %v6643 = vpop.f32.mrb[0].mxu0
      %v6644 = vadd.f32 0.0, %v6643
      %v6645 = vpop.f32.mrb[0].mxu0
      %6646 = vmatprep.mubr.bf16.mxu0 0
      %6647 = vmatmul.mubr.bf16.gmra.mrb[0].mxu0 %v6499
      %v6648 = vpop.f32.mrb[0].mxu0
      %v6649 = vadd.f32 0.0, %v6648
      %v6650 = vpop.f32.mrb[0].mxu0
      %v6651 = vpop.f32.mrb[0].mxu0
      %v6652 = vadd.f32 0.0, %v6651
      %v6653 = vpop.f32.mrb[0].mxu0
      %6654 = vmatprep.mubr.bf16.mxu0 0
      %6655 = vmatmul.mubr.bf16.gmra.mrb[0].mxu0 %v6500
      %v6656 = vpop.f32.mrb[0].mxu0
      %v6657 = vadd.f32 0.0, %v6656
      %v6658 = vpop.f32.mrb[0].mxu0
      %v6659 = vpop.f32.mrb[0].mxu0
      %v6660 = vadd.f32 0.0, %v6659
      %v6661 = vpop.f32.mrb[0].mxu0
      %6662 = vmatprep.mubr.bf16.mxu0 0
      %6663 = vmatmul.mubr.bf16.gmra.mrb[0].mxu0 %v6501
      %v6664 = vpop.f32.mrb[0].mxu0
      %v6665 = vadd.f32 0.0, %v6664
      %v6666 = vpop.f32.mrb[0].mxu0
      %v6667 = vpop.f32.mrb[0].mxu0
      %v6668 = vadd.f32 0.0, %v6667
      %v6669 = vpop.f32.mrb[0].mxu0
      %6670 = vmatprep.mubr.bf16.mxu0 0
      %6671 = vmatmul.mubr.bf16.gmra.mrb[0].mxu0 %v6502
      %v6672 = vpop.f32.mrb[0].mxu0
      %v6673 = vadd.f32 0.0, %v6672
      %v6674 = vpop.f32.mrb[0].mxu0
      %v6675 = vpop.f32.mrb[0].mxu0
      %v6676 = vadd.f32 0.0, %v6675
      %v6677 = vpop.f32.mrb[0].mxu0
      %6678 = vmatprep.mubr.bf16.mxu0 0
      %6679 = vmatmul.mubr.bf16.gmra.mrb[0].mxu0 %v6503
      %v6680 = vpop.f32.mrb[0].mxu0
      %v6681 = vadd.f32 0.0, %v6680
      %v6682 = vpop.f32.mrb[0].mxu0
      %v6683 = vpop.f32.mrb[0].mxu0
      %v6684 = vadd.f32 0.0, %v6683
      %v6685 = vpop.f32.mrb[0].mxu0
      %6686 = vmatprep.mubr.bf16.mxu0 0
      %6687 = vmatmul.mubr.bf16.gmra.mrb[0].mxu0 %v6504
      %v6688 = vpop.f32.mrb[0].mxu0
      %v6689 = vadd.f32 0.0, %v6688
      %v6690 = vpop.f32.mrb[0].mxu0
      %v6691 = vpop.f32.mrb[0].mxu0
      %v6692 = vadd.f32 0.0, %v6691
      %v6693 = vpop.f32.mrb[0].mxu0
      %6694 = vmatprep.mubr.bf16.mxu0 0
      %6695 = vmatmul.mubr.bf16.gmra.mrb[0].mxu0 %v6505
      %v6696 = vpop.f32.mrb[0].mxu0
      %v6697 = vadd.f32 0.0, %v6696
      %v6698 = vpop.f32.mrb[0].mxu0
      %v6699 = vpop.f32.mrb[0].mxu0
      %v6700 = vadd.f32 0.0, %v6699
      %v6701 = vpop.f32.mrb[0].mxu0
      %6702 = vmatprep.mubr.bf16.mxu0 0
      %6703 = vmatmul.mubr.bf16.gmra.mrb[0].mxu0 %v6506
      %v6704 = vpop.f32.mrb[0].mxu0
      %v6705 = vadd.f32 0.0, %v6704
      %v6706 = vpop.f32.mrb[0].mxu0
      %v6707 = vpop.f32.mrb[0].mxu0
      %v6708 = vadd.f32 0.0, %v6707
      %v6709 = vpop.f32.mrb[0].mxu0
      %6710 = vmatprep.mubr.bf16.mxu0 0
      %6711 = vmatmul.mubr.bf16.gmra.mrb[0].mxu0 %v6507
      %v6712 = vpop.f32.mrb[0].mxu0
      %v6713 = vadd.f32 0.0, %v6712
      %v6714 = vpop.f32.mrb[0].mxu0
      %v6715 = vpop.f32.mrb[0].mxu0
      %v6716 = vadd.f32 0.0, %v6715
      %v6717 = vpop.f32.mrb[0].mxu0
      %6718 = vmatprep.mubr.bf16.mxu0 0
      %6719 = vmatmul.mubr.bf16.gmra.mrb[0].mxu0 %v6508
      %v6720 = vpop.f32.mrb[0].mxu0
      %v6721 = vadd.f32 0.0, %v6720
      %v6722 = vpop.f32.mrb[0].mxu0
      %v6723 = vpop.f32.mrb[0].mxu0
      %v6724 = vadd.f32 0.0, %v6723
      %v6725 = vpop.f32.mrb[0].mxu0
      %6726 = vmatprep.mubr.bf16.mxu0 0
      %6727 = vmatmul.mubr.bf16.gmra.mrb[0].mxu0 %v6509
      %v6728 = vpop.f32.mrb[0].mxu0
      %v6729 = vadd.f32 0.0, %v6728
      %v6730 = vpop.f32.mrb[0].mxu0
      %v6731 = vpop.f32.mrb[0].mxu0
      %v6732 = vadd.f32 0.0, %v6731
      %v6733 = vpop.f32.mrb[0].mxu0
      %6734 = vdwg.mxu0
      %v6735 = vadd.f32 %v6237, %v6609
      %v6736 = vadd.f32 %v6238, %v6612
      %v6737 = vadd.f32 %v6239, %v6617
      %v6738 = vadd.f32 %v6240, %v6620
      %v6739 = vadd.f32 %v6241, %v6625
      %v6740 = vadd.f32 %v6242, %v6628
      %v6741 = vadd.f32 %v6243, %v6633
      %v6742 = vadd.f32 %v6244, %v6636
      %v6743 = vadd.f32 %v6245, %v6641
      %v6744 = vadd.f32 %v6246, %v6644
      %v6745 = vadd.f32 %v6247, %v6649
      %v6746 = vadd.f32 %v6248, %v6652
      %v6747 = vadd.f32 %v6249, %v6657
      %v6748 = vadd.f32 %v6250, %v6660
      %v6749 = vadd.f32 %v6251, %v6665
      %v6750 = vadd.f32 %v6252, %v6668
      %v6751 = vadd.f32 %v6253, %v6673
      %v6752 = vadd.f32 %v6254, %v6676
      %v6753 = vadd.f32 %v6255, %v6681
      %v6754 = vadd.f32 %v6256, %v6684
      %v6755 = vadd.f32 %v6257, %v6689
      %v6756 = vadd.f32 %v6258, %v6692
      %v6757 = vadd.f32 %v6259, %v6697
      %v6758 = vadd.f32 %v6260, %v6700
      %v6759 = vadd.f32 %v6261, %v6705
      %v6760 = vadd.f32 %v6262, %v6708
      %v6761 = vadd.f32 %v6263, %v6713
      %v6762 = vadd.f32 %v6264, %v6716
      %v6763 = vadd.f32 %v6265, %v6721
      %v6764 = vadd.f32 %v6266, %v6724
      %v6765 = vadd.f32 %v6267, %v6729
      %v6766 = vadd.f32 %v6268, %v6732
      %s6767 = scalar_lea.vmem [#allocation2], 24
      %v6768 = vld [vmem:[%s6767] sm:$0xf]
      %v6769 = vld [vmem:[%s6767 + $0x4] sm:$0xf]
      %v6770 = vld [vmem:[%s6767 + $0xc] sm:$0xf]
      %v6771 = vld [vmem:[%s6767 + $0x10] sm:$0xf]
      %v6772 = vld [vmem:[%s6767 + $0x18] sm:$0xf]
      %v6773 = vld [vmem:[%s6767 + $0x1c] sm:$0xf]
      %v6774 = vld [vmem:[%s6767 + $0x24] sm:$0xf]
      %v6775 = vld [vmem:[%s6767 + $0x28] sm:$0xf]
      %v6776 = vld [vmem:[%s6767 + $0x30] sm:$0xf]
      %v6777 = vld [vmem:[%s6767 + $0x34] sm:$0xf]
      %v6778 = vld [vmem:[%s6767 + $0x3c] sm:$0xf]
      %v6779 = vld [vmem:[%s6767 + $0x40] sm:$0xf]
      %v6780 = vld [vmem:[%s6767 + $0x48] sm:$0xf]
      %v6781 = vld [vmem:[%s6767 + $0x4c] sm:$0xf]
      %v6782 = vld [vmem:[%s6767 + $0x54] sm:$0xf]
      %v6783 = vld [vmem:[%s6767 + $0x58] sm:$0xf]
      %v6784 = vld [vmem:[%s6767 + $0x60] sm:$0xf]
      %v6785 = vld [vmem:[%s6767 + $0x64] sm:$0xf]
      %v6786 = vld [vmem:[%s6767 + $0x6c] sm:$0xf]
      %v6787 = vld [vmem:[%s6767 + $0x70] sm:$0xf]
      %v6788 = vld [vmem:[%s6767 + $0x78] sm:$0xf]
      %v6789 = vld [vmem:[%s6767 + $0x7c] sm:$0xf]
      %v6790 = vld [vmem:[%s6767 + $0x84] sm:$0xf]
      %v6791 = vld [vmem:[%s6767 + $0x88] sm:$0xf]
      %v6792 = vld [vmem:[%s6767 + $0x90] sm:$0xf]
      %v6793 = vld [vmem:[%s6767 + $0x94] sm:$0xf]
      %v6794 = vld [vmem:[%s6767 + $0x9c] sm:$0xf]
      %v6795 = vld [vmem:[%s6767 + $0xa0] sm:$0xf]
      %v6796 = vld [vmem:[%s6767 + $0xa8] sm:$0xf]
      %v6797 = vld [vmem:[%s6767 + $0xac] sm:$0xf]
      %v6798 = vld [vmem:[%s6767 + $0xb4] sm:$0xf]
      %v6799 = vld [vmem:[%s6767 + $0xb8] sm:$0xf]
      %s6800 = scalar_lea.vmem %s3, 384
      %v6801 = vld [vmem:[%s6800] sm:$0xf]
      %v6802 = vld [vmem:[%s6800 + $0x4] sm:$0xf]
      %v6803 = vld [vmem:[%s6800 + $0x8] sm:$0xf]
      %v6804 = vld [vmem:[%s6800 + $0xc] sm:$0xf]
      %v6805 = vld [vmem:[%s6800 + $0x10] sm:$0xf]
      %v6806 = vld [vmem:[%s6800 + $0x14] sm:$0xf]
      %v6807 = vld [vmem:[%s6800 + $0x18] sm:$0xf]
      %v6808 = vld [vmem:[%s6800 + $0x1c] sm:$0xf]
      %v6809 = vld [vmem:[%s6800 + $0x20] sm:$0xf]
      %v6810 = vld [vmem:[%s6800 + $0x24] sm:$0xf]
      %v6811 = vld [vmem:[%s6800 + $0x28] sm:$0xf]
      %v6812 = vld [vmem:[%s6800 + $0x2c] sm:$0xf]
      %v6813 = vld [vmem:[%s6800 + $0x30] sm:$0xf]
      %v6814 = vld [vmem:[%s6800 + $0x34] sm:$0xf]
      %v6815 = vld [vmem:[%s6800 + $0x38] sm:$0xf]
      %v6816 = vld [vmem:[%s6800 + $0x3c] sm:$0xf]
      %v6849 = vunpack.c.l.b16 %v6768
      %v6850 = vunpack.c.l.b16 %v6769
      %v6851 = vunpack.c.l.b16 %v6770
      %v6852 = vunpack.c.l.b16 %v6771
      %v6853 = vunpack.c.l.b16 %v6772
      %v6854 = vunpack.c.l.b16 %v6773
      %v6855 = vunpack.c.l.b16 %v6774
      %v6856 = vunpack.c.l.b16 %v6775
      %v6857 = vunpack.c.l.b16 %v6776
      %v6858 = vunpack.c.l.b16 %v6777
      %v6859 = vunpack.c.l.b16 %v6778
      %v6860 = vunpack.c.l.b16 %v6779
      %v6861 = vunpack.c.l.b16 %v6780
      %v6862 = vunpack.c.l.b16 %v6781
      %v6863 = vunpack.c.l.b16 %v6782
      %v6864 = vunpack.c.l.b16 %v6783
      %v6865 = vunpack.c.l.b16 %v6784
      %v6866 = vunpack.c.l.b16 %v6785
      %v6867 = vunpack.c.l.b16 %v6786
      %v6868 = vunpack.c.l.b16 %v6787
      %v6869 = vunpack.c.l.b16 %v6788
      %v6870 = vunpack.c.l.b16 %v6789
      %v6871 = vunpack.c.l.b16 %v6790
      %v6872 = vunpack.c.l.b16 %v6791
      %v6873 = vunpack.c.l.b16 %v6792
      %v6874 = vunpack.c.l.b16 %v6793
      %v6875 = vunpack.c.l.b16 %v6794
      %v6876 = vunpack.c.l.b16 %v6795
      %v6877 = vunpack.c.l.b16 %v6796
      %v6878 = vunpack.c.l.b16 %v6797
      %v6879 = vunpack.c.l.b16 %v6798
      %v6880 = vunpack.c.l.b16 %v6799
      %v6881 = vpack.c.b16 %v6850, %v6849
      %v6882 = vpack.c.b16 %v6852, %v6851
      %v6883 = vpack.c.b16 %v6854, %v6853
      %v6884 = vpack.c.b16 %v6856, %v6855
      %v6885 = vpack.c.b16 %v6858, %v6857
      %v6886 = vpack.c.b16 %v6860, %v6859
      %v6887 = vpack.c.b16 %v6862, %v6861
      %v6888 = vpack.c.b16 %v6864, %v6863
      %v6889 = vpack.c.b16 %v6866, %v6865
      %v6890 = vpack.c.b16 %v6868, %v6867
      %v6891 = vpack.c.b16 %v6870, %v6869
      %v6892 = vpack.c.b16 %v6872, %v6871
      %v6893 = vpack.c.b16 %v6874, %v6873
      %v6894 = vpack.c.b16 %v6876, %v6875
      %v6895 = vpack.c.b16 %v6878, %v6877
      %v6896 = vpack.c.b16 %v6880, %v6879
      %v6929 = vunpack.c.l.b16 %v6801
      %v6930 = vunpack.c.l.b16 %v6802
      %v6931 = vunpack.c.l.b16 %v6803
      %v6932 = vunpack.c.l.b16 %v6804
      %v6933 = vunpack.c.l.b16 %v6805
      %v6934 = vunpack.c.l.b16 %v6806
      %v6935 = vunpack.c.l.b16 %v6807
      %v6936 = vunpack.c.l.b16 %v6808
      %v6937 = vunpack.c.l.b16 %v6809
      %v6938 = vunpack.c.l.b16 %v6810
      %v6939 = vunpack.c.l.b16 %v6811
      %v6940 = vunpack.c.l.b16 %v6812
      %v6941 = vunpack.c.l.b16 %v6813
      %v6942 = vunpack.c.l.b16 %v6814
      %v6943 = vunpack.c.l.b16 %v6815
      %v6944 = vunpack.c.l.b16 %v6816
      %v6945 = vpack.c.b16 %v6930, %v6929
      %v6946 = vpack.c.b16 %v6932, %v6931
      %v6947 = vpack.c.b16 %v6934, %v6933
      %v6948 = vpack.c.b16 %v6936, %v6935
      %v6949 = vpack.c.b16 %v6938, %v6937
      %v6950 = vpack.c.b16 %v6940, %v6939
      %v6951 = vpack.c.b16 %v6942, %v6941
      %v6952 = vpack.c.b16 %v6944, %v6943
      %6961 = vmatprep.subr.bf16.mxu0 0
      %6962 = vmatpush1.bf16.msra.mxu0 %v6945
      %6963 = vmatprep.subr.bf16.mxu0 0
      %6964 = vmatpush1.bf16.msra.mxu0 %v6946
      %6965 = vmatprep.subr.bf16.mxu0 0
      %6966 = vmatpush1.bf16.msra.mxu0 %v6947
      %6967 = vmatprep.subr.bf16.mxu0 0
      %6968 = vmatpush1.bf16.msra.mxu0 %v6948
      %6969 = vmatprep.subr.bf16.mxu0 0
      %6970 = vmatpush1.bf16.msra.mxu0 %v6949
      %6971 = vmatprep.subr.bf16.mxu0 0
      %6972 = vmatpush1.bf16.msra.mxu0 %v6950
      %6973 = vmatprep.subr.bf16.mxu0 0
      %6974 = vmatpush1.bf16.msra.mxu0 %v6951
      %6975 = vmatprep.subr.bf16.mxu0 0
      %6976 = vmatpush1.bf16.msra.mxu0 %v6952
      %6977 = vmatprep.subr.bf16.mxu0 0
      %6978 = vmatpush1.bf16.msra.mxu0 0
      %6979 = vmatprep.subr.bf16.mxu0 0
      %6980 = vmatpush1.bf16.msra.mxu0 0
      %6981 = vmatprep.subr.bf16.mxu0 0
      %6982 = vmatpush1.bf16.msra.mxu0 0
      %6983 = vmatprep.subr.bf16.mxu0 0
      %6984 = vmatpush1.bf16.msra.mxu0 0
      %6985 = vmatprep.subr.bf16.mxu0 0
      %6986 = vmatpush1.bf16.msra.mxu0 0
      %6987 = vmatprep.subr.bf16.mxu0 0
      %6988 = vmatpush1.bf16.msra.mxu0 0
      %6989 = vmatprep.subr.bf16.mxu0 0
      %6990 = vmatpush1.bf16.msra.mxu0 0
      %6991 = vmatprep.subr.bf16.mxu0 0
      %6992 = vmatpush1.bf16.msra.mxu0 0
      %6993 = vmatprep.mubr.bf16.mxu0 0
      %6994 = vmatmul.mubr.bf16.gmra.mrb[0].mxu0 %v6881
      %v6995 = vpop.f32.mrb[0].mxu0
      %v6996 = vadd.f32 0.0, %v6995
      %v6997 = vpop.f32.mrb[0].mxu0
      %v6998 = vpop.f32.mrb[0].mxu0
      %v6999 = vadd.f32 0.0, %v6998
      %v7000 = vpop.f32.mrb[0].mxu0
      %7001 = vmatprep.mubr.bf16.mxu0 0
      %7002 = vmatmul.mubr.bf16.gmra.mrb[0].mxu0 %v6882
      %v7003 = vpop.f32.mrb[0].mxu0
      %v7004 = vadd.f32 0.0, %v7003
      %v7005 = vpop.f32.mrb[0].mxu0
      %v7006 = vpop.f32.mrb[0].mxu0
      %v7007 = vadd.f32 0.0, %v7006
      %v7008 = vpop.f32.mrb[0].mxu0
      %7009 = vmatprep.mubr.bf16.mxu0 0
      %7010 = vmatmul.mubr.bf16.gmra.mrb[0].mxu0 %v6883
      %v7011 = vpop.f32.mrb[0].mxu0
      %v7012 = vadd.f32 0.0, %v7011
      %v7013 = vpop.f32.mrb[0].mxu0
      %v7014 = vpop.f32.mrb[0].mxu0
      %v7015 = vadd.f32 0.0, %v7014
      %v7016 = vpop.f32.mrb[0].mxu0
      %7017 = vmatprep.mubr.bf16.mxu0 0
      %7018 = vmatmul.mubr.bf16.gmra.mrb[0].mxu0 %v6884
      %v7019 = vpop.f32.mrb[0].mxu0
      %v7020 = vadd.f32 0.0, %v7019
      %v7021 = vpop.f32.mrb[0].mxu0
      %v7022 = vpop.f32.mrb[0].mxu0
      %v7023 = vadd.f32 0.0, %v7022
      %v7024 = vpop.f32.mrb[0].mxu0
      %7025 = vmatprep.mubr.bf16.mxu0 0
      %7026 = vmatmul.mubr.bf16.gmra.mrb[0].mxu0 %v6885
      %v7027 = vpop.f32.mrb[0].mxu0
      %v7028 = vadd.f32 0.0, %v7027
      %v7029 = vpop.f32.mrb[0].mxu0
      %v7030 = vpop.f32.mrb[0].mxu0
      %v7031 = vadd.f32 0.0, %v7030
      %v7032 = vpop.f32.mrb[0].mxu0
      %7033 = vmatprep.mubr.bf16.mxu0 0
      %7034 = vmatmul.mubr.bf16.gmra.mrb[0].mxu0 %v6886
      %v7035 = vpop.f32.mrb[0].mxu0
      %v7036 = vadd.f32 0.0, %v7035
      %v7037 = vpop.f32.mrb[0].mxu0
      %v7038 = vpop.f32.mrb[0].mxu0
      %v7039 = vadd.f32 0.0, %v7038
      %v7040 = vpop.f32.mrb[0].mxu0
      %7041 = vmatprep.mubr.bf16.mxu0 0
      %7042 = vmatmul.mubr.bf16.gmra.mrb[0].mxu0 %v6887
      %v7043 = vpop.f32.mrb[0].mxu0
      %v7044 = vadd.f32 0.0, %v7043
      %v7045 = vpop.f32.mrb[0].mxu0
      %v7046 = vpop.f32.mrb[0].mxu0
      %v7047 = vadd.f32 0.0, %v7046
      %v7048 = vpop.f32.mrb[0].mxu0
      %7049 = vmatprep.mubr.bf16.mxu0 0
      %7050 = vmatmul.mubr.bf16.gmra.mrb[0].mxu0 %v6888
      %v7051 = vpop.f32.mrb[0].mxu0
      %v7052 = vadd.f32 0.0, %v7051
      %v7053 = vpop.f32.mrb[0].mxu0
      %v7054 = vpop.f32.mrb[0].mxu0
      %v7055 = vadd.f32 0.0, %v7054
      %v7056 = vpop.f32.mrb[0].mxu0
      %7057 = vmatprep.mubr.bf16.mxu0 0
      %7058 = vmatmul.mubr.bf16.gmra.mrb[0].mxu0 %v6889
      %v7059 = vpop.f32.mrb[0].mxu0
      %v7060 = vadd.f32 0.0, %v7059
      %v7061 = vpop.f32.mrb[0].mxu0
      %v7062 = vpop.f32.mrb[0].mxu0
      %v7063 = vadd.f32 0.0, %v7062
      %v7064 = vpop.f32.mrb[0].mxu0
      %7065 = vmatprep.mubr.bf16.mxu0 0
      %7066 = vmatmul.mubr.bf16.gmra.mrb[0].mxu0 %v6890
      %v7067 = vpop.f32.mrb[0].mxu0
      %v7068 = vadd.f32 0.0, %v7067
      %v7069 = vpop.f32.mrb[0].mxu0
      %v7070 = vpop.f32.mrb[0].mxu0
      %v7071 = vadd.f32 0.0, %v7070
      %v7072 = vpop.f32.mrb[0].mxu0
      %7073 = vmatprep.mubr.bf16.mxu0 0
      %7074 = vmatmul.mubr.bf16.gmra.mrb[0].mxu0 %v6891
      %v7075 = vpop.f32.mrb[0].mxu0
      %v7076 = vadd.f32 0.0, %v7075
      %v7077 = vpop.f32.mrb[0].mxu0
      %v7078 = vpop.f32.mrb[0].mxu0
      %v7079 = vadd.f32 0.0, %v7078
      %v7080 = vpop.f32.mrb[0].mxu0
      %7081 = vmatprep.mubr.bf16.mxu0 0
      %7082 = vmatmul.mubr.bf16.gmra.mrb[0].mxu0 %v6892
      %v7083 = vpop.f32.mrb[0].mxu0
      %v7084 = vadd.f32 0.0, %v7083
      %v7085 = vpop.f32.mrb[0].mxu0
      %v7086 = vpop.f32.mrb[0].mxu0
      %v7087 = vadd.f32 0.0, %v7086
      %v7088 = vpop.f32.mrb[0].mxu0
      %7089 = vmatprep.mubr.bf16.mxu0 0
      %7090 = vmatmul.mubr.bf16.gmra.mrb[0].mxu0 %v6893
      %v7091 = vpop.f32.mrb[0].mxu0
      %v7092 = vadd.f32 0.0, %v7091
      %v7093 = vpop.f32.mrb[0].mxu0
      %v7094 = vpop.f32.mrb[0].mxu0
      %v7095 = vadd.f32 0.0, %v7094
      %v7096 = vpop.f32.mrb[0].mxu0
      %7097 = vmatprep.mubr.bf16.mxu0 0
      %7098 = vmatmul.mubr.bf16.gmra.mrb[0].mxu0 %v6894
      %v7099 = vpop.f32.mrb[0].mxu0
      %v7100 = vadd.f32 0.0, %v7099
      %v7101 = vpop.f32.mrb[0].mxu0
      %v7102 = vpop.f32.mrb[0].mxu0
      %v7103 = vadd.f32 0.0, %v7102
      %v7104 = vpop.f32.mrb[0].mxu0
      %7105 = vmatprep.mubr.bf16.mxu0 0
      %7106 = vmatmul.mubr.bf16.gmra.mrb[0].mxu0 %v6895
      %v7107 = vpop.f32.mrb[0].mxu0
      %v7108 = vadd.f32 0.0, %v7107
      %v7109 = vpop.f32.mrb[0].mxu0
      %v7110 = vpop.f32.mrb[0].mxu0
      %v7111 = vadd.f32 0.0, %v7110
      %v7112 = vpop.f32.mrb[0].mxu0
      %7113 = vmatprep.mubr.bf16.mxu0 0
      %7114 = vmatmul.mubr.bf16.gmra.mrb[0].mxu0 %v6896
      %v7115 = vpop.f32.mrb[0].mxu0
      %v7116 = vadd.f32 0.0, %v7115
      %v7117 = vpop.f32.mrb[0].mxu0
      %v7118 = vpop.f32.mrb[0].mxu0
      %v7119 = vadd.f32 0.0, %v7118
      %v7120 = vpop.f32.mrb[0].mxu0
      %7121 = vdwg.mxu0
      %v7122 = vadd.f32 %v6735, %v6996
      %v7123 = vadd.f32 %v6736, %v6999
      %v7124 = vadd.f32 %v6737, %v7004
      %v7125 = vadd.f32 %v6738, %v7007
      %v7126 = vadd.f32 %v6739, %v7012
      %v7127 = vadd.f32 %v6740, %v7015
      %v7128 = vadd.f32 %v6741, %v7020
      %v7129 = vadd.f32 %v6742, %v7023
      %v7130 = vadd.f32 %v6743, %v7028
      %v7131 = vadd.f32 %v6744, %v7031
      %v7132 = vadd.f32 %v6745, %v7036
      %v7133 = vadd.f32 %v6746, %v7039
      %v7134 = vadd.f32 %v6747, %v7044
      %v7135 = vadd.f32 %v6748, %v7047
      %v7136 = vadd.f32 %v6749, %v7052
      %v7137 = vadd.f32 %v6750, %v7055
      %v7138 = vadd.f32 %v6751, %v7060
      %v7139 = vadd.f32 %v6752, %v7063
      %v7140 = vadd.f32 %v6753, %v7068
      %v7141 = vadd.f32 %v6754, %v7071
      %v7142 = vadd.f32 %v6755, %v7076
      %v7143 = vadd.f32 %v6756, %v7079
      %v7144 = vadd.f32 %v6757, %v7084
      %v7145 = vadd.f32 %v6758, %v7087
      %v7146 = vadd.f32 %v6759, %v7092
      %v7147 = vadd.f32 %v6760, %v7095
      %v7148 = vadd.f32 %v6761, %v7100
      %v7149 = vadd.f32 %v6762, %v7103
      %v7150 = vadd.f32 %v6763, %v7108
      %v7151 = vadd.f32 %v6764, %v7111
      %v7152 = vadd.f32 %v6765, %v7116
      %v7153 = vadd.f32 %v6766, %v7119
      %v7154 = vld [vmem:[%s6767] sm:$0xf]
      %v7155 = vld [vmem:[%s6767 + $0x4] sm:$0xf]
      %v7156 = vld [vmem:[%s6767 + $0x8] sm:$0x1]
      %v7157 = vld [vmem:[%s6767 + $0xc] sm:$0xf]
      %v7158 = vld [vmem:[%s6767 + $0x10] sm:$0xf]
      %v7159 = vld [vmem:[%s6767 + $0x14] sm:$0x1]
      %v7160 = vld [vmem:[%s6767 + $0x18] sm:$0xf]
      %v7161 = vld [vmem:[%s6767 + $0x1c] sm:$0xf]
      %v7162 = vld [vmem:[%s6767 + $0x20] sm:$0x1]
      %v7163 = vld [vmem:[%s6767 + $0x24] sm:$0xf]
      %v7164 = vld [vmem:[%s6767 + $0x28] sm:$0xf]
      %v7165 = vld [vmem:[%s6767 + $0x2c] sm:$0x1]
      %v7166 = vld [vmem:[%s6767 + $0x30] sm:$0xf]
      %v7167 = vld [vmem:[%s6767 + $0x34] sm:$0xf]
      %v7168 = vld [vmem:[%s6767 + $0x38] sm:$0x1]
      %v7169 = vld [vmem:[%s6767 + $0x3c] sm:$0xf]
      %v7170 = vld [vmem:[%s6767 + $0x40] sm:$0xf]
      %v7171 = vld [vmem:[%s6767 + $0x44] sm:$0x1]
      %v7172 = vld [vmem:[%s6767 + $0x48] sm:$0xf]
      %v7173 = vld [vmem:[%s6767 + $0x4c] sm:$0xf]
      %v7174 = vld [vmem:[%s6767 + $0x50] sm:$0x1]
      %v7175 = vld [vmem:[%s6767 + $0x54] sm:$0xf]
      %v7176 = vld [vmem:[%s6767 + $0x58] sm:$0xf]
      %v7177 = vld [vmem:[%s6767 + $0x5c] sm:$0x1]
      %v7178 = vld [vmem:[%s6767 + $0x60] sm:$0xf]
      %v7179 = vld [vmem:[%s6767 + $0x64] sm:$0xf]
      %v7180 = vld [vmem:[%s6767 + $0x68] sm:$0x1]
      %v7181 = vld [vmem:[%s6767 + $0x6c] sm:$0xf]
      %v7182 = vld [vmem:[%s6767 + $0x70] sm:$0xf]
      %v7183 = vld [vmem:[%s6767 + $0x74] sm:$0x1]
      %v7184 = vld [vmem:[%s6767 + $0x78] sm:$0xf]
      %v7185 = vld [vmem:[%s6767 + $0x7c] sm:$0xf]
      %v7186 = vld [vmem:[%s6767 + $0x80] sm:$0x1]
      %v7187 = vld [vmem:[%s6767 + $0x84] sm:$0xf]
      %v7188 = vld [vmem:[%s6767 + $0x88] sm:$0xf]
      %v7189 = vld [vmem:[%s6767 + $0x8c] sm:$0x1]
      %v7190 = vld [vmem:[%s6767 + $0x90] sm:$0xf]
      %v7191 = vld [vmem:[%s6767 + $0x94] sm:$0xf]
      %v7192 = vld [vmem:[%s6767 + $0x98] sm:$0x1]
      %v7193 = vld [vmem:[%s6767 + $0x9c] sm:$0xf]
      %v7194 = vld [vmem:[%s6767 + $0xa0] sm:$0xf]
      %v7195 = vld [vmem:[%s6767 + $0xa4] sm:$0x1]
      %v7196 = vld [vmem:[%s6767 + $0xa8] sm:$0xf]
      %v7197 = vld [vmem:[%s6767 + $0xac] sm:$0xf]
      %v7198 = vld [vmem:[%s6767 + $0xb0] sm:$0x1]
      %v7199 = vld [vmem:[%s6767 + $0xb4] sm:$0xf]
      %v7200 = vld [vmem:[%s6767 + $0xb8] sm:$0xf]
      %v7201 = vld [vmem:[%s6767 + $0xbc] sm:$0x1]
      %v7203 = vshrl.u32 %v7154, 16
      %v7205 = vrot.slane %v7203, 4
      %v7206 = vshll.u32 %v7154, 16
      %v7208 = vrot.slane %v7206, 5
      %v7209 = vor.u32 %v7205, %v7208
      %v7210 = vrot.slane %v7209, 4
      %v7212 = vshll.u32 %v7155, 16
      %v7214 = vrot.slane %v7212, 5
      %v7215 = vsel %vm284, %v7210, %v7214
      %v7216 = vshrl.u32 %v7155, 16
      %v7218 = vrot.slane %v7216, 4
      %v7219 = vor.u32 %v7218, %v7214
      %v7220 = vrot.slane %v7219, 4
      %v7222 = vshll.u32 %v7156, 16
      %v7224 = vrot.slane %v7222, 5
      %v7225 = vsel %vm284, %v7220, %v7224
      %v7227 = vshrl.u32 %v7157, 16
      %v7229 = vrot.slane %v7227, 4
      %v7230 = vshll.u32 %v7157, 16
      %v7232 = vrot.slane %v7230, 5
      %v7233 = vor.u32 %v7229, %v7232
      %v7234 = vrot.slane %v7233, 4
      %v7236 = vshll.u32 %v7158, 16
      %v7238 = vrot.slane %v7236, 5
      %v7239 = vsel %vm284, %v7234, %v7238
      %v7240 = vshrl.u32 %v7158, 16
      %v7242 = vrot.slane %v7240, 4
      %v7243 = vor.u32 %v7242, %v7238
      %v7244 = vrot.slane %v7243, 4
      %v7246 = vshll.u32 %v7159, 16
      %v7248 = vrot.slane %v7246, 5
      %v7249 = vsel %vm284, %v7244, %v7248
      %v7251 = vshrl.u32 %v7160, 16
      %v7253 = vrot.slane %v7251, 4
      %v7254 = vshll.u32 %v7160, 16
      %v7256 = vrot.slane %v7254, 5
      %v7257 = vor.u32 %v7253, %v7256
      %v7258 = vrot.slane %v7257, 4
      %v7260 = vshll.u32 %v7161, 16
      %v7262 = vrot.slane %v7260, 5
      %v7263 = vsel %vm284, %v7258, %v7262
      %v7264 = vshrl.u32 %v7161, 16
      %v7266 = vrot.slane %v7264, 4
      %v7267 = vor.u32 %v7266, %v7262
      %v7268 = vrot.slane %v7267, 4
      %v7270 = vshll.u32 %v7162, 16
      %v7272 = vrot.slane %v7270, 5
      %v7273 = vsel %vm284, %v7268, %v7272
      %v7275 = vshrl.u32 %v7163, 16
      %v7277 = vrot.slane %v7275, 4
      %v7278 = vshll.u32 %v7163, 16
      %v7280 = vrot.slane %v7278, 5
      %v7281 = vor.u32 %v7277, %v7280
      %v7282 = vrot.slane %v7281, 4
      %v7284 = vshll.u32 %v7164, 16
      %v7286 = vrot.slane %v7284, 5
      %v7287 = vsel %vm284, %v7282, %v7286
      %v7288 = vshrl.u32 %v7164, 16
      %v7290 = vrot.slane %v7288, 4
      %v7291 = vor.u32 %v7290, %v7286
      %v7292 = vrot.slane %v7291, 4
      %v7294 = vshll.u32 %v7165, 16
      %v7296 = vrot.slane %v7294, 5
      %v7297 = vsel %vm284, %v7292, %v7296
      %v7299 = vshrl.u32 %v7166, 16
      %v7301 = vrot.slane %v7299, 4
      %v7302 = vshll.u32 %v7166, 16
      %v7304 = vrot.slane %v7302, 5
      %v7305 = vor.u32 %v7301, %v7304
      %v7306 = vrot.slane %v7305, 4
      %v7308 = vshll.u32 %v7167, 16
      %v7310 = vrot.slane %v7308, 5
      %v7311 = vsel %vm284, %v7306, %v7310
      %v7312 = vshrl.u32 %v7167, 16
      %v7314 = vrot.slane %v7312, 4
      %v7315 = vor.u32 %v7314, %v7310
      %v7316 = vrot.slane %v7315, 4
      %v7318 = vshll.u32 %v7168, 16
      %v7320 = vrot.slane %v7318, 5
      %v7321 = vsel %vm284, %v7316, %v7320
      %v7323 = vshrl.u32 %v7169, 16
      %v7325 = vrot.slane %v7323, 4
      %v7326 = vshll.u32 %v7169, 16
      %v7328 = vrot.slane %v7326, 5
      %v7329 = vor.u32 %v7325, %v7328
      %v7330 = vrot.slane %v7329, 4
      %v7332 = vshll.u32 %v7170, 16
      %v7334 = vrot.slane %v7332, 5
      %v7335 = vsel %vm284, %v7330, %v7334
      %v7336 = vshrl.u32 %v7170, 16
      %v7338 = vrot.slane %v7336, 4
      %v7339 = vor.u32 %v7338, %v7334
      %v7340 = vrot.slane %v7339, 4
      %v7342 = vshll.u32 %v7171, 16
      %v7344 = vrot.slane %v7342, 5
      %v7345 = vsel %vm284, %v7340, %v7344
      %v7347 = vshrl.u32 %v7172, 16
      %v7349 = vrot.slane %v7347, 4
      %v7350 = vshll.u32 %v7172, 16
      %v7352 = vrot.slane %v7350, 5
      %v7353 = vor.u32 %v7349, %v7352
      %v7354 = vrot.slane %v7353, 4
      %v7356 = vshll.u32 %v7173, 16
      %v7358 = vrot.slane %v7356, 5
      %v7359 = vsel %vm284, %v7354, %v7358
      %v7360 = vshrl.u32 %v7173, 16
      %v7362 = vrot.slane %v7360, 4
      %v7363 = vor.u32 %v7362, %v7358
      %v7364 = vrot.slane %v7363, 4
      %v7366 = vshll.u32 %v7174, 16
      %v7368 = vrot.slane %v7366, 5
      %v7369 = vsel %vm284, %v7364, %v7368
      %v7371 = vshrl.u32 %v7175, 16
      %v7373 = vrot.slane %v7371, 4
      %v7374 = vshll.u32 %v7175, 16
      %v7376 = vrot.slane %v7374, 5
      %v7377 = vor.u32 %v7373, %v7376
      %v7378 = vrot.slane %v7377, 4
      %v7380 = vshll.u32 %v7176, 16
      %v7382 = vrot.slane %v7380, 5
      %v7383 = vsel %vm284, %v7378, %v7382
      %v7384 = vshrl.u32 %v7176, 16
      %v7386 = vrot.slane %v7384, 4
      %v7387 = vor.u32 %v7386, %v7382
      %v7388 = vrot.slane %v7387, 4
      %v7390 = vshll.u32 %v7177, 16
      %v7392 = vrot.slane %v7390, 5
      %v7393 = vsel %vm284, %v7388, %v7392
      %v7395 = vshrl.u32 %v7178, 16
      %v7397 = vrot.slane %v7395, 4
      %v7398 = vshll.u32 %v7178, 16
      %v7400 = vrot.slane %v7398, 5
      %v7401 = vor.u32 %v7397, %v7400
      %v7402 = vrot.slane %v7401, 4
      %v7404 = vshll.u32 %v7179, 16
      %v7406 = vrot.slane %v7404, 5
      %v7407 = vsel %vm284, %v7402, %v7406
      %v7408 = vshrl.u32 %v7179, 16
      %v7410 = vrot.slane %v7408, 4
      %v7411 = vor.u32 %v7410, %v7406
      %v7412 = vrot.slane %v7411, 4
      %v7414 = vshll.u32 %v7180, 16
      %v7416 = vrot.slane %v7414, 5
      %v7417 = vsel %vm284, %v7412, %v7416
      %v7419 = vshrl.u32 %v7181, 16
      %v7421 = vrot.slane %v7419, 4
      %v7422 = vshll.u32 %v7181, 16
      %v7424 = vrot.slane %v7422, 5
      %v7425 = vor.u32 %v7421, %v7424
      %v7426 = vrot.slane %v7425, 4
      %v7428 = vshll.u32 %v7182, 16
      %v7430 = vrot.slane %v7428, 5
      %v7431 = vsel %vm284, %v7426, %v7430
      %v7432 = vshrl.u32 %v7182, 16
      %v7434 = vrot.slane %v7432, 4
      %v7435 = vor.u32 %v7434, %v7430
      %v7436 = vrot.slane %v7435, 4
      %v7438 = vshll.u32 %v7183, 16
      %v7440 = vrot.slane %v7438, 5
      %v7441 = vsel %vm284, %v7436, %v7440
      %v7443 = vshrl.u32 %v7184, 16
      %v7445 = vrot.slane %v7443, 4
      %v7446 = vshll.u32 %v7184, 16
      %v7448 = vrot.slane %v7446, 5
      %v7449 = vor.u32 %v7445, %v7448
      %v7450 = vrot.slane %v7449, 4
      %v7452 = vshll.u32 %v7185, 16
      %v7454 = vrot.slane %v7452, 5
      %v7455 = vsel %vm284, %v7450, %v7454
      %v7456 = vshrl.u32 %v7185, 16
      %v7458 = vrot.slane %v7456, 4
      %v7459 = vor.u32 %v7458, %v7454
      %v7460 = vrot.slane %v7459, 4
      %v7462 = vshll.u32 %v7186, 16
      %v7464 = vrot.slane %v7462, 5
      %v7465 = vsel %vm284, %v7460, %v7464
      %v7467 = vshrl.u32 %v7187, 16
      %v7469 = vrot.slane %v7467, 4
      %v7470 = vshll.u32 %v7187, 16
      %v7472 = vrot.slane %v7470, 5
      %v7473 = vor.u32 %v7469, %v7472
      %v7474 = vrot.slane %v7473, 4
      %v7476 = vshll.u32 %v7188, 16
      %v7478 = vrot.slane %v7476, 5
      %v7479 = vsel %vm284, %v7474, %v7478
      %v7480 = vshrl.u32 %v7188, 16
      %v7482 = vrot.slane %v7480, 4
      %v7483 = vor.u32 %v7482, %v7478
      %v7484 = vrot.slane %v7483, 4
      %v7486 = vshll.u32 %v7189, 16
      %v7488 = vrot.slane %v7486, 5
      %v7489 = vsel %vm284, %v7484, %v7488
      %v7491 = vshrl.u32 %v7190, 16
      %v7493 = vrot.slane %v7491, 4
      %v7494 = vshll.u32 %v7190, 16
      %v7496 = vrot.slane %v7494, 5
      %v7497 = vor.u32 %v7493, %v7496
      %v7498 = vrot.slane %v7497, 4
      %v7500 = vshll.u32 %v7191, 16
      %v7502 = vrot.slane %v7500, 5
      %v7503 = vsel %vm284, %v7498, %v7502
      %v7504 = vshrl.u32 %v7191, 16
      %v7506 = vrot.slane %v7504, 4
      %v7507 = vor.u32 %v7506, %v7502
      %v7508 = vrot.slane %v7507, 4
      %v7510 = vshll.u32 %v7192, 16
      %v7512 = vrot.slane %v7510, 5
      %v7513 = vsel %vm284, %v7508, %v7512
      %v7515 = vshrl.u32 %v7193, 16
      %v7517 = vrot.slane %v7515, 4
      %v7518 = vshll.u32 %v7193, 16
      %v7520 = vrot.slane %v7518, 5
      %v7521 = vor.u32 %v7517, %v7520
      %v7522 = vrot.slane %v7521, 4
      %v7524 = vshll.u32 %v7194, 16
      %v7526 = vrot.slane %v7524, 5
      %v7527 = vsel %vm284, %v7522, %v7526
      %v7528 = vshrl.u32 %v7194, 16
      %v7530 = vrot.slane %v7528, 4
      %v7531 = vor.u32 %v7530, %v7526
      %v7532 = vrot.slane %v7531, 4
      %v7534 = vshll.u32 %v7195, 16
      %v7536 = vrot.slane %v7534, 5
      %v7537 = vsel %vm284, %v7532, %v7536
      %v7539 = vshrl.u32 %v7196, 16
      %v7541 = vrot.slane %v7539, 4
      %v7542 = vshll.u32 %v7196, 16
      %v7544 = vrot.slane %v7542, 5
      %v7545 = vor.u32 %v7541, %v7544
      %v7546 = vrot.slane %v7545, 4
      %v7548 = vshll.u32 %v7197, 16
      %v7550 = vrot.slane %v7548, 5
      %v7551 = vsel %vm284, %v7546, %v7550
      %v7552 = vshrl.u32 %v7197, 16
      %v7554 = vrot.slane %v7552, 4
      %v7555 = vor.u32 %v7554, %v7550
      %v7556 = vrot.slane %v7555, 4
      %v7558 = vshll.u32 %v7198, 16
      %v7560 = vrot.slane %v7558, 5
      %v7561 = vsel %vm284, %v7556, %v7560
      %v7563 = vshrl.u32 %v7199, 16
      %v7565 = vrot.slane %v7563, 4
      %v7566 = vshll.u32 %v7199, 16
      %v7568 = vrot.slane %v7566, 5
      %v7569 = vor.u32 %v7565, %v7568
      %v7570 = vrot.slane %v7569, 4
      %v7572 = vshll.u32 %v7200, 16
      %v7574 = vrot.slane %v7572, 5
      %v7575 = vsel %vm284, %v7570, %v7574
      %v7576 = vshrl.u32 %v7200, 16
      %v7578 = vrot.slane %v7576, 4
      %v7579 = vor.u32 %v7578, %v7574
      %v7580 = vrot.slane %v7579, 4
      %v7582 = vshll.u32 %v7201, 16
      %v7584 = vrot.slane %v7582, 5
      %v7585 = vsel %vm284, %v7580, %v7584
      %s7586 = scalar_lea.vmem %s3, 448
      %v7587 = vld [vmem:[%s7586] sm:$0xf]
      %v7588 = vld [vmem:[%s7586 + $0x4] sm:$0xf]
      %v7589 = vld [vmem:[%s7586 + $0x8] sm:$0xf]
      %v7590 = vld [vmem:[%s7586 + $0xc] sm:$0xf]
      %v7591 = vld [vmem:[%s7586 + $0x10] sm:$0xf]
      %v7592 = vld [vmem:[%s7586 + $0x14] sm:$0xf]
      %v7593 = vld [vmem:[%s7586 + $0x18] sm:$0xf]
      %v7594 = vld [vmem:[%s7586 + $0x1c] sm:$0xf]
      %v7595 = vld [vmem:[%s7586 + $0x20] sm:$0xf]
      %v7596 = vld [vmem:[%s7586 + $0x24] sm:$0xf]
      %v7597 = vld [vmem:[%s7586 + $0x28] sm:$0xf]
      %v7598 = vld [vmem:[%s7586 + $0x2c] sm:$0xf]
      %v7599 = vld [vmem:[%s7586 + $0x30] sm:$0xf]
      %v7600 = vld [vmem:[%s7586 + $0x34] sm:$0xf]
      %v7601 = vld [vmem:[%s7586 + $0x38] sm:$0xf]
      %v7602 = vld [vmem:[%s7586 + $0x3c] sm:$0xf]
      %v7603 = vunpack.c.l.b16 %v7215
      %v7604 = vunpack.c.l.b16 %v7225
      %v7605 = vunpack.c.l.b16 %v7239
      %v7606 = vunpack.c.l.b16 %v7249
      %v7607 = vunpack.c.l.b16 %v7263
      %v7608 = vunpack.c.l.b16 %v7273
      %v7609 = vunpack.c.l.b16 %v7287
      %v7610 = vunpack.c.l.b16 %v7297
      %v7611 = vunpack.c.l.b16 %v7311
      %v7612 = vunpack.c.l.b16 %v7321
      %v7613 = vunpack.c.l.b16 %v7335
      %v7614 = vunpack.c.l.b16 %v7345
      %v7615 = vunpack.c.l.b16 %v7359
      %v7616 = vunpack.c.l.b16 %v7369
      %v7617 = vunpack.c.l.b16 %v7383
      %v7618 = vunpack.c.l.b16 %v7393
      %v7619 = vunpack.c.l.b16 %v7407
      %v7620 = vunpack.c.l.b16 %v7417
      %v7621 = vunpack.c.l.b16 %v7431
      %v7622 = vunpack.c.l.b16 %v7441
      %v7623 = vunpack.c.l.b16 %v7455
      %v7624 = vunpack.c.l.b16 %v7465
      %v7625 = vunpack.c.l.b16 %v7479
      %v7626 = vunpack.c.l.b16 %v7489
      %v7627 = vunpack.c.l.b16 %v7503
      %v7628 = vunpack.c.l.b16 %v7513
      %v7629 = vunpack.c.l.b16 %v7527
      %v7630 = vunpack.c.l.b16 %v7537
      %v7631 = vunpack.c.l.b16 %v7551
      %v7632 = vunpack.c.l.b16 %v7561
      %v7633 = vunpack.c.l.b16 %v7575
      %v7634 = vunpack.c.l.b16 %v7585
      %v7635 = vpack.c.b16 %v7604, %v7603
      %v7636 = vpack.c.b16 %v7606, %v7605
      %v7637 = vpack.c.b16 %v7608, %v7607
      %v7638 = vpack.c.b16 %v7610, %v7609
      %v7639 = vpack.c.b16 %v7612, %v7611
      %v7640 = vpack.c.b16 %v7614, %v7613
      %v7641 = vpack.c.b16 %v7616, %v7615
      %v7642 = vpack.c.b16 %v7618, %v7617
      %v7643 = vpack.c.b16 %v7620, %v7619
      %v7644 = vpack.c.b16 %v7622, %v7621
      %v7645 = vpack.c.b16 %v7624, %v7623
      %v7646 = vpack.c.b16 %v7626, %v7625
      %v7647 = vpack.c.b16 %v7628, %v7627
      %v7648 = vpack.c.b16 %v7630, %v7629
      %v7649 = vpack.c.b16 %v7632, %v7631
      %v7650 = vpack.c.b16 %v7634, %v7633
      %v7683 = vunpack.c.l.b16 %v7587
      %v7684 = vunpack.c.l.b16 %v7588
      %v7685 = vunpack.c.l.b16 %v7589
      %v7686 = vunpack.c.l.b16 %v7590
      %v7687 = vunpack.c.l.b16 %v7591
      %v7688 = vunpack.c.l.b16 %v7592
      %v7689 = vunpack.c.l.b16 %v7593
      %v7690 = vunpack.c.l.b16 %v7594
      %v7691 = vunpack.c.l.b16 %v7595
      %v7692 = vunpack.c.l.b16 %v7596
      %v7693 = vunpack.c.l.b16 %v7597
      %v7694 = vunpack.c.l.b16 %v7598
      %v7695 = vunpack.c.l.b16 %v7599
      %v7696 = vunpack.c.l.b16 %v7600
      %v7697 = vunpack.c.l.b16 %v7601
      %v7698 = vunpack.c.l.b16 %v7602
      %v7699 = vpack.c.b16 %v7684, %v7683
      %v7700 = vpack.c.b16 %v7686, %v7685
      %v7701 = vpack.c.b16 %v7688, %v7687
      %v7702 = vpack.c.b16 %v7690, %v7689
      %v7703 = vpack.c.b16 %v7692, %v7691
      %v7704 = vpack.c.b16 %v7694, %v7693
      %v7705 = vpack.c.b16 %v7696, %v7695
      %v7706 = vpack.c.b16 %v7698, %v7697
      %7715 = vmatprep.subr.bf16.mxu0 0
      %7716 = vmatpush1.bf16.msra.mxu0 %v7699
      %7717 = vmatprep.subr.bf16.mxu0 0
      %7718 = vmatpush1.bf16.msra.mxu0 %v7700
      %7719 = vmatprep.subr.bf16.mxu0 0
      %7720 = vmatpush1.bf16.msra.mxu0 %v7701
      %7721 = vmatprep.subr.bf16.mxu0 0
      %7722 = vmatpush1.bf16.msra.mxu0 %v7702
      %7723 = vmatprep.subr.bf16.mxu0 0
      %7724 = vmatpush1.bf16.msra.mxu0 %v7703
      %7725 = vmatprep.subr.bf16.mxu0 0
      %7726 = vmatpush1.bf16.msra.mxu0 %v7704
      %7727 = vmatprep.subr.bf16.mxu0 0
      %7728 = vmatpush1.bf16.msra.mxu0 %v7705
      %7729 = vmatprep.subr.bf16.mxu0 0
      %7730 = vmatpush1.bf16.msra.mxu0 %v7706
      %7731 = vmatprep.subr.bf16.mxu0 0
      %7732 = vmatpush1.bf16.msra.mxu0 0
      %7733 = vmatprep.subr.bf16.mxu0 0
      %7734 = vmatpush1.bf16.msra.mxu0 0
      %7735 = vmatprep.subr.bf16.mxu0 0
      %7736 = vmatpush1.bf16.msra.mxu0 0
      %7737 = vmatprep.subr.bf16.mxu0 0
      %7738 = vmatpush1.bf16.msra.mxu0 0
      %7739 = vmatprep.subr.bf16.mxu0 0
      %7740 = vmatpush1.bf16.msra.mxu0 0
      %7741 = vmatprep.subr.bf16.mxu0 0
      %7742 = vmatpush1.bf16.msra.mxu0 0
      %7743 = vmatprep.subr.bf16.mxu0 0
      %7744 = vmatpush1.bf16.msra.mxu0 0
      %7745 = vmatprep.subr.bf16.mxu0 0
      %7746 = vmatpush1.bf16.msra.mxu0 0
      %7747 = vmatprep.mubr.bf16.mxu0 0
      %7748 = vmatmul.mubr.bf16.gmra.mrb[0].mxu0 %v7635
      %v7749 = vpop.f32.mrb[0].mxu0
      %v7750 = vadd.f32 0.0, %v7749
      %v7751 = vpop.f32.mrb[0].mxu0
      %v7752 = vpop.f32.mrb[0].mxu0
      %v7753 = vadd.f32 0.0, %v7752
      %v7754 = vpop.f32.mrb[0].mxu0
      %7755 = vmatprep.mubr.bf16.mxu0 0
      %7756 = vmatmul.mubr.bf16.gmra.mrb[0].mxu0 %v7636
      %v7757 = vpop.f32.mrb[0].mxu0
      %v7758 = vadd.f32 0.0, %v7757
      %v7759 = vpop.f32.mrb[0].mxu0
      %v7760 = vpop.f32.mrb[0].mxu0
      %v7761 = vadd.f32 0.0, %v7760
      %v7762 = vpop.f32.mrb[0].mxu0
      %7763 = vmatprep.mubr.bf16.mxu0 0
      %7764 = vmatmul.mubr.bf16.gmra.mrb[0].mxu0 %v7637
      %v7765 = vpop.f32.mrb[0].mxu0
      %v7766 = vadd.f32 0.0, %v7765
      %v7767 = vpop.f32.mrb[0].mxu0
      %v7768 = vpop.f32.mrb[0].mxu0
      %v7769 = vadd.f32 0.0, %v7768
      %v7770 = vpop.f32.mrb[0].mxu0
      %7771 = vmatprep.mubr.bf16.mxu0 0
      %7772 = vmatmul.mubr.bf16.gmra.mrb[0].mxu0 %v7638
      %v7773 = vpop.f32.mrb[0].mxu0
      %v7774 = vadd.f32 0.0, %v7773
      %v7775 = vpop.f32.mrb[0].mxu0
      %v7776 = vpop.f32.mrb[0].mxu0
      %v7777 = vadd.f32 0.0, %v7776
      %v7778 = vpop.f32.mrb[0].mxu0
      %7779 = vmatprep.mubr.bf16.mxu0 0
      %7780 = vmatmul.mubr.bf16.gmra.mrb[0].mxu0 %v7639
      %v7781 = vpop.f32.mrb[0].mxu0
      %v7782 = vadd.f32 0.0, %v7781
      %v7783 = vpop.f32.mrb[0].mxu0
      %v7784 = vpop.f32.mrb[0].mxu0
      %v7785 = vadd.f32 0.0, %v7784
      %v7786 = vpop.f32.mrb[0].mxu0
      %7787 = vmatprep.mubr.bf16.mxu0 0
      %7788 = vmatmul.mubr.bf16.gmra.mrb[0].mxu0 %v7640
      %v7789 = vpop.f32.mrb[0].mxu0
      %v7790 = vadd.f32 0.0, %v7789
      %v7791 = vpop.f32.mrb[0].mxu0
      %v7792 = vpop.f32.mrb[0].mxu0
      %v7793 = vadd.f32 0.0, %v7792
      %v7794 = vpop.f32.mrb[0].mxu0
      %7795 = vmatprep.mubr.bf16.mxu0 0
      %7796 = vmatmul.mubr.bf16.gmra.mrb[0].mxu0 %v7641
      %v7797 = vpop.f32.mrb[0].mxu0
      %v7798 = vadd.f32 0.0, %v7797
      %v7799 = vpop.f32.mrb[0].mxu0
      %v7800 = vpop.f32.mrb[0].mxu0
      %v7801 = vadd.f32 0.0, %v7800
      %v7802 = vpop.f32.mrb[0].mxu0
      %7803 = vmatprep.mubr.bf16.mxu0 0
      %7804 = vmatmul.mubr.bf16.gmra.mrb[0].mxu0 %v7642
      %v7805 = vpop.f32.mrb[0].mxu0
      %v7806 = vadd.f32 0.0, %v7805
      %v7807 = vpop.f32.mrb[0].mxu0
      %v7808 = vpop.f32.mrb[0].mxu0
      %v7809 = vadd.f32 0.0, %v7808
      %v7810 = vpop.f32.mrb[0].mxu0
      %7811 = vmatprep.mubr.bf16.mxu0 0
      %7812 = vmatmul.mubr.bf16.gmra.mrb[0].mxu0 %v7643
      %v7813 = vpop.f32.mrb[0].mxu0
      %v7814 = vadd.f32 0.0, %v7813
      %v7815 = vpop.f32.mrb[0].mxu0
      %v7816 = vpop.f32.mrb[0].mxu0
      %v7817 = vadd.f32 0.0, %v7816
      %v7818 = vpop.f32.mrb[0].mxu0
      %7819 = vmatprep.mubr.bf16.mxu0 0
      %7820 = vmatmul.mubr.bf16.gmra.mrb[0].mxu0 %v7644
      %v7821 = vpop.f32.mrb[0].mxu0
      %v7822 = vadd.f32 0.0, %v7821
      %v7823 = vpop.f32.mrb[0].mxu0
      %v7824 = vpop.f32.mrb[0].mxu0
      %v7825 = vadd.f32 0.0, %v7824
      %v7826 = vpop.f32.mrb[0].mxu0
      %7827 = vmatprep.mubr.bf16.mxu0 0
      %7828 = vmatmul.mubr.bf16.gmra.mrb[0].mxu0 %v7645
      %v7829 = vpop.f32.mrb[0].mxu0
      %v7830 = vadd.f32 0.0, %v7829
      %v7831 = vpop.f32.mrb[0].mxu0
      %v7832 = vpop.f32.mrb[0].mxu0
      %v7833 = vadd.f32 0.0, %v7832
      %v7834 = vpop.f32.mrb[0].mxu0
      %7835 = vmatprep.mubr.bf16.mxu0 0
      %7836 = vmatmul.mubr.bf16.gmra.mrb[0].mxu0 %v7646
      %v7837 = vpop.f32.mrb[0].mxu0
      %v7838 = vadd.f32 0.0, %v7837
      %v7839 = vpop.f32.mrb[0].mxu0
      %v7840 = vpop.f32.mrb[0].mxu0
      %v7841 = vadd.f32 0.0, %v7840
      %v7842 = vpop.f32.mrb[0].mxu0
      %7843 = vmatprep.mubr.bf16.mxu0 0
      %7844 = vmatmul.mubr.bf16.gmra.mrb[0].mxu0 %v7647
      %v7845 = vpop.f32.mrb[0].mxu0
      %v7846 = vadd.f32 0.0, %v7845
      %v7847 = vpop.f32.mrb[0].mxu0
      %v7848 = vpop.f32.mrb[0].mxu0
      %v7849 = vadd.f32 0.0, %v7848
      %v7850 = vpop.f32.mrb[0].mxu0
      %7851 = vmatprep.mubr.bf16.mxu0 0
      %7852 = vmatmul.mubr.bf16.gmra.mrb[0].mxu0 %v7648
      %v7853 = vpop.f32.mrb[0].mxu0
      %v7854 = vadd.f32 0.0, %v7853
      %v7855 = vpop.f32.mrb[0].mxu0
      %v7856 = vpop.f32.mrb[0].mxu0
      %v7857 = vadd.f32 0.0, %v7856
      %v7858 = vpop.f32.mrb[0].mxu0
      %7859 = vmatprep.mubr.bf16.mxu0 0
      %7860 = vmatmul.mubr.bf16.gmra.mrb[0].mxu0 %v7649
      %v7861 = vpop.f32.mrb[0].mxu0
      %v7862 = vadd.f32 0.0, %v7861
      %v7863 = vpop.f32.mrb[0].mxu0
      %v7864 = vpop.f32.mrb[0].mxu0
      %v7865 = vadd.f32 0.0, %v7864
      %v7866 = vpop.f32.mrb[0].mxu0
      %7867 = vmatprep.mubr.bf16.mxu0 0
      %7868 = vmatmul.mubr.bf16.gmra.mrb[0].mxu0 %v7650
      %v7869 = vpop.f32.mrb[0].mxu0
      %v7870 = vadd.f32 0.0, %v7869
      %v7871 = vpop.f32.mrb[0].mxu0
      %v7872 = vpop.f32.mrb[0].mxu0
      %v7873 = vadd.f32 0.0, %v7872
      %v7874 = vpop.f32.mrb[0].mxu0
      %7875 = vdwg.mxu0
      %v7876 = vadd.f32 %v7122, %v7750
      %v7877 = vadd.f32 %v7123, %v7753
      %v7878 = vadd.f32 %v7124, %v7758
      %v7879 = vadd.f32 %v7125, %v7761
      %v7880 = vadd.f32 %v7126, %v7766
      %v7881 = vadd.f32 %v7127, %v7769
      %v7882 = vadd.f32 %v7128, %v7774
      %v7883 = vadd.f32 %v7129, %v7777
      %v7884 = vadd.f32 %v7130, %v7782
      %v7885 = vadd.f32 %v7131, %v7785
      %v7886 = vadd.f32 %v7132, %v7790
      %v7887 = vadd.f32 %v7133, %v7793
      %v7888 = vadd.f32 %v7134, %v7798
      %v7889 = vadd.f32 %v7135, %v7801
      %v7890 = vadd.f32 %v7136, %v7806
      %v7891 = vadd.f32 %v7137, %v7809
      %v7892 = vadd.f32 %v7138, %v7814
      %v7893 = vadd.f32 %v7139, %v7817
      %v7894 = vadd.f32 %v7140, %v7822
      %v7895 = vadd.f32 %v7141, %v7825
      %v7896 = vadd.f32 %v7142, %v7830
      %v7897 = vadd.f32 %v7143, %v7833
      %v7898 = vadd.f32 %v7144, %v7838
      %v7899 = vadd.f32 %v7145, %v7841
      %v7900 = vadd.f32 %v7146, %v7846
      %v7901 = vadd.f32 %v7147, %v7849
      %v7902 = vadd.f32 %v7148, %v7854
      %v7903 = vadd.f32 %v7149, %v7857
      %v7904 = vadd.f32 %v7150, %v7862
      %v7905 = vadd.f32 %v7151, %v7865
      %v7906 = vadd.f32 %v7152, %v7870
      %v7907 = vadd.f32 %v7153, %v7873
      %v7908 = vld [vmem:[%s6767] sm:$0xe]
      %v7909 = vld [vmem:[%s6767 + $0xc] sm:$0xe]
      %v7910 = vld [vmem:[%s6767 + $0x18] sm:$0xe]
      %v7911 = vld [vmem:[%s6767 + $0x24] sm:$0xe]
      %v7912 = vld [vmem:[%s6767 + $0x30] sm:$0xe]
      %v7913 = vld [vmem:[%s6767 + $0x3c] sm:$0xe]
      %v7914 = vld [vmem:[%s6767 + $0x48] sm:$0xe]
      %v7915 = vld [vmem:[%s6767 + $0x54] sm:$0xe]
      %v7916 = vld [vmem:[%s6767 + $0x60] sm:$0xe]
      %v7917 = vld [vmem:[%s6767 + $0x6c] sm:$0xe]
      %v7918 = vld [vmem:[%s6767 + $0x78] sm:$0xe]
      %v7919 = vld [vmem:[%s6767 + $0x84] sm:$0xe]
      %v7920 = vld [vmem:[%s6767 + $0x90] sm:$0xe]
      %v7921 = vld [vmem:[%s6767 + $0x9c] sm:$0xe]
      %v7922 = vld [vmem:[%s6767 + $0xa8] sm:$0xe]
      %v7923 = vld [vmem:[%s6767 + $0xb4] sm:$0xe]
      %v7972 = vrot.slane %v7908, 5
      %v7973 = vrot.slane %v7972, 4
      %v7974 = vrot.slane %v7155, 5
      %v7975 = vsel %vm1243, %v7973, %v7974
      %v7976 = vrot.slane %v7974, 4
      %v7977 = vrot.slane %v7156, 5
      %v7978 = vsel %vm1243, %v7976, %v7977
      %v7979 = vrot.slane %v7909, 5
      %v7980 = vrot.slane %v7979, 4
      %v7981 = vrot.slane %v7158, 5
      %v7982 = vsel %vm1243, %v7980, %v7981
      %v7983 = vrot.slane %v7981, 4
      %v7984 = vrot.slane %v7159, 5
      %v7985 = vsel %vm1243, %v7983, %v7984
      %v7986 = vrot.slane %v7910, 5
      %v7987 = vrot.slane %v7986, 4
      %v7988 = vrot.slane %v7161, 5
      %v7989 = vsel %vm1243, %v7987, %v7988
      %v7990 = vrot.slane %v7988, 4
      %v7991 = vrot.slane %v7162, 5
      %v7992 = vsel %vm1243, %v7990, %v7991
      %v7993 = vrot.slane %v7911, 5
      %v7994 = vrot.slane %v7993, 4
      %v7995 = vrot.slane %v7164, 5
      %v7996 = vsel %vm1243, %v7994, %v7995
      %v7997 = vrot.slane %v7995, 4
      %v7998 = vrot.slane %v7165, 5
      %v7999 = vsel %vm1243, %v7997, %v7998
      %v8000 = vrot.slane %v7912, 5
      %v8001 = vrot.slane %v8000, 4
      %v8002 = vrot.slane %v7167, 5
      %v8003 = vsel %vm1243, %v8001, %v8002
      %v8004 = vrot.slane %v8002, 4
      %v8005 = vrot.slane %v7168, 5
      %v8006 = vsel %vm1243, %v8004, %v8005
      %v8007 = vrot.slane %v7913, 5
      %v8008 = vrot.slane %v8007, 4
      %v8009 = vrot.slane %v7170, 5
      %v8010 = vsel %vm1243, %v8008, %v8009
      %v8011 = vrot.slane %v8009, 4
      %v8012 = vrot.slane %v7171, 5
      %v8013 = vsel %vm1243, %v8011, %v8012
      %v8014 = vrot.slane %v7914, 5
      %v8015 = vrot.slane %v8014, 4
      %v8016 = vrot.slane %v7173, 5
      %v8017 = vsel %vm1243, %v8015, %v8016
      %v8018 = vrot.slane %v8016, 4
      %v8019 = vrot.slane %v7174, 5
      %v8020 = vsel %vm1243, %v8018, %v8019
      %v8021 = vrot.slane %v7915, 5
      %v8022 = vrot.slane %v8021, 4
      %v8023 = vrot.slane %v7176, 5
      %v8024 = vsel %vm1243, %v8022, %v8023
      %v8025 = vrot.slane %v8023, 4
      %v8026 = vrot.slane %v7177, 5
      %v8027 = vsel %vm1243, %v8025, %v8026
      %v8028 = vrot.slane %v7916, 5
      %v8029 = vrot.slane %v8028, 4
      %v8030 = vrot.slane %v7179, 5
      %v8031 = vsel %vm1243, %v8029, %v8030
      %v8032 = vrot.slane %v8030, 4
      %v8033 = vrot.slane %v7180, 5
      %v8034 = vsel %vm1243, %v8032, %v8033
      %v8035 = vrot.slane %v7917, 5
      %v8036 = vrot.slane %v8035, 4
      %v8037 = vrot.slane %v7182, 5
      %v8038 = vsel %vm1243, %v8036, %v8037
      %v8039 = vrot.slane %v8037, 4
      %v8040 = vrot.slane %v7183, 5
      %v8041 = vsel %vm1243, %v8039, %v8040
      %v8042 = vrot.slane %v7918, 5
      %v8043 = vrot.slane %v8042, 4
      %v8044 = vrot.slane %v7185, 5
      %v8045 = vsel %vm1243, %v8043, %v8044
      %v8046 = vrot.slane %v8044, 4
      %v8047 = vrot.slane %v7186, 5
      %v8048 = vsel %vm1243, %v8046, %v8047
      %v8049 = vrot.slane %v7919, 5
      %v8050 = vrot.slane %v8049, 4
      %v8051 = vrot.slane %v7188, 5
      %v8052 = vsel %vm1243, %v8050, %v8051
      %v8053 = vrot.slane %v8051, 4
      %v8054 = vrot.slane %v7189, 5
      %v8055 = vsel %vm1243, %v8053, %v8054
      %v8056 = vrot.slane %v7920, 5
      %v8057 = vrot.slane %v8056, 4
      %v8058 = vrot.slane %v7191, 5
      %v8059 = vsel %vm1243, %v8057, %v8058
      %v8060 = vrot.slane %v8058, 4
      %v8061 = vrot.slane %v7192, 5
      %v8062 = vsel %vm1243, %v8060, %v8061
      %v8063 = vrot.slane %v7921, 5
      %v8064 = vrot.slane %v8063, 4
      %v8065 = vrot.slane %v7194, 5
      %v8066 = vsel %vm1243, %v8064, %v8065
      %v8067 = vrot.slane %v8065, 4
      %v8068 = vrot.slane %v7195, 5
      %v8069 = vsel %vm1243, %v8067, %v8068
      %v8070 = vrot.slane %v7922, 5
      %v8071 = vrot.slane %v8070, 4
      %v8072 = vrot.slane %v7197, 5
      %v8073 = vsel %vm1243, %v8071, %v8072
      %v8074 = vrot.slane %v8072, 4
      %v8075 = vrot.slane %v7198, 5
      %v8076 = vsel %vm1243, %v8074, %v8075
      %v8077 = vrot.slane %v7923, 5
      %v8078 = vrot.slane %v8077, 4
      %v8079 = vrot.slane %v7200, 5
      %v8080 = vsel %vm1243, %v8078, %v8079
      %v8081 = vrot.slane %v8079, 4
      %v8082 = vrot.slane %v7201, 5
      %v8083 = vsel %vm1243, %v8081, %v8082
      %s8084 = scalar_lea.vmem %s3, 512
      %v8085 = vld [vmem:[%s8084] sm:$0xf]
      %v8086 = vld [vmem:[%s8084 + $0x4] sm:$0xf]
      %v8087 = vld [vmem:[%s8084 + $0x8] sm:$0xf]
      %v8088 = vld [vmem:[%s8084 + $0xc] sm:$0xf]
      %v8089 = vld [vmem:[%s8084 + $0x10] sm:$0xf]
      %v8090 = vld [vmem:[%s8084 + $0x14] sm:$0xf]
      %v8091 = vld [vmem:[%s8084 + $0x18] sm:$0xf]
      %v8092 = vld [vmem:[%s8084 + $0x1c] sm:$0xf]
      %v8093 = vld [vmem:[%s8084 + $0x20] sm:$0xf]
      %v8094 = vld [vmem:[%s8084 + $0x24] sm:$0xf]
      %v8095 = vld [vmem:[%s8084 + $0x28] sm:$0xf]
      %v8096 = vld [vmem:[%s8084 + $0x2c] sm:$0xf]
      %v8097 = vld [vmem:[%s8084 + $0x30] sm:$0xf]
      %v8098 = vld [vmem:[%s8084 + $0x34] sm:$0xf]
      %v8099 = vld [vmem:[%s8084 + $0x38] sm:$0xf]
      %v8100 = vld [vmem:[%s8084 + $0x3c] sm:$0xf]
      %v8101 = vunpack.c.l.b16 %v7975
      %v8102 = vunpack.c.l.b16 %v7978
      %v8103 = vunpack.c.l.b16 %v7982
      %v8104 = vunpack.c.l.b16 %v7985
      %v8105 = vunpack.c.l.b16 %v7989
      %v8106 = vunpack.c.l.b16 %v7992
      %v8107 = vunpack.c.l.b16 %v7996
      %v8108 = vunpack.c.l.b16 %v7999
      %v8109 = vunpack.c.l.b16 %v8003
      %v8110 = vunpack.c.l.b16 %v8006
      %v8111 = vunpack.c.l.b16 %v8010
      %v8112 = vunpack.c.l.b16 %v8013
      %v8113 = vunpack.c.l.b16 %v8017
      %v8114 = vunpack.c.l.b16 %v8020
      %v8115 = vunpack.c.l.b16 %v8024
      %v8116 = vunpack.c.l.b16 %v8027
      %v8117 = vunpack.c.l.b16 %v8031
      %v8118 = vunpack.c.l.b16 %v8034
      %v8119 = vunpack.c.l.b16 %v8038
      %v8120 = vunpack.c.l.b16 %v8041
      %v8121 = vunpack.c.l.b16 %v8045
      %v8122 = vunpack.c.l.b16 %v8048
      %v8123 = vunpack.c.l.b16 %v8052
      %v8124 = vunpack.c.l.b16 %v8055
      %v8125 = vunpack.c.l.b16 %v8059
      %v8126 = vunpack.c.l.b16 %v8062
      %v8127 = vunpack.c.l.b16 %v8066
      %v8128 = vunpack.c.l.b16 %v8069
      %v8129 = vunpack.c.l.b16 %v8073
      %v8130 = vunpack.c.l.b16 %v8076
      %v8131 = vunpack.c.l.b16 %v8080
      %v8132 = vunpack.c.l.b16 %v8083
      %v8133 = vpack.c.b16 %v8102, %v8101
      %v8134 = vpack.c.b16 %v8104, %v8103
      %v8135 = vpack.c.b16 %v8106, %v8105
      %v8136 = vpack.c.b16 %v8108, %v8107
      %v8137 = vpack.c.b16 %v8110, %v8109
      %v8138 = vpack.c.b16 %v8112, %v8111
      %v8139 = vpack.c.b16 %v8114, %v8113
      %v8140 = vpack.c.b16 %v8116, %v8115
      %v8141 = vpack.c.b16 %v8118, %v8117
      %v8142 = vpack.c.b16 %v8120, %v8119
      %v8143 = vpack.c.b16 %v8122, %v8121
      %v8144 = vpack.c.b16 %v8124, %v8123
      %v8145 = vpack.c.b16 %v8126, %v8125
      %v8146 = vpack.c.b16 %v8128, %v8127
      %v8147 = vpack.c.b16 %v8130, %v8129
      %v8148 = vpack.c.b16 %v8132, %v8131
      %v8181 = vunpack.c.l.b16 %v8085
      %v8182 = vunpack.c.l.b16 %v8086
      %v8183 = vunpack.c.l.b16 %v8087
      %v8184 = vunpack.c.l.b16 %v8088
      %v8185 = vunpack.c.l.b16 %v8089
      %v8186 = vunpack.c.l.b16 %v8090
      %v8187 = vunpack.c.l.b16 %v8091
      %v8188 = vunpack.c.l.b16 %v8092
      %v8189 = vunpack.c.l.b16 %v8093
      %v8190 = vunpack.c.l.b16 %v8094
      %v8191 = vunpack.c.l.b16 %v8095
      %v8192 = vunpack.c.l.b16 %v8096
      %v8193 = vunpack.c.l.b16 %v8097
      %v8194 = vunpack.c.l.b16 %v8098
      %v8195 = vunpack.c.l.b16 %v8099
      %v8196 = vunpack.c.l.b16 %v8100
      %v8197 = vpack.c.b16 %v8182, %v8181
      %v8198 = vpack.c.b16 %v8184, %v8183
      %v8199 = vpack.c.b16 %v8186, %v8185
      %v8200 = vpack.c.b16 %v8188, %v8187
      %v8201 = vpack.c.b16 %v8190, %v8189
      %v8202 = vpack.c.b16 %v8192, %v8191
      %v8203 = vpack.c.b16 %v8194, %v8193
      %v8204 = vpack.c.b16 %v8196, %v8195
      %8213 = vmatprep.subr.bf16.mxu0 0
      %8214 = vmatpush1.bf16.msra.mxu0 %v8197
      %8215 = vmatprep.subr.bf16.mxu0 0
      %8216 = vmatpush1.bf16.msra.mxu0 %v8198
      %8217 = vmatprep.subr.bf16.mxu0 0
      %8218 = vmatpush1.bf16.msra.mxu0 %v8199
      %8219 = vmatprep.subr.bf16.mxu0 0
      %8220 = vmatpush1.bf16.msra.mxu0 %v8200
      %8221 = vmatprep.subr.bf16.mxu0 0
      %8222 = vmatpush1.bf16.msra.mxu0 %v8201
      %8223 = vmatprep.subr.bf16.mxu0 0
      %8224 = vmatpush1.bf16.msra.mxu0 %v8202
      %8225 = vmatprep.subr.bf16.mxu0 0
      %8226 = vmatpush1.bf16.msra.mxu0 %v8203
      %8227 = vmatprep.subr.bf16.mxu0 0
      %8228 = vmatpush1.bf16.msra.mxu0 %v8204
      %8229 = vmatprep.subr.bf16.mxu0 0
      %8230 = vmatpush1.bf16.msra.mxu0 0
      %8231 = vmatprep.subr.bf16.mxu0 0
      %8232 = vmatpush1.bf16.msra.mxu0 0
      %8233 = vmatprep.subr.bf16.mxu0 0
      %8234 = vmatpush1.bf16.msra.mxu0 0
      %8235 = vmatprep.subr.bf16.mxu0 0
      %8236 = vmatpush1.bf16.msra.mxu0 0
      %8237 = vmatprep.subr.bf16.mxu0 0
      %8238 = vmatpush1.bf16.msra.mxu0 0
      %8239 = vmatprep.subr.bf16.mxu0 0
      %8240 = vmatpush1.bf16.msra.mxu0 0
      %8241 = vmatprep.subr.bf16.mxu0 0
      %8242 = vmatpush1.bf16.msra.mxu0 0
      %8243 = vmatprep.subr.bf16.mxu0 0
      %8244 = vmatpush1.bf16.msra.mxu0 0
      %8245 = vmatprep.mubr.bf16.mxu0 0
      %8246 = vmatmul.mubr.bf16.gmra.mrb[0].mxu0 %v8133
      %v8247 = vpop.f32.mrb[0].mxu0
      %v8248 = vadd.f32 0.0, %v8247
      %v8249 = vpop.f32.mrb[0].mxu0
      %v8250 = vpop.f32.mrb[0].mxu0
      %v8251 = vadd.f32 0.0, %v8250
      %v8252 = vpop.f32.mrb[0].mxu0
      %8253 = vmatprep.mubr.bf16.mxu0 0
      %8254 = vmatmul.mubr.bf16.gmra.mrb[0].mxu0 %v8134
      %v8255 = vpop.f32.mrb[0].mxu0
      %v8256 = vadd.f32 0.0, %v8255
      %v8257 = vpop.f32.mrb[0].mxu0
      %v8258 = vpop.f32.mrb[0].mxu0
      %v8259 = vadd.f32 0.0, %v8258
      %v8260 = vpop.f32.mrb[0].mxu0
      %8261 = vmatprep.mubr.bf16.mxu0 0
      %8262 = vmatmul.mubr.bf16.gmra.mrb[0].mxu0 %v8135
      %v8263 = vpop.f32.mrb[0].mxu0
      %v8264 = vadd.f32 0.0, %v8263
      %v8265 = vpop.f32.mrb[0].mxu0
      %v8266 = vpop.f32.mrb[0].mxu0
      %v8267 = vadd.f32 0.0, %v8266
      %v8268 = vpop.f32.mrb[0].mxu0
      %8269 = vmatprep.mubr.bf16.mxu0 0
      %8270 = vmatmul.mubr.bf16.gmra.mrb[0].mxu0 %v8136
      %v8271 = vpop.f32.mrb[0].mxu0
      %v8272 = vadd.f32 0.0, %v8271
      %v8273 = vpop.f32.mrb[0].mxu0
      %v8274 = vpop.f32.mrb[0].mxu0
      %v8275 = vadd.f32 0.0, %v8274
      %v8276 = vpop.f32.mrb[0].mxu0
      %8277 = vmatprep.mubr.bf16.mxu0 0
      %8278 = vmatmul.mubr.bf16.gmra.mrb[0].mxu0 %v8137
      %v8279 = vpop.f32.mrb[0].mxu0
      %v8280 = vadd.f32 0.0, %v8279
      %v8281 = vpop.f32.mrb[0].mxu0
      %v8282 = vpop.f32.mrb[0].mxu0
      %v8283 = vadd.f32 0.0, %v8282
      %v8284 = vpop.f32.mrb[0].mxu0
      %8285 = vmatprep.mubr.bf16.mxu0 0
      %8286 = vmatmul.mubr.bf16.gmra.mrb[0].mxu0 %v8138
      %v8287 = vpop.f32.mrb[0].mxu0
      %v8288 = vadd.f32 0.0, %v8287
      %v8289 = vpop.f32.mrb[0].mxu0
      %v8290 = vpop.f32.mrb[0].mxu0
      %v8291 = vadd.f32 0.0, %v8290
      %v8292 = vpop.f32.mrb[0].mxu0
      %8293 = vmatprep.mubr.bf16.mxu0 0
      %8294 = vmatmul.mubr.bf16.gmra.mrb[0].mxu0 %v8139
      %v8295 = vpop.f32.mrb[0].mxu0
      %v8296 = vadd.f32 0.0, %v8295
      %v8297 = vpop.f32.mrb[0].mxu0
      %v8298 = vpop.f32.mrb[0].mxu0
      %v8299 = vadd.f32 0.0, %v8298
      %v8300 = vpop.f32.mrb[0].mxu0
      %8301 = vmatprep.mubr.bf16.mxu0 0
      %8302 = vmatmul.mubr.bf16.gmra.mrb[0].mxu0 %v8140
      %v8303 = vpop.f32.mrb[0].mxu0
      %v8304 = vadd.f32 0.0, %v8303
      %v8305 = vpop.f32.mrb[0].mxu0
      %v8306 = vpop.f32.mrb[0].mxu0
      %v8307 = vadd.f32 0.0, %v8306
      %v8308 = vpop.f32.mrb[0].mxu0
      %8309 = vmatprep.mubr.bf16.mxu0 0
      %8310 = vmatmul.mubr.bf16.gmra.mrb[0].mxu0 %v8141
      %v8311 = vpop.f32.mrb[0].mxu0
      %v8312 = vadd.f32 0.0, %v8311
      %v8313 = vpop.f32.mrb[0].mxu0
      %v8314 = vpop.f32.mrb[0].mxu0
      %v8315 = vadd.f32 0.0, %v8314
      %v8316 = vpop.f32.mrb[0].mxu0
      %8317 = vmatprep.mubr.bf16.mxu0 0
      %8318 = vmatmul.mubr.bf16.gmra.mrb[0].mxu0 %v8142
      %v8319 = vpop.f32.mrb[0].mxu0
      %v8320 = vadd.f32 0.0, %v8319
      %v8321 = vpop.f32.mrb[0].mxu0
      %v8322 = vpop.f32.mrb[0].mxu0
      %v8323 = vadd.f32 0.0, %v8322
      %v8324 = vpop.f32.mrb[0].mxu0
      %8325 = vmatprep.mubr.bf16.mxu0 0
      %8326 = vmatmul.mubr.bf16.gmra.mrb[0].mxu0 %v8143
      %v8327 = vpop.f32.mrb[0].mxu0
      %v8328 = vadd.f32 0.0, %v8327
      %v8329 = vpop.f32.mrb[0].mxu0
      %v8330 = vpop.f32.mrb[0].mxu0
      %v8331 = vadd.f32 0.0, %v8330
      %v8332 = vpop.f32.mrb[0].mxu0
      %8333 = vmatprep.mubr.bf16.mxu0 0
      %8334 = vmatmul.mubr.bf16.gmra.mrb[0].mxu0 %v8144
      %v8335 = vpop.f32.mrb[0].mxu0
      %v8336 = vadd.f32 0.0, %v8335
      %v8337 = vpop.f32.mrb[0].mxu0
      %v8338 = vpop.f32.mrb[0].mxu0
      %v8339 = vadd.f32 0.0, %v8338
      %v8340 = vpop.f32.mrb[0].mxu0
      %8341 = vmatprep.mubr.bf16.mxu0 0
      %8342 = vmatmul.mubr.bf16.gmra.mrb[0].mxu0 %v8145
      %v8343 = vpop.f32.mrb[0].mxu0
      %v8344 = vadd.f32 0.0, %v8343
      %v8345 = vpop.f32.mrb[0].mxu0
      %v8346 = vpop.f32.mrb[0].mxu0
      %v8347 = vadd.f32 0.0, %v8346
      %v8348 = vpop.f32.mrb[0].mxu0
      %8349 = vmatprep.mubr.bf16.mxu0 0
      %8350 = vmatmul.mubr.bf16.gmra.mrb[0].mxu0 %v8146
      %v8351 = vpop.f32.mrb[0].mxu0
      %v8352 = vadd.f32 0.0, %v8351
      %v8353 = vpop.f32.mrb[0].mxu0
      %v8354 = vpop.f32.mrb[0].mxu0
      %v8355 = vadd.f32 0.0, %v8354
      %v8356 = vpop.f32.mrb[0].mxu0
      %8357 = vmatprep.mubr.bf16.mxu0 0
      %8358 = vmatmul.mubr.bf16.gmra.mrb[0].mxu0 %v8147
      %v8359 = vpop.f32.mrb[0].mxu0
      %v8360 = vadd.f32 0.0, %v8359
      %v8361 = vpop.f32.mrb[0].mxu0
      %v8362 = vpop.f32.mrb[0].mxu0
      %v8363 = vadd.f32 0.0, %v8362
      %v8364 = vpop.f32.mrb[0].mxu0
      %8365 = vmatprep.mubr.bf16.mxu0 0
      %8366 = vmatmul.mubr.bf16.gmra.mrb[0].mxu0 %v8148
      %v8367 = vpop.f32.mrb[0].mxu0
      %v8368 = vadd.f32 0.0, %v8367
      %v8369 = vpop.f32.mrb[0].mxu0
      %v8370 = vpop.f32.mrb[0].mxu0
      %v8371 = vadd.f32 0.0, %v8370
      %v8372 = vpop.f32.mrb[0].mxu0
      %8373 = vdwg.mxu0
      %v8374 = vadd.f32 %v7876, %v8248
      %v8375 = vadd.f32 %v7877, %v8251
      %v8376 = vadd.f32 %v7878, %v8256
      %v8377 = vadd.f32 %v7879, %v8259
      %v8378 = vadd.f32 %v7880, %v8264
      %v8379 = vadd.f32 %v7881, %v8267
      %v8380 = vadd.f32 %v7882, %v8272
      %v8381 = vadd.f32 %v7883, %v8275
      %v8382 = vadd.f32 %v7884, %v8280
      %v8383 = vadd.f32 %v7885, %v8283
      %v8384 = vadd.f32 %v7886, %v8288
      %v8385 = vadd.f32 %v7887, %v8291
      %v8386 = vadd.f32 %v7888, %v8296
      %v8387 = vadd.f32 %v7889, %v8299
      %v8388 = vadd.f32 %v7890, %v8304
      %v8389 = vadd.f32 %v7891, %v8307
      %v8390 = vadd.f32 %v7892, %v8312
      %v8391 = vadd.f32 %v7893, %v8315
      %v8392 = vadd.f32 %v7894, %v8320
      %v8393 = vadd.f32 %v7895, %v8323
      %v8394 = vadd.f32 %v7896, %v8328
      %v8395 = vadd.f32 %v7897, %v8331
      %v8396 = vadd.f32 %v7898, %v8336
      %v8397 = vadd.f32 %v7899, %v8339
      %v8398 = vadd.f32 %v7900, %v8344
      %v8399 = vadd.f32 %v7901, %v8347
      %v8400 = vadd.f32 %v7902, %v8352
      %v8401 = vadd.f32 %v7903, %v8355
      %v8402 = vadd.f32 %v7904, %v8360
      %v8403 = vadd.f32 %v7905, %v8363
      %v8404 = vadd.f32 %v7906, %v8368
      %v8405 = vadd.f32 %v7907, %v8371
      %v8406 = vld [vmem:[%s4] sm:$0x1]
      %v8408 = vlaneseq
      %v8409 = vshrl.u32 %v8408, 7
      %v8410 = vsub.s32 0, %v8409
      %v8411 = vrot.slane %v8406, %v8410
      %v8413 = vadd.f32 %v8374, %v8411
      %v8414 = vadd.f32 %v8375, %v8411
      %v8415 = vadd.f32 %v8376, %v8411
      %v8416 = vadd.f32 %v8377, %v8411
      %v8417 = vadd.f32 %v8378, %v8411
      %v8418 = vadd.f32 %v8379, %v8411
      %v8419 = vadd.f32 %v8380, %v8411
      %v8420 = vadd.f32 %v8381, %v8411
      %v8421 = vadd.f32 %v8382, %v8411
      %v8422 = vadd.f32 %v8383, %v8411
      %v8423 = vadd.f32 %v8384, %v8411
      %v8424 = vadd.f32 %v8385, %v8411
      %v8425 = vadd.f32 %v8386, %v8411
      %v8426 = vadd.f32 %v8387, %v8411
      %v8427 = vadd.f32 %v8388, %v8411
      %v8428 = vadd.f32 %v8389, %v8411
      %v8429 = vadd.f32 %v8390, %v8411
      %v8430 = vadd.f32 %v8391, %v8411
      %v8431 = vadd.f32 %v8392, %v8411
      %v8432 = vadd.f32 %v8393, %v8411
      %v8433 = vadd.f32 %v8394, %v8411
      %v8434 = vadd.f32 %v8395, %v8411
      %v8435 = vadd.f32 %v8396, %v8411
      %v8436 = vadd.f32 %v8397, %v8411
      %v8437 = vadd.f32 %v8398, %v8411
      %v8438 = vadd.f32 %v8399, %v8411
      %v8439 = vadd.f32 %v8400, %v8411
      %v8440 = vadd.f32 %v8401, %v8411
      %v8441 = vadd.f32 %v8402, %v8411
      %v8442 = vadd.f32 %v8403, %v8411
      %v8443 = vadd.f32 %v8404, %v8411
      %v8444 = vadd.f32 %v8405, %v8411
      %v8445 = vmax.f32 %v8413, 0.0
      %v8446 = vmax.f32 %v8414, 0.0
      %v8447 = vmax.f32 %v8415, 0.0
      %v8448 = vmax.f32 %v8416, 0.0
      %v8449 = vmax.f32 %v8417, 0.0
      %v8450 = vmax.f32 %v8418, 0.0
      %v8451 = vmax.f32 %v8419, 0.0
      %v8452 = vmax.f32 %v8420, 0.0
      %v8453 = vmax.f32 %v8421, 0.0
      %v8454 = vmax.f32 %v8422, 0.0
      %v8455 = vmax.f32 %v8423, 0.0
      %v8456 = vmax.f32 %v8424, 0.0
      %v8457 = vmax.f32 %v8425, 0.0
      %v8458 = vmax.f32 %v8426, 0.0
      %v8459 = vmax.f32 %v8427, 0.0
      %v8460 = vmax.f32 %v8428, 0.0
      %v8461 = vmax.f32 %v8429, 0.0
      %v8462 = vmax.f32 %v8430, 0.0
      %v8463 = vmax.f32 %v8431, 0.0
      %v8464 = vmax.f32 %v8432, 0.0
      %v8465 = vmax.f32 %v8433, 0.0
      %v8466 = vmax.f32 %v8434, 0.0
      %v8467 = vmax.f32 %v8435, 0.0
      %v8468 = vmax.f32 %v8436, 0.0
      %v8469 = vmax.f32 %v8437, 0.0
      %v8470 = vmax.f32 %v8438, 0.0
      %v8471 = vmax.f32 %v8439, 0.0
      %v8472 = vmax.f32 %v8440, 0.0
      %v8473 = vmax.f32 %v8441, 0.0
      %v8474 = vmax.f32 %v8442, 0.0
      %v8475 = vmax.f32 %v8443, 0.0
      %v8476 = vmax.f32 %v8444, 0.0
      %8477 = vst [vmem:[%s224] sm:$0xff] %v8445
      %8478 = vst [vmem:[%s224 + $0x8] sm:$0xff] %v8446
      %8479 = vst [vmem:[%s224 + $0x10] sm:$0xff] %v8447
      %8480 = vst [vmem:[%s224 + $0x18] sm:$0xff] %v8448
      %8481 = vst [vmem:[%s224 + $0x20] sm:$0xff] %v8449
      %8482 = vst [vmem:[%s224 + $0x28] sm:$0xff] %v8450
      %8483 = vst [vmem:[%s224 + $0x30] sm:$0xff] %v8451
      %8484 = vst [vmem:[%s224 + $0x38] sm:$0xff] %v8452
      %8485 = vst [vmem:[%s224 + $0x40] sm:$0xff] %v8453
      %8486 = vst [vmem:[%s224 + $0x48] sm:$0xff] %v8454
      %8487 = vst [vmem:[%s224 + $0x50] sm:$0xff] %v8455
      %8488 = vst [vmem:[%s224 + $0x58] sm:$0xff] %v8456
      %8489 = vst [vmem:[%s224 + $0x60] sm:$0xff] %v8457
      %8490 = vst [vmem:[%s224 + $0x68] sm:$0xff] %v8458
      %8491 = vst [vmem:[%s224 + $0x70] sm:$0xff] %v8459
      %8492 = vst [vmem:[%s224 + $0x78] sm:$0xff] %v8460
      %8493 = vst [vmem:[%s224 + $0x80] sm:$0xff] %v8461
      %8494 = vst [vmem:[%s224 + $0x88] sm:$0xff] %v8462
      %8495 = vst [vmem:[%s224 + $0x90] sm:$0xff] %v8463
      %8496 = vst [vmem:[%s224 + $0x98] sm:$0xff] %v8464
      %8497 = vst [vmem:[%s224 + $0xa0] sm:$0xff] %v8465
      %8498 = vst [vmem:[%s224 + $0xa8] sm:$0xff] %v8466
      %8499 = vst [vmem:[%s224 + $0xb0] sm:$0xff] %v8467
      %8500 = vst [vmem:[%s224 + $0xb8] sm:$0xff] %v8468
      %8501 = vst [vmem:[%s224 + $0xc0] sm:$0xff] %v8469
      %8502 = vst [vmem:[%s224 + $0xc8] sm:$0xff] %v8470
      %8503 = vst [vmem:[%s224 + $0xd0] sm:$0xff] %v8471
      %8504 = vst [vmem:[%s224 + $0xd8] sm:$0xff] %v8472
      %8505 = vst [vmem:[%s224 + $0xe0] sm:$0xff] %v8473
      %8506 = vst [vmem:[%s224 + $0xe8] sm:$0xff] %v8474
      %8507 = vst [vmem:[%s224 + $0xf0] sm:$0xff] %v8475
      %8508 = vst [vmem:[%s224 + $0xf8] sm:$0xff] %v8476
      %s8509 = smul.u32 32, %s16
      %p8510 = scmp.lt.s32.totalorder %s8509, 63
      %s8511 = scalar_select %p8510, %s8509, 63
      %s8512 = smul.addr %s8511, 8
      %s8513 = scalar_lea.vmem %s5, %s8512
      // Predicated region
      $region41: #{vanilla_block_pallas.1} parent=39 // pred_check
        %p8514 = pneg %p144
      $region42: #{vanilla_block_pallas.1} parent=39 // pred_check_branch
        %8516 = sbr.rel (%p8514) target = $region44
      $region43: #{vanilla_block_pallas.1} parent=39 // pred_region
        %s8517 = smul.u32 32, %s16
      $region44: #{vanilla_block_pallas.1} parent=39 // pred_fallthru
        _
    $region40: #{vanilla_block_pallas.1} parent=5 // pred_fallthru
      _
    %p8518 = scmp.le.s32.totalorder 2, %s11
    // Predicated region
    $region45: #{vanilla_block_pallas.1} parent=5 // pred_check
      %p8519 = pneg %p8518
    $region46: #{vanilla_block_pallas.1} parent=5 // pred_check_branch
      %8521 = sbr.rel (%p8519) target = $region48
    $region47: #{vanilla_block_pallas.1} parent=5 // pred_region
      %s8522 = ssub.s32 %s11, 2
      // Predicated region
      $region49: #{vanilla_block_pallas.1} parent=47 // pred_check
        %p8523 = pneg %p150
      $region50: #{vanilla_block_pallas.1} parent=47 // pred_check_branch
        %8525 = sbr.rel (%p8523) target = $region52
      $region51: #{vanilla_block_pallas.1} parent=47 // pred_region
        %s8526 = smul.u32 32, %s17
        %p8527 = scmp.lt.s32.totalorder %s8526, 63
        %s8528 = scalar_select %p8527, %s8526, 63
        %s8529 = smul.addr %s8528, 8
        %s8530 = scalar_lea.vmem %s5, %s8529
      $region52: #{vanilla_block_pallas.1} parent=47 // pred_fallthru
        _
    $region48: #{vanilla_block_pallas.1} parent=5 // pred_fallthru
      _
  $region6: #{vanilla_block_pallas.1} parent=0 // loop_footer
    %s15 = sadd.s32 1, %s11
  $region7: #{vanilla_block_pallas.1} parent=0 // loop_footer_branch
    %10 = sbr.rel target = $region3
  $region8: #{vanilla_block_pallas.1} parent=0 // loop_exit
    _

</llo_original>
